<compile_context>
chip_gen: v7x
topology: tpu7x:2x2x1
jax: 0.10.0
libtpu: 0.0.40
codegen_flags: <defaults>
</compile_context>

<pallas_src>
import functools

import jax
import jax.numpy as jnp
from jax import lax
from jax.experimental import pallas as pl
from jax.experimental.pallas import tpu as pltpu


# ----------------------------------------------------------------------------
# Fused kernel: layer1..layer4 + GAP + classifier for one batch block.
# ----------------------------------------------------------------------------
def _lcnn_fused_kernel(x_ref,
                       w1_ref, b1_ref,
                       w2_ref, b2_ref,
                       w3_ref, b3_ref,
                       w4_ref, b4_ref,
                       fcw_ref, fcb_ref,
                       o_ref,
                       pad1, pat1, pad2, pat2, pad3, pat3, pad4, pat4):
    f32 = jnp.float32
    bf16 = jnp.bfloat16
    NB, H1, W1 = x_ref.shape
    H2, W2 = H1 // 2, W1 // 2
    H3, W3 = H2 // 2, W2 // 2
    H4, W4 = H3 // 2, W3 // 2

    def zero_border4(dst):
        """Zero only the 1-pixel border of a padded NHWC scratch (interior is
        fully overwritten right after), instead of re-zeroing the whole buffer."""
        Hp, Wp, C = dst.shape[1], dst.shape[2], dst.shape[3]
        dst[:, 0:1, :, :] = jnp.zeros((NB, 1, Wp, C), f32)
        dst[:, Hp - 1:Hp, :, :] = jnp.zeros((NB, 1, Wp, C), f32)
        dst[:, :, 0:1, :] = jnp.zeros((NB, Hp, 1, C), f32)
        dst[:, :, Wp - 1:Wp, :] = jnp.zeros((NB, Hp, 1, C), f32)

    def pool_into(y_flat, dst, H, W):
        """2x2 stride-2 maxpool of (NB*H*W, C); write into padded scratch interior."""
        C = y_flat.shape[-1]
        zero_border4(dst)
        y = y_flat.reshape(NB * H // 2, 2, W, C)
        y = jnp.max(y, axis=1)                       # row pool: pure VPU max
        y = y.reshape(NB * H // 2, W // 2, 2, C)
        y = jnp.max(y, axis=2)                       # col pool: pairwise sublane reduce
        dst[:, 1:H // 2 + 1, 1:W // 2 + 1, :] = y.reshape(NB, H // 2, W // 2, C)

    def im2col_into(src, dst_pat, H, W):
        """Build the (NB*H*W, 9*Cin) patch matrix (bf16) from a padded activation."""
        Cin = src.shape[-1]
        p = src[...]
        for dx in range(3):                          # hoist the misaligned dx shift
            slab = p[:, :, dx:dx + W, :]             # (NB, H+2, W, Cin)
            for dy in range(3):
                t = dy * 3 + dx
                dst_pat[:, t * Cin:(t + 1) * Cin] = (
                    slab[:, dy:dy + H, :, :]
                    .reshape(NB * H * W, Cin)
                    .astype(dst_pat.dtype))

    # ---- layer 1: 3x3 conv (Cin=1, pad=1) as a K=16 im2col matmul + MFM -----
    M1 = NB * H1 * W1
    pad1[:, 0:1, :] = jnp.zeros((NB, 1, W1 + 2), f32)
    pad1[:, H1 + 1:H1 + 2, :] = jnp.zeros((NB, 1, W1 + 2), f32)
    pad1[:, :, 0:1] = jnp.zeros((NB, H1 + 2, 1), f32)
    pad1[:, :, W1 + 1:W1 + 2] = jnp.zeros((NB, H1 + 2, 1), f32)
    pad1[:, 1:H1 + 1, 1:W1 + 1] = x_ref[...]

    pat1[:, 9:16] = jnp.zeros((M1, 7), f32)          # K padding columns
    p1 = pad1[...].reshape(NB, H1 + 2, W1 + 2, 1)    # single channels-last relayout
    for dy in range(3):
        for dx in range(3):
            t = dy * 3 + dx
            pat1[:, t:t + 1] = p1[:, dy:dy + H1, dx:dx + W1, :].reshape(M1, 1)
    patches1 = pat1[...].astype(bf16)
    y1a = jnp.dot(patches1, w1_ref[0], preferred_element_type=f32) + b1_ref[0:1, :]
    y1b = jnp.dot(patches1, w1_ref[1], preferred_element_type=f32) + b1_ref[1:2, :]
    y1 = jnp.maximum(y1a, y1b)                       # (M1, 64)
    pool_into(y1, pad2, H1, W1)

    # ---- layer 2: halved MFM (cout=64 split is not lane aligned) -------------
    im2col_into(pad2, pat2, H2, W2)
    p2 = pat2[...]
    y2a = jnp.dot(p2, w2_ref[0], preferred_element_type=f32) + b2_ref[0:1, :]
    y2b = jnp.dot(p2, w2_ref[1], preferred_element_type=f32) + b2_ref[1:2, :]
    y2 = jnp.maximum(y2a, y2b)                       # (M2, 64)
    pool_into(y2, pad3, H2, W2)

    # ---- layer 3: fused MFM, single N=256 matmul, split at lane tile 128 -----
    im2col_into(pad3, pat3, H3, W3)
    cout3 = w3_ref.shape[-1] // 2
    y3f = jnp.dot(pat3[...], w3_ref[...], preferred_element_type=f32) + b3_ref[...]
    y3 = jnp.maximum(y3f[:, :cout3], y3f[:, cout3:])  # (M3, 128)
    pool_into(y3, pad4, H3, W3)

    # ---- layer 4 (fused MFM) + global average pool + classifier --------------
    im2col_into(pad4, pat4, H4, W4)
    cout4 = w4_ref.shape[-1] // 2
    y4f = jnp.dot(pat4[...], w4_ref[...], preferred_element_type=f32) + b4_ref[...]
    y4 = jnp.maximum(y4f[:, :cout4], y4f[:, cout4:])  # (NB*H4*W4, 128)
    g = jnp.sum(y4.reshape(NB, H4 * W4, cout4), axis=1) * (1.0 / (H4 * W4))
    logits = jnp.dot(g, fcw_ref[...], preferred_element_type=f32) + fcb_ref[...]
    o_ref[...] = logits.reshape(o_ref.shape).astype(o_ref.dtype)


# ----------------------------------------------------------------------------
# Host-side parameter repacking (free reshapes, done once per call under jit)
# ----------------------------------------------------------------------------
def _prep_params(params):
    f32, bf16 = jnp.float32, jnp.bfloat16
    l = params["layers"]

    # layer 1: (3,3,1,128) -> per-half (16, 64) im2col weights (K padded 9->16).
    w1 = l[0]["w"].reshape(9, -1)
    c1 = w1.shape[-1] // 2
    w1h = jnp.stack([w1[:, :c1], w1[:, c1:]], axis=0)          # (2, 9, 64)
    w1h = jnp.pad(w1h, ((0, 0), (0, 7), (0, 0)))               # (2, 16, 64)
    b1 = jnp.stack([l[0]["b"][:c1], l[0]["b"][c1:]], axis=0)   # (2, 64)

    # layer 2: halves stacked (2, 576, 64).
    w2 = l[1]["w"].reshape(-1, l[1]["w"].shape[-1])            # (576, 128)
    c2 = w2.shape[-1] // 2
    w2h = jnp.stack([w2[:, :c2], w2[:, c2:]], axis=0)          # (2, 576, 64)
    b2 = jnp.stack([l[1]["b"][:c2], l[1]["b"][c2:]], axis=0)   # (2, 64)

    # layers 3-4: full (9*Cin, 2*Cout) weight -> one fused N=256 matmul each.
    w3 = l[2]["w"].reshape(-1, l[2]["w"].shape[-1])            # (576, 256)
    b3 = l[2]["b"].reshape(1, -1)                              # (1, 256)
    w4 = l[3]["w"].reshape(-1, l[3]["w"].shape[-1])            # (1152, 256)
    b4 = l[3]["b"].reshape(1, -1)                              # (1, 256)

    return (w1h.astype(bf16), b1.astype(f32),
            w2h.astype(bf16), b2.astype(f32),
            w3.astype(bf16), b3.astype(f32),
            w4.astype(bf16), b4.astype(f32),
            params["fcw"].astype(f32), params["fcb"].reshape(1, -1).astype(f32))


def _const_spec(a):
    nd = a.ndim
    return pl.BlockSpec(a.shape, lambda n, _nd=nd: (0,) * _nd)


@functools.partial(jax.jit, static_argnames=("block_n",))
def lfcc_lcnn_forward(x_nchw, params, block_n=1):
    N, cin, H, W = x_nchw.shape
    assert cin == 1, "LFCC_LCNN expects a single-channel input"
    assert H % 8 == 0 and W % 8 == 0, "three 2x2 maxpools need H, W divisible by 8"
    assert N % block_n == 0, "batch must be divisible by block_n"
    NB = block_n

    x = x_nchw[:, 0, :, :].astype(jnp.float32)                 # (N, H, W) lane-dense
    (w1, b1, w2, b2, w3, b3, w4, b4, fcw, fcb) = _prep_params(params)
    num_classes = fcw.shape[1]
    c1 = w1.shape[-1]            # 64  layer-1 MFM channels
    c2 = w2.shape[-1]            # 64  layer-2 MFM channels
    c3 = w3.shape[-1] // 2       # 128 layer-3 MFM channels

    out = pl.pallas_call(
        _lcnn_fused_kernel,
        out_shape=jax.ShapeDtypeStruct((N, 1, num_classes), jnp.float32),
        grid=(N // NB,),
        in_specs=[
            pl.BlockSpec((NB, H, W), lambda n: (n, 0, 0)),
            _const_spec(w1), _const_spec(b1),
            _const_spec(w2), _const_spec(b2),
            _const_spec(w3), _const_spec(b3),
            _const_spec(w4), _const_spec(b4),
            _const_spec(fcw), _const_spec(fcb),
        ],
        out_specs=pl.BlockSpec((NB, 1, num_classes), lambda n: (n, 0, 0)),
        scratch_shapes=[
            # padded conv inputs for layers 1..4
            pltpu.VMEM((NB, H + 2, W + 2), jnp.float32),                   # pad1
            pltpu.VMEM((NB * H * W, 16), jnp.float32),                     # pat1
            pltpu.VMEM((NB, H // 2 + 2, W // 2 + 2, c1), jnp.float32),     # pad2
            pltpu.VMEM((NB * (H // 2) * (W // 2), 9 * c1), jnp.bfloat16),  # pat2
            pltpu.VMEM((NB, H // 4 + 2, W // 4 + 2, c2), jnp.float32),     # pad3
            pltpu.VMEM((NB * (H // 4) * (W // 4), 9 * c2), jnp.bfloat16),  # pat3
            pltpu.VMEM((NB, H // 8 + 2, W // 8 + 2, c3), jnp.float32),     # pad4
            pltpu.VMEM((NB * (H // 8) * (W // 8), 9 * c3), jnp.bfloat16),  # pat4
        ],
        compiler_params=pltpu.CompilerParams(
            dimension_semantics=("parallel",),
            vmem_limit_bytes=64 * 1024 * 1024),
    )(x, w1, b1, w2, b2, w3, b3, w4, b4, fcw, fcb)
    return out[:, 0, :]


# ----------------------------------------------------------------------------
# Parameters and a pure-JAX f32 reference mirroring the PyTorch forward
# ----------------------------------------------------------------------------
def init_params(key, num_classes=2):
    layer_cfg = [(1, 64), (64, 64), (64, 128), (128, 128)]
    params = {"layers": []}
    keys = jax.random.split(key, 2 * len(layer_cfg) + 2)
    ki = 0
    for cin, cout in layer_cfg:
        w = jax.random.normal(keys[ki], (3, 3, cin, 2 * cout), jnp.float32) * 0.1
        b = jax.random.normal(keys[ki + 1], (2 * cout,), jnp.float32) * 0.01
        ki += 2
        params["layers"].append({"w": w, "b": b})
    params["fcw"] = jax.random.normal(keys[ki], (128, num_classes), jnp.float32) * 0.1
    params["fcb"] = jax.random.normal(keys[ki + 1], (num_classes,), jnp.float32) * 0.01
    return params


def _ref_forward(x_nchw, params):
    x = jnp.transpose(x_nchw, (0, 2, 3, 1)).astype(jnp.float32)

    def conv_mfm(x, w, b):
        cout = w.shape[-1] // 2
        y = lax.conv_general_dilated(
            x, w, window_strides=(1, 1), padding="SAME",
            dimension_numbers=("NHWC", "HWIO", "NHWC")) + b.reshape(1, 1, 1, -1)
        return jnp.maximum(y[..., :cout], y[..., cout:])

    def maxpool2(x):
        N, H, W, C = x.shape
        return x.reshape(N, H // 2, 2, W // 2, 2, C).max(axis=(2, 4))

    l = params["layers"]
    x = maxpool2(conv_mfm(x, l[0]["w"], l[0]["b"]))
    x = maxpool2(conv_mfm(x, l[1]["w"], l[1]["b"]))
    x = maxpool2(conv_mfm(x, l[2]["w"], l[2]["b"]))
    x = conv_mfm(x, l[3]["w"], l[3]["b"])
    g = jnp.mean(x, axis=(1, 2))                     # AdaptiveAvgPool2d((1,1))
    return g @ params["fcw"] + params["fcb"].reshape(1, -1)


# ----------------------------------------------------------------------------
if __name__ == "__main__":
    key = jax.random.PRNGKey(0)
    k_x, k_p = jax.random.split(key)

    # batch=2, 1 input channel, 16x16 "LFCC map" (NCHW, like the PyTorch module)
    x = jax.random.normal(k_x, (2, 1, 16, 16), jnp.float32)
    params = init_params(k_p, num_classes=2)

    logits = jax.block_until_ready(lfcc_lcnn_forward(x, params))
    ref = jax.block_until_ready(_ref_forward(x, params))

    assert logits.shape == (2, 2), logits.shape
    # bf16 matmul inputs with f32 accumulation vs. f32 reference: use a
    # scale-normalized error bound.
    err = float(jnp.max(jnp.abs(logits - ref)) / (jnp.max(jnp.abs(ref)) + 1e-6))
    assert err < 5e-2, (err, logits, ref)

    print("KERNEL_OK")
</pallas_src>

<mosaic_0001>
module attributes {stable_mosaic.version = 11 : i64} {
  func.func @_lcnn_fused_kernel(%arg0: i32, %arg1: memref<1x16x16xf32, #tpu.memory_space<vmem>>, %arg2: memref<2x16x64xbf16, #tpu.memory_space<vmem>>, %arg3: memref<2x64xf32, #tpu.memory_space<vmem>>, %arg4: memref<2x576x64xbf16, #tpu.memory_space<vmem>>, %arg5: memref<2x64xf32, #tpu.memory_space<vmem>>, %arg6: memref<576x256xbf16, #tpu.memory_space<vmem>>, %arg7: memref<1x256xf32, #tpu.memory_space<vmem>>, %arg8: memref<1152x256xbf16, #tpu.memory_space<vmem>>, %arg9: memref<1x256xf32, #tpu.memory_space<vmem>>, %arg10: memref<128x2xf32, #tpu.memory_space<vmem>>, %arg11: memref<1x2xf32, #tpu.memory_space<vmem>>, %arg12: memref<1x1x2xf32, #tpu.memory_space<vmem>>, %arg13: memref<1x18x18xf32, #tpu.memory_space<vmem>>, %arg14: memref<256x16xf32, #tpu.memory_space<vmem>>, %arg15: memref<1x10x10x64xf32, #tpu.memory_space<vmem>>, %arg16: memref<64x576xbf16, #tpu.memory_space<vmem>>, %arg17: memref<1x6x6x64xf32, #tpu.memory_space<vmem>>, %arg18: memref<16x576xbf16, #tpu.memory_space<vmem>>, %arg19: memref<1x4x4x128xf32, #tpu.memory_space<vmem>>, %arg20: memref<4x1152xbf16, #tpu.memory_space<vmem>>) attributes {dimension_semantics = [#tpu.dimension_semantics<parallel>], iteration_bounds = array<i64: 2>, scalar_prefetch = 0 : i64, scratch_operands = 8 : i64, tpu.core_type = #tpu.core_type<tc>, window_params = [{transform_indices = @transform_0, window_bounds = array<i64: 1, 16, 16>}, {pipeline_mode = #tpu.pipeline_mode<synchronous>, transform_indices = @transform_1, window_bounds = array<i64: 2, 16, 64>}, {pipeline_mode = #tpu.pipeline_mode<synchronous>, transform_indices = @transform_2, window_bounds = array<i64: 2, 64>}, {pipeline_mode = #tpu.pipeline_mode<synchronous>, transform_indices = @transform_3, window_bounds = array<i64: 2, 576, 64>}, {pipeline_mode = #tpu.pipeline_mode<synchronous>, transform_indices = @transform_4, window_bounds = array<i64: 2, 64>}, {pipeline_mode = #tpu.pipeline_mode<synchronous>, transform_indices = @transform_5, window_bounds = array<i64: 576, 256>}, {pipeline_mode = #tpu.pipeline_mode<synchronous>, transform_indices = @transform_6, window_bounds = array<i64: 1, 256>}, {pipeline_mode = #tpu.pipeline_mode<synchronous>, transform_indices = @transform_7, window_bounds = array<i64: 1152, 256>}, {pipeline_mode = #tpu.pipeline_mode<synchronous>, transform_indices = @transform_8, window_bounds = array<i64: 1, 256>}, {pipeline_mode = #tpu.pipeline_mode<synchronous>, transform_indices = @transform_9, window_bounds = array<i64: 128, 2>}, {pipeline_mode = #tpu.pipeline_mode<synchronous>, transform_indices = @transform_10, window_bounds = array<i64: 1, 2>}, {transform_indices = @transform_11, window_bounds = array<i64: 1, 1, 2>}]} {
    %cst = arith.constant 0.000000e+00 : f32
    %0 = vector.broadcast %cst : f32 to vector<1x1x18xf32>
    %c0 = arith.constant 0 : index
    %c0_0 = arith.constant 0 : index
    %c0_1 = arith.constant 0 : index
    %1 = vector.load %arg13[%c0, %c0_0, %c0_1] : memref<1x18x18xf32, #tpu.memory_space<vmem>>, vector<1x1x18xf32>
    tpu.vector_store %arg13[%c0, %c0_0, %c0_1], %0 {strides = array<i32>} : memref<1x18x18xf32, #tpu.memory_space<vmem>>, vector<1x1x18xf32>,
    %cst_2 = arith.constant 0.000000e+00 : f32
    %2 = vector.broadcast %cst_2 : f32 to vector<1x1x18xf32>
    %c0_3 = arith.constant 0 : index
    %c17 = arith.constant 17 : index
    %c0_4 = arith.constant 0 : index
    %3 = vector.load %arg13[%c0_3, %c17, %c0_4] : memref<1x18x18xf32, #tpu.memory_space<vmem>>, vector<1x1x18xf32>
    tpu.vector_store %arg13[%c0_3, %c17, %c0_4], %2 {strides = array<i32>} : memref<1x18x18xf32, #tpu.memory_space<vmem>>, vector<1x1x18xf32>,
    %cst_5 = arith.constant 0.000000e+00 : f32
    %4 = vector.broadcast %cst_5 : f32 to vector<1x18x1xf32>
    %c0_6 = arith.constant 0 : index
    %c0_7 = arith.constant 0 : index
    %c0_8 = arith.constant 0 : index
    %5 = vector.load %arg13[%c0_6, %c0_7, %c0_8] : memref<1x18x18xf32, #tpu.memory_space<vmem>>, vector<1x18x1xf32>
    tpu.vector_store %arg13[%c0_6, %c0_7, %c0_8], %4 {strides = array<i32>} : memref<1x18x18xf32, #tpu.memory_space<vmem>>, vector<1x18x1xf32>,
    %cst_9 = arith.constant 0.000000e+00 : f32
    %6 = vector.broadcast %cst_9 : f32 to vector<1x18x1xf32>
    %c0_10 = arith.constant 0 : index
    %c0_11 = arith.constant 0 : index
    %c17_12 = arith.constant 17 : index
    %7 = vector.load %arg13[%c0_10, %c0_11, %c17_12] : memref<1x18x18xf32, #tpu.memory_space<vmem>>, vector<1x18x1xf32>
    tpu.vector_store %arg13[%c0_10, %c0_11, %c17_12], %6 {strides = array<i32>} : memref<1x18x18xf32, #tpu.memory_space<vmem>>, vector<1x18x1xf32>,
    %c0_13 = arith.constant 0 : index
    %c0_14 = arith.constant 0 : index
    %c0_15 = arith.constant 0 : index
    %8 = vector.load %arg1[%c0_13, %c0_14, %c0_15] : memref<1x16x16xf32, #tpu.memory_space<vmem>>, vector<1x16x16xf32>
    %c0_16 = arith.constant 0 : index
    %c1 = arith.constant 1 : index
    %c1_17 = arith.constant 1 : index
    %9 = vector.load %arg13[%c0_16, %c1, %c1_17] : memref<1x18x18xf32, #tpu.memory_space<vmem>>, vector<1x16x16xf32>
    tpu.vector_store %arg13[%c0_16, %c1, %c1_17], %8 {strides = array<i32>} : memref<1x18x18xf32, #tpu.memory_space<vmem>>, vector<1x16x16xf32>,
    %cst_18 = arith.constant 0.000000e+00 : f32
    %10 = vector.broadcast %cst_18 : f32 to vector<256x7xf32>
    %c0_19 = arith.constant 0 : index
    %c9 = arith.constant 9 : index
    %11 = vector.load %arg14[%c0_19, %c9] : memref<256x16xf32, #tpu.memory_space<vmem>>, vector<256x7xf32>
    tpu.vector_store %arg14[%c0_19, %c9], %10 {strides = array<i32>} : memref<256x16xf32, #tpu.memory_space<vmem>>, vector<256x7xf32>,
    %c0_20 = arith.constant 0 : index
    %c0_21 = arith.constant 0 : index
    %c0_22 = arith.constant 0 : index
    %12 = vector.load %arg13[%c0_20, %c0_21, %c0_22] : memref<1x18x18xf32, #tpu.memory_space<vmem>>, vector<1x18x18xf32>
    %13 = vector.shape_cast %12 : vector<1x18x18xf32> to vector<1x18x18x1xf32>
    %14 = vector.extract_strided_slice %13 {offsets = [0, 0, 0, 0], sizes = [1, 16, 16, 1], strides = [1, 1, 1, 1]} : vector<1x18x18x1xf32> to vector<1x16x16x1xf32>
    %15 = vector.shape_cast %14 : vector<1x16x16x1xf32> to vector<256x1xf32>
    %c0_23 = arith.constant 0 : index
    %c0_24 = arith.constant 0 : index
    %16 = vector.load %arg14[%c0_23, %c0_24] : memref<256x16xf32, #tpu.memory_space<vmem>>, vector<256x1xf32>
    tpu.vector_store %arg14[%c0_23, %c0_24], %15 {strides = array<i32>} : memref<256x16xf32, #tpu.memory_space<vmem>>, vector<256x1xf32>,
    %17 = vector.extract_strided_slice %13 {offsets = [0, 0, 1, 0], sizes = [1, 16, 16, 1], strides = [1, 1, 1, 1]} : vector<1x18x18x1xf32> to vector<1x16x16x1xf32>
    %18 = vector.shape_cast %17 : vector<1x16x16x1xf32> to vector<256x1xf32>
    %c0_25 = arith.constant 0 : index
    %c1_26 = arith.constant 1 : index
    %19 = vector.load %arg14[%c0_25, %c1_26] : memref<256x16xf32, #tpu.memory_space<vmem>>, vector<256x1xf32>
    tpu.vector_store %arg14[%c0_25, %c1_26], %18 {strides = array<i32>} : memref<256x16xf32, #tpu.memory_space<vmem>>, vector<256x1xf32>,
    %20 = vector.extract_strided_slice %13 {offsets = [0, 0, 2, 0], sizes = [1, 16, 16, 1], strides = [1, 1, 1, 1]} : vector<1x18x18x1xf32> to vector<1x16x16x1xf32>
    %21 = vector.shape_cast %20 : vector<1x16x16x1xf32> to vector<256x1xf32>
    %c0_27 = arith.constant 0 : index
    %c2 = arith.constant 2 : index
    %22 = vector.load %arg14[%c0_27, %c2] : memref<256x16xf32, #tpu.memory_space<vmem>>, vector<256x1xf32>
    tpu.vector_store %arg14[%c0_27, %c2], %21 {strides = array<i32>} : memref<256x16xf32, #tpu.memory_space<vmem>>, vector<256x1xf32>,
    %23 = vector.extract_strided_slice %13 {offsets = [0, 1, 0, 0], sizes = [1, 16, 16, 1], strides = [1, 1, 1, 1]} : vector<1x18x18x1xf32> to vector<1x16x16x1xf32>
    %24 = vector.shape_cast %23 : vector<1x16x16x1xf32> to vector<256x1xf32>
    %c0_28 = arith.constant 0 : index
    %c3 = arith.constant 3 : index
    %25 = vector.load %arg14[%c0_28, %c3] : memref<256x16xf32, #tpu.memory_space<vmem>>, vector<256x1xf32>
    tpu.vector_store %arg14[%c0_28, %c3], %24 {strides = array<i32>} : memref<256x16xf32, #tpu.memory_space<vmem>>, vector<256x1xf32>,
    %26 = vector.extract_strided_slice %13 {offsets = [0, 1, 1, 0], sizes = [1, 16, 16, 1], strides = [1, 1, 1, 1]} : vector<1x18x18x1xf32> to vector<1x16x16x1xf32>
    %27 = vector.shape_cast %26 : vector<1x16x16x1xf32> to vector<256x1xf32>
    %c0_29 = arith.constant 0 : index
    %c4 = arith.constant 4 : index
    %28 = vector.load %arg14[%c0_29, %c4] : memref<256x16xf32, #tpu.memory_space<vmem>>, vector<256x1xf32>
    tpu.vector_store %arg14[%c0_29, %c4], %27 {strides = array<i32>} : memref<256x16xf32, #tpu.memory_space<vmem>>, vector<256x1xf32>,
    %29 = vector.extract_strided_slice %13 {offsets = [0, 1, 2, 0], sizes = [1, 16, 16, 1], strides = [1, 1, 1, 1]} : vector<1x18x18x1xf32> to vector<1x16x16x1xf32>
    %30 = vector.shape_cast %29 : vector<1x16x16x1xf32> to vector<256x1xf32>
    %c0_30 = arith.constant 0 : index
    %c5 = arith.constant 5 : index
    %31 = vector.load %arg14[%c0_30, %c5] : memref<256x16xf32, #tpu.memory_space<vmem>>, vector<256x1xf32>
    tpu.vector_store %arg14[%c0_30, %c5], %30 {strides = array<i32>} : memref<256x16xf32, #tpu.memory_space<vmem>>, vector<256x1xf32>,
    %32 = vector.extract_strided_slice %13 {offsets = [0, 2, 0, 0], sizes = [1, 16, 16, 1], strides = [1, 1, 1, 1]} : vector<1x18x18x1xf32> to vector<1x16x16x1xf32>
    %33 = vector.shape_cast %32 : vector<1x16x16x1xf32> to vector<256x1xf32>
    %c0_31 = arith.constant 0 : index
    %c6 = arith.constant 6 : index
    %34 = vector.load %arg14[%c0_31, %c6] : memref<256x16xf32, #tpu.memory_space<vmem>>, vector<256x1xf32>
    tpu.vector_store %arg14[%c0_31, %c6], %33 {strides = array<i32>} : memref<256x16xf32, #tpu.memory_space<vmem>>, vector<256x1xf32>,
    %35 = vector.extract_strided_slice %13 {offsets = [0, 2, 1, 0], sizes = [1, 16, 16, 1], strides = [1, 1, 1, 1]} : vector<1x18x18x1xf32> to vector<1x16x16x1xf32>
    %36 = vector.shape_cast %35 : vector<1x16x16x1xf32> to vector<256x1xf32>
    %c0_32 = arith.constant 0 : index
    %c7 = arith.constant 7 : index
    %37 = vector.load %arg14[%c0_32, %c7] : memref<256x16xf32, #tpu.memory_space<vmem>>, vector<256x1xf32>
    tpu.vector_store %arg14[%c0_32, %c7], %36 {strides = array<i32>} : memref<256x16xf32, #tpu.memory_space<vmem>>, vector<256x1xf32>,
    %38 = vector.extract_strided_slice %13 {offsets = [0, 2, 2, 0], sizes = [1, 16, 16, 1], strides = [1, 1, 1, 1]} : vector<1x18x18x1xf32> to vector<1x16x16x1xf32>
    %39 = vector.shape_cast %38 : vector<1x16x16x1xf32> to vector<256x1xf32>
    %c0_33 = arith.constant 0 : index
    %c8 = arith.constant 8 : index
    %40 = vector.load %arg14[%c0_33, %c8] : memref<256x16xf32, #tpu.memory_space<vmem>>, vector<256x1xf32>
    tpu.vector_store %arg14[%c0_33, %c8], %39 {strides = array<i32>} : memref<256x16xf32, #tpu.memory_space<vmem>>, vector<256x1xf32>,
    %c0_34 = arith.constant 0 : index
    %c0_35 = arith.constant 0 : index
    %41 = vector.load %arg14[%c0_34, %c0_35] : memref<256x16xf32, #tpu.memory_space<vmem>>, vector<256x16xf32>
    %42 = arith.truncf %41 : vector<256x16xf32> to vector<256x16xbf16>
    %c0_36 = arith.constant 0 : index
    %c0_37 = arith.constant 0 : index
    %c0_38 = arith.constant 0 : index
    %43 = vector.load %arg2[%c0_36, %c0_37, %c0_38] : memref<2x16x64xbf16, #tpu.memory_space<vmem>>, vector<1x16x64xbf16>
    %44 = vector.shape_cast %43 : vector<1x16x64xbf16> to vector<16x64xbf16>
    %cst_39 = arith.constant dense<0.000000e+00> : vector<256x64xf32>
    %45 = tpu.matmul %42, %44, %cst_39 {dimension_numbers = #tpu.dot_dimension_numbers<[1], [0], [0], [1], [0, 0, 1, 1], [], []>} : vector<256x16xbf16>, vector<16x64xbf16>, vector<256x64xf32> -> vector<256x64xf32>
    %c0_40 = arith.constant 0 : index
    %c0_41 = arith.constant 0 : index
    %46 = vector.load %arg3[%c0_40, %c0_41] : memref<2x64xf32, #tpu.memory_space<vmem>>, vector<1x64xf32>
    %47 = vector.broadcast %46 : vector<1x64xf32> to vector<256x64xf32>
    %48 = arith.addf %45, %47 : vector<256x64xf32>
    %c1_42 = arith.constant 1 : index
    %c0_43 = arith.constant 0 : index
    %c0_44 = arith.constant 0 : index
    %49 = vector.load %arg2[%c1_42, %c0_43, %c0_44] : memref<2x16x64xbf16, #tpu.memory_space<vmem>>, vector<1x16x64xbf16>
    %50 = vector.shape_cast %49 : vector<1x16x64xbf16> to vector<16x64xbf16>
    %cst_45 = arith.constant dense<0.000000e+00> : vector<256x64xf32>
    %51 = tpu.matmul %42, %50, %cst_45 {dimension_numbers = #tpu.dot_dimension_numbers<[1], [0], [0], [1], [0, 0, 1, 1], [], []>} : vector<256x16xbf16>, vector<16x64xbf16>, vector<256x64xf32> -> vector<256x64xf32>
    %c1_46 = arith.constant 1 : index
    %c0_47 = arith.constant 0 : index
    %52 = vector.load %arg3[%c1_46, %c0_47] : memref<2x64xf32, #tpu.memory_space<vmem>>, vector<1x64xf32>
    %53 = vector.broadcast %52 : vector<1x64xf32> to vector<256x64xf32>
    %54 = arith.addf %51, %53 : vector<256x64xf32>
    %55 = arith.maximumf %48, %54 : vector<256x64xf32>
    %cst_48 = arith.constant 0.000000e+00 : f32
    %56 = vector.broadcast %cst_48 : f32 to vector<1x1x10x64xf32>
    %c0_49 = arith.constant 0 : index
    %c0_50 = arith.constant 0 : index
    %c0_51 = arith.constant 0 : index
    %c0_52 = arith.constant 0 : index
    %57 = vector.load %arg15[%c0_49, %c0_50, %c0_51, %c0_52] : memref<1x10x10x64xf32, #tpu.memory_space<vmem>>, vector<1x1x10x64xf32>
    tpu.vector_store %arg15[%c0_49, %c0_50, %c0_51, %c0_52], %56 {strides = array<i32>} : memref<1x10x10x64xf32, #tpu.memory_space<vmem>>, vector<1x1x10x64xf32>,
    %cst_53 = arith.constant 0.000000e+00 : f32
    %58 = vector.broadcast %cst_53 : f32 to vector<1x1x10x64xf32>
    %c0_54 = arith.constant 0 : index
    %c9_55 = arith.constant 9 : index
    %c0_56 = arith.constant 0 : index
    %c0_57 = arith.constant 0 : index
    %59 = vector.load %arg15[%c0_54, %c9_55, %c0_56, %c0_57] : memref<1x10x10x64xf32, #tpu.memory_space<vmem>>, vector<1x1x10x64xf32>
    tpu.vector_store %arg15[%c0_54, %c9_55, %c0_56, %c0_57], %58 {strides = array<i32>} : memref<1x10x10x64xf32, #tpu.memory_space<vmem>>, vector<1x1x10x64xf32>,
    %cst_58 = arith.constant 0.000000e+00 : f32
    %60 = vector.broadcast %cst_58 : f32 to vector<1x10x1x64xf32>
    %c0_59 = arith.constant 0 : index
    %c0_60 = arith.constant 0 : index
    %c0_61 = arith.constant 0 : index
    %c0_62 = arith.constant 0 : index
    %61 = vector.load %arg15[%c0_59, %c0_60, %c0_61, %c0_62] : memref<1x10x10x64xf32, #tpu.memory_space<vmem>>, vector<1x10x1x64xf32>
    tpu.vector_store %arg15[%c0_59, %c0_60, %c0_61, %c0_62], %60 {strides = array<i32>} : memref<1x10x10x64xf32, #tpu.memory_space<vmem>>, vector<1x10x1x64xf32>,
    %cst_63 = arith.constant 0.000000e+00 : f32
    %62 = vector.broadcast %cst_63 : f32 to vector<1x10x1x64xf32>
    %c0_64 = arith.constant 0 : index
    %c0_65 = arith.constant 0 : index
    %c9_66 = arith.constant 9 : index
    %c0_67 = arith.constant 0 : index
    %63 = vector.load %arg15[%c0_64, %c0_65, %c9_66, %c0_67] : memref<1x10x10x64xf32, #tpu.memory_space<vmem>>, vector<1x10x1x64xf32>
    tpu.vector_store %arg15[%c0_64, %c0_65, %c9_66, %c0_67], %62 {strides = array<i32>} : memref<1x10x10x64xf32, #tpu.memory_space<vmem>>, vector<1x10x1x64xf32>,
    %64 = vector.shape_cast %55 : vector<256x64xf32> to vector<8x2x16x64xf32>
    %cst_68 = arith.constant dense<0xFF800000> : vector<8x16x64xf32>
    %65 = vector.multi_reduction <maximumf>, %64, %cst_68 [1] : vector<8x2x16x64xf32> to vector<8x16x64xf32>
    %66 = vector.shape_cast %65 : vector<8x16x64xf32> to vector<8x8x2x64xf32>
    %cst_69 = arith.constant dense<0xFF800000> : vector<8x8x64xf32>
    %67 = vector.multi_reduction <maximumf>, %66, %cst_69 [2] : vector<8x8x2x64xf32> to vector<8x8x64xf32>
    %68 = vector.shape_cast %67 : vector<8x8x64xf32> to vector<1x8x8x64xf32>
    %c0_70 = arith.constant 0 : index
    %c1_71 = arith.constant 1 : index
    %c1_72 = arith.constant 1 : index
    %c0_73 = arith.constant 0 : index
    %69 = vector.load %arg15[%c0_70, %c1_71, %c1_72, %c0_73] : memref<1x10x10x64xf32, #tpu.memory_space<vmem>>, vector<1x8x8x64xf32>
    tpu.vector_store %arg15[%c0_70, %c1_71, %c1_72, %c0_73], %68 {strides = array<i32>} : memref<1x10x10x64xf32, #tpu.memory_space<vmem>>, vector<1x8x8x64xf32>,
    %c0_74 = arith.constant 0 : index
    %c0_75 = arith.constant 0 : index
    %c0_76 = arith.constant 0 : index
    %c0_77 = arith.constant 0 : index
    %70 = vector.load %arg15[%c0_74, %c0_75, %c0_76, %c0_77] : memref<1x10x10x64xf32, #tpu.memory_space<vmem>>, vector<1x10x10x64xf32>
    %71 = vector.extract_strided_slice %70 {offsets = [0, 0, 0, 0], sizes = [1, 10, 8, 64], strides = [1, 1, 1, 1]} : vector<1x10x10x64xf32> to vector<1x10x8x64xf32>
    %72 = vector.extract_strided_slice %71 {offsets = [0, 0, 0, 0], sizes = [1, 8, 8, 64], strides = [1, 1, 1, 1]} : vector<1x10x8x64xf32> to vector<1x8x8x64xf32>
    %73 = vector.shape_cast %72 : vector<1x8x8x64xf32> to vector<64x64xf32>
    %74 = arith.truncf %73 : vector<64x64xf32> to vector<64x64xbf16>
    %c0_78 = arith.constant 0 : index
    %c0_79 = arith.constant 0 : index
    %75 = vector.load %arg16[%c0_78, %c0_79] : memref<64x576xbf16, #tpu.memory_space<vmem>>, vector<64x64xbf16>
    tpu.vector_store %arg16[%c0_78, %c0_79], %74 {strides = array<i32>} : memref<64x576xbf16, #tpu.memory_space<vmem>>, vector<64x64xbf16>,
    %76 = vector.extract_strided_slice %71 {offsets = [0, 1, 0, 0], sizes = [1, 8, 8, 64], strides = [1, 1, 1, 1]} : vector<1x10x8x64xf32> to vector<1x8x8x64xf32>
    %77 = vector.shape_cast %76 : vector<1x8x8x64xf32> to vector<64x64xf32>
    %78 = arith.truncf %77 : vector<64x64xf32> to vector<64x64xbf16>
    %c0_80 = arith.constant 0 : index
    %c192 = arith.constant 192 : index
    %79 = vector.load %arg16[%c0_80, %c192] : memref<64x576xbf16, #tpu.memory_space<vmem>>, vector<64x64xbf16>
    tpu.vector_store %arg16[%c0_80, %c192], %78 {strides = array<i32>} : memref<64x576xbf16, #tpu.memory_space<vmem>>, vector<64x64xbf16>,
    %80 = vector.extract_strided_slice %71 {offsets = [0, 2, 0, 0], sizes = [1, 8, 8, 64], strides = [1, 1, 1, 1]} : vector<1x10x8x64xf32> to vector<1x8x8x64xf32>
    %81 = vector.shape_cast %80 : vector<1x8x8x64xf32> to vector<64x64xf32>
    %82 = arith.truncf %81 : vector<64x64xf32> to vector<64x64xbf16>
    %c0_81 = arith.constant 0 : index
    %c384 = arith.constant 384 : index
    %83 = vector.load %arg16[%c0_81, %c384] : memref<64x576xbf16, #tpu.memory_space<vmem>>, vector<64x64xbf16>
    tpu.vector_store %arg16[%c0_81, %c384], %82 {strides = array<i32>} : memref<64x576xbf16, #tpu.memory_space<vmem>>, vector<64x64xbf16>,
    %84 = vector.extract_strided_slice %70 {offsets = [0, 0, 1, 0], sizes = [1, 10, 8, 64], strides = [1, 1, 1, 1]} : vector<1x10x10x64xf32> to vector<1x10x8x64xf32>
    %85 = vector.extract_strided_slice %84 {offsets = [0, 0, 0, 0], sizes = [1, 8, 8, 64], strides = [1, 1, 1, 1]} : vector<1x10x8x64xf32> to vector<1x8x8x64xf32>
    %86 = vector.shape_cast %85 : vector<1x8x8x64xf32> to vector<64x64xf32>
    %87 = arith.truncf %86 : vector<64x64xf32> to vector<64x64xbf16>
    %c0_82 = arith.constant 0 : index
    %c64 = arith.constant 64 : index
    %88 = vector.load %arg16[%c0_82, %c64] : memref<64x576xbf16, #tpu.memory_space<vmem>>, vector<64x64xbf16>
    tpu.vector_store %arg16[%c0_82, %c64], %87 {strides = array<i32>} : memref<64x576xbf16, #tpu.memory_space<vmem>>, vector<64x64xbf16>,
    %89 = vector.extract_strided_slice %84 {offsets = [0, 1, 0, 0], sizes = [1, 8, 8, 64], strides = [1, 1, 1, 1]} : vector<1x10x8x64xf32> to vector<1x8x8x64xf32>
    %90 = vector.shape_cast %89 : vector<1x8x8x64xf32> to vector<64x64xf32>
    %91 = arith.truncf %90 : vector<64x64xf32> to vector<64x64xbf16>
    %c0_83 = arith.constant 0 : index
    %c256 = arith.constant 256 : index
    %92 = vector.load %arg16[%c0_83, %c256] : memref<64x576xbf16, #tpu.memory_space<vmem>>, vector<64x64xbf16>
    tpu.vector_store %arg16[%c0_83, %c256], %91 {strides = array<i32>} : memref<64x576xbf16, #tpu.memory_space<vmem>>, vector<64x64xbf16>,
    %93 = vector.extract_strided_slice %84 {offsets = [0, 2, 0, 0], sizes = [1, 8, 8, 64], strides = [1, 1, 1, 1]} : vector<1x10x8x64xf32> to vector<1x8x8x64xf32>
    %94 = vector.shape_cast %93 : vector<1x8x8x64xf32> to vector<64x64xf32>
    %95 = arith.truncf %94 : vector<64x64xf32> to vector<64x64xbf16>
    %c0_84 = arith.constant 0 : index
    %c448 = arith.constant 448 : index
    %96 = vector.load %arg16[%c0_84, %c448] : memref<64x576xbf16, #tpu.memory_space<vmem>>, vector<64x64xbf16>
    tpu.vector_store %arg16[%c0_84, %c448], %95 {strides = array<i32>} : memref<64x576xbf16, #tpu.memory_space<vmem>>, vector<64x64xbf16>,
    %97 = vector.extract_strided_slice %70 {offsets = [0, 0, 2, 0], sizes = [1, 10, 8, 64], strides = [1, 1, 1, 1]} : vector<1x10x10x64xf32> to vector<1x10x8x64xf32>
    %98 = vector.extract_strided_slice %97 {offsets = [0, 0, 0, 0], sizes = [1, 8, 8, 64], strides = [1, 1, 1, 1]} : vector<1x10x8x64xf32> to vector<1x8x8x64xf32>
    %99 = vector.shape_cast %98 : vector<1x8x8x64xf32> to vector<64x64xf32>
    %100 = arith.truncf %99 : vector<64x64xf32> to vector<64x64xbf16>
    %c0_85 = arith.constant 0 : index
    %c128 = arith.constant 128 : index
    %101 = vector.load %arg16[%c0_85, %c128] : memref<64x576xbf16, #tpu.memory_space<vmem>>, vector<64x64xbf16>
    tpu.vector_store %arg16[%c0_85, %c128], %100 {strides = array<i32>} : memref<64x576xbf16, #tpu.memory_space<vmem>>, vector<64x64xbf16>,
    %102 = vector.extract_strided_slice %97 {offsets = [0, 1, 0, 0], sizes = [1, 8, 8, 64], strides = [1, 1, 1, 1]} : vector<1x10x8x64xf32> to vector<1x8x8x64xf32>
    %103 = vector.shape_cast %102 : vector<1x8x8x64xf32> to vector<64x64xf32>
    %104 = arith.truncf %103 : vector<64x64xf32> to vector<64x64xbf16>
    %c0_86 = arith.constant 0 : index
    %c320 = arith.constant 320 : index
    %105 = vector.load %arg16[%c0_86, %c320] : memref<64x576xbf16, #tpu.memory_space<vmem>>, vector<64x64xbf16>
    tpu.vector_store %arg16[%c0_86, %c320], %104 {strides = array<i32>} : memref<64x576xbf16, #tpu.memory_space<vmem>>, vector<64x64xbf16>,
    %106 = vector.extract_strided_slice %97 {offsets = [0, 2, 0, 0], sizes = [1, 8, 8, 64], strides = [1, 1, 1, 1]} : vector<1x10x8x64xf32> to vector<1x8x8x64xf32>
    %107 = vector.shape_cast %106 : vector<1x8x8x64xf32> to vector<64x64xf32>
    %108 = arith.truncf %107 : vector<64x64xf32> to vector<64x64xbf16>
    %c0_87 = arith.constant 0 : index
    %c512 = arith.constant 512 : index
    %109 = vector.load %arg16[%c0_87, %c512] : memref<64x576xbf16, #tpu.memory_space<vmem>>, vector<64x64xbf16>
    tpu.vector_store %arg16[%c0_87, %c512], %108 {strides = array<i32>} : memref<64x576xbf16, #tpu.memory_space<vmem>>, vector<64x64xbf16>,
    %c0_88 = arith.constant 0 : index
    %c0_89 = arith.constant 0 : index
    %110 = vector.load %arg16[%c0_88, %c0_89] : memref<64x576xbf16, #tpu.memory_space<vmem>>, vector<64x576xbf16>
    %c0_90 = arith.constant 0 : index
    %c0_91 = arith.constant 0 : index
    %c0_92 = arith.constant 0 : index
    %111 = vector.load %arg4[%c0_90, %c0_91, %c0_92] : memref<2x576x64xbf16, #tpu.memory_space<vmem>>, vector<1x576x64xbf16>
    %112 = vector.shape_cast %111 : vector<1x576x64xbf16> to vector<576x64xbf16>
    %cst_93 = arith.constant dense<0.000000e+00> : vector<64x64xf32>
    %113 = tpu.matmul %110, %112, %cst_93 {dimension_numbers = #tpu.dot_dimension_numbers<[1], [0], [0], [1], [0, 0, 1, 1], [], []>} : vector<64x576xbf16>, vector<576x64xbf16>, vector<64x64xf32> -> vector<64x64xf32>
    %c0_94 = arith.constant 0 : index
    %c0_95 = arith.constant 0 : index
    %114 = vector.load %arg5[%c0_94, %c0_95] : memref<2x64xf32, #tpu.memory_space<vmem>>, vector<1x64xf32>
    %115 = vector.broadcast %114 : vector<1x64xf32> to vector<64x64xf32>
    %116 = arith.addf %113, %115 : vector<64x64xf32>
    %c1_96 = arith.constant 1 : index
    %c0_97 = arith.constant 0 : index
    %c0_98 = arith.constant 0 : index
    %117 = vector.load %arg4[%c1_96, %c0_97, %c0_98] : memref<2x576x64xbf16, #tpu.memory_space<vmem>>, vector<1x576x64xbf16>
    %118 = vector.shape_cast %117 : vector<1x576x64xbf16> to vector<576x64xbf16>
    %cst_99 = arith.constant dense<0.000000e+00> : vector<64x64xf32>
    %119 = tpu.matmul %110, %118, %cst_99 {dimension_numbers = #tpu.dot_dimension_numbers<[1], [0], [0], [1], [0, 0, 1, 1], [], []>} : vector<64x576xbf16>, vector<576x64xbf16>, vector<64x64xf32> -> vector<64x64xf32>
    %c1_100 = arith.constant 1 : index
    %c0_101 = arith.constant 0 : index
    %120 = vector.load %arg5[%c1_100, %c0_101] : memref<2x64xf32, #tpu.memory_space<vmem>>, vector<1x64xf32>
    %121 = vector.broadcast %120 : vector<1x64xf32> to vector<64x64xf32>
    %122 = arith.addf %119, %121 : vector<64x64xf32>
    %123 = arith.maximumf %116, %122 : vector<64x64xf32>
    %cst_102 = arith.constant 0.000000e+00 : f32
    %124 = vector.broadcast %cst_102 : f32 to vector<1x1x6x64xf32>
    %c0_103 = arith.constant 0 : index
    %c0_104 = arith.constant 0 : index
    %c0_105 = arith.constant 0 : index
    %c0_106 = arith.constant 0 : index
    %125 = vector.load %arg17[%c0_103, %c0_104, %c0_105, %c0_106] : memref<1x6x6x64xf32, #tpu.memory_space<vmem>>, vector<1x1x6x64xf32>
    tpu.vector_store %arg17[%c0_103, %c0_104, %c0_105, %c0_106], %124 {strides = array<i32>} : memref<1x6x6x64xf32, #tpu.memory_space<vmem>>, vector<1x1x6x64xf32>,
    %cst_107 = arith.constant 0.000000e+00 : f32
    %126 = vector.broadcast %cst_107 : f32 to vector<1x1x6x64xf32>
    %c0_108 = arith.constant 0 : index
    %c5_109 = arith.constant 5 : index
    %c0_110 = arith.constant 0 : index
    %c0_111 = arith.constant 0 : index
    %127 = vector.load %arg17[%c0_108, %c5_109, %c0_110, %c0_111] : memref<1x6x6x64xf32, #tpu.memory_space<vmem>>, vector<1x1x6x64xf32>
    tpu.vector_store %arg17[%c0_108, %c5_109, %c0_110, %c0_111], %126 {strides = array<i32>} : memref<1x6x6x64xf32, #tpu.memory_space<vmem>>, vector<1x1x6x64xf32>,
    %cst_112 = arith.constant 0.000000e+00 : f32
    %128 = vector.broadcast %cst_112 : f32 to vector<1x6x1x64xf32>
    %c0_113 = arith.constant 0 : index
    %c0_114 = arith.constant 0 : index
    %c0_115 = arith.constant 0 : index
    %c0_116 = arith.constant 0 : index
    %129 = vector.load %arg17[%c0_113, %c0_114, %c0_115, %c0_116] : memref<1x6x6x64xf32, #tpu.memory_space<vmem>>, vector<1x6x1x64xf32>
    tpu.vector_store %arg17[%c0_113, %c0_114, %c0_115, %c0_116], %128 {strides = array<i32>} : memref<1x6x6x64xf32, #tpu.memory_space<vmem>>, vector<1x6x1x64xf32>,
    %cst_117 = arith.constant 0.000000e+00 : f32
    %130 = vector.broadcast %cst_117 : f32 to vector<1x6x1x64xf32>
    %c0_118 = arith.constant 0 : index
    %c0_119 = arith.constant 0 : index
    %c5_120 = arith.constant 5 : index
    %c0_121 = arith.constant 0 : index
    %131 = vector.load %arg17[%c0_118, %c0_119, %c5_120, %c0_121] : memref<1x6x6x64xf32, #tpu.memory_space<vmem>>, vector<1x6x1x64xf32>
    tpu.vector_store %arg17[%c0_118, %c0_119, %c5_120, %c0_121], %130 {strides = array<i32>} : memref<1x6x6x64xf32, #tpu.memory_space<vmem>>, vector<1x6x1x64xf32>,
    %132 = vector.shape_cast %123 : vector<64x64xf32> to vector<4x2x8x64xf32>
    %cst_122 = arith.constant dense<0xFF800000> : vector<4x8x64xf32>
    %133 = vector.multi_reduction <maximumf>, %132, %cst_122 [1] : vector<4x2x8x64xf32> to vector<4x8x64xf32>
    %134 = vector.shape_cast %133 : vector<4x8x64xf32> to vector<4x4x2x64xf32>
    %cst_123 = arith.constant dense<0xFF800000> : vector<4x4x64xf32>
    %135 = vector.multi_reduction <maximumf>, %134, %cst_123 [2] : vector<4x4x2x64xf32> to vector<4x4x64xf32>
    %136 = vector.shape_cast %135 : vector<4x4x64xf32> to vector<1x4x4x64xf32>
    %c0_124 = arith.constant 0 : index
    %c1_125 = arith.constant 1 : index
    %c1_126 = arith.constant 1 : index
    %c0_127 = arith.constant 0 : index
    %137 = vector.load %arg17[%c0_124, %c1_125, %c1_126, %c0_127] : memref<1x6x6x64xf32, #tpu.memory_space<vmem>>, vector<1x4x4x64xf32>
    tpu.vector_store %arg17[%c0_124, %c1_125, %c1_126, %c0_127], %136 {strides = array<i32>} : memref<1x6x6x64xf32, #tpu.memory_space<vmem>>, vector<1x4x4x64xf32>,
    %c0_128 = arith.constant 0 : index
    %c0_129 = arith.constant 0 : index
    %c0_130 = arith.constant 0 : index
    %c0_131 = arith.constant 0 : index
    %138 = vector.load %arg17[%c0_128, %c0_129, %c0_130, %c0_131] : memref<1x6x6x64xf32, #tpu.memory_space<vmem>>, vector<1x6x6x64xf32>
    %139 = vector.extract_strided_slice %138 {offsets = [0, 0, 0, 0], sizes = [1, 6, 4, 64], strides = [1, 1, 1, 1]} : vector<1x6x6x64xf32> to vector<1x6x4x64xf32>
    %140 = vector.extract_strided_slice %139 {offsets = [0, 0, 0, 0], sizes = [1, 4, 4, 64], strides = [1, 1, 1, 1]} : vector<1x6x4x64xf32> to vector<1x4x4x64xf32>
    %141 = vector.shape_cast %140 : vector<1x4x4x64xf32> to vector<16x64xf32>
    %142 = arith.truncf %141 : vector<16x64xf32> to vector<16x64xbf16>
    %c0_132 = arith.constant 0 : index
    %c0_133 = arith.constant 0 : index
    %143 = vector.load %arg18[%c0_132, %c0_133] : memref<16x576xbf16, #tpu.memory_space<vmem>>, vector<16x64xbf16>
    tpu.vector_store %arg18[%c0_132, %c0_133], %142 {strides = array<i32>} : memref<16x576xbf16, #tpu.memory_space<vmem>>, vector<16x64xbf16>,
    %144 = vector.extract_strided_slice %139 {offsets = [0, 1, 0, 0], sizes = [1, 4, 4, 64], strides = [1, 1, 1, 1]} : vector<1x6x4x64xf32> to vector<1x4x4x64xf32>
    %145 = vector.shape_cast %144 : vector<1x4x4x64xf32> to vector<16x64xf32>
    %146 = arith.truncf %145 : vector<16x64xf32> to vector<16x64xbf16>
    %c0_134 = arith.constant 0 : index
    %c192_135 = arith.constant 192 : index
    %147 = vector.load %arg18[%c0_134, %c192_135] : memref<16x576xbf16, #tpu.memory_space<vmem>>, vector<16x64xbf16>
    tpu.vector_store %arg18[%c0_134, %c192_135], %146 {strides = array<i32>} : memref<16x576xbf16, #tpu.memory_space<vmem>>, vector<16x64xbf16>,
    %148 = vector.extract_strided_slice %139 {offsets = [0, 2, 0, 0], sizes = [1, 4, 4, 64], strides = [1, 1, 1, 1]} : vector<1x6x4x64xf32> to vector<1x4x4x64xf32>
    %149 = vector.shape_cast %148 : vector<1x4x4x64xf32> to vector<16x64xf32>
    %150 = arith.truncf %149 : vector<16x64xf32> to vector<16x64xbf16>
    %c0_136 = arith.constant 0 : index
    %c384_137 = arith.constant 384 : index
    %151 = vector.load %arg18[%c0_136, %c384_137] : memref<16x576xbf16, #tpu.memory_space<vmem>>, vector<16x64xbf16>
    tpu.vector_store %arg18[%c0_136, %c384_137], %150 {strides = array<i32>} : memref<16x576xbf16, #tpu.memory_space<vmem>>, vector<16x64xbf16>,
    %152 = vector.extract_strided_slice %138 {offsets = [0, 0, 1, 0], sizes = [1, 6, 4, 64], strides = [1, 1, 1, 1]} : vector<1x6x6x64xf32> to vector<1x6x4x64xf32>
    %153 = vector.extract_strided_slice %152 {offsets = [0, 0, 0, 0], sizes = [1, 4, 4, 64], strides = [1, 1, 1, 1]} : vector<1x6x4x64xf32> to vector<1x4x4x64xf32>
    %154 = vector.shape_cast %153 : vector<1x4x4x64xf32> to vector<16x64xf32>
    %155 = arith.truncf %154 : vector<16x64xf32> to vector<16x64xbf16>
    %c0_138 = arith.constant 0 : index
    %c64_139 = arith.constant 64 : index
    %156 = vector.load %arg18[%c0_138, %c64_139] : memref<16x576xbf16, #tpu.memory_space<vmem>>, vector<16x64xbf16>
    tpu.vector_store %arg18[%c0_138, %c64_139], %155 {strides = array<i32>} : memref<16x576xbf16, #tpu.memory_space<vmem>>, vector<16x64xbf16>,
    %157 = vector.extract_strided_slice %152 {offsets = [0, 1, 0, 0], sizes = [1, 4, 4, 64], strides = [1, 1, 1, 1]} : vector<1x6x4x64xf32> to vector<1x4x4x64xf32>
    %158 = vector.shape_cast %157 : vector<1x4x4x64xf32> to vector<16x64xf32>
    %159 = arith.truncf %158 : vector<16x64xf32> to vector<16x64xbf16>
    %c0_140 = arith.constant 0 : index
    %c256_141 = arith.constant 256 : index
    %160 = vector.load %arg18[%c0_140, %c256_141] : memref<16x576xbf16, #tpu.memory_space<vmem>>, vector<16x64xbf16>
    tpu.vector_store %arg18[%c0_140, %c256_141], %159 {strides = array<i32>} : memref<16x576xbf16, #tpu.memory_space<vmem>>, vector<16x64xbf16>,
    %161 = vector.extract_strided_slice %152 {offsets = [0, 2, 0, 0], sizes = [1, 4, 4, 64], strides = [1, 1, 1, 1]} : vector<1x6x4x64xf32> to vector<1x4x4x64xf32>
    %162 = vector.shape_cast %161 : vector<1x4x4x64xf32> to vector<16x64xf32>
    %163 = arith.truncf %162 : vector<16x64xf32> to vector<16x64xbf16>
    %c0_142 = arith.constant 0 : index
    %c448_143 = arith.constant 448 : index
    %164 = vector.load %arg18[%c0_142, %c448_143] : memref<16x576xbf16, #tpu.memory_space<vmem>>, vector<16x64xbf16>
    tpu.vector_store %arg18[%c0_142, %c448_143], %163 {strides = array<i32>} : memref<16x576xbf16, #tpu.memory_space<vmem>>, vector<16x64xbf16>,
    %165 = vector.extract_strided_slice %138 {offsets = [0, 0, 2, 0], sizes = [1, 6, 4, 64], strides = [1, 1, 1, 1]} : vector<1x6x6x64xf32> to vector<1x6x4x64xf32>
    %166 = vector.extract_strided_slice %165 {offsets = [0, 0, 0, 0], sizes = [1, 4, 4, 64], strides = [1, 1, 1, 1]} : vector<1x6x4x64xf32> to vector<1x4x4x64xf32>
    %167 = vector.shape_cast %166 : vector<1x4x4x64xf32> to vector<16x64xf32>
    %168 = arith.truncf %167 : vector<16x64xf32> to vector<16x64xbf16>
    %c0_144 = arith.constant 0 : index
    %c128_145 = arith.constant 128 : index
    %169 = vector.load %arg18[%c0_144, %c128_145] : memref<16x576xbf16, #tpu.memory_space<vmem>>, vector<16x64xbf16>
    tpu.vector_store %arg18[%c0_144, %c128_145], %168 {strides = array<i32>} : memref<16x576xbf16, #tpu.memory_space<vmem>>, vector<16x64xbf16>,
    %170 = vector.extract_strided_slice %165 {offsets = [0, 1, 0, 0], sizes = [1, 4, 4, 64], strides = [1, 1, 1, 1]} : vector<1x6x4x64xf32> to vector<1x4x4x64xf32>
    %171 = vector.shape_cast %170 : vector<1x4x4x64xf32> to vector<16x64xf32>
    %172 = arith.truncf %171 : vector<16x64xf32> to vector<16x64xbf16>
    %c0_146 = arith.constant 0 : index
    %c320_147 = arith.constant 320 : index
    %173 = vector.load %arg18[%c0_146, %c320_147] : memref<16x576xbf16, #tpu.memory_space<vmem>>, vector<16x64xbf16>
    tpu.vector_store %arg18[%c0_146, %c320_147], %172 {strides = array<i32>} : memref<16x576xbf16, #tpu.memory_space<vmem>>, vector<16x64xbf16>,
    %174 = vector.extract_strided_slice %165 {offsets = [0, 2, 0, 0], sizes = [1, 4, 4, 64], strides = [1, 1, 1, 1]} : vector<1x6x4x64xf32> to vector<1x4x4x64xf32>
    %175 = vector.shape_cast %174 : vector<1x4x4x64xf32> to vector<16x64xf32>
    %176 = arith.truncf %175 : vector<16x64xf32> to vector<16x64xbf16>
    %c0_148 = arith.constant 0 : index
    %c512_149 = arith.constant 512 : index
    %177 = vector.load %arg18[%c0_148, %c512_149] : memref<16x576xbf16, #tpu.memory_space<vmem>>, vector<16x64xbf16>
    tpu.vector_store %arg18[%c0_148, %c512_149], %176 {strides = array<i32>} : memref<16x576xbf16, #tpu.memory_space<vmem>>, vector<16x64xbf16>,
    %c0_150 = arith.constant 0 : index
    %c0_151 = arith.constant 0 : index
    %178 = vector.load %arg18[%c0_150, %c0_151] : memref<16x576xbf16, #tpu.memory_space<vmem>>, vector<16x576xbf16>
    %c0_152 = arith.constant 0 : index
    %c0_153 = arith.constant 0 : index
    %179 = vector.load %arg6[%c0_152, %c0_153] : memref<576x256xbf16, #tpu.memory_space<vmem>>, vector<576x256xbf16>
    %cst_154 = arith.constant dense<0.000000e+00> : vector<16x256xf32>
    %180 = tpu.matmul %178, %179, %cst_154 {dimension_numbers = #tpu.dot_dimension_numbers<[1], [0], [0], [1], [0, 0, 1, 1], [], []>} : vector<16x576xbf16>, vector<576x256xbf16>, vector<16x256xf32> -> vector<16x256xf32>
    %c0_155 = arith.constant 0 : index
    %c0_156 = arith.constant 0 : index
    %181 = vector.load %arg7[%c0_155, %c0_156] : memref<1x256xf32, #tpu.memory_space<vmem>>, vector<1x256xf32>
    %182 = vector.broadcast %181 : vector<1x256xf32> to vector<16x256xf32>
    %183 = arith.addf %180, %182 : vector<16x256xf32>
    %184 = vector.extract_strided_slice %183 {offsets = [0, 0], sizes = [16, 128], strides = [1, 1]} : vector<16x256xf32> to vector<16x128xf32>
    %185 = vector.extract_strided_slice %183 {offsets = [0, 128], sizes = [16, 128], strides = [1, 1]} : vector<16x256xf32> to vector<16x128xf32>
    %186 = arith.maximumf %184, %185 : vector<16x128xf32>
    %cst_157 = arith.constant 0.000000e+00 : f32
    %187 = vector.broadcast %cst_157 : f32 to vector<1x1x4x128xf32>
    %c0_158 = arith.constant 0 : index
    %c0_159 = arith.constant 0 : index
    %c0_160 = arith.constant 0 : index
    %c0_161 = arith.constant 0 : index
    %188 = vector.load %arg19[%c0_158, %c0_159, %c0_160, %c0_161] : memref<1x4x4x128xf32, #tpu.memory_space<vmem>>, vector<1x1x4x128xf32>
    tpu.vector_store %arg19[%c0_158, %c0_159, %c0_160, %c0_161], %187 {strides = array<i32>} : memref<1x4x4x128xf32, #tpu.memory_space<vmem>>, vector<1x1x4x128xf32>,
    %cst_162 = arith.constant 0.000000e+00 : f32
    %189 = vector.broadcast %cst_162 : f32 to vector<1x1x4x128xf32>
    %c0_163 = arith.constant 0 : index
    %c3_164 = arith.constant 3 : index
    %c0_165 = arith.constant 0 : index
    %c0_166 = arith.constant 0 : index
    %190 = vector.load %arg19[%c0_163, %c3_164, %c0_165, %c0_166] : memref<1x4x4x128xf32, #tpu.memory_space<vmem>>, vector<1x1x4x128xf32>
    tpu.vector_store %arg19[%c0_163, %c3_164, %c0_165, %c0_166], %189 {strides = array<i32>} : memref<1x4x4x128xf32, #tpu.memory_space<vmem>>, vector<1x1x4x128xf32>,
    %cst_167 = arith.constant 0.000000e+00 : f32
    %191 = vector.broadcast %cst_167 : f32 to vector<1x4x1x128xf32>
    %c0_168 = arith.constant 0 : index
    %c0_169 = arith.constant 0 : index
    %c0_170 = arith.constant 0 : index
    %c0_171 = arith.constant 0 : index
    %192 = vector.load %arg19[%c0_168, %c0_169, %c0_170, %c0_171] : memref<1x4x4x128xf32, #tpu.memory_space<vmem>>, vector<1x4x1x128xf32>
    tpu.vector_store %arg19[%c0_168, %c0_169, %c0_170, %c0_171], %191 {strides = array<i32>} : memref<1x4x4x128xf32, #tpu.memory_space<vmem>>, vector<1x4x1x128xf32>,
    %cst_172 = arith.constant 0.000000e+00 : f32
    %193 = vector.broadcast %cst_172 : f32 to vector<1x4x1x128xf32>
    %c0_173 = arith.constant 0 : index
    %c0_174 = arith.constant 0 : index
    %c3_175 = arith.constant 3 : index
    %c0_176 = arith.constant 0 : index
    %194 = vector.load %arg19[%c0_173, %c0_174, %c3_175, %c0_176] : memref<1x4x4x128xf32, #tpu.memory_space<vmem>>, vector<1x4x1x128xf32>
    tpu.vector_store %arg19[%c0_173, %c0_174, %c3_175, %c0_176], %193 {strides = array<i32>} : memref<1x4x4x128xf32, #tpu.memory_space<vmem>>, vector<1x4x1x128xf32>,
    %195 = vector.shape_cast %186 : vector<16x128xf32> to vector<2x2x4x128xf32>
    %cst_177 = arith.constant dense<0xFF800000> : vector<2x4x128xf32>
    %196 = vector.multi_reduction <maximumf>, %195, %cst_177 [1] : vector<2x2x4x128xf32> to vector<2x4x128xf32>
    %197 = vector.shape_cast %196 : vector<2x4x128xf32> to vector<2x2x2x128xf32>
    %cst_178 = arith.constant dense<0xFF800000> : vector<2x2x128xf32>
    %198 = vector.multi_reduction <maximumf>, %197, %cst_178 [2] : vector<2x2x2x128xf32> to vector<2x2x128xf32>
    %199 = vector.shape_cast %198 : vector<2x2x128xf32> to vector<1x2x2x128xf32>
    %c0_179 = arith.constant 0 : index
    %c1_180 = arith.constant 1 : index
    %c1_181 = arith.constant 1 : index
    %c0_182 = arith.constant 0 : index
    %200 = vector.load %arg19[%c0_179, %c1_180, %c1_181, %c0_182] : memref<1x4x4x128xf32, #tpu.memory_space<vmem>>, vector<1x2x2x128xf32>
    tpu.vector_store %arg19[%c0_179, %c1_180, %c1_181, %c0_182], %199 {strides = array<i32>} : memref<1x4x4x128xf32, #tpu.memory_space<vmem>>, vector<1x2x2x128xf32>,
    %c0_183 = arith.constant 0 : index
    %c0_184 = arith.constant 0 : index
    %c0_185 = arith.constant 0 : index
    %c0_186 = arith.constant 0 : index
    %201 = vector.load %arg19[%c0_183, %c0_184, %c0_185, %c0_186] : memref<1x4x4x128xf32, #tpu.memory_space<vmem>>, vector<1x4x4x128xf32>
    %202 = vector.extract_strided_slice %201 {offsets = [0, 0, 0, 0], sizes = [1, 4, 2, 128], strides = [1, 1, 1, 1]} : vector<1x4x4x128xf32> to vector<1x4x2x128xf32>
    %203 = vector.extract_strided_slice %202 {offsets = [0, 0, 0, 0], sizes = [1, 2, 2, 128], strides = [1, 1, 1, 1]} : vector<1x4x2x128xf32> to vector<1x2x2x128xf32>
    %204 = vector.shape_cast %203 : vector<1x2x2x128xf32> to vector<4x128xf32>
    %205 = arith.truncf %204 : vector<4x128xf32> to vector<4x128xbf16>
    %c0_187 = arith.constant 0 : index
    %c0_188 = arith.constant 0 : index
    %206 = vector.load %arg20[%c0_187, %c0_188] : memref<4x1152xbf16, #tpu.memory_space<vmem>>, vector<4x128xbf16>
    tpu.vector_store %arg20[%c0_187, %c0_188], %205 {strides = array<i32>} : memref<4x1152xbf16, #tpu.memory_space<vmem>>, vector<4x128xbf16>,
    %207 = vector.extract_strided_slice %202 {offsets = [0, 1, 0, 0], sizes = [1, 2, 2, 128], strides = [1, 1, 1, 1]} : vector<1x4x2x128xf32> to vector<1x2x2x128xf32>
    %208 = vector.shape_cast %207 : vector<1x2x2x128xf32> to vector<4x128xf32>
    %209 = arith.truncf %208 : vector<4x128xf32> to vector<4x128xbf16>
    %c0_189 = arith.constant 0 : index
    %c384_190 = arith.constant 384 : index
    %210 = vector.load %arg20[%c0_189, %c384_190] : memref<4x1152xbf16, #tpu.memory_space<vmem>>, vector<4x128xbf16>
    tpu.vector_store %arg20[%c0_189, %c384_190], %209 {strides = array<i32>} : memref<4x1152xbf16, #tpu.memory_space<vmem>>, vector<4x128xbf16>,
    %211 = vector.extract_strided_slice %202 {offsets = [0, 2, 0, 0], sizes = [1, 2, 2, 128], strides = [1, 1, 1, 1]} : vector<1x4x2x128xf32> to vector<1x2x2x128xf32>
    %212 = vector.shape_cast %211 : vector<1x2x2x128xf32> to vector<4x128xf32>
    %213 = arith.truncf %212 : vector<4x128xf32> to vector<4x128xbf16>
    %c0_191 = arith.constant 0 : index
    %c768 = arith.constant 768 : index
    %214 = vector.load %arg20[%c0_191, %c768] : memref<4x1152xbf16, #tpu.memory_space<vmem>>, vector<4x128xbf16>
    tpu.vector_store %arg20[%c0_191, %c768], %213 {strides = array<i32>} : memref<4x1152xbf16, #tpu.memory_space<vmem>>, vector<4x128xbf16>,
    %215 = vector.extract_strided_slice %201 {offsets = [0, 0, 1, 0], sizes = [1, 4, 2, 128], strides = [1, 1, 1, 1]} : vector<1x4x4x128xf32> to vector<1x4x2x128xf32>
    %216 = vector.extract_strided_slice %215 {offsets = [0, 0, 0, 0], sizes = [1, 2, 2, 128], strides = [1, 1, 1, 1]} : vector<1x4x2x128xf32> to vector<1x2x2x128xf32>
    %217 = vector.shape_cast %216 : vector<1x2x2x128xf32> to vector<4x128xf32>
    %218 = arith.truncf %217 : vector<4x128xf32> to vector<4x128xbf16>
    %c0_192 = arith.constant 0 : index
    %c128_193 = arith.constant 128 : index
    %219 = vector.load %arg20[%c0_192, %c128_193] : memref<4x1152xbf16, #tpu.memory_space<vmem>>, vector<4x128xbf16>
    tpu.vector_store %arg20[%c0_192, %c128_193], %218 {strides = array<i32>} : memref<4x1152xbf16, #tpu.memory_space<vmem>>, vector<4x128xbf16>,
    %220 = vector.extract_strided_slice %215 {offsets = [0, 1, 0, 0], sizes = [1, 2, 2, 128], strides = [1, 1, 1, 1]} : vector<1x4x2x128xf32> to vector<1x2x2x128xf32>
    %221 = vector.shape_cast %220 : vector<1x2x2x128xf32> to vector<4x128xf32>
    %222 = arith.truncf %221 : vector<4x128xf32> to vector<4x128xbf16>
    %c0_194 = arith.constant 0 : index
    %c512_195 = arith.constant 512 : index
    %223 = vector.load %arg20[%c0_194, %c512_195] : memref<4x1152xbf16, #tpu.memory_space<vmem>>, vector<4x128xbf16>
    tpu.vector_store %arg20[%c0_194, %c512_195], %222 {strides = array<i32>} : memref<4x1152xbf16, #tpu.memory_space<vmem>>, vector<4x128xbf16>,
    %224 = vector.extract_strided_slice %215 {offsets = [0, 2, 0, 0], sizes = [1, 2, 2, 128], strides = [1, 1, 1, 1]} : vector<1x4x2x128xf32> to vector<1x2x2x128xf32>
    %225 = vector.shape_cast %224 : vector<1x2x2x128xf32> to vector<4x128xf32>
    %226 = arith.truncf %225 : vector<4x128xf32> to vector<4x128xbf16>
    %c0_196 = arith.constant 0 : index
    %c896 = arith.constant 896 : index
    %227 = vector.load %arg20[%c0_196, %c896] : memref<4x1152xbf16, #tpu.memory_space<vmem>>, vector<4x128xbf16>
    tpu.vector_store %arg20[%c0_196, %c896], %226 {strides = array<i32>} : memref<4x1152xbf16, #tpu.memory_space<vmem>>, vector<4x128xbf16>,
    %228 = vector.extract_strided_slice %201 {offsets = [0, 0, 2, 0], sizes = [1, 4, 2, 128], strides = [1, 1, 1, 1]} : vector<1x4x4x128xf32> to vector<1x4x2x128xf32>
    %229 = vector.extract_strided_slice %228 {offsets = [0, 0, 0, 0], sizes = [1, 2, 2, 128], strides = [1, 1, 1, 1]} : vector<1x4x2x128xf32> to vector<1x2x2x128xf32>
    %230 = vector.shape_cast %229 : vector<1x2x2x128xf32> to vector<4x128xf32>
    %231 = arith.truncf %230 : vector<4x128xf32> to vector<4x128xbf16>
    %c0_197 = arith.constant 0 : index
    %c256_198 = arith.constant 256 : index
    %232 = vector.load %arg20[%c0_197, %c256_198] : memref<4x1152xbf16, #tpu.memory_space<vmem>>, vector<4x128xbf16>
    tpu.vector_store %arg20[%c0_197, %c256_198], %231 {strides = array<i32>} : memref<4x1152xbf16, #tpu.memory_space<vmem>>, vector<4x128xbf16>,
    %233 = vector.extract_strided_slice %228 {offsets = [0, 1, 0, 0], sizes = [1, 2, 2, 128], strides = [1, 1, 1, 1]} : vector<1x4x2x128xf32> to vector<1x2x2x128xf32>
    %234 = vector.shape_cast %233 : vector<1x2x2x128xf32> to vector<4x128xf32>
    %235 = arith.truncf %234 : vector<4x128xf32> to vector<4x128xbf16>
    %c0_199 = arith.constant 0 : index
    %c640 = arith.constant 640 : index
    %236 = vector.load %arg20[%c0_199, %c640] : memref<4x1152xbf16, #tpu.memory_space<vmem>>, vector<4x128xbf16>
    tpu.vector_store %arg20[%c0_199, %c640], %235 {strides = array<i32>} : memref<4x1152xbf16, #tpu.memory_space<vmem>>, vector<4x128xbf16>,
    %237 = vector.extract_strided_slice %228 {offsets = [0, 2, 0, 0], sizes = [1, 2, 2, 128], strides = [1, 1, 1, 1]} : vector<1x4x2x128xf32> to vector<1x2x2x128xf32>
    %238 = vector.shape_cast %237 : vector<1x2x2x128xf32> to vector<4x128xf32>
    %239 = arith.truncf %238 : vector<4x128xf32> to vector<4x128xbf16>
    %c0_200 = arith.constant 0 : index
    %c1024 = arith.constant 1024 : index
    %240 = vector.load %arg20[%c0_200, %c1024] : memref<4x1152xbf16, #tpu.memory_space<vmem>>, vector<4x128xbf16>
    tpu.vector_store %arg20[%c0_200, %c1024], %239 {strides = array<i32>} : memref<4x1152xbf16, #tpu.memory_space<vmem>>, vector<4x128xbf16>,
    %c0_201 = arith.constant 0 : index
    %c0_202 = arith.constant 0 : index
    %241 = vector.load %arg20[%c0_201, %c0_202] : memref<4x1152xbf16, #tpu.memory_space<vmem>>, vector<4x1152xbf16>
    %c0_203 = arith.constant 0 : index
    %c0_204 = arith.constant 0 : index
    %242 = vector.load %arg8[%c0_203, %c0_204] : memref<1152x256xbf16, #tpu.memory_space<vmem>>, vector<1152x256xbf16>
    %cst_205 = arith.constant dense<0.000000e+00> : vector<4x256xf32>
    %243 = tpu.matmul %241, %242, %cst_205 {dimension_numbers = #tpu.dot_dimension_numbers<[1], [0], [0], [1], [0, 0, 1, 1], [], []>} : vector<4x1152xbf16>, vector<1152x256xbf16>, vector<4x256xf32> -> vector<4x256xf32>
    %c0_206 = arith.constant 0 : index
    %c0_207 = arith.constant 0 : index
    %244 = vector.load %arg9[%c0_206, %c0_207] : memref<1x256xf32, #tpu.memory_space<vmem>>, vector<1x256xf32>
    %245 = vector.broadcast %244 : vector<1x256xf32> to vector<4x256xf32>
    %246 = arith.addf %243, %245 : vector<4x256xf32>
    %247 = vector.extract_strided_slice %246 {offsets = [0, 0], sizes = [4, 128], strides = [1, 1]} : vector<4x256xf32> to vector<4x128xf32>
    %248 = vector.extract_strided_slice %246 {offsets = [0, 128], sizes = [4, 128], strides = [1, 1]} : vector<4x256xf32> to vector<4x128xf32>
    %249 = arith.maximumf %247, %248 : vector<4x128xf32>
    %250 = vector.shape_cast %249 : vector<4x128xf32> to vector<1x4x128xf32>
    %cst_208 = arith.constant dense<0.000000e+00> : vector<1x128xf32>
    %251 = vector.multi_reduction <add>, %250, %cst_208 [1] : vector<1x4x128xf32> to vector<1x128xf32>
    %cst_209 = arith.constant 2.500000e-01 : f32
    %252 = vector.broadcast %cst_209 : f32 to vector<1x128xf32>
    %253 = arith.mulf %251, %252 : vector<1x128xf32>
    %c0_210 = arith.constant 0 : index
    %c0_211 = arith.constant 0 : index
    %254 = vector.load %arg10[%c0_210, %c0_211] : memref<128x2xf32, #tpu.memory_space<vmem>>, vector<128x2xf32>
    %cst_212 = arith.constant dense<0.000000e+00> : vector<1x2xf32>
    %255 = tpu.matmul %253, %254, %cst_212 {dimension_numbers = #tpu.dot_dimension_numbers<[1], [0], [0], [1], [0, 0, 1, 1], [], []>} : vector<1x128xf32>, vector<128x2xf32>, vector<1x2xf32> -> vector<1x2xf32>
    %c0_213 = arith.constant 0 : index
    %c0_214 = arith.constant 0 : index
    %256 = vector.load %arg11[%c0_213, %c0_214] : memref<1x2xf32, #tpu.memory_space<vmem>>, vector<1x2xf32>
    %257 = arith.addf %255, %256 : vector<1x2xf32>
    %258 = vector.shape_cast %257 : vector<1x2xf32> to vector<1x1x2xf32>
    %c0_215 = arith.constant 0 : index
    %c0_216 = arith.constant 0 : index
    %c0_217 = arith.constant 0 : index
    %259 = vector.load %arg12[%c0_215, %c0_216, %c0_217] : memref<1x1x2xf32, #tpu.memory_space<vmem>>, vector<1x1x2xf32>
    tpu.vector_store %arg12[%c0_215, %c0_216, %c0_217], %258 {strides = array<i32>} : memref<1x1x2xf32, #tpu.memory_space<vmem>>, vector<1x1x2xf32>,
    return
  }
  func.func @transform_0(%arg0: i32) -> (i32, i32, i32) {
    %c0_i32 = arith.constant 0 : i32
    %c0_i32_0 = arith.constant 0 : i32
    %c0_i32_1 = arith.constant 0 : i32
    return %arg0, %c0_i32, %c0_i32_0 : i32, i32, i32
  }
  func.func @transform_1(%arg0: i32) -> (i32, i32, i32) {
    %c0_i32 = arith.constant 0 : i32
    %c0_i32_0 = arith.constant 0 : i32
    %c0_i32_1 = arith.constant 0 : i32
    %c0_i32_2 = arith.constant 0 : i32
    return %c0_i32, %c0_i32_0, %c0_i32_1 : i32, i32, i32
  }
  func.func @transform_2(%arg0: i32) -> (i32, i32) {
    %c0_i32 = arith.constant 0 : i32
    %c0_i32_0 = arith.constant 0 : i32
    %c0_i32_1 = arith.constant 0 : i32
    return %c0_i32, %c0_i32_0 : i32, i32
  }
  func.func @transform_3(%arg0: i32) -> (i32, i32, i32) {
    %c0_i32 = arith.constant 0 : i32
    %c0_i32_0 = arith.constant 0 : i32
    %c0_i32_1 = arith.constant 0 : i32
    %c0_i32_2 = arith.constant 0 : i32
    return %c0_i32, %c0_i32_0, %c0_i32_1 : i32, i32, i32
  }
  func.func @transform_4(%arg0: i32) -> (i32, i32) {
    %c0_i32 = arith.constant 0 : i32
    %c0_i32_0 = arith.constant 0 : i32
    %c0_i32_1 = arith.constant 0 : i32
    return %c0_i32, %c0_i32_0 : i32, i32
  }
  func.func @transform_5(%arg0: i32) -> (i32, i32) {
    %c0_i32 = arith.constant 0 : i32
    %c0_i32_0 = arith.constant 0 : i32
    %c0_i32_1 = arith.constant 0 : i32
    return %c0_i32, %c0_i32_0 : i32, i32
  }
  func.func @transform_6(%arg0: i32) -> (i32, i32) {
    %c0_i32 = arith.constant 0 : i32
    %c0_i32_0 = arith.constant 0 : i32
    %c0_i32_1 = arith.constant 0 : i32
    return %c0_i32, %c0_i32_0 : i32, i32
  }
  func.func @transform_7(%arg0: i32) -> (i32, i32) {
    %c0_i32 = arith.constant 0 : i32
    %c0_i32_0 = arith.constant 0 : i32
    %c0_i32_1 = arith.constant 0 : i32
    return %c0_i32, %c0_i32_0 : i32, i32
  }
  func.func @transform_8(%arg0: i32) -> (i32, i32) {
    %c0_i32 = arith.constant 0 : i32
    %c0_i32_0 = arith.constant 0 : i32
    %c0_i32_1 = arith.constant 0 : i32
    return %c0_i32, %c0_i32_0 : i32, i32
  }
  func.func @transform_9(%arg0: i32) -> (i32, i32) {
    %c0_i32 = arith.constant 0 : i32
    %c0_i32_0 = arith.constant 0 : i32
    %c0_i32_1 = arith.constant 0 : i32
    return %c0_i32, %c0_i32_0 : i32, i32
  }
  func.func @transform_10(%arg0: i32) -> (i32, i32) {
    %c0_i32 = arith.constant 0 : i32
    %c0_i32_0 = arith.constant 0 : i32
    %c0_i32_1 = arith.constant 0 : i32
    return %c0_i32, %c0_i32_0 : i32, i32
  }
  func.func @transform_11(%arg0: i32) -> (i32, i32, i32) {
    %c0_i32 = arith.constant 0 : i32
    %c0_i32_0 = arith.constant 0 : i32
    %c0_i32_1 = arith.constant 0 : i32
    return %arg0, %c0_i32, %c0_i32_0 : i32, i32, i32
  }
}

</mosaic_0001>

<llo_original>
// kernel: lfcc_lcnn_forward.1
$region0: #{lfcc_lcnn_forward.1}
  #allocation0 [shape = 'u32[]', space=smem, size = 0x4, offset = 0x4, fixed_abs, tag = 'smem constant byte address 0x4 - core index']
  #allocation1 [shape = 'u32[144,128]{1,0:T(1,128)}', space=vmem, size = 0x12000, scoped, tag = 'internal scratch']
  #allocation2 [shape = 'f32[1,18,18]{2,1,0:T(8,128)}', space=vmem, size = 0x3000, scoped, tag = 'scratch operand']
  #allocation3 [shape = 'f32[256,16]{1,0:T(8,128)}', space=vmem, size = 0x20000, scoped, tag = 'scratch operand']
  #allocation4 [shape = 'f32[1,10,10,64]{3,2,1,0:T(8,128)}', space=vmem, size = 0x14000, scoped, tag = 'scratch operand']
  #allocation5 [shape = 'bf16[64,576]{1,0:T(16,128)(2,1)}', space=vmem, size = 0x14000, scoped, tag = 'scratch operand']
  #allocation6 [shape = 'f32[1,6,6,64]{3,2,1,0:T(8,128)}', space=vmem, size = 0x6000, scoped, tag = 'scratch operand']
  #allocation7 [shape = 'bf16[16,576]{1,0:T(16,128)(2,1)}', space=vmem, size = 0x5000, scoped, tag = 'scratch operand']
  #allocation8 [shape = 'f32[1,4,4,128]{3,2,1,0:T(4,128)}', space=vmem, size = 0x2000, scoped, tag = 'scratch operand']
  #allocation9 [shape = 'bf16[4,1152]{1,0:T(4,128)(2,1)}', space=vmem, size = 0x2400, scoped, tag = 'scratch operand']
  %s0 = inlined_call_operand.hbm [shape: f32[2,16,16], index: 0, kind: input, shape index: {}]
  %s1 = inlined_call_operand.hbm [shape: bf16[2,16,64], index: 1, kind: input, shape index: {}]
  %s2 = inlined_call_operand.hbm [shape: f32[2,64], index: 2, kind: input, shape index: {}]
  %s3 = inlined_call_operand.hbm [shape: bf16[2,576,64], index: 3, kind: input, shape index: {}]
  %s4 = inlined_call_operand.hbm [shape: f32[2,64], index: 4, kind: input, shape index: {}]
  %s5 = inlined_call_operand.hbm [shape: bf16[576,256], index: 5, kind: input, shape index: {}]
  %s6 = inlined_call_operand.hbm [shape: f32[1,256], index: 6, kind: input, shape index: {}]
  %s7 = inlined_call_operand.hbm [shape: bf16[1152,256], index: 7, kind: input, shape index: {}]
  %s8 = inlined_call_operand.hbm [shape: f32[1,256], index: 8, kind: input, shape index: {}]
  %s9 = inlined_call_operand.hbm [shape: f32[128,2], index: 9, kind: input, shape index: {}]
  %s10 = inlined_call_operand.hbm [shape: f32[1,2], index: 10, kind: input, shape index: {}]
  %s11 = inlined_call_operand.hbm [shape: f32[2,1,2], index: 11, kind: output, shape index: {}]
  %s12 = sld [smem:[#allocation0]]
  $region121: #{lfcc_lcnn_forward.1} parent=0
    _
  %s14 = ssub.s32 1, %s12
  %s15 = scalar_select 0, %s14, %s12
  $region1: #{lfcc_lcnn_forward.1} parent=0
    #allocation10 [shape = 'u8[16384]{0}', space=vmem, size = 0x4000, scoped, tag = 'input window, operand 0']
    #allocation11 [shape = 's32[2]{0}', space=sflag, size = 0x8, scoped, tag = 'scoped memory for lfcc_lcnn_forward.1']
    #allocation12 [shape = 's32[2]{0}', space=sflag, size = 0x8, scoped, tag = 'scoped memory for lfcc_lcnn_forward.1']
    #allocation13 [shape = 'u8[8192]{0}', space=vmem, size = 0x2000, scoped, tag = 'input window, operand 1, single buffered']
    #allocation14 [shape = 's32[1]{0}', space=sflag, size = 0x4, scoped, tag = 'scoped memory for lfcc_lcnn_forward.1']
    #allocation15 [shape = 'u8[1024]{0}', space=vmem, size = 0x400, scoped, tag = 'input window, operand 2, single buffered']
    #allocation16 [shape = 'u8[294912]{0}', space=vmem, size = 0x48000, scoped, tag = 'input window, operand 3, single buffered']
    #allocation17 [shape = 's32[1]{0}', space=sflag, size = 0x4, scoped, tag = 'scoped memory for lfcc_lcnn_forward.1']
    #allocation18 [shape = 'u8[1024]{0}', space=vmem, size = 0x400, scoped, tag = 'input window, operand 4, single buffered']
    #allocation19 [shape = 'u8[294912]{0}', space=vmem, size = 0x48000, scoped, tag = 'input window, operand 5, single buffered']
    #allocation20 [shape = 's32[1]{0}', space=sflag, size = 0x4, scoped, tag = 'scoped memory for lfcc_lcnn_forward.1']
    #allocation21 [shape = 'u8[1024]{0}', space=vmem, size = 0x400, scoped, tag = 'input window, operand 6, single buffered']
    #allocation22 [shape = 'u8[589824]{0}', space=vmem, size = 0x90000, scoped, tag = 'input window, operand 7, single buffered']
    #allocation23 [shape = 's32[1]{0}', space=sflag, size = 0x4, scoped, tag = 'scoped memory for lfcc_lcnn_forward.1']
    #allocation24 [shape = 'u8[1024]{0}', space=vmem, size = 0x400, scoped, tag = 'input window, operand 8, single buffered']
    #allocation25 [shape = 'u8[65536]{0}', space=vmem, size = 0x10000, scoped, tag = 'input window, operand 9, single buffered']
    #allocation26 [shape = 's32[1]{0}', space=sflag, size = 0x4, scoped, tag = 'scoped memory for lfcc_lcnn_forward.1']
    #allocation27 [shape = 'u8[512]{0}', space=vmem, size = 0x400, scoped, tag = 'input window, operand 10, single buffered']
    #allocation28 [shape = 'u8[1024]{0}', space=vmem, size = 0x400, scoped, tag = 'output window, operand 0']
    %16 = vsyncpa [#allocation11], 0
    %s17 = scalar_lea.sflag [#allocation11], 1
    %18 = vsyncpa %s17, 0
    %19 = vsyncpa [#allocation14], 0
    %20 = vsyncpa [#allocation17], 0
    %21 = vsyncpa [#allocation20], 0
    %22 = vsyncpa [#allocation23], 0
    %23 = vsyncpa [#allocation26], 0
    %24 = vsyncpa [#allocation12], 0
    %s25 = scalar_lea.sflag [#allocation12], 1
    %26 = vsyncpa %s25, 0
    loop: start=0, step=1, limit=4
    $region2: #{lfcc_lcnn_forward.1} parent=1 // loop_pre_header
      _
    $region3: #{lfcc_lcnn_forward.1} parent=1 // loop_header
      %s28 = sphi 0, %s32
      %p29 = scmp.ge.s32.totalorder %s28, 4
      %s38 = sphi 0, %s40
      %s41 = sphi 0, %s38
      %s42 = sphi 0, %s41
      %s58 = sphi 0, %s42
      %s62 = sphi 0, %s62
      %s64 = sphi 0, %s62
      %s65 = sphi 0, %s64
      %s79 = sphi 0, %s65
      %s83 = sphi 0, %s83
      %s85 = sphi 0, %s83
      %s86 = sphi 0, %s85
      %s100 = sphi 0, %s86
      %s104 = sphi 0, %s104
      %s106 = sphi 0, %s104
      %s107 = sphi 0, %s106
      %s121 = sphi 0, %s107
      %s125 = sphi 0, %s125
      %s127 = sphi 0, %s125
      %s128 = sphi 0, %s127
      %s142 = sphi 0, %s128
      %s146 = sphi 0, %s146
      %s148 = sphi 0, %s146
      %s149 = sphi 0, %s148
      %s163 = sphi 0, %s149
      %s167 = sphi 0, %s167
      %s169 = sphi 0, %s167
      %s170 = sphi 0, %s169
      %s184 = sphi 0, %s170
      %s188 = sphi 0, %s188
      %s190 = sphi 0, %s188
      %s191 = sphi 0, %s190
      %s205 = sphi 0, %s191
      %s209 = sphi 0, %s209
      %s211 = sphi 0, %s209
      %s212 = sphi 0, %s211
      %s226 = sphi 0, %s212
      %s230 = sphi 0, %s230
      %s232 = sphi 0, %s230
      %s233 = sphi 0, %s232
      %s247 = sphi 0, %s233
      %s251 = sphi 0, %s251
      %s253 = sphi 0, %s251
      %s254 = sphi 0, %s253
      %s268 = sphi 0, %s254
      %s274 = sphi 0, %s276
      %s277 = sphi 0, %s274
      %s278 = sphi 0, %s277
      %s294 = sphi 0, %s278
    $region4: #{lfcc_lcnn_forward.1} parent=1 // loop_header_branch
      %31 = sbr.rel (%p29) target = $region8
    $region5: #{lfcc_lcnn_forward.1} parent=1 // loop_body
      %s33 = ssub.s32 %s28, 1
      %s34 = ssub.s32 %s28, 2
      %s35 = sadd.s32 %s28, 1
      %s36 = ssub.s32 %s28, %s35
      %p37 = scmp.eq.s32.totalorder %s36, 0
      %s39 = sadd.s32 %s38, 1
      %s40 = scalar_select %p37, %s38, %s39
      %p43 = pneg %p37
      %p44 = scmp.eq.s32.totalorder %s28, 1
      %p45 = por %p43, %p44
      %p46 = scmp.ne.s32.totalorder %s38, %s41
      %p47 = scmp.eq.s32.totalorder %s28, 0
      %p48 = por %p46, %p47
      %p49 = scmp.ne.s32.totalorder %s38, %s41
      %p50 = scmp.eq.s32.totalorder %s33, 1
      %p51 = por %p49, %p50
      %p52 = scmp.ne.s32.totalorder %s41, %s42
      %p53 = scmp.eq.s32.totalorder %s33, 0
      %p54 = por %p52, %p53
      %p55 = scmp.ne.s32.totalorder %s41, %s42
      %p56 = scmp.eq.s32.totalorder %s34, 1
      %p57 = por %p55, %p56
      %p59 = scmp.ne.s32.totalorder %s42, %s58
      %p60 = scmp.eq.s32.totalorder %s34, 0
      %p61 = por %p59, %p60
      %s63 = sadd.s32 %s62, 1
      %p66 = scmp.eq.s32.totalorder %s28, 1
      %p67 = scmp.ne.s32.totalorder %s62, %s64
      %p68 = scmp.eq.s32.totalorder %s28, 0
      %p69 = por %p67, %p68
      %p70 = scmp.ne.s32.totalorder %s62, %s64
      %p71 = scmp.eq.s32.totalorder %s33, 1
      %p72 = por %p70, %p71
      %p73 = scmp.ne.s32.totalorder %s64, %s65
      %p74 = scmp.eq.s32.totalorder %s33, 0
      %p75 = por %p73, %p74
      %p76 = scmp.ne.s32.totalorder %s64, %s65
      %p77 = scmp.eq.s32.totalorder %s34, 1
      %p78 = por %p76, %p77
      %p80 = scmp.ne.s32.totalorder %s65, %s79
      %p81 = scmp.eq.s32.totalorder %s34, 0
      %p82 = por %p80, %p81
      %s84 = sadd.s32 %s83, 1
      %p87 = scmp.eq.s32.totalorder %s28, 1
      %p88 = scmp.ne.s32.totalorder %s83, %s85
      %p89 = scmp.eq.s32.totalorder %s28, 0
      %p90 = por %p88, %p89
      %p91 = scmp.ne.s32.totalorder %s83, %s85
      %p92 = scmp.eq.s32.totalorder %s33, 1
      %p93 = por %p91, %p92
      %p94 = scmp.ne.s32.totalorder %s85, %s86
      %p95 = scmp.eq.s32.totalorder %s33, 0
      %p96 = por %p94, %p95
      %p97 = scmp.ne.s32.totalorder %s85, %s86
      %p98 = scmp.eq.s32.totalorder %s34, 1
      %p99 = por %p97, %p98
      %p101 = scmp.ne.s32.totalorder %s86, %s100
      %p102 = scmp.eq.s32.totalorder %s34, 0
      %p103 = por %p101, %p102
      %s105 = sadd.s32 %s104, 1
      %p108 = scmp.eq.s32.totalorder %s28, 1
      %p109 = scmp.ne.s32.totalorder %s104, %s106
      %p110 = scmp.eq.s32.totalorder %s28, 0
      %p111 = por %p109, %p110
      %p112 = scmp.ne.s32.totalorder %s104, %s106
      %p113 = scmp.eq.s32.totalorder %s33, 1
      %p114 = por %p112, %p113
      %p115 = scmp.ne.s32.totalorder %s106, %s107
      %p116 = scmp.eq.s32.totalorder %s33, 0
      %p117 = por %p115, %p116
      %p118 = scmp.ne.s32.totalorder %s106, %s107
      %p119 = scmp.eq.s32.totalorder %s34, 1
      %p120 = por %p118, %p119
      %p122 = scmp.ne.s32.totalorder %s107, %s121
      %p123 = scmp.eq.s32.totalorder %s34, 0
      %p124 = por %p122, %p123
      %s126 = sadd.s32 %s125, 1
      %p129 = scmp.eq.s32.totalorder %s28, 1
      %p130 = scmp.ne.s32.totalorder %s125, %s127
      %p131 = scmp.eq.s32.totalorder %s28, 0
      %p132 = por %p130, %p131
      %p133 = scmp.ne.s32.totalorder %s125, %s127
      %p134 = scmp.eq.s32.totalorder %s33, 1
      %p135 = por %p133, %p134
      %p136 = scmp.ne.s32.totalorder %s127, %s128
      %p137 = scmp.eq.s32.totalorder %s33, 0
      %p138 = por %p136, %p137
      %p139 = scmp.ne.s32.totalorder %s127, %s128
      %p140 = scmp.eq.s32.totalorder %s34, 1
      %p141 = por %p139, %p140
      %p143 = scmp.ne.s32.totalorder %s128, %s142
      %p144 = scmp.eq.s32.totalorder %s34, 0
      %p145 = por %p143, %p144
      %s147 = sadd.s32 %s146, 1
      %p150 = scmp.eq.s32.totalorder %s28, 1
      %p151 = scmp.ne.s32.totalorder %s146, %s148
      %p152 = scmp.eq.s32.totalorder %s28, 0
      %p153 = por %p151, %p152
      %p154 = scmp.ne.s32.totalorder %s146, %s148
      %p155 = scmp.eq.s32.totalorder %s33, 1
      %p156 = por %p154, %p155
      %p157 = scmp.ne.s32.totalorder %s148, %s149
      %p158 = scmp.eq.s32.totalorder %s33, 0
      %p159 = por %p157, %p158
      %p160 = scmp.ne.s32.totalorder %s148, %s149
      %p161 = scmp.eq.s32.totalorder %s34, 1
      %p162 = por %p160, %p161
      %p164 = scmp.ne.s32.totalorder %s149, %s163
      %p165 = scmp.eq.s32.totalorder %s34, 0
      %p166 = por %p164, %p165
      %s168 = sadd.s32 %s167, 1
      %p171 = scmp.eq.s32.totalorder %s28, 1
      %p172 = scmp.ne.s32.totalorder %s167, %s169
      %p173 = scmp.eq.s32.totalorder %s28, 0
      %p174 = por %p172, %p173
      %p175 = scmp.ne.s32.totalorder %s167, %s169
      %p176 = scmp.eq.s32.totalorder %s33, 1
      %p177 = por %p175, %p176
      %p178 = scmp.ne.s32.totalorder %s169, %s170
      %p179 = scmp.eq.s32.totalorder %s33, 0
      %p180 = por %p178, %p179
      %p181 = scmp.ne.s32.totalorder %s169, %s170
      %p182 = scmp.eq.s32.totalorder %s34, 1
      %p183 = por %p181, %p182
      %p185 = scmp.ne.s32.totalorder %s170, %s184
      %p186 = scmp.eq.s32.totalorder %s34, 0
      %p187 = por %p185, %p186
      %s189 = sadd.s32 %s188, 1
      %p192 = scmp.eq.s32.totalorder %s28, 1
      %p193 = scmp.ne.s32.totalorder %s188, %s190
      %p194 = scmp.eq.s32.totalorder %s28, 0
      %p195 = por %p193, %p194
      %p196 = scmp.ne.s32.totalorder %s188, %s190
      %p197 = scmp.eq.s32.totalorder %s33, 1
      %p198 = por %p196, %p197
      %p199 = scmp.ne.s32.totalorder %s190, %s191
      %p200 = scmp.eq.s32.totalorder %s33, 0
      %p201 = por %p199, %p200
      %p202 = scmp.ne.s32.totalorder %s190, %s191
      %p203 = scmp.eq.s32.totalorder %s34, 1
      %p204 = por %p202, %p203
      %p206 = scmp.ne.s32.totalorder %s191, %s205
      %p207 = scmp.eq.s32.totalorder %s34, 0
      %p208 = por %p206, %p207
      %s210 = sadd.s32 %s209, 1
      %p213 = scmp.eq.s32.totalorder %s28, 1
      %p214 = scmp.ne.s32.totalorder %s209, %s211
      %p215 = scmp.eq.s32.totalorder %s28, 0
      %p216 = por %p214, %p215
      %p217 = scmp.ne.s32.totalorder %s209, %s211
      %p218 = scmp.eq.s32.totalorder %s33, 1
      %p219 = por %p217, %p218
      %p220 = scmp.ne.s32.totalorder %s211, %s212
      %p221 = scmp.eq.s32.totalorder %s33, 0
      %p222 = por %p220, %p221
      %p223 = scmp.ne.s32.totalorder %s211, %s212
      %p224 = scmp.eq.s32.totalorder %s34, 1
      %p225 = por %p223, %p224
      %p227 = scmp.ne.s32.totalorder %s212, %s226
      %p228 = scmp.eq.s32.totalorder %s34, 0
      %p229 = por %p227, %p228
      %s231 = sadd.s32 %s230, 1
      %p234 = scmp.eq.s32.totalorder %s28, 1
      %p235 = scmp.ne.s32.totalorder %s230, %s232
      %p236 = scmp.eq.s32.totalorder %s28, 0
      %p237 = por %p235, %p236
      %p238 = scmp.ne.s32.totalorder %s230, %s232
      %p239 = scmp.eq.s32.totalorder %s33, 1
      %p240 = por %p238, %p239
      %p241 = scmp.ne.s32.totalorder %s232, %s233
      %p242 = scmp.eq.s32.totalorder %s33, 0
      %p243 = por %p241, %p242
      %p244 = scmp.ne.s32.totalorder %s232, %s233
      %p245 = scmp.eq.s32.totalorder %s34, 1
      %p246 = por %p244, %p245
      %p248 = scmp.ne.s32.totalorder %s233, %s247
      %p249 = scmp.eq.s32.totalorder %s34, 0
      %p250 = por %p248, %p249
      %s252 = sadd.s32 %s251, 1
      %p255 = scmp.eq.s32.totalorder %s28, 1
      %p256 = scmp.ne.s32.totalorder %s251, %s253
      %p257 = scmp.eq.s32.totalorder %s28, 0
      %p258 = por %p256, %p257
      %p259 = scmp.ne.s32.totalorder %s251, %s253
      %p260 = scmp.eq.s32.totalorder %s33, 1
      %p261 = por %p259, %p260
      %p262 = scmp.ne.s32.totalorder %s253, %s254
      %p263 = scmp.eq.s32.totalorder %s33, 0
      %p264 = por %p262, %p263
      %p265 = scmp.ne.s32.totalorder %s253, %s254
      %p266 = scmp.eq.s32.totalorder %s34, 1
      %p267 = por %p265, %p266
      %p269 = scmp.ne.s32.totalorder %s254, %s268
      %p270 = scmp.eq.s32.totalorder %s34, 0
      %p271 = por %p269, %p270
      %s272 = ssub.s32 %s28, %s35
      %p273 = scmp.eq.s32.totalorder %s272, 0
      %s275 = sadd.s32 %s274, 1
      %s276 = scalar_select %p273, %s274, %s275
      %p279 = pneg %p273
      %p280 = scmp.eq.s32.totalorder %s28, 1
      %p281 = por %p279, %p280
      %p282 = scmp.ne.s32.totalorder %s274, %s277
      %p283 = scmp.eq.s32.totalorder %s28, 0
      %p284 = por %p282, %p283
      %p285 = scmp.ne.s32.totalorder %s274, %s277
      %p286 = scmp.eq.s32.totalorder %s33, 1
      %p287 = por %p285, %p286
      %p288 = scmp.ne.s32.totalorder %s277, %s278
      %p289 = scmp.eq.s32.totalorder %s33, 0
      %p290 = por %p288, %p289
      %p291 = scmp.ne.s32.totalorder %s277, %s278
      %p292 = scmp.eq.s32.totalorder %s34, 1
      %p293 = por %p291, %p292
      %p295 = scmp.ne.s32.totalorder %s278, %s294
      %p296 = scmp.eq.s32.totalorder %s34, 0
      %p297 = por %p295, %p296
      %p298 = scmp.le.s32.totalorder 1, %s28
      %p299 = scmp.lt.s32.totalorder %s28, 3
      %p300 = pnand %p298, %p299
      %p301 = pneg %p300
      // Predicated region
      $region9: #{lfcc_lcnn_forward.1} parent=5 // pred_check
        _
      $region10: #{lfcc_lcnn_forward.1} parent=5 // pred_check_branch
        %303 = sbr.rel (%p300) target = $region12
      $region11: #{lfcc_lcnn_forward.1} parent=5 // pred_region
        %s304 = ssub.s32 %s28, 1
        // Predicated region
        $region13: #{lfcc_lcnn_forward.1} parent=11 // pred_check
          %p305 = pneg %p75
        $region14: #{lfcc_lcnn_forward.1} parent=11 // pred_check_branch
          %307 = sbr.rel (%p305) target = $region16
        $region15: #{lfcc_lcnn_forward.1} parent=11 // pred_region
          %s309 = ssub.s32 256, 256
          %310 = vsyncadd [#allocation14], %s309
          %s311 = sshll.u32 [#allocation13], 4
          %s312 = int_to_ptr.vmem [resolvable:$true] %s311
          %317 = dma.hbm_to_vmem [thread:$0]  %s1, 256, %s312, [#allocation14], 64, 64, 4
        $region16: #{lfcc_lcnn_forward.1} parent=11 // pred_fallthru
          _
        // Predicated region
        $region17: #{lfcc_lcnn_forward.1} parent=11 // pred_check
          %p318 = pneg %p96
        $region18: #{lfcc_lcnn_forward.1} parent=11 // pred_check_branch
          %320 = sbr.rel (%p318) target = $region20
        $region19: #{lfcc_lcnn_forward.1} parent=11 // pred_region
          %s322 = ssub.s32 32, 32
          %323 = vsyncadd [#allocation14], %s322
          %s325 = sshll.u32 [#allocation15], 4
          %s326 = int_to_ptr.vmem [resolvable:$true] %s325
          %328 = dma.hbm_to_vmem [thread:$0]  %s2, 32, %s326, [#allocation14]
        $region20: #{lfcc_lcnn_forward.1} parent=11 // pred_fallthru
          _
        // Predicated region
        $region21: #{lfcc_lcnn_forward.1} parent=11 // pred_check
          %p329 = pneg %p117
        $region22: #{lfcc_lcnn_forward.1} parent=11 // pred_check_branch
          %331 = sbr.rel (%p329) target = $region24
        $region23: #{lfcc_lcnn_forward.1} parent=11 // pred_region
          %s333 = ssub.s32 9216, 9216
          %334 = vsyncadd [#allocation17], %s333
          %s335 = sshll.u32 [#allocation16], 4
          %s336 = int_to_ptr.vmem [resolvable:$true] %s335
          %341 = dma.hbm_to_vmem [thread:$0]  %s3, 9216, %s336, [#allocation17], 64, 64, 4
        $region24: #{lfcc_lcnn_forward.1} parent=11 // pred_fallthru
          _
        // Predicated region
        $region25: #{lfcc_lcnn_forward.1} parent=11 // pred_check
          %p342 = pneg %p138
        $region26: #{lfcc_lcnn_forward.1} parent=11 // pred_check_branch
          %344 = sbr.rel (%p342) target = $region28
        $region27: #{lfcc_lcnn_forward.1} parent=11 // pred_region
          %s346 = ssub.s32 32, 32
          %347 = vsyncadd [#allocation17], %s346
          %s349 = sshll.u32 [#allocation18], 4
          %s350 = int_to_ptr.vmem [resolvable:$true] %s349
          %352 = dma.hbm_to_vmem [thread:$0]  %s4, 32, %s350, [#allocation17]
        $region28: #{lfcc_lcnn_forward.1} parent=11 // pred_fallthru
          _
        // Predicated region
        $region29: #{lfcc_lcnn_forward.1} parent=11 // pred_check
          %p353 = pneg %p159
        $region30: #{lfcc_lcnn_forward.1} parent=11 // pred_check_branch
          %355 = sbr.rel (%p353) target = $region32
        $region31: #{lfcc_lcnn_forward.1} parent=11 // pred_region
          %s357 = ssub.s32 9216, 9216
          %358 = vsyncadd [#allocation20], %s357
          %s359 = sshll.u32 [#allocation19], 4
          %s360 = int_to_ptr.vmem [resolvable:$true] %s359
          %365 = dma.hbm_to_vmem [thread:$0]  %s5, 9216, %s360, [#allocation20], 128, 128, 8
        $region32: #{lfcc_lcnn_forward.1} parent=11 // pred_fallthru
          _
        // Predicated region
        $region33: #{lfcc_lcnn_forward.1} parent=11 // pred_check
          %p366 = pneg %p180
        $region34: #{lfcc_lcnn_forward.1} parent=11 // pred_check_branch
          %368 = sbr.rel (%p366) target = $region36
        $region35: #{lfcc_lcnn_forward.1} parent=11 // pred_region
          %s370 = ssub.s32 32, 32
          %371 = vsyncadd [#allocation20], %s370
          %s373 = sshll.u32 [#allocation21], 4
          %s374 = int_to_ptr.vmem [resolvable:$true] %s373
          %376 = dma.hbm_to_vmem [thread:$0]  %s6, 32, %s374, [#allocation20]
        $region36: #{lfcc_lcnn_forward.1} parent=11 // pred_fallthru
          _
        // Predicated region
        $region37: #{lfcc_lcnn_forward.1} parent=11 // pred_check
          %p377 = pneg %p201
        $region38: #{lfcc_lcnn_forward.1} parent=11 // pred_check_branch
          %379 = sbr.rel (%p377) target = $region40
        $region39: #{lfcc_lcnn_forward.1} parent=11 // pred_region
          %s381 = ssub.s32 18432, 18432
          %382 = vsyncadd [#allocation23], %s381
          %s383 = sshll.u32 [#allocation22], 4
          %s384 = int_to_ptr.vmem [resolvable:$true] %s383
          %389 = dma.hbm_to_vmem [thread:$0]  %s7, 18432, %s384, [#allocation23], 128, 128, 8
        $region40: #{lfcc_lcnn_forward.1} parent=11 // pred_fallthru
          _
        // Predicated region
        $region41: #{lfcc_lcnn_forward.1} parent=11 // pred_check
          %p390 = pneg %p222
        $region42: #{lfcc_lcnn_forward.1} parent=11 // pred_check_branch
          %392 = sbr.rel (%p390) target = $region44
        $region43: #{lfcc_lcnn_forward.1} parent=11 // pred_region
          %s394 = ssub.s32 32, 32
          %395 = vsyncadd [#allocation23], %s394
          %s397 = sshll.u32 [#allocation24], 4
          %s398 = int_to_ptr.vmem [resolvable:$true] %s397
          %400 = dma.hbm_to_vmem [thread:$0]  %s8, 32, %s398, [#allocation23]
        $region44: #{lfcc_lcnn_forward.1} parent=11 // pred_fallthru
          _
        // Predicated region
        $region45: #{lfcc_lcnn_forward.1} parent=11 // pred_check
          %p401 = pneg %p243
        $region46: #{lfcc_lcnn_forward.1} parent=11 // pred_check_branch
          %403 = sbr.rel (%p401) target = $region48
        $region47: #{lfcc_lcnn_forward.1} parent=11 // pred_region
          %s405 = ssub.s32 2048, 2048
          %406 = vsyncadd [#allocation26], %s405
          %s407 = sshll.u32 [#allocation25], 4
          %s408 = int_to_ptr.vmem [resolvable:$true] %s407
          %413 = dma.hbm_to_vmem [thread:$0]  %s9, 2048, %s408, [#allocation26], 128, 128, 8
        $region48: #{lfcc_lcnn_forward.1} parent=11 // pred_fallthru
          _
        // Predicated region
        $region49: #{lfcc_lcnn_forward.1} parent=11 // pred_check
          %p414 = pneg %p264
        $region50: #{lfcc_lcnn_forward.1} parent=11 // pred_check_branch
          %416 = sbr.rel (%p414) target = $region52
        $region51: #{lfcc_lcnn_forward.1} parent=11 // pred_region
          %s418 = ssub.s32 16, 16
          %419 = vsyncadd [#allocation26], %s418
          %s421 = sshll.u32 [#allocation27], 4
          %s422 = int_to_ptr.vmem [resolvable:$true] %s421
          %424 = dma.hbm_to_vmem [thread:$0]  %s10, 16, %s422, [#allocation26]
        $region52: #{lfcc_lcnn_forward.1} parent=11 // pred_fallthru
          _
      $region12: #{lfcc_lcnn_forward.1} parent=5 // pred_fallthru
        _
      %p425 = scmp.lt.s32.totalorder %s28, 2
      // Predicated region
      $region53: #{lfcc_lcnn_forward.1} parent=5 // pred_check
        %p426 = pneg %p425
      $region54: #{lfcc_lcnn_forward.1} parent=5 // pred_check_branch
        %428 = sbr.rel (%p426) target = $region56
      $region55: #{lfcc_lcnn_forward.1} parent=5 // pred_region
        // Predicated region
        $region57: #{lfcc_lcnn_forward.1} parent=55 // pred_check
          %p429 = pneg %p48
        $region58: #{lfcc_lcnn_forward.1} parent=55 // pred_check_branch
          %431 = sbr.rel (%p429) target = $region60
        $region59: #{lfcc_lcnn_forward.1} parent=55 // pred_region
          %s432 = sand.u32 %s38, 1
          %s433 = scalar_lea.sflag [#allocation11], %s432
          %s434 = sand.u32 %s38, 1
          %s435 = smul.addr %s434, 16
          %s436 = scalar_lea.vmem [#allocation10], %s435
          %s438 = ssub.s32 256, 256
          %439 = vsyncadd %s433, %s438
          %s440 = smul.addr %s28, 2
          %s441 = smul.addr %s440, 128
          %s442 = scalar_lea.hbm %s0, %s441
          %s443 = sshll.u32 %s436, 4
          %s444 = int_to_ptr.vmem [resolvable:$true] %s443
          %449 = dma.hbm_to_vmem [thread:$0]  %s442, 256, %s444, %s433, 128, 128, 8
        $region60: #{lfcc_lcnn_forward.1} parent=55 // pred_fallthru
          _
      $region56: #{lfcc_lcnn_forward.1} parent=5 // pred_fallthru
        _
      %p450 = scmp.le.s32.totalorder 1, %s28
      %p451 = scmp.lt.s32.totalorder %s28, 3
      %p452 = pnand %p450, %p451
      %p453 = pneg %p452
      // Predicated region
      $region61: #{lfcc_lcnn_forward.1} parent=5 // pred_check
        _
      $region62: #{lfcc_lcnn_forward.1} parent=5 // pred_check_branch
        %455 = sbr.rel (%p452) target = $region64
      $region63: #{lfcc_lcnn_forward.1} parent=5 // pred_region
        %s456 = ssub.s32 %s28, 1
        %s457 = sand.u32 %s41, 1
        %s458 = scalar_lea.sflag [#allocation11], %s457
        %s459 = sand.u32 %s41, 1
        %s460 = smul.addr %s459, 16
        %s461 = scalar_lea.vmem [#allocation10], %s460
        // Predicated region
        $region65: #{lfcc_lcnn_forward.1} parent=63 // pred_check
          %p462 = pneg %p54
        $region66: #{lfcc_lcnn_forward.1} parent=63 // pred_check_branch
          %464 = sbr.rel (%p462) target = $region68
        $region67: #{lfcc_lcnn_forward.1} parent=63 // pred_region
          %465 = dma.done %s458, 256
        $region68: #{lfcc_lcnn_forward.1} parent=63 // pred_fallthru
          _
        // Predicated region
        $region69: #{lfcc_lcnn_forward.1} parent=63 // pred_check
          %p466 = pneg %p75
        $region70: #{lfcc_lcnn_forward.1} parent=63 // pred_check_branch
          %468 = sbr.rel (%p466) target = $region72
        $region71: #{lfcc_lcnn_forward.1} parent=63 // pred_region
          %469 = dma.done [#allocation14], 256
        $region72: #{lfcc_lcnn_forward.1} parent=63 // pred_fallthru
          _
        // Predicated region
        $region73: #{lfcc_lcnn_forward.1} parent=63 // pred_check
          %p470 = pneg %p96
        $region74: #{lfcc_lcnn_forward.1} parent=63 // pred_check_branch
          %472 = sbr.rel (%p470) target = $region76
        $region75: #{lfcc_lcnn_forward.1} parent=63 // pred_region
          %473 = dma.done [#allocation14], 32
        $region76: #{lfcc_lcnn_forward.1} parent=63 // pred_fallthru
          _
        // Predicated region
        $region77: #{lfcc_lcnn_forward.1} parent=63 // pred_check
          %p474 = pneg %p117
        $region78: #{lfcc_lcnn_forward.1} parent=63 // pred_check_branch
          %476 = sbr.rel (%p474) target = $region80
        $region79: #{lfcc_lcnn_forward.1} parent=63 // pred_region
          %477 = dma.done [#allocation17], 9216
        $region80: #{lfcc_lcnn_forward.1} parent=63 // pred_fallthru
          _
        // Predicated region
        $region81: #{lfcc_lcnn_forward.1} parent=63 // pred_check
          %p478 = pneg %p138
        $region82: #{lfcc_lcnn_forward.1} parent=63 // pred_check_branch
          %480 = sbr.rel (%p478) target = $region84
        $region83: #{lfcc_lcnn_forward.1} parent=63 // pred_region
          %481 = dma.done [#allocation17], 32
        $region84: #{lfcc_lcnn_forward.1} parent=63 // pred_fallthru
          _
        // Predicated region
        $region85: #{lfcc_lcnn_forward.1} parent=63 // pred_check
          %p482 = pneg %p159
        $region86: #{lfcc_lcnn_forward.1} parent=63 // pred_check_branch
          %484 = sbr.rel (%p482) target = $region88
        $region87: #{lfcc_lcnn_forward.1} parent=63 // pred_region
          %485 = dma.done [#allocation20], 9216
        $region88: #{lfcc_lcnn_forward.1} parent=63 // pred_fallthru
          _
        // Predicated region
        $region89: #{lfcc_lcnn_forward.1} parent=63 // pred_check
          %p486 = pneg %p180
        $region90: #{lfcc_lcnn_forward.1} parent=63 // pred_check_branch
          %488 = sbr.rel (%p486) target = $region92
        $region91: #{lfcc_lcnn_forward.1} parent=63 // pred_region
          %489 = dma.done [#allocation20], 32
        $region92: #{lfcc_lcnn_forward.1} parent=63 // pred_fallthru
          _
        // Predicated region
        $region93: #{lfcc_lcnn_forward.1} parent=63 // pred_check
          %p490 = pneg %p201
        $region94: #{lfcc_lcnn_forward.1} parent=63 // pred_check_branch
          %492 = sbr.rel (%p490) target = $region96
        $region95: #{lfcc_lcnn_forward.1} parent=63 // pred_region
          %493 = dma.done [#allocation23], 18432
        $region96: #{lfcc_lcnn_forward.1} parent=63 // pred_fallthru
          _
        // Predicated region
        $region97: #{lfcc_lcnn_forward.1} parent=63 // pred_check
          %p494 = pneg %p222
        $region98: #{lfcc_lcnn_forward.1} parent=63 // pred_check_branch
          %496 = sbr.rel (%p494) target = $region100
        $region99: #{lfcc_lcnn_forward.1} parent=63 // pred_region
          %497 = dma.done [#allocation23], 32
        $region100: #{lfcc_lcnn_forward.1} parent=63 // pred_fallthru
          _
        // Predicated region
        $region101: #{lfcc_lcnn_forward.1} parent=63 // pred_check
          %p498 = pneg %p243
        $region102: #{lfcc_lcnn_forward.1} parent=63 // pred_check_branch
          %500 = sbr.rel (%p498) target = $region104
        $region103: #{lfcc_lcnn_forward.1} parent=63 // pred_region
          %501 = dma.done [#allocation26], 2048
        $region104: #{lfcc_lcnn_forward.1} parent=63 // pred_fallthru
          _
        // Predicated region
        $region105: #{lfcc_lcnn_forward.1} parent=63 // pred_check
          %p502 = pneg %p264
        $region106: #{lfcc_lcnn_forward.1} parent=63 // pred_check_branch
          %504 = sbr.rel (%p502) target = $region108
        $region107: #{lfcc_lcnn_forward.1} parent=63 // pred_region
          %505 = dma.done [#allocation26], 16
        $region108: #{lfcc_lcnn_forward.1} parent=63 // pred_fallthru
          _
        %s506 = sand.u32 %s41, 1
        %s507 = scalar_lea.sflag [#allocation11], %s506
        %s508 = sand.u32 %s41, 1
        %s509 = smul.addr %s508, 16
        %s510 = scalar_lea.vmem [#allocation10], %s509
        %p511 = pneg %p54
        %p512 = pneg %p51
        %p513 = pneg %p75
        %p514 = pneg %p72
        %p515 = pneg %p96
        %p516 = pneg %p93
        %p517 = pneg %p117
        %p518 = pneg %p114
        %p519 = pneg %p138
        %p520 = pneg %p135
        %p521 = pneg %p159
        %p522 = pneg %p156
        %p523 = pneg %p180
        %p524 = pneg %p177
        %p525 = pneg %p201
        %p526 = pneg %p198
        %p527 = pneg %p222
        %p528 = pneg %p219
        %p529 = pneg %p243
        %p530 = pneg %p240
        %p531 = pneg %p264
        %p532 = pneg %p261
        %p533 = pneg %p290
        %p534 = pneg %p287
        %s535 = sand.u32 %s277, 1
        %s536 = scalar_lea.sflag [#allocation12], %s535
        %s537 = sand.u32 %s277, 1
        %s538 = scalar_lea.vmem [#allocation28], %s537
        %vm540 = vcmask 139264
        %541 = vst.msk [vmem:[#allocation2] sm:$0x1] %vm540, 0.0
        %542 = vst.msk [vmem:[#allocation2 + $0x11] sm:$0x1] %vm540, 0.0
        %vm543 = vcmask 7168
        %544 = vst.msk [vmem:[#allocation2] sm:$0xff] %vm543, 0.0
        %545 = vst.msk [vmem:[#allocation2 + $0x8] sm:$0xff] %vm543, 0.0
        %vm546 = vcmask 1024
        %547 = vst.msk [vmem:[#allocation2 + $0x10] sm:$0x3] %vm546, 0.0
        %vm548 = vcmask 146568
        %549 = vst.msk [vmem:[#allocation2] sm:$0xff] %vm548, 0.0
        %550 = vst.msk [vmem:[#allocation2 + $0x8] sm:$0xff] %vm548, 0.0
        %vm551 = vcmask 140424
        %552 = vst.msk [vmem:[#allocation2 + $0x10] sm:$0x3] %vm551, 0.0
        %v553 = vld [vmem:[%s461] sm:$0xff]
        %v554 = vld [vmem:[%s461 + $0x8] sm:$0xff]
        %557 = vrot.lane.b32.xlu0 %v553, 1
        %v558 = vpop.permute.xlu0 %557
        %559 = vrot.lane.b32.xlu0 %v554, 1
        %v560 = vpop.permute.xlu0 %559
        %vm563 = vcmask 138248
        %564 = vst.msk [vmem:[#allocation2 + $0x1] sm:$0xff] %vm563, %v558
        %565 = vst.msk [vmem:[#allocation2 + $0x9] sm:$0xff] %vm563, %v560
        %vm566 = vcmask 130120
        %567 = vst.msk [vmem:[#allocation3] sm:$0xff] %vm566, 0.0
        %568 = vst.msk [vmem:[#allocation3 + $0x8] sm:$0xff] %vm566, 0.0
        %569 = vst.msk [vmem:[#allocation3 + $0x10] sm:$0xff] %vm566, 0.0
        %570 = vst.msk [vmem:[#allocation3 + $0x18] sm:$0xff] %vm566, 0.0
        %571 = vst.msk [vmem:[#allocation3 + $0x20] sm:$0xff] %vm566, 0.0
        %572 = vst.msk [vmem:[#allocation3 + $0x28] sm:$0xff] %vm566, 0.0
        %573 = vst.msk [vmem:[#allocation3 + $0x30] sm:$0xff] %vm566, 0.0
        %574 = vst.msk [vmem:[#allocation3 + $0x38] sm:$0xff] %vm566, 0.0
        %575 = vst.msk [vmem:[#allocation3 + $0x40] sm:$0xff] %vm566, 0.0
        %576 = vst.msk [vmem:[#allocation3 + $0x48] sm:$0xff] %vm566, 0.0
        %577 = vst.msk [vmem:[#allocation3 + $0x50] sm:$0xff] %vm566, 0.0
        %578 = vst.msk [vmem:[#allocation3 + $0x58] sm:$0xff] %vm566, 0.0
        %579 = vst.msk [vmem:[#allocation3 + $0x60] sm:$0xff] %vm566, 0.0
        %580 = vst.msk [vmem:[#allocation3 + $0x68] sm:$0xff] %vm566, 0.0
        %581 = vst.msk [vmem:[#allocation3 + $0x70] sm:$0xff] %vm566, 0.0
        %582 = vst.msk [vmem:[#allocation3 + $0x78] sm:$0xff] %vm566, 0.0
        %583 = vst.msk [vmem:[#allocation3 + $0x80] sm:$0xff] %vm566, 0.0
        %584 = vst.msk [vmem:[#allocation3 + $0x88] sm:$0xff] %vm566, 0.0
        %585 = vst.msk [vmem:[#allocation3 + $0x90] sm:$0xff] %vm566, 0.0
        %586 = vst.msk [vmem:[#allocation3 + $0x98] sm:$0xff] %vm566, 0.0
        %587 = vst.msk [vmem:[#allocation3 + $0xa0] sm:$0xff] %vm566, 0.0
        %588 = vst.msk [vmem:[#allocation3 + $0xa8] sm:$0xff] %vm566, 0.0
        %589 = vst.msk [vmem:[#allocation3 + $0xb0] sm:$0xff] %vm566, 0.0
        %590 = vst.msk [vmem:[#allocation3 + $0xb8] sm:$0xff] %vm566, 0.0
        %591 = vst.msk [vmem:[#allocation3 + $0xc0] sm:$0xff] %vm566, 0.0
        %592 = vst.msk [vmem:[#allocation3 + $0xc8] sm:$0xff] %vm566, 0.0
        %593 = vst.msk [vmem:[#allocation3 + $0xd0] sm:$0xff] %vm566, 0.0
        %594 = vst.msk [vmem:[#allocation3 + $0xd8] sm:$0xff] %vm566, 0.0
        %595 = vst.msk [vmem:[#allocation3 + $0xe0] sm:$0xff] %vm566, 0.0
        %596 = vst.msk [vmem:[#allocation3 + $0xe8] sm:$0xff] %vm566, 0.0
        %597 = vst.msk [vmem:[#allocation3 + $0xf0] sm:$0xff] %vm566, 0.0
        %598 = vst.msk [vmem:[#allocation3 + $0xf8] sm:$0xff] %vm566, 0.0
        %v599 = vld [vmem:[#allocation2] sm:$0xff]
        %v600 = vld [vmem:[#allocation2 + $0x8] sm:$0xff]
        %v601 = vld [vmem:[#allocation2 + $0x10] sm:$0x3]
        %v602 = vlaneseq
        %v603 = vshrl.u32 %v602, 7
        %v604 = vsub.s32 0, %v603
        %v605 = vrot.slane %v599, %v604
        %607 = vbcast.lane.b32.xlu0 %v605, 256
        %v608 = vpop.permute.xlu0 %607
        %s610 = sor.u32 256, 8
        %611 = vbcast.lane.b32.xlu0 %v605, %s610
        %v612 = vpop.permute.xlu0 %611
        %s614 = sor.u32 256, 16
        %615 = vbcast.lane.b32.xlu0 %v605, %s614
        %v616 = vpop.permute.xlu0 %615
        %v617 = vlaneseq
        %v618 = vshrl.u32 %v617, 7
        %v619 = vsub.s32 1, %v618
        %v620 = vrot.slane %v599, %v619
        %622 = vbcast.lane.b32.xlu0 %v620, 256
        %v623 = vpop.permute.xlu0 %622
        %s625 = sor.u32 256, 8
        %626 = vbcast.lane.b32.xlu0 %v620, %s625
        %v627 = vpop.permute.xlu0 %626
        %s629 = sor.u32 256, 16
        %630 = vbcast.lane.b32.xlu0 %v620, %s629
        %v631 = vpop.permute.xlu0 %630
        %v632 = vlaneseq
        %v633 = vshrl.u32 %v632, 7
        %v634 = vsub.s32 2, %v633
        %v635 = vrot.slane %v599, %v634
        %637 = vbcast.lane.b32.xlu0 %v635, 256
        %v638 = vpop.permute.xlu0 %637
        %s640 = sor.u32 256, 8
        %641 = vbcast.lane.b32.xlu0 %v635, %s640
        %v642 = vpop.permute.xlu0 %641
        %s644 = sor.u32 256, 16
        %645 = vbcast.lane.b32.xlu0 %v635, %s644
        %v646 = vpop.permute.xlu0 %645
        %v647 = vlaneseq
        %v648 = vshrl.u32 %v647, 7
        %v649 = vsub.s32 3, %v648
        %v650 = vrot.slane %v599, %v649
        %652 = vbcast.lane.b32.xlu0 %v650, 256
        %v653 = vpop.permute.xlu0 %652
        %s655 = sor.u32 256, 8
        %656 = vbcast.lane.b32.xlu0 %v650, %s655
        %v657 = vpop.permute.xlu0 %656
        %s659 = sor.u32 256, 16
        %660 = vbcast.lane.b32.xlu0 %v650, %s659
        %v661 = vpop.permute.xlu0 %660
        %v662 = vlaneseq
        %v663 = vshrl.u32 %v662, 7
        %v664 = vsub.s32 4, %v663
        %v665 = vrot.slane %v599, %v664
        %667 = vbcast.lane.b32.xlu0 %v665, 256
        %v668 = vpop.permute.xlu0 %667
        %s670 = sor.u32 256, 8
        %671 = vbcast.lane.b32.xlu0 %v665, %s670
        %v672 = vpop.permute.xlu0 %671
        %s674 = sor.u32 256, 16
        %675 = vbcast.lane.b32.xlu0 %v665, %s674
        %v676 = vpop.permute.xlu0 %675
        %v677 = vlaneseq
        %v678 = vshrl.u32 %v677, 7
        %v679 = vsub.s32 5, %v678
        %v680 = vrot.slane %v599, %v679
        %682 = vbcast.lane.b32.xlu0 %v680, 256
        %v683 = vpop.permute.xlu0 %682
        %s685 = sor.u32 256, 8
        %686 = vbcast.lane.b32.xlu0 %v680, %s685
        %v687 = vpop.permute.xlu0 %686
        %s689 = sor.u32 256, 16
        %690 = vbcast.lane.b32.xlu0 %v680, %s689
        %v691 = vpop.permute.xlu0 %690
        %v692 = vlaneseq
        %v693 = vshrl.u32 %v692, 7
        %v694 = vsub.s32 6, %v693
        %v695 = vrot.slane %v599, %v694
        %697 = vbcast.lane.b32.xlu0 %v695, 256
        %v698 = vpop.permute.xlu0 %697
        %s700 = sor.u32 256, 8
        %701 = vbcast.lane.b32.xlu0 %v695, %s700
        %v702 = vpop.permute.xlu0 %701
        %s704 = sor.u32 256, 16
        %705 = vbcast.lane.b32.xlu0 %v695, %s704
        %v706 = vpop.permute.xlu0 %705
        %v707 = vlaneseq
        %v708 = vshrl.u32 %v707, 7
        %v709 = vsub.s32 7, %v708
        %v710 = vrot.slane %v599, %v709
        %712 = vbcast.lane.b32.xlu0 %v710, 256
        %v713 = vpop.permute.xlu0 %712
        %s715 = sor.u32 256, 8
        %716 = vbcast.lane.b32.xlu0 %v710, %s715
        %v717 = vpop.permute.xlu0 %716
        %s719 = sor.u32 256, 16
        %720 = vbcast.lane.b32.xlu0 %v710, %s719
        %v721 = vpop.permute.xlu0 %720
        %v722 = vlaneseq
        %v723 = vshrl.u32 %v722, 7
        %v724 = vsub.s32 0, %v723
        %v725 = vrot.slane %v600, %v724
        %727 = vbcast.lane.b32.xlu0 %v725, 256
        %v728 = vpop.permute.xlu0 %727
        %s730 = sor.u32 256, 8
        %731 = vbcast.lane.b32.xlu0 %v725, %s730
        %v732 = vpop.permute.xlu0 %731
        %s734 = sor.u32 256, 16
        %735 = vbcast.lane.b32.xlu0 %v725, %s734
        %v736 = vpop.permute.xlu0 %735
        %v737 = vlaneseq
        %v738 = vshrl.u32 %v737, 7
        %v739 = vsub.s32 1, %v738
        %v740 = vrot.slane %v600, %v739
        %742 = vbcast.lane.b32.xlu0 %v740, 256
        %v743 = vpop.permute.xlu0 %742
        %s745 = sor.u32 256, 8
        %746 = vbcast.lane.b32.xlu0 %v740, %s745
        %v747 = vpop.permute.xlu0 %746
        %s749 = sor.u32 256, 16
        %750 = vbcast.lane.b32.xlu0 %v740, %s749
        %v751 = vpop.permute.xlu0 %750
        %v752 = vlaneseq
        %v753 = vshrl.u32 %v752, 7
        %v754 = vsub.s32 2, %v753
        %v755 = vrot.slane %v600, %v754
        %757 = vbcast.lane.b32.xlu0 %v755, 256
        %v758 = vpop.permute.xlu0 %757
        %s760 = sor.u32 256, 8
        %761 = vbcast.lane.b32.xlu0 %v755, %s760
        %v762 = vpop.permute.xlu0 %761
        %s764 = sor.u32 256, 16
        %765 = vbcast.lane.b32.xlu0 %v755, %s764
        %v766 = vpop.permute.xlu0 %765
        %v767 = vlaneseq
        %v768 = vshrl.u32 %v767, 7
        %v769 = vsub.s32 3, %v768
        %v770 = vrot.slane %v600, %v769
        %772 = vbcast.lane.b32.xlu0 %v770, 256
        %v773 = vpop.permute.xlu0 %772
        %s775 = sor.u32 256, 8
        %776 = vbcast.lane.b32.xlu0 %v770, %s775
        %v777 = vpop.permute.xlu0 %776
        %s779 = sor.u32 256, 16
        %780 = vbcast.lane.b32.xlu0 %v770, %s779
        %v781 = vpop.permute.xlu0 %780
        %v782 = vlaneseq
        %v783 = vshrl.u32 %v782, 7
        %v784 = vsub.s32 4, %v783
        %v785 = vrot.slane %v600, %v784
        %787 = vbcast.lane.b32.xlu0 %v785, 256
        %v788 = vpop.permute.xlu0 %787
        %s790 = sor.u32 256, 8
        %791 = vbcast.lane.b32.xlu0 %v785, %s790
        %v792 = vpop.permute.xlu0 %791
        %s794 = sor.u32 256, 16
        %795 = vbcast.lane.b32.xlu0 %v785, %s794
        %v796 = vpop.permute.xlu0 %795
        %v797 = vlaneseq
        %v798 = vshrl.u32 %v797, 7
        %v799 = vsub.s32 5, %v798
        %v800 = vrot.slane %v600, %v799
        %802 = vbcast.lane.b32.xlu0 %v800, 256
        %v803 = vpop.permute.xlu0 %802
        %s805 = sor.u32 256, 8
        %806 = vbcast.lane.b32.xlu0 %v800, %s805
        %v807 = vpop.permute.xlu0 %806
        %s809 = sor.u32 256, 16
        %810 = vbcast.lane.b32.xlu0 %v800, %s809
        %v811 = vpop.permute.xlu0 %810
        %v812 = vlaneseq
        %v813 = vshrl.u32 %v812, 7
        %v814 = vsub.s32 6, %v813
        %v815 = vrot.slane %v600, %v814
        %817 = vbcast.lane.b32.xlu0 %v815, 256
        %v818 = vpop.permute.xlu0 %817
        %s820 = sor.u32 256, 8
        %821 = vbcast.lane.b32.xlu0 %v815, %s820
        %v822 = vpop.permute.xlu0 %821
        %s824 = sor.u32 256, 16
        %825 = vbcast.lane.b32.xlu0 %v815, %s824
        %v826 = vpop.permute.xlu0 %825
        %v827 = vlaneseq
        %v828 = vshrl.u32 %v827, 7
        %v829 = vsub.s32 7, %v828
        %v830 = vrot.slane %v600, %v829
        %832 = vbcast.lane.b32.xlu0 %v830, 256
        %v833 = vpop.permute.xlu0 %832
        %s835 = sor.u32 256, 8
        %836 = vbcast.lane.b32.xlu0 %v830, %s835
        %v837 = vpop.permute.xlu0 %836
        %s839 = sor.u32 256, 16
        %840 = vbcast.lane.b32.xlu0 %v830, %s839
        %v841 = vpop.permute.xlu0 %840
        %v842 = vlaneseq
        %v843 = vshrl.u32 %v842, 7
        %v844 = vsub.s32 0, %v843
        %v845 = vrot.slane %v601, %v844
        %847 = vbcast.lane.b32.xlu0 %v845, 256
        %v848 = vpop.permute.xlu0 %847
        %s850 = sor.u32 256, 8
        %851 = vbcast.lane.b32.xlu0 %v845, %s850
        %v852 = vpop.permute.xlu0 %851
        %s854 = sor.u32 256, 16
        %855 = vbcast.lane.b32.xlu0 %v845, %s854
        %v856 = vpop.permute.xlu0 %855
        %v857 = vlaneseq
        %v858 = vshrl.u32 %v857, 7
        %v859 = vsub.s32 1, %v858
        %v860 = vrot.slane %v601, %v859
        %862 = vbcast.lane.b32.xlu0 %v860, 256
        %v863 = vpop.permute.xlu0 %862
        %s865 = sor.u32 256, 8
        %866 = vbcast.lane.b32.xlu0 %v860, %s865
        %v867 = vpop.permute.xlu0 %866
        %s869 = sor.u32 256, 16
        %870 = vbcast.lane.b32.xlu0 %v860, %s869
        %v871 = vpop.permute.xlu0 %870
        %872 = vst.msk [vmem:[#allocation3] sm:$0xff] %vm543, %v608
        %873 = vst.msk [vmem:[#allocation3 + $0x8] sm:$0xff] %vm543, %v612
        %874 = vst.msk [vmem:[#allocation3 + $0x10] sm:$0xff] %vm543, %v623
        %875 = vst.msk [vmem:[#allocation3 + $0x18] sm:$0xff] %vm543, %v627
        %876 = vst.msk [vmem:[#allocation3 + $0x20] sm:$0xff] %vm543, %v638
        %877 = vst.msk [vmem:[#allocation3 + $0x28] sm:$0xff] %vm543, %v642
        %878 = vst.msk [vmem:[#allocation3 + $0x30] sm:$0xff] %vm543, %v653
        %879 = vst.msk [vmem:[#allocation3 + $0x38] sm:$0xff] %vm543, %v657
        %880 = vst.msk [vmem:[#allocation3 + $0x40] sm:$0xff] %vm543, %v668
        %881 = vst.msk [vmem:[#allocation3 + $0x48] sm:$0xff] %vm543, %v672
        %882 = vst.msk [vmem:[#allocation3 + $0x50] sm:$0xff] %vm543, %v683
        %883 = vst.msk [vmem:[#allocation3 + $0x58] sm:$0xff] %vm543, %v687
        %884 = vst.msk [vmem:[#allocation3 + $0x60] sm:$0xff] %vm543, %v698
        %885 = vst.msk [vmem:[#allocation3 + $0x68] sm:$0xff] %vm543, %v702
        %886 = vst.msk [vmem:[#allocation3 + $0x70] sm:$0xff] %vm543, %v713
        %887 = vst.msk [vmem:[#allocation3 + $0x78] sm:$0xff] %vm543, %v717
        %888 = vst.msk [vmem:[#allocation3 + $0x80] sm:$0xff] %vm543, %v728
        %889 = vst.msk [vmem:[#allocation3 + $0x88] sm:$0xff] %vm543, %v732
        %890 = vst.msk [vmem:[#allocation3 + $0x90] sm:$0xff] %vm543, %v743
        %891 = vst.msk [vmem:[#allocation3 + $0x98] sm:$0xff] %vm543, %v747
        %892 = vst.msk [vmem:[#allocation3 + $0xa0] sm:$0xff] %vm543, %v758
        %893 = vst.msk [vmem:[#allocation3 + $0xa8] sm:$0xff] %vm543, %v762
        %894 = vst.msk [vmem:[#allocation3 + $0xb0] sm:$0xff] %vm543, %v773
        %895 = vst.msk [vmem:[#allocation3 + $0xb8] sm:$0xff] %vm543, %v777
        %896 = vst.msk [vmem:[#allocation3 + $0xc0] sm:$0xff] %vm543, %v788
        %897 = vst.msk [vmem:[#allocation3 + $0xc8] sm:$0xff] %vm543, %v792
        %898 = vst.msk [vmem:[#allocation3 + $0xd0] sm:$0xff] %vm543, %v803
        %899 = vst.msk [vmem:[#allocation3 + $0xd8] sm:$0xff] %vm543, %v807
        %900 = vst.msk [vmem:[#allocation3 + $0xe0] sm:$0xff] %vm543, %v818
        %901 = vst.msk [vmem:[#allocation3 + $0xe8] sm:$0xff] %vm543, %v822
        %902 = vst.msk [vmem:[#allocation3 + $0xf0] sm:$0xff] %vm543, %v833
        %903 = vst.msk [vmem:[#allocation3 + $0xf8] sm:$0xff] %vm543, %v837
        %vm952 = vcmask 1046528
        %v953 = vrot.slane %v608, 1
        %v954 = vrot.slane %v612, 1
        %v955 = vsel %vm952, %v953, %v954
        %v956 = vrot.slane %v616, 1
        %v957 = vsel %vm952, %v954, %v956
        %v958 = vrot.slane %v623, 1
        %v959 = vrot.slane %v627, 1
        %v960 = vsel %vm952, %v958, %v959
        %v961 = vrot.slane %v631, 1
        %v962 = vsel %vm952, %v959, %v961
        %v963 = vrot.slane %v638, 1
        %v964 = vrot.slane %v642, 1
        %v965 = vsel %vm952, %v963, %v964
        %v966 = vrot.slane %v646, 1
        %v967 = vsel %vm952, %v964, %v966
        %v968 = vrot.slane %v653, 1
        %v969 = vrot.slane %v657, 1
        %v970 = vsel %vm952, %v968, %v969
        %v971 = vrot.slane %v661, 1
        %v972 = vsel %vm952, %v969, %v971
        %v973 = vrot.slane %v668, 1
        %v974 = vrot.slane %v672, 1
        %v975 = vsel %vm952, %v973, %v974
        %v976 = vrot.slane %v676, 1
        %v977 = vsel %vm952, %v974, %v976
        %v978 = vrot.slane %v683, 1
        %v979 = vrot.slane %v687, 1
        %v980 = vsel %vm952, %v978, %v979
        %v981 = vrot.slane %v691, 1
        %v982 = vsel %vm952, %v979, %v981
        %v983 = vrot.slane %v698, 1
        %v984 = vrot.slane %v702, 1
        %v985 = vsel %vm952, %v983, %v984
        %v986 = vrot.slane %v706, 1
        %v987 = vsel %vm952, %v984, %v986
        %v988 = vrot.slane %v713, 1
        %v989 = vrot.slane %v717, 1
        %v990 = vsel %vm952, %v988, %v989
        %v991 = vrot.slane %v721, 1
        %v992 = vsel %vm952, %v989, %v991
        %v993 = vrot.slane %v728, 1
        %v994 = vrot.slane %v732, 1
        %v995 = vsel %vm952, %v993, %v994
        %v996 = vrot.slane %v736, 1
        %v997 = vsel %vm952, %v994, %v996
        %v998 = vrot.slane %v743, 1
        %v999 = vrot.slane %v747, 1
        %v1000 = vsel %vm952, %v998, %v999
        %v1001 = vrot.slane %v751, 1
        %v1002 = vsel %vm952, %v999, %v1001
        %v1003 = vrot.slane %v758, 1
        %v1004 = vrot.slane %v762, 1
        %v1005 = vsel %vm952, %v1003, %v1004
        %v1006 = vrot.slane %v766, 1
        %v1007 = vsel %vm952, %v1004, %v1006
        %v1008 = vrot.slane %v773, 1
        %v1009 = vrot.slane %v777, 1
        %v1010 = vsel %vm952, %v1008, %v1009
        %v1011 = vrot.slane %v781, 1
        %v1012 = vsel %vm952, %v1009, %v1011
        %v1013 = vrot.slane %v788, 1
        %v1014 = vrot.slane %v792, 1
        %v1015 = vsel %vm952, %v1013, %v1014
        %v1016 = vrot.slane %v796, 1
        %v1017 = vsel %vm952, %v1014, %v1016
        %v1018 = vrot.slane %v803, 1
        %v1019 = vrot.slane %v807, 1
        %v1020 = vsel %vm952, %v1018, %v1019
        %v1021 = vrot.slane %v811, 1
        %v1022 = vsel %vm952, %v1019, %v1021
        %v1023 = vrot.slane %v818, 1
        %v1024 = vrot.slane %v822, 1
        %v1025 = vsel %vm952, %v1023, %v1024
        %v1026 = vrot.slane %v826, 1
        %v1027 = vsel %vm952, %v1024, %v1026
        %v1028 = vrot.slane %v833, 1
        %v1029 = vrot.slane %v837, 1
        %v1030 = vsel %vm952, %v1028, %v1029
        %v1031 = vrot.slane %v841, 1
        %v1032 = vsel %vm952, %v1029, %v1031
        %vm1065 = vcmask 15368
        %1066 = vst.msk [vmem:[#allocation3] sm:$0xff] %vm1065, %v955
        %1067 = vst.msk [vmem:[#allocation3 + $0x8] sm:$0xff] %vm1065, %v957
        %1068 = vst.msk [vmem:[#allocation3 + $0x10] sm:$0xff] %vm1065, %v960
        %1069 = vst.msk [vmem:[#allocation3 + $0x18] sm:$0xff] %vm1065, %v962
        %1070 = vst.msk [vmem:[#allocation3 + $0x20] sm:$0xff] %vm1065, %v965
        %1071 = vst.msk [vmem:[#allocation3 + $0x28] sm:$0xff] %vm1065, %v967
        %1072 = vst.msk [vmem:[#allocation3 + $0x30] sm:$0xff] %vm1065, %v970
        %1073 = vst.msk [vmem:[#allocation3 + $0x38] sm:$0xff] %vm1065, %v972
        %1074 = vst.msk [vmem:[#allocation3 + $0x40] sm:$0xff] %vm1065, %v975
        %1075 = vst.msk [vmem:[#allocation3 + $0x48] sm:$0xff] %vm1065, %v977
        %1076 = vst.msk [vmem:[#allocation3 + $0x50] sm:$0xff] %vm1065, %v980
        %1077 = vst.msk [vmem:[#allocation3 + $0x58] sm:$0xff] %vm1065, %v982
        %1078 = vst.msk [vmem:[#allocation3 + $0x60] sm:$0xff] %vm1065, %v985
        %1079 = vst.msk [vmem:[#allocation3 + $0x68] sm:$0xff] %vm1065, %v987
        %1080 = vst.msk [vmem:[#allocation3 + $0x70] sm:$0xff] %vm1065, %v990
        %1081 = vst.msk [vmem:[#allocation3 + $0x78] sm:$0xff] %vm1065, %v992
        %1082 = vst.msk [vmem:[#allocation3 + $0x80] sm:$0xff] %vm1065, %v995
        %1083 = vst.msk [vmem:[#allocation3 + $0x88] sm:$0xff] %vm1065, %v997
        %1084 = vst.msk [vmem:[#allocation3 + $0x90] sm:$0xff] %vm1065, %v1000
        %1085 = vst.msk [vmem:[#allocation3 + $0x98] sm:$0xff] %vm1065, %v1002
        %1086 = vst.msk [vmem:[#allocation3 + $0xa0] sm:$0xff] %vm1065, %v1005
        %1087 = vst.msk [vmem:[#allocation3 + $0xa8] sm:$0xff] %vm1065, %v1007
        %1088 = vst.msk [vmem:[#allocation3 + $0xb0] sm:$0xff] %vm1065, %v1010
        %1089 = vst.msk [vmem:[#allocation3 + $0xb8] sm:$0xff] %vm1065, %v1012
        %1090 = vst.msk [vmem:[#allocation3 + $0xc0] sm:$0xff] %vm1065, %v1015
        %1091 = vst.msk [vmem:[#allocation3 + $0xc8] sm:$0xff] %vm1065, %v1017
        %1092 = vst.msk [vmem:[#allocation3 + $0xd0] sm:$0xff] %vm1065, %v1020
        %1093 = vst.msk [vmem:[#allocation3 + $0xd8] sm:$0xff] %vm1065, %v1022
        %1094 = vst.msk [vmem:[#allocation3 + $0xe0] sm:$0xff] %vm1065, %v1025
        %1095 = vst.msk [vmem:[#allocation3 + $0xe8] sm:$0xff] %vm1065, %v1027
        %1096 = vst.msk [vmem:[#allocation3 + $0xf0] sm:$0xff] %vm1065, %v1030
        %1097 = vst.msk [vmem:[#allocation3 + $0xf8] sm:$0xff] %vm1065, %v1032
        %vm1098 = vcmask 1045504
        %v1099 = vrot.slane %v608, 2
        %v1100 = vrot.slane %v612, 2
        %v1101 = vsel %vm1098, %v1099, %v1100
        %v1102 = vrot.slane %v616, 2
        %v1103 = vsel %vm1098, %v1100, %v1102
        %v1104 = vrot.slane %v623, 2
        %v1105 = vrot.slane %v627, 2
        %v1106 = vsel %vm1098, %v1104, %v1105
        %v1107 = vrot.slane %v631, 2
        %v1108 = vsel %vm1098, %v1105, %v1107
        %v1109 = vrot.slane %v638, 2
        %v1110 = vrot.slane %v642, 2
        %v1111 = vsel %vm1098, %v1109, %v1110
        %v1112 = vrot.slane %v646, 2
        %v1113 = vsel %vm1098, %v1110, %v1112
        %v1114 = vrot.slane %v653, 2
        %v1115 = vrot.slane %v657, 2
        %v1116 = vsel %vm1098, %v1114, %v1115
        %v1117 = vrot.slane %v661, 2
        %v1118 = vsel %vm1098, %v1115, %v1117
        %v1119 = vrot.slane %v668, 2
        %v1120 = vrot.slane %v672, 2
        %v1121 = vsel %vm1098, %v1119, %v1120
        %v1122 = vrot.slane %v676, 2
        %v1123 = vsel %vm1098, %v1120, %v1122
        %v1124 = vrot.slane %v683, 2
        %v1125 = vrot.slane %v687, 2
        %v1126 = vsel %vm1098, %v1124, %v1125
        %v1127 = vrot.slane %v691, 2
        %v1128 = vsel %vm1098, %v1125, %v1127
        %v1129 = vrot.slane %v698, 2
        %v1130 = vrot.slane %v702, 2
        %v1131 = vsel %vm1098, %v1129, %v1130
        %v1132 = vrot.slane %v706, 2
        %v1133 = vsel %vm1098, %v1130, %v1132
        %v1134 = vrot.slane %v713, 2
        %v1135 = vrot.slane %v717, 2
        %v1136 = vsel %vm1098, %v1134, %v1135
        %v1137 = vrot.slane %v721, 2
        %v1138 = vsel %vm1098, %v1135, %v1137
        %v1139 = vrot.slane %v728, 2
        %v1140 = vrot.slane %v732, 2
        %v1141 = vsel %vm1098, %v1139, %v1140
        %v1142 = vrot.slane %v736, 2
        %v1143 = vsel %vm1098, %v1140, %v1142
        %v1144 = vrot.slane %v743, 2
        %v1145 = vrot.slane %v747, 2
        %v1146 = vsel %vm1098, %v1144, %v1145
        %v1147 = vrot.slane %v751, 2
        %v1148 = vsel %vm1098, %v1145, %v1147
        %v1149 = vrot.slane %v758, 2
        %v1150 = vrot.slane %v762, 2
        %v1151 = vsel %vm1098, %v1149, %v1150
        %v1152 = vrot.slane %v766, 2
        %v1153 = vsel %vm1098, %v1150, %v1152
        %v1154 = vrot.slane %v773, 2
        %v1155 = vrot.slane %v777, 2
        %v1156 = vsel %vm1098, %v1154, %v1155
        %v1157 = vrot.slane %v781, 2
        %v1158 = vsel %vm1098, %v1155, %v1157
        %v1159 = vrot.slane %v788, 2
        %v1160 = vrot.slane %v792, 2
        %v1161 = vsel %vm1098, %v1159, %v1160
        %v1162 = vrot.slane %v796, 2
        %v1163 = vsel %vm1098, %v1160, %v1162
        %v1164 = vrot.slane %v803, 2
        %v1165 = vrot.slane %v807, 2
        %v1166 = vsel %vm1098, %v1164, %v1165
        %v1167 = vrot.slane %v811, 2
        %v1168 = vsel %vm1098, %v1165, %v1167
        %v1169 = vrot.slane %v818, 2
        %v1170 = vrot.slane %v822, 2
        %v1171 = vsel %vm1098, %v1169, %v1170
        %v1172 = vrot.slane %v826, 2
        %v1173 = vsel %vm1098, %v1170, %v1172
        %v1174 = vrot.slane %v833, 2
        %v1175 = vrot.slane %v837, 2
        %v1176 = vsel %vm1098, %v1174, %v1175
        %v1177 = vrot.slane %v841, 2
        %v1178 = vsel %vm1098, %v1175, %v1177
        %vm1211 = vcmask 23568
        %1212 = vst.msk [vmem:[#allocation3] sm:$0xff] %vm1211, %v1101
        %1213 = vst.msk [vmem:[#allocation3 + $0x8] sm:$0xff] %vm1211, %v1103
        %1214 = vst.msk [vmem:[#allocation3 + $0x10] sm:$0xff] %vm1211, %v1106
        %1215 = vst.msk [vmem:[#allocation3 + $0x18] sm:$0xff] %vm1211, %v1108
        %1216 = vst.msk [vmem:[#allocation3 + $0x20] sm:$0xff] %vm1211, %v1111
        %1217 = vst.msk [vmem:[#allocation3 + $0x28] sm:$0xff] %vm1211, %v1113
        %1218 = vst.msk [vmem:[#allocation3 + $0x30] sm:$0xff] %vm1211, %v1116
        %1219 = vst.msk [vmem:[#allocation3 + $0x38] sm:$0xff] %vm1211, %v1118
        %1220 = vst.msk [vmem:[#allocation3 + $0x40] sm:$0xff] %vm1211, %v1121
        %1221 = vst.msk [vmem:[#allocation3 + $0x48] sm:$0xff] %vm1211, %v1123
        %1222 = vst.msk [vmem:[#allocation3 + $0x50] sm:$0xff] %vm1211, %v1126
        %1223 = vst.msk [vmem:[#allocation3 + $0x58] sm:$0xff] %vm1211, %v1128
        %1224 = vst.msk [vmem:[#allocation3 + $0x60] sm:$0xff] %vm1211, %v1131
        %1225 = vst.msk [vmem:[#allocation3 + $0x68] sm:$0xff] %vm1211, %v1133
        %1226 = vst.msk [vmem:[#allocation3 + $0x70] sm:$0xff] %vm1211, %v1136
        %1227 = vst.msk [vmem:[#allocation3 + $0x78] sm:$0xff] %vm1211, %v1138
        %1228 = vst.msk [vmem:[#allocation3 + $0x80] sm:$0xff] %vm1211, %v1141
        %1229 = vst.msk [vmem:[#allocation3 + $0x88] sm:$0xff] %vm1211, %v1143
        %1230 = vst.msk [vmem:[#allocation3 + $0x90] sm:$0xff] %vm1211, %v1146
        %1231 = vst.msk [vmem:[#allocation3 + $0x98] sm:$0xff] %vm1211, %v1148
        %1232 = vst.msk [vmem:[#allocation3 + $0xa0] sm:$0xff] %vm1211, %v1151
        %1233 = vst.msk [vmem:[#allocation3 + $0xa8] sm:$0xff] %vm1211, %v1153
        %1234 = vst.msk [vmem:[#allocation3 + $0xb0] sm:$0xff] %vm1211, %v1156
        %1235 = vst.msk [vmem:[#allocation3 + $0xb8] sm:$0xff] %vm1211, %v1158
        %1236 = vst.msk [vmem:[#allocation3 + $0xc0] sm:$0xff] %vm1211, %v1161
        %1237 = vst.msk [vmem:[#allocation3 + $0xc8] sm:$0xff] %vm1211, %v1163
        %1238 = vst.msk [vmem:[#allocation3 + $0xd0] sm:$0xff] %vm1211, %v1166
        %1239 = vst.msk [vmem:[#allocation3 + $0xd8] sm:$0xff] %vm1211, %v1168
        %1240 = vst.msk [vmem:[#allocation3 + $0xe0] sm:$0xff] %vm1211, %v1171
        %1241 = vst.msk [vmem:[#allocation3 + $0xe8] sm:$0xff] %vm1211, %v1173
        %1242 = vst.msk [vmem:[#allocation3 + $0xf0] sm:$0xff] %vm1211, %v1176
        %1243 = vst.msk [vmem:[#allocation3 + $0xf8] sm:$0xff] %vm1211, %v1178
        %vm1244 = vcmask 31768
        %1245 = vst.msk [vmem:[#allocation3] sm:$0xff] %vm1244, %v623
        %1246 = vst.msk [vmem:[#allocation3 + $0x8] sm:$0xff] %vm1244, %v627
        %1247 = vst.msk [vmem:[#allocation3 + $0x10] sm:$0xff] %vm1244, %v638
        %1248 = vst.msk [vmem:[#allocation3 + $0x18] sm:$0xff] %vm1244, %v642
        %1249 = vst.msk [vmem:[#allocation3 + $0x20] sm:$0xff] %vm1244, %v653
        %1250 = vst.msk [vmem:[#allocation3 + $0x28] sm:$0xff] %vm1244, %v657
        %1251 = vst.msk [vmem:[#allocation3 + $0x30] sm:$0xff] %vm1244, %v668
        %1252 = vst.msk [vmem:[#allocation3 + $0x38] sm:$0xff] %vm1244, %v672
        %1253 = vst.msk [vmem:[#allocation3 + $0x40] sm:$0xff] %vm1244, %v683
        %1254 = vst.msk [vmem:[#allocation3 + $0x48] sm:$0xff] %vm1244, %v687
        %1255 = vst.msk [vmem:[#allocation3 + $0x50] sm:$0xff] %vm1244, %v698
        %1256 = vst.msk [vmem:[#allocation3 + $0x58] sm:$0xff] %vm1244, %v702
        %1257 = vst.msk [vmem:[#allocation3 + $0x60] sm:$0xff] %vm1244, %v713
        %1258 = vst.msk [vmem:[#allocation3 + $0x68] sm:$0xff] %vm1244, %v717
        %1259 = vst.msk [vmem:[#allocation3 + $0x70] sm:$0xff] %vm1244, %v728
        %1260 = vst.msk [vmem:[#allocation3 + $0x78] sm:$0xff] %vm1244, %v732
        %1261 = vst.msk [vmem:[#allocation3 + $0x80] sm:$0xff] %vm1244, %v743
        %1262 = vst.msk [vmem:[#allocation3 + $0x88] sm:$0xff] %vm1244, %v747
        %1263 = vst.msk [vmem:[#allocation3 + $0x90] sm:$0xff] %vm1244, %v758
        %1264 = vst.msk [vmem:[#allocation3 + $0x98] sm:$0xff] %vm1244, %v762
        %1265 = vst.msk [vmem:[#allocation3 + $0xa0] sm:$0xff] %vm1244, %v773
        %1266 = vst.msk [vmem:[#allocation3 + $0xa8] sm:$0xff] %vm1244, %v777
        %1267 = vst.msk [vmem:[#allocation3 + $0xb0] sm:$0xff] %vm1244, %v788
        %1268 = vst.msk [vmem:[#allocation3 + $0xb8] sm:$0xff] %vm1244, %v792
        %1269 = vst.msk [vmem:[#allocation3 + $0xc0] sm:$0xff] %vm1244, %v803
        %1270 = vst.msk [vmem:[#allocation3 + $0xc8] sm:$0xff] %vm1244, %v807
        %1271 = vst.msk [vmem:[#allocation3 + $0xd0] sm:$0xff] %vm1244, %v818
        %1272 = vst.msk [vmem:[#allocation3 + $0xd8] sm:$0xff] %vm1244, %v822
        %1273 = vst.msk [vmem:[#allocation3 + $0xe0] sm:$0xff] %vm1244, %v833
        %1274 = vst.msk [vmem:[#allocation3 + $0xe8] sm:$0xff] %vm1244, %v837
        %1275 = vst.msk [vmem:[#allocation3 + $0xf0] sm:$0xff] %vm1244, %v848
        %1276 = vst.msk [vmem:[#allocation3 + $0xf8] sm:$0xff] %vm1244, %v852
        %v1280 = vrot.slane %v848, 1
        %v1281 = vrot.slane %v852, 1
        %v1282 = vsel %vm952, %v1280, %v1281
        %v1283 = vrot.slane %v856, 1
        %v1284 = vsel %vm952, %v1281, %v1283
        %vm1287 = vcmask 39968
        %1288 = vst.msk [vmem:[#allocation3] sm:$0xff] %vm1287, %v960
        %1289 = vst.msk [vmem:[#allocation3 + $0x8] sm:$0xff] %vm1287, %v962
        %1290 = vst.msk [vmem:[#allocation3 + $0x10] sm:$0xff] %vm1287, %v965
        %1291 = vst.msk [vmem:[#allocation3 + $0x18] sm:$0xff] %vm1287, %v967
        %1292 = vst.msk [vmem:[#allocation3 + $0x20] sm:$0xff] %vm1287, %v970
        %1293 = vst.msk [vmem:[#allocation3 + $0x28] sm:$0xff] %vm1287, %v972
        %1294 = vst.msk [vmem:[#allocation3 + $0x30] sm:$0xff] %vm1287, %v975
        %1295 = vst.msk [vmem:[#allocation3 + $0x38] sm:$0xff] %vm1287, %v977
        %1296 = vst.msk [vmem:[#allocation3 + $0x40] sm:$0xff] %vm1287, %v980
        %1297 = vst.msk [vmem:[#allocation3 + $0x48] sm:$0xff] %vm1287, %v982
        %1298 = vst.msk [vmem:[#allocation3 + $0x50] sm:$0xff] %vm1287, %v985
        %1299 = vst.msk [vmem:[#allocation3 + $0x58] sm:$0xff] %vm1287, %v987
        %1300 = vst.msk [vmem:[#allocation3 + $0x60] sm:$0xff] %vm1287, %v990
        %1301 = vst.msk [vmem:[#allocation3 + $0x68] sm:$0xff] %vm1287, %v992
        %1302 = vst.msk [vmem:[#allocation3 + $0x70] sm:$0xff] %vm1287, %v995
        %1303 = vst.msk [vmem:[#allocation3 + $0x78] sm:$0xff] %vm1287, %v997
        %1304 = vst.msk [vmem:[#allocation3 + $0x80] sm:$0xff] %vm1287, %v1000
        %1305 = vst.msk [vmem:[#allocation3 + $0x88] sm:$0xff] %vm1287, %v1002
        %1306 = vst.msk [vmem:[#allocation3 + $0x90] sm:$0xff] %vm1287, %v1005
        %1307 = vst.msk [vmem:[#allocation3 + $0x98] sm:$0xff] %vm1287, %v1007
        %1308 = vst.msk [vmem:[#allocation3 + $0xa0] sm:$0xff] %vm1287, %v1010
        %1309 = vst.msk [vmem:[#allocation3 + $0xa8] sm:$0xff] %vm1287, %v1012
        %1310 = vst.msk [vmem:[#allocation3 + $0xb0] sm:$0xff] %vm1287, %v1015
        %1311 = vst.msk [vmem:[#allocation3 + $0xb8] sm:$0xff] %vm1287, %v1017
        %1312 = vst.msk [vmem:[#allocation3 + $0xc0] sm:$0xff] %vm1287, %v1020
        %1313 = vst.msk [vmem:[#allocation3 + $0xc8] sm:$0xff] %vm1287, %v1022
        %1314 = vst.msk [vmem:[#allocation3 + $0xd0] sm:$0xff] %vm1287, %v1025
        %1315 = vst.msk [vmem:[#allocation3 + $0xd8] sm:$0xff] %vm1287, %v1027
        %1316 = vst.msk [vmem:[#allocation3 + $0xe0] sm:$0xff] %vm1287, %v1030
        %1317 = vst.msk [vmem:[#allocation3 + $0xe8] sm:$0xff] %vm1287, %v1032
        %1318 = vst.msk [vmem:[#allocation3 + $0xf0] sm:$0xff] %vm1287, %v1282
        %1319 = vst.msk [vmem:[#allocation3 + $0xf8] sm:$0xff] %vm1287, %v1284
        %v1320 = vrot.slane %v848, 2
        %v1321 = vrot.slane %v852, 2
        %v1322 = vsel %vm1098, %v1320, %v1321
        %v1323 = vrot.slane %v856, 2
        %v1324 = vsel %vm1098, %v1321, %v1323
        %vm1327 = vcmask 48168
        %1328 = vst.msk [vmem:[#allocation3] sm:$0xff] %vm1327, %v1106
        %1329 = vst.msk [vmem:[#allocation3 + $0x8] sm:$0xff] %vm1327, %v1108
        %1330 = vst.msk [vmem:[#allocation3 + $0x10] sm:$0xff] %vm1327, %v1111
        %1331 = vst.msk [vmem:[#allocation3 + $0x18] sm:$0xff] %vm1327, %v1113
        %1332 = vst.msk [vmem:[#allocation3 + $0x20] sm:$0xff] %vm1327, %v1116
        %1333 = vst.msk [vmem:[#allocation3 + $0x28] sm:$0xff] %vm1327, %v1118
        %1334 = vst.msk [vmem:[#allocation3 + $0x30] sm:$0xff] %vm1327, %v1121
        %1335 = vst.msk [vmem:[#allocation3 + $0x38] sm:$0xff] %vm1327, %v1123
        %1336 = vst.msk [vmem:[#allocation3 + $0x40] sm:$0xff] %vm1327, %v1126
        %1337 = vst.msk [vmem:[#allocation3 + $0x48] sm:$0xff] %vm1327, %v1128
        %1338 = vst.msk [vmem:[#allocation3 + $0x50] sm:$0xff] %vm1327, %v1131
        %1339 = vst.msk [vmem:[#allocation3 + $0x58] sm:$0xff] %vm1327, %v1133
        %1340 = vst.msk [vmem:[#allocation3 + $0x60] sm:$0xff] %vm1327, %v1136
        %1341 = vst.msk [vmem:[#allocation3 + $0x68] sm:$0xff] %vm1327, %v1138
        %1342 = vst.msk [vmem:[#allocation3 + $0x70] sm:$0xff] %vm1327, %v1141
        %1343 = vst.msk [vmem:[#allocation3 + $0x78] sm:$0xff] %vm1327, %v1143
        %1344 = vst.msk [vmem:[#allocation3 + $0x80] sm:$0xff] %vm1327, %v1146
        %1345 = vst.msk [vmem:[#allocation3 + $0x88] sm:$0xff] %vm1327, %v1148
        %1346 = vst.msk [vmem:[#allocation3 + $0x90] sm:$0xff] %vm1327, %v1151
        %1347 = vst.msk [vmem:[#allocation3 + $0x98] sm:$0xff] %vm1327, %v1153
        %1348 = vst.msk [vmem:[#allocation3 + $0xa0] sm:$0xff] %vm1327, %v1156
        %1349 = vst.msk [vmem:[#allocation3 + $0xa8] sm:$0xff] %vm1327, %v1158
        %1350 = vst.msk [vmem:[#allocation3 + $0xb0] sm:$0xff] %vm1327, %v1161
        %1351 = vst.msk [vmem:[#allocation3 + $0xb8] sm:$0xff] %vm1327, %v1163
        %1352 = vst.msk [vmem:[#allocation3 + $0xc0] sm:$0xff] %vm1327, %v1166
        %1353 = vst.msk [vmem:[#allocation3 + $0xc8] sm:$0xff] %vm1327, %v1168
        %1354 = vst.msk [vmem:[#allocation3 + $0xd0] sm:$0xff] %vm1327, %v1171
        %1355 = vst.msk [vmem:[#allocation3 + $0xd8] sm:$0xff] %vm1327, %v1173
        %1356 = vst.msk [vmem:[#allocation3 + $0xe0] sm:$0xff] %vm1327, %v1176
        %1357 = vst.msk [vmem:[#allocation3 + $0xe8] sm:$0xff] %vm1327, %v1178
        %1358 = vst.msk [vmem:[#allocation3 + $0xf0] sm:$0xff] %vm1327, %v1322
        %1359 = vst.msk [vmem:[#allocation3 + $0xf8] sm:$0xff] %vm1327, %v1324
        %vm1360 = vcmask 56368
        %1361 = vst.msk [vmem:[#allocation3] sm:$0xff] %vm1360, %v638
        %1362 = vst.msk [vmem:[#allocation3 + $0x8] sm:$0xff] %vm1360, %v642
        %1363 = vst.msk [vmem:[#allocation3 + $0x10] sm:$0xff] %vm1360, %v653
        %1364 = vst.msk [vmem:[#allocation3 + $0x18] sm:$0xff] %vm1360, %v657
        %1365 = vst.msk [vmem:[#allocation3 + $0x20] sm:$0xff] %vm1360, %v668
        %1366 = vst.msk [vmem:[#allocation3 + $0x28] sm:$0xff] %vm1360, %v672
        %1367 = vst.msk [vmem:[#allocation3 + $0x30] sm:$0xff] %vm1360, %v683
        %1368 = vst.msk [vmem:[#allocation3 + $0x38] sm:$0xff] %vm1360, %v687
        %1369 = vst.msk [vmem:[#allocation3 + $0x40] sm:$0xff] %vm1360, %v698
        %1370 = vst.msk [vmem:[#allocation3 + $0x48] sm:$0xff] %vm1360, %v702
        %1371 = vst.msk [vmem:[#allocation3 + $0x50] sm:$0xff] %vm1360, %v713
        %1372 = vst.msk [vmem:[#allocation3 + $0x58] sm:$0xff] %vm1360, %v717
        %1373 = vst.msk [vmem:[#allocation3 + $0x60] sm:$0xff] %vm1360, %v728
        %1374 = vst.msk [vmem:[#allocation3 + $0x68] sm:$0xff] %vm1360, %v732
        %1375 = vst.msk [vmem:[#allocation3 + $0x70] sm:$0xff] %vm1360, %v743
        %1376 = vst.msk [vmem:[#allocation3 + $0x78] sm:$0xff] %vm1360, %v747
        %1377 = vst.msk [vmem:[#allocation3 + $0x80] sm:$0xff] %vm1360, %v758
        %1378 = vst.msk [vmem:[#allocation3 + $0x88] sm:$0xff] %vm1360, %v762
        %1379 = vst.msk [vmem:[#allocation3 + $0x90] sm:$0xff] %vm1360, %v773
        %1380 = vst.msk [vmem:[#allocation3 + $0x98] sm:$0xff] %vm1360, %v777
        %1381 = vst.msk [vmem:[#allocation3 + $0xa0] sm:$0xff] %vm1360, %v788
        %1382 = vst.msk [vmem:[#allocation3 + $0xa8] sm:$0xff] %vm1360, %v792
        %1383 = vst.msk [vmem:[#allocation3 + $0xb0] sm:$0xff] %vm1360, %v803
        %1384 = vst.msk [vmem:[#allocation3 + $0xb8] sm:$0xff] %vm1360, %v807
        %1385 = vst.msk [vmem:[#allocation3 + $0xc0] sm:$0xff] %vm1360, %v818
        %1386 = vst.msk [vmem:[#allocation3 + $0xc8] sm:$0xff] %vm1360, %v822
        %1387 = vst.msk [vmem:[#allocation3 + $0xd0] sm:$0xff] %vm1360, %v833
        %1388 = vst.msk [vmem:[#allocation3 + $0xd8] sm:$0xff] %vm1360, %v837
        %1389 = vst.msk [vmem:[#allocation3 + $0xe0] sm:$0xff] %vm1360, %v848
        %1390 = vst.msk [vmem:[#allocation3 + $0xe8] sm:$0xff] %vm1360, %v852
        %1391 = vst.msk [vmem:[#allocation3 + $0xf0] sm:$0xff] %vm1360, %v863
        %1392 = vst.msk [vmem:[#allocation3 + $0xf8] sm:$0xff] %vm1360, %v867
        %v1396 = vrot.slane %v863, 1
        %v1397 = vrot.slane %v867, 1
        %v1398 = vsel %vm952, %v1396, %v1397
        %v1399 = vrot.slane %v871, 1
        %v1400 = vsel %vm952, %v1397, %v1399
        %vm1403 = vcmask 64568
        %1404 = vst.msk [vmem:[#allocation3] sm:$0xff] %vm1403, %v965
        %1405 = vst.msk [vmem:[#allocation3 + $0x8] sm:$0xff] %vm1403, %v967
        %1406 = vst.msk [vmem:[#allocation3 + $0x10] sm:$0xff] %vm1403, %v970
        %1407 = vst.msk [vmem:[#allocation3 + $0x18] sm:$0xff] %vm1403, %v972
        %1408 = vst.msk [vmem:[#allocation3 + $0x20] sm:$0xff] %vm1403, %v975
        %1409 = vst.msk [vmem:[#allocation3 + $0x28] sm:$0xff] %vm1403, %v977
        %1410 = vst.msk [vmem:[#allocation3 + $0x30] sm:$0xff] %vm1403, %v980
        %1411 = vst.msk [vmem:[#allocation3 + $0x38] sm:$0xff] %vm1403, %v982
        %1412 = vst.msk [vmem:[#allocation3 + $0x40] sm:$0xff] %vm1403, %v985
        %1413 = vst.msk [vmem:[#allocation3 + $0x48] sm:$0xff] %vm1403, %v987
        %1414 = vst.msk [vmem:[#allocation3 + $0x50] sm:$0xff] %vm1403, %v990
        %1415 = vst.msk [vmem:[#allocation3 + $0x58] sm:$0xff] %vm1403, %v992
        %1416 = vst.msk [vmem:[#allocation3 + $0x60] sm:$0xff] %vm1403, %v995
        %1417 = vst.msk [vmem:[#allocation3 + $0x68] sm:$0xff] %vm1403, %v997
        %1418 = vst.msk [vmem:[#allocation3 + $0x70] sm:$0xff] %vm1403, %v1000
        %1419 = vst.msk [vmem:[#allocation3 + $0x78] sm:$0xff] %vm1403, %v1002
        %1420 = vst.msk [vmem:[#allocation3 + $0x80] sm:$0xff] %vm1403, %v1005
        %1421 = vst.msk [vmem:[#allocation3 + $0x88] sm:$0xff] %vm1403, %v1007
        %1422 = vst.msk [vmem:[#allocation3 + $0x90] sm:$0xff] %vm1403, %v1010
        %1423 = vst.msk [vmem:[#allocation3 + $0x98] sm:$0xff] %vm1403, %v1012
        %1424 = vst.msk [vmem:[#allocation3 + $0xa0] sm:$0xff] %vm1403, %v1015
        %1425 = vst.msk [vmem:[#allocation3 + $0xa8] sm:$0xff] %vm1403, %v1017
        %1426 = vst.msk [vmem:[#allocation3 + $0xb0] sm:$0xff] %vm1403, %v1020
        %1427 = vst.msk [vmem:[#allocation3 + $0xb8] sm:$0xff] %vm1403, %v1022
        %1428 = vst.msk [vmem:[#allocation3 + $0xc0] sm:$0xff] %vm1403, %v1025
        %1429 = vst.msk [vmem:[#allocation3 + $0xc8] sm:$0xff] %vm1403, %v1027
        %1430 = vst.msk [vmem:[#allocation3 + $0xd0] sm:$0xff] %vm1403, %v1030
        %1431 = vst.msk [vmem:[#allocation3 + $0xd8] sm:$0xff] %vm1403, %v1032
        %1432 = vst.msk [vmem:[#allocation3 + $0xe0] sm:$0xff] %vm1403, %v1282
        %1433 = vst.msk [vmem:[#allocation3 + $0xe8] sm:$0xff] %vm1403, %v1284
        %1434 = vst.msk [vmem:[#allocation3 + $0xf0] sm:$0xff] %vm1403, %v1398
        %1435 = vst.msk [vmem:[#allocation3 + $0xf8] sm:$0xff] %vm1403, %v1400
        %v1436 = vrot.slane %v863, 2
        %v1437 = vrot.slane %v867, 2
        %v1438 = vsel %vm1098, %v1436, %v1437
        %v1439 = vrot.slane %v871, 2
        %v1440 = vsel %vm1098, %v1437, %v1439
        %vm1443 = vcmask 72768
        %1444 = vst.msk [vmem:[#allocation3] sm:$0xff] %vm1443, %v1111
        %1445 = vst.msk [vmem:[#allocation3 + $0x8] sm:$0xff] %vm1443, %v1113
        %1446 = vst.msk [vmem:[#allocation3 + $0x10] sm:$0xff] %vm1443, %v1116
        %1447 = vst.msk [vmem:[#allocation3 + $0x18] sm:$0xff] %vm1443, %v1118
        %1448 = vst.msk [vmem:[#allocation3 + $0x20] sm:$0xff] %vm1443, %v1121
        %1449 = vst.msk [vmem:[#allocation3 + $0x28] sm:$0xff] %vm1443, %v1123
        %1450 = vst.msk [vmem:[#allocation3 + $0x30] sm:$0xff] %vm1443, %v1126
        %1451 = vst.msk [vmem:[#allocation3 + $0x38] sm:$0xff] %vm1443, %v1128
        %1452 = vst.msk [vmem:[#allocation3 + $0x40] sm:$0xff] %vm1443, %v1131
        %1453 = vst.msk [vmem:[#allocation3 + $0x48] sm:$0xff] %vm1443, %v1133
        %1454 = vst.msk [vmem:[#allocation3 + $0x50] sm:$0xff] %vm1443, %v1136
        %1455 = vst.msk [vmem:[#allocation3 + $0x58] sm:$0xff] %vm1443, %v1138
        %1456 = vst.msk [vmem:[#allocation3 + $0x60] sm:$0xff] %vm1443, %v1141
        %1457 = vst.msk [vmem:[#allocation3 + $0x68] sm:$0xff] %vm1443, %v1143
        %1458 = vst.msk [vmem:[#allocation3 + $0x70] sm:$0xff] %vm1443, %v1146
        %1459 = vst.msk [vmem:[#allocation3 + $0x78] sm:$0xff] %vm1443, %v1148
        %1460 = vst.msk [vmem:[#allocation3 + $0x80] sm:$0xff] %vm1443, %v1151
        %1461 = vst.msk [vmem:[#allocation3 + $0x88] sm:$0xff] %vm1443, %v1153
        %1462 = vst.msk [vmem:[#allocation3 + $0x90] sm:$0xff] %vm1443, %v1156
        %1463 = vst.msk [vmem:[#allocation3 + $0x98] sm:$0xff] %vm1443, %v1158
        %1464 = vst.msk [vmem:[#allocation3 + $0xa0] sm:$0xff] %vm1443, %v1161
        %1465 = vst.msk [vmem:[#allocation3 + $0xa8] sm:$0xff] %vm1443, %v1163
        %1466 = vst.msk [vmem:[#allocation3 + $0xb0] sm:$0xff] %vm1443, %v1166
        %1467 = vst.msk [vmem:[#allocation3 + $0xb8] sm:$0xff] %vm1443, %v1168
        %1468 = vst.msk [vmem:[#allocation3 + $0xc0] sm:$0xff] %vm1443, %v1171
        %1469 = vst.msk [vmem:[#allocation3 + $0xc8] sm:$0xff] %vm1443, %v1173
        %1470 = vst.msk [vmem:[#allocation3 + $0xd0] sm:$0xff] %vm1443, %v1176
        %1471 = vst.msk [vmem:[#allocation3 + $0xd8] sm:$0xff] %vm1443, %v1178
        %1472 = vst.msk [vmem:[#allocation3 + $0xe0] sm:$0xff] %vm1443, %v1322
        %1473 = vst.msk [vmem:[#allocation3 + $0xe8] sm:$0xff] %vm1443, %v1324
        %1474 = vst.msk [vmem:[#allocation3 + $0xf0] sm:$0xff] %vm1443, %v1438
        %1475 = vst.msk [vmem:[#allocation3 + $0xf8] sm:$0xff] %vm1443, %v1440
        %v1476 = vld [vmem:[#allocation3] sm:$0xff]
        %v1477 = vld [vmem:[#allocation3 + $0x8] sm:$0xff]
        %v1478 = vld [vmem:[#allocation3 + $0x10] sm:$0xff]
        %v1479 = vld [vmem:[#allocation3 + $0x18] sm:$0xff]
        %v1480 = vld [vmem:[#allocation3 + $0x20] sm:$0xff]
        %v1481 = vld [vmem:[#allocation3 + $0x28] sm:$0xff]
        %v1482 = vld [vmem:[#allocation3 + $0x30] sm:$0xff]
        %v1483 = vld [vmem:[#allocation3 + $0x38] sm:$0xff]
        %v1484 = vld [vmem:[#allocation3 + $0x40] sm:$0xff]
        %v1485 = vld [vmem:[#allocation3 + $0x48] sm:$0xff]
        %v1486 = vld [vmem:[#allocation3 + $0x50] sm:$0xff]
        %v1487 = vld [vmem:[#allocation3 + $0x58] sm:$0xff]
        %v1488 = vld [vmem:[#allocation3 + $0x60] sm:$0xff]
        %v1489 = vld [vmem:[#allocation3 + $0x68] sm:$0xff]
        %v1490 = vld [vmem:[#allocation3 + $0x70] sm:$0xff]
        %v1491 = vld [vmem:[#allocation3 + $0x78] sm:$0xff]
        %v1492 = vld [vmem:[#allocation3 + $0x80] sm:$0xff]
        %v1493 = vld [vmem:[#allocation3 + $0x88] sm:$0xff]
        %v1494 = vld [vmem:[#allocation3 + $0x90] sm:$0xff]
        %v1495 = vld [vmem:[#allocation3 + $0x98] sm:$0xff]
        %v1496 = vld [vmem:[#allocation3 + $0xa0] sm:$0xff]
        %v1497 = vld [vmem:[#allocation3 + $0xa8] sm:$0xff]
        %v1498 = vld [vmem:[#allocation3 + $0xb0] sm:$0xff]
        %v1499 = vld [vmem:[#allocation3 + $0xb8] sm:$0xff]
        %v1500 = vld [vmem:[#allocation3 + $0xc0] sm:$0xff]
        %v1501 = vld [vmem:[#allocation3 + $0xc8] sm:$0xff]
        %v1502 = vld [vmem:[#allocation3 + $0xd0] sm:$0xff]
        %v1503 = vld [vmem:[#allocation3 + $0xd8] sm:$0xff]
        %v1504 = vld [vmem:[#allocation3 + $0xe0] sm:$0xff]
        %v1505 = vld [vmem:[#allocation3 + $0xe8] sm:$0xff]
        %v1506 = vld [vmem:[#allocation3 + $0xf0] sm:$0xff]
        %v1507 = vld [vmem:[#allocation3 + $0xf8] sm:$0xff]
        %v1508 = vpack.c.bf16 %v1477, %v1476
        %v1509 = vpack.c.bf16 %v1479, %v1478
        %v1510 = vpack.c.bf16 %v1481, %v1480
        %v1511 = vpack.c.bf16 %v1483, %v1482
        %v1512 = vpack.c.bf16 %v1485, %v1484
        %v1513 = vpack.c.bf16 %v1487, %v1486
        %v1514 = vpack.c.bf16 %v1489, %v1488
        %v1515 = vpack.c.bf16 %v1491, %v1490
        %v1516 = vpack.c.bf16 %v1493, %v1492
        %v1517 = vpack.c.bf16 %v1495, %v1494
        %v1518 = vpack.c.bf16 %v1497, %v1496
        %v1519 = vpack.c.bf16 %v1499, %v1498
        %v1520 = vpack.c.bf16 %v1501, %v1500
        %v1521 = vpack.c.bf16 %v1503, %v1502
        %v1522 = vpack.c.bf16 %v1505, %v1504
        %v1523 = vpack.c.bf16 %v1507, %v1506
        %v1524 = vld [vmem:[#allocation13] sm:$0xf]
        %v1525 = vld [vmem:[#allocation13 + $0x4] sm:$0xf]
        %v1526 = vld [vmem:[#allocation15] sm:$0x1]
        %v1527 = vlaneseq
        %v1528 = vshrl.u32 %v1527, 7
        %v1529 = vsub.s32 0, %v1528
        %v1530 = vrot.slane %v1526, %v1529
        %v1533 = vunpack.c.l.b16 %v1524
        %v1534 = vunpack.c.l.b16 %v1525
        %v1535 = vpack.c.b16 %v1534, %v1533
        %vm1537 = vcmask 130048
        %v1539 = vsel %vm1537, %v1508, 0
        %v1542 = vsel %vm1537, %v1509, 0
        %v1545 = vsel %vm1537, %v1510, 0
        %v1548 = vsel %vm1537, %v1511, 0
        %v1551 = vsel %vm1537, %v1512, 0
        %v1554 = vsel %vm1537, %v1513, 0
        %v1557 = vsel %vm1537, %v1514, 0
        %v1560 = vsel %vm1537, %v1515, 0
        %v1563 = vsel %vm1537, %v1516, 0
        %v1566 = vsel %vm1537, %v1517, 0
        %v1569 = vsel %vm1537, %v1518, 0
        %v1572 = vsel %vm1537, %v1519, 0
        %v1575 = vsel %vm1537, %v1520, 0
        %v1578 = vsel %vm1537, %v1521, 0
        %v1581 = vsel %vm1537, %v1522, 0
        %v1584 = vsel %vm1537, %v1523, 0
        %1586 = vmatprep.subr.bf16.mxu0 0
        %1587 = vmatpush1.bf16.msra.mxu0 %v1535
        %1588 = vmatprep.subr.bf16.mxu0 0
        %1589 = vmatpush1.bf16.msra.mxu0 0
        %1590 = vmatprep.subr.bf16.mxu0 0
        %1591 = vmatpush1.bf16.msra.mxu0 0
        %1592 = vmatprep.subr.bf16.mxu0 0
        %1593 = vmatpush1.bf16.msra.mxu0 0
        %1594 = vmatprep.subr.bf16.mxu0 0
        %1595 = vmatpush1.bf16.msra.mxu0 0
        %1596 = vmatprep.subr.bf16.mxu0 0
        %1597 = vmatpush1.bf16.msra.mxu0 0
        %1598 = vmatprep.subr.bf16.mxu0 0
        %1599 = vmatpush1.bf16.msra.mxu0 0
        %1600 = vmatprep.subr.bf16.mxu0 0
        %1601 = vmatpush1.bf16.msra.mxu0 0
        %1602 = vmatprep.subr.bf16.mxu0 0
        %1603 = vmatpush1.bf16.msra.mxu0 0
        %1604 = vmatprep.subr.bf16.mxu0 0
        %1605 = vmatpush1.bf16.msra.mxu0 0
        %1606 = vmatprep.subr.bf16.mxu0 0
        %1607 = vmatpush1.bf16.msra.mxu0 0
        %1608 = vmatprep.subr.bf16.mxu0 0
        %1609 = vmatpush1.bf16.msra.mxu0 0
        %1610 = vmatprep.subr.bf16.mxu0 0
        %1611 = vmatpush1.bf16.msra.mxu0 0
        %1612 = vmatprep.subr.bf16.mxu0 0
        %1613 = vmatpush1.bf16.msra.mxu0 0
        %1614 = vmatprep.subr.bf16.mxu0 0
        %1615 = vmatpush1.bf16.msra.mxu0 0
        %1616 = vmatprep.subr.bf16.mxu0 0
        %1617 = vmatpush1.bf16.msra.mxu0 0
        %1618 = vmatprep.mubr.bf16.mxu0 0
        %1619 = vmatmul.mubr.bf16.gmra.mrb[0].mxu0 %v1539
        %v1620 = vpop.f32.mrb[0].mxu0
        %v1621 = vadd.f32 %v1530, %v1620
        %v1622 = vpop.f32.mrb[0].mxu0
        %v1623 = vpop.f32.mrb[0].mxu0
        %v1624 = vadd.f32 %v1530, %v1623
        %v1625 = vpop.f32.mrb[0].mxu0
        %1626 = vmatprep.mubr.bf16.mxu0 0
        %1627 = vmatmul.mubr.bf16.gmra.mrb[0].mxu0 %v1542
        %v1628 = vpop.f32.mrb[0].mxu0
        %v1629 = vadd.f32 %v1530, %v1628
        %v1630 = vpop.f32.mrb[0].mxu0
        %v1631 = vpop.f32.mrb[0].mxu0
        %v1632 = vadd.f32 %v1530, %v1631
        %v1633 = vpop.f32.mrb[0].mxu0
        %1634 = vmatprep.mubr.bf16.mxu0 0
        %1635 = vmatmul.mubr.bf16.gmra.mrb[0].mxu0 %v1545
        %v1636 = vpop.f32.mrb[0].mxu0
        %v1637 = vadd.f32 %v1530, %v1636
        %v1638 = vpop.f32.mrb[0].mxu0
        %v1639 = vpop.f32.mrb[0].mxu0
        %v1640 = vadd.f32 %v1530, %v1639
        %v1641 = vpop.f32.mrb[0].mxu0
        %1642 = vmatprep.mubr.bf16.mxu0 0
        %1643 = vmatmul.mubr.bf16.gmra.mrb[0].mxu0 %v1548
        %v1644 = vpop.f32.mrb[0].mxu0
        %v1645 = vadd.f32 %v1530, %v1644
        %v1646 = vpop.f32.mrb[0].mxu0
        %v1647 = vpop.f32.mrb[0].mxu0
        %v1648 = vadd.f32 %v1530, %v1647
        %v1649 = vpop.f32.mrb[0].mxu0
        %1650 = vmatprep.mubr.bf16.mxu0 0
        %1651 = vmatmul.mubr.bf16.gmra.mrb[0].mxu0 %v1551
        %v1652 = vpop.f32.mrb[0].mxu0
        %v1653 = vadd.f32 %v1530, %v1652
        %v1654 = vpop.f32.mrb[0].mxu0
        %v1655 = vpop.f32.mrb[0].mxu0
        %v1656 = vadd.f32 %v1530, %v1655
        %v1657 = vpop.f32.mrb[0].mxu0
        %1658 = vmatprep.mubr.bf16.mxu0 0
        %1659 = vmatmul.mubr.bf16.gmra.mrb[0].mxu0 %v1554
        %v1660 = vpop.f32.mrb[0].mxu0
        %v1661 = vadd.f32 %v1530, %v1660
        %v1662 = vpop.f32.mrb[0].mxu0
        %v1663 = vpop.f32.mrb[0].mxu0
        %v1664 = vadd.f32 %v1530, %v1663
        %v1665 = vpop.f32.mrb[0].mxu0
        %1666 = vmatprep.mubr.bf16.mxu0 0
        %1667 = vmatmul.mubr.bf16.gmra.mrb[0].mxu0 %v1557
        %v1668 = vpop.f32.mrb[0].mxu0
        %v1669 = vadd.f32 %v1530, %v1668
        %v1670 = vpop.f32.mrb[0].mxu0
        %v1671 = vpop.f32.mrb[0].mxu0
        %v1672 = vadd.f32 %v1530, %v1671
        %v1673 = vpop.f32.mrb[0].mxu0
        %1674 = vmatprep.mubr.bf16.mxu0 0
        %1675 = vmatmul.mubr.bf16.gmra.mrb[0].mxu0 %v1560
        %v1676 = vpop.f32.mrb[0].mxu0
        %v1677 = vadd.f32 %v1530, %v1676
        %v1678 = vpop.f32.mrb[0].mxu0
        %v1679 = vpop.f32.mrb[0].mxu0
        %v1680 = vadd.f32 %v1530, %v1679
        %v1681 = vpop.f32.mrb[0].mxu0
        %1682 = vmatprep.mubr.bf16.mxu0 0
        %1683 = vmatmul.mubr.bf16.gmra.mrb[0].mxu0 %v1563
        %v1684 = vpop.f32.mrb[0].mxu0
        %v1685 = vadd.f32 %v1530, %v1684
        %v1686 = vpop.f32.mrb[0].mxu0
        %v1687 = vpop.f32.mrb[0].mxu0
        %v1688 = vadd.f32 %v1530, %v1687
        %v1689 = vpop.f32.mrb[0].mxu0
        %1690 = vmatprep.mubr.bf16.mxu0 0
        %1691 = vmatmul.mubr.bf16.gmra.mrb[0].mxu0 %v1566
        %v1692 = vpop.f32.mrb[0].mxu0
        %v1693 = vadd.f32 %v1530, %v1692
        %v1694 = vpop.f32.mrb[0].mxu0
        %v1695 = vpop.f32.mrb[0].mxu0
        %v1696 = vadd.f32 %v1530, %v1695
        %v1697 = vpop.f32.mrb[0].mxu0
        %1698 = vmatprep.mubr.bf16.mxu0 0
        %1699 = vmatmul.mubr.bf16.gmra.mrb[0].mxu0 %v1569
        %v1700 = vpop.f32.mrb[0].mxu0
        %v1701 = vadd.f32 %v1530, %v1700
        %v1702 = vpop.f32.mrb[0].mxu0
        %v1703 = vpop.f32.mrb[0].mxu0
        %v1704 = vadd.f32 %v1530, %v1703
        %v1705 = vpop.f32.mrb[0].mxu0
        %1706 = vmatprep.mubr.bf16.mxu0 0
        %1707 = vmatmul.mubr.bf16.gmra.mrb[0].mxu0 %v1572
        %v1708 = vpop.f32.mrb[0].mxu0
        %v1709 = vadd.f32 %v1530, %v1708
        %v1710 = vpop.f32.mrb[0].mxu0
        %v1711 = vpop.f32.mrb[0].mxu0
        %v1712 = vadd.f32 %v1530, %v1711
        %v1713 = vpop.f32.mrb[0].mxu0
        %1714 = vmatprep.mubr.bf16.mxu0 0
        %1715 = vmatmul.mubr.bf16.gmra.mrb[0].mxu0 %v1575
        %v1716 = vpop.f32.mrb[0].mxu0
        %v1717 = vadd.f32 %v1530, %v1716
        %v1718 = vpop.f32.mrb[0].mxu0
        %v1719 = vpop.f32.mrb[0].mxu0
        %v1720 = vadd.f32 %v1530, %v1719
        %v1721 = vpop.f32.mrb[0].mxu0
        %1722 = vmatprep.mubr.bf16.mxu0 0
        %1723 = vmatmul.mubr.bf16.gmra.mrb[0].mxu0 %v1578
        %v1724 = vpop.f32.mrb[0].mxu0
        %v1725 = vadd.f32 %v1530, %v1724
        %v1726 = vpop.f32.mrb[0].mxu0
        %v1727 = vpop.f32.mrb[0].mxu0
        %v1728 = vadd.f32 %v1530, %v1727
        %v1729 = vpop.f32.mrb[0].mxu0
        %1730 = vmatprep.mubr.bf16.mxu0 0
        %1731 = vmatmul.mubr.bf16.gmra.mrb[0].mxu0 %v1581
        %v1732 = vpop.f32.mrb[0].mxu0
        %v1733 = vadd.f32 %v1530, %v1732
        %v1734 = vpop.f32.mrb[0].mxu0
        %v1735 = vpop.f32.mrb[0].mxu0
        %v1736 = vadd.f32 %v1530, %v1735
        %v1737 = vpop.f32.mrb[0].mxu0
        %1738 = vmatprep.mubr.bf16.mxu0 0
        %1739 = vmatmul.mubr.bf16.gmra.mrb[0].mxu0 %v1584
        %v1740 = vpop.f32.mrb[0].mxu0
        %v1741 = vadd.f32 %v1530, %v1740
        %v1742 = vpop.f32.mrb[0].mxu0
        %v1743 = vpop.f32.mrb[0].mxu0
        %v1744 = vadd.f32 %v1530, %v1743
        %v1745 = vpop.f32.mrb[0].mxu0
        %1746 = vdwg.mxu0
        %s1747 = scalar_lea.vmem [#allocation13], 8
        %v1748 = vld [vmem:[%s1747] sm:$0xf]
        %v1749 = vld [vmem:[%s1747 + $0x4] sm:$0xf]
        %v1750 = vld [vmem:[#allocation15 + $0x1] sm:$0x1]
        %v1751 = vlaneseq
        %v1752 = vshrl.u32 %v1751, 7
        %v1753 = vsub.s32 0, %v1752
        %v1754 = vrot.slane %v1750, %v1753
        %v1757 = vunpack.c.l.b16 %v1748
        %v1758 = vunpack.c.l.b16 %v1749
        %v1759 = vpack.c.b16 %v1758, %v1757
        %1761 = vmatprep.subr.bf16.mxu0 0
        %1762 = vmatpush1.bf16.msra.mxu0 %v1759
        %1763 = vmatprep.subr.bf16.mxu0 0
        %1764 = vmatpush1.bf16.msra.mxu0 0
        %1765 = vmatprep.subr.bf16.mxu0 0
        %1766 = vmatpush1.bf16.msra.mxu0 0
        %1767 = vmatprep.subr.bf16.mxu0 0
        %1768 = vmatpush1.bf16.msra.mxu0 0
        %1769 = vmatprep.subr.bf16.mxu0 0
        %1770 = vmatpush1.bf16.msra.mxu0 0
        %1771 = vmatprep.subr.bf16.mxu0 0
        %1772 = vmatpush1.bf16.msra.mxu0 0
        %1773 = vmatprep.subr.bf16.mxu0 0
        %1774 = vmatpush1.bf16.msra.mxu0 0
        %1775 = vmatprep.subr.bf16.mxu0 0
        %1776 = vmatpush1.bf16.msra.mxu0 0
        %1777 = vmatprep.subr.bf16.mxu0 0
        %1778 = vmatpush1.bf16.msra.mxu0 0
        %1779 = vmatprep.subr.bf16.mxu0 0
        %1780 = vmatpush1.bf16.msra.mxu0 0
        %1781 = vmatprep.subr.bf16.mxu0 0
        %1782 = vmatpush1.bf16.msra.mxu0 0
        %1783 = vmatprep.subr.bf16.mxu0 0
        %1784 = vmatpush1.bf16.msra.mxu0 0
        %1785 = vmatprep.subr.bf16.mxu0 0
        %1786 = vmatpush1.bf16.msra.mxu0 0
        %1787 = vmatprep.subr.bf16.mxu0 0
        %1788 = vmatpush1.bf16.msra.mxu0 0
        %1789 = vmatprep.subr.bf16.mxu0 0
        %1790 = vmatpush1.bf16.msra.mxu0 0
        %1791 = vmatprep.subr.bf16.mxu0 0
        %1792 = vmatpush1.bf16.msra.mxu0 0
        %1793 = vmatprep.mubr.bf16.mxu0 0
        %1794 = vmatmul.mubr.bf16.gmra.mrb[0].mxu0 %v1539
        %v1795 = vpop.f32.mrb[0].mxu0
        %v1796 = vadd.f32 %v1754, %v1795
        %v1797 = vpop.f32.mrb[0].mxu0
        %v1798 = vpop.f32.mrb[0].mxu0
        %v1799 = vadd.f32 %v1754, %v1798
        %v1800 = vpop.f32.mrb[0].mxu0
        %1801 = vmatprep.mubr.bf16.mxu0 0
        %1802 = vmatmul.mubr.bf16.gmra.mrb[0].mxu0 %v1542
        %v1803 = vpop.f32.mrb[0].mxu0
        %v1804 = vadd.f32 %v1754, %v1803
        %v1805 = vpop.f32.mrb[0].mxu0
        %v1806 = vpop.f32.mrb[0].mxu0
        %v1807 = vadd.f32 %v1754, %v1806
        %v1808 = vpop.f32.mrb[0].mxu0
        %1809 = vmatprep.mubr.bf16.mxu0 0
        %1810 = vmatmul.mubr.bf16.gmra.mrb[0].mxu0 %v1545
        %v1811 = vpop.f32.mrb[0].mxu0
        %v1812 = vadd.f32 %v1754, %v1811
        %v1813 = vpop.f32.mrb[0].mxu0
        %v1814 = vpop.f32.mrb[0].mxu0
        %v1815 = vadd.f32 %v1754, %v1814
        %v1816 = vpop.f32.mrb[0].mxu0
        %1817 = vmatprep.mubr.bf16.mxu0 0
        %1818 = vmatmul.mubr.bf16.gmra.mrb[0].mxu0 %v1548
        %v1819 = vpop.f32.mrb[0].mxu0
        %v1820 = vadd.f32 %v1754, %v1819
        %v1821 = vpop.f32.mrb[0].mxu0
        %v1822 = vpop.f32.mrb[0].mxu0
        %v1823 = vadd.f32 %v1754, %v1822
        %v1824 = vpop.f32.mrb[0].mxu0
        %1825 = vmatprep.mubr.bf16.mxu0 0
        %1826 = vmatmul.mubr.bf16.gmra.mrb[0].mxu0 %v1551
        %v1827 = vpop.f32.mrb[0].mxu0
        %v1828 = vadd.f32 %v1754, %v1827
        %v1829 = vpop.f32.mrb[0].mxu0
        %v1830 = vpop.f32.mrb[0].mxu0
        %v1831 = vadd.f32 %v1754, %v1830
        %v1832 = vpop.f32.mrb[0].mxu0
        %1833 = vmatprep.mubr.bf16.mxu0 0
        %1834 = vmatmul.mubr.bf16.gmra.mrb[0].mxu0 %v1554
        %v1835 = vpop.f32.mrb[0].mxu0
        %v1836 = vadd.f32 %v1754, %v1835
        %v1837 = vpop.f32.mrb[0].mxu0
        %v1838 = vpop.f32.mrb[0].mxu0
        %v1839 = vadd.f32 %v1754, %v1838
        %v1840 = vpop.f32.mrb[0].mxu0
        %1841 = vmatprep.mubr.bf16.mxu0 0
        %1842 = vmatmul.mubr.bf16.gmra.mrb[0].mxu0 %v1557
        %v1843 = vpop.f32.mrb[0].mxu0
        %v1844 = vadd.f32 %v1754, %v1843
        %v1845 = vpop.f32.mrb[0].mxu0
        %v1846 = vpop.f32.mrb[0].mxu0
        %v1847 = vadd.f32 %v1754, %v1846
        %v1848 = vpop.f32.mrb[0].mxu0
        %1849 = vmatprep.mubr.bf16.mxu0 0
        %1850 = vmatmul.mubr.bf16.gmra.mrb[0].mxu0 %v1560
        %v1851 = vpop.f32.mrb[0].mxu0
        %v1852 = vadd.f32 %v1754, %v1851
        %v1853 = vpop.f32.mrb[0].mxu0
        %v1854 = vpop.f32.mrb[0].mxu0
        %v1855 = vadd.f32 %v1754, %v1854
        %v1856 = vpop.f32.mrb[0].mxu0
        %1857 = vmatprep.mubr.bf16.mxu0 0
        %1858 = vmatmul.mubr.bf16.gmra.mrb[0].mxu0 %v1563
        %v1859 = vpop.f32.mrb[0].mxu0
        %v1860 = vadd.f32 %v1754, %v1859
        %v1861 = vpop.f32.mrb[0].mxu0
        %v1862 = vpop.f32.mrb[0].mxu0
        %v1863 = vadd.f32 %v1754, %v1862
        %v1864 = vpop.f32.mrb[0].mxu0
        %1865 = vmatprep.mubr.bf16.mxu0 0
        %1866 = vmatmul.mubr.bf16.gmra.mrb[0].mxu0 %v1566
        %v1867 = vpop.f32.mrb[0].mxu0
        %v1868 = vadd.f32 %v1754, %v1867
        %v1869 = vpop.f32.mrb[0].mxu0
        %v1870 = vpop.f32.mrb[0].mxu0
        %v1871 = vadd.f32 %v1754, %v1870
        %v1872 = vpop.f32.mrb[0].mxu0
        %1873 = vmatprep.mubr.bf16.mxu0 0
        %1874 = vmatmul.mubr.bf16.gmra.mrb[0].mxu0 %v1569
        %v1875 = vpop.f32.mrb[0].mxu0
        %v1876 = vadd.f32 %v1754, %v1875
        %v1877 = vpop.f32.mrb[0].mxu0
        %v1878 = vpop.f32.mrb[0].mxu0
        %v1879 = vadd.f32 %v1754, %v1878
        %v1880 = vpop.f32.mrb[0].mxu0
        %1881 = vmatprep.mubr.bf16.mxu0 0
        %1882 = vmatmul.mubr.bf16.gmra.mrb[0].mxu0 %v1572
        %v1883 = vpop.f32.mrb[0].mxu0
        %v1884 = vadd.f32 %v1754, %v1883
        %v1885 = vpop.f32.mrb[0].mxu0
        %v1886 = vpop.f32.mrb[0].mxu0
        %v1887 = vadd.f32 %v1754, %v1886
        %v1888 = vpop.f32.mrb[0].mxu0
        %1889 = vmatprep.mubr.bf16.mxu0 0
        %1890 = vmatmul.mubr.bf16.gmra.mrb[0].mxu0 %v1575
        %v1891 = vpop.f32.mrb[0].mxu0
        %v1892 = vadd.f32 %v1754, %v1891
        %v1893 = vpop.f32.mrb[0].mxu0
        %v1894 = vpop.f32.mrb[0].mxu0
        %v1895 = vadd.f32 %v1754, %v1894
        %v1896 = vpop.f32.mrb[0].mxu0
        %1897 = vmatprep.mubr.bf16.mxu0 0
        %1898 = vmatmul.mubr.bf16.gmra.mrb[0].mxu0 %v1578
        %v1899 = vpop.f32.mrb[0].mxu0
        %v1900 = vadd.f32 %v1754, %v1899
        %v1901 = vpop.f32.mrb[0].mxu0
        %v1902 = vpop.f32.mrb[0].mxu0
        %v1903 = vadd.f32 %v1754, %v1902
        %v1904 = vpop.f32.mrb[0].mxu0
        %1905 = vmatprep.mubr.bf16.mxu0 0
        %1906 = vmatmul.mubr.bf16.gmra.mrb[0].mxu0 %v1581
        %v1907 = vpop.f32.mrb[0].mxu0
        %v1908 = vadd.f32 %v1754, %v1907
        %v1909 = vpop.f32.mrb[0].mxu0
        %v1910 = vpop.f32.mrb[0].mxu0
        %v1911 = vadd.f32 %v1754, %v1910
        %v1912 = vpop.f32.mrb[0].mxu0
        %1913 = vmatprep.mubr.bf16.mxu0 0
        %1914 = vmatmul.mubr.bf16.gmra.mrb[0].mxu0 %v1584
        %v1915 = vpop.f32.mrb[0].mxu0
        %v1916 = vadd.f32 %v1754, %v1915
        %v1917 = vpop.f32.mrb[0].mxu0
        %v1918 = vpop.f32.mrb[0].mxu0
        %v1919 = vadd.f32 %v1754, %v1918
        %v1920 = vpop.f32.mrb[0].mxu0
        %1921 = vdwg.mxu0
        %v1922 = vmax.f32 %v1621, %v1796
        %v1923 = vmax.f32 %v1624, %v1799
        %v1924 = vmax.f32 %v1629, %v1804
        %v1925 = vmax.f32 %v1632, %v1807
        %v1926 = vmax.f32 %v1637, %v1812
        %v1927 = vmax.f32 %v1640, %v1815
        %v1928 = vmax.f32 %v1645, %v1820
        %v1929 = vmax.f32 %v1648, %v1823
        %v1930 = vmax.f32 %v1653, %v1828
        %v1931 = vmax.f32 %v1656, %v1831
        %v1932 = vmax.f32 %v1661, %v1836
        %v1933 = vmax.f32 %v1664, %v1839
        %v1934 = vmax.f32 %v1669, %v1844
        %v1935 = vmax.f32 %v1672, %v1847
        %v1936 = vmax.f32 %v1677, %v1852
        %v1937 = vmax.f32 %v1680, %v1855
        %v1938 = vmax.f32 %v1685, %v1860
        %v1939 = vmax.f32 %v1688, %v1863
        %v1940 = vmax.f32 %v1693, %v1868
        %v1941 = vmax.f32 %v1696, %v1871
        %v1942 = vmax.f32 %v1701, %v1876
        %v1943 = vmax.f32 %v1704, %v1879
        %v1944 = vmax.f32 %v1709, %v1884
        %v1945 = vmax.f32 %v1712, %v1887
        %v1946 = vmax.f32 %v1717, %v1892
        %v1947 = vmax.f32 %v1720, %v1895
        %v1948 = vmax.f32 %v1725, %v1900
        %v1949 = vmax.f32 %v1728, %v1903
        %v1950 = vmax.f32 %v1733, %v1908
        %v1951 = vmax.f32 %v1736, %v1911
        %v1952 = vmax.f32 %v1741, %v1916
        %v1953 = vmax.f32 %v1744, %v1919
        %vm1954 = vcmask 523264
        %1955 = vst.msk [vmem:[#allocation4] sm:$0xff] %vm1954, 0.0
        %vm1956 = vcmask 517120
        %1957 = vst.msk [vmem:[#allocation4 + $0x8] sm:$0x3] %vm1956, 0.0
        %s1958 = scalar_lea.vmem [#allocation4], 144
        %1959 = vst.msk [vmem:[%s1958] sm:$0xff] %vm1954, 0.0
        %1960 = vst.msk [vmem:[%s1958 + $0x8] sm:$0x3] %vm1956, 0.0
        %vm1961 = vcmask 516096
        %1962 = vst.msk [vmem:[#allocation4] sm:$0x1] %vm1961, 0.0
        %1963 = vst.msk [vmem:[#allocation4 + $0x10] sm:$0x1] %vm1961, 0.0
        %1964 = vst.msk [vmem:[#allocation4 + $0x20] sm:$0x1] %vm1961, 0.0
        %1965 = vst.msk [vmem:[#allocation4 + $0x30] sm:$0x1] %vm1961, 0.0
        %1966 = vst.msk [vmem:[#allocation4 + $0x40] sm:$0x1] %vm1961, 0.0
        %1967 = vst.msk [vmem:[#allocation4 + $0x50] sm:$0x1] %vm1961, 0.0
        %1968 = vst.msk [vmem:[#allocation4 + $0x60] sm:$0x1] %vm1961, 0.0
        %1969 = vst.msk [vmem:[#allocation4 + $0x70] sm:$0x1] %vm1961, 0.0
        %1970 = vst.msk [vmem:[#allocation4 + $0x80] sm:$0x1] %vm1961, 0.0
        %1971 = vst.msk [vmem:[#allocation4 + $0x90] sm:$0x1] %vm1961, 0.0
        %1972 = vst.msk [vmem:[#allocation4 + $0x9] sm:$0x1] %vm1961, 0.0
        %1973 = vst.msk [vmem:[#allocation4 + $0x19] sm:$0x1] %vm1961, 0.0
        %1974 = vst.msk [vmem:[#allocation4 + $0x29] sm:$0x1] %vm1961, 0.0
        %1975 = vst.msk [vmem:[#allocation4 + $0x39] sm:$0x1] %vm1961, 0.0
        %1976 = vst.msk [vmem:[#allocation4 + $0x49] sm:$0x1] %vm1961, 0.0
        %1977 = vst.msk [vmem:[#allocation4 + $0x59] sm:$0x1] %vm1961, 0.0
        %1978 = vst.msk [vmem:[#allocation4 + $0x69] sm:$0x1] %vm1961, 0.0
        %1979 = vst.msk [vmem:[#allocation4 + $0x79] sm:$0x1] %vm1961, 0.0
        %1980 = vst.msk [vmem:[#allocation4 + $0x89] sm:$0x1] %vm1961, 0.0
        %1981 = vst.msk [vmem:[#allocation4 + $0x99] sm:$0x1] %vm1961, 0.0
        %v1982 = vsel %vm1954, %v1922, -inf
        %v1983 = vsel %vm1954, %v1924, -inf
        %v1984 = vmax.f32 %v1982, %v1983
        %v1985 = vsel %vm1954, %v1923, -inf
        %v1986 = vsel %vm1954, %v1925, -inf
        %v1987 = vmax.f32 %v1985, %v1986
        %v1988 = vsel %vm1954, %v1926, -inf
        %v1989 = vsel %vm1954, %v1928, -inf
        %v1990 = vmax.f32 %v1988, %v1989
        %v1991 = vsel %vm1954, %v1927, -inf
        %v1992 = vsel %vm1954, %v1929, -inf
        %v1993 = vmax.f32 %v1991, %v1992
        %v1994 = vsel %vm1954, %v1930, -inf
        %v1995 = vsel %vm1954, %v1932, -inf
        %v1996 = vmax.f32 %v1994, %v1995
        %v1997 = vsel %vm1954, %v1931, -inf
        %v1998 = vsel %vm1954, %v1933, -inf
        %v1999 = vmax.f32 %v1997, %v1998
        %v2000 = vsel %vm1954, %v1934, -inf
        %v2001 = vsel %vm1954, %v1936, -inf
        %v2002 = vmax.f32 %v2000, %v2001
        %v2003 = vsel %vm1954, %v1935, -inf
        %v2004 = vsel %vm1954, %v1937, -inf
        %v2005 = vmax.f32 %v2003, %v2004
        %v2006 = vsel %vm1954, %v1938, -inf
        %v2007 = vsel %vm1954, %v1940, -inf
        %v2008 = vmax.f32 %v2006, %v2007
        %v2009 = vsel %vm1954, %v1939, -inf
        %v2010 = vsel %vm1954, %v1941, -inf
        %v2011 = vmax.f32 %v2009, %v2010
        %v2012 = vsel %vm1954, %v1942, -inf
        %v2013 = vsel %vm1954, %v1944, -inf
        %v2014 = vmax.f32 %v2012, %v2013
        %v2015 = vsel %vm1954, %v1943, -inf
        %v2016 = vsel %vm1954, %v1945, -inf
        %v2017 = vmax.f32 %v2015, %v2016
        %v2018 = vsel %vm1954, %v1946, -inf
        %v2019 = vsel %vm1954, %v1948, -inf
        %v2020 = vmax.f32 %v2018, %v2019
        %v2021 = vsel %vm1954, %v1947, -inf
        %v2022 = vsel %vm1954, %v1949, -inf
        %v2023 = vmax.f32 %v2021, %v2022
        %v2024 = vsel %vm1954, %v1950, -inf
        %v2025 = vsel %vm1954, %v1952, -inf
        %v2026 = vmax.f32 %v2024, %v2025
        %v2027 = vsel %vm1954, %v1951, -inf
        %v2028 = vsel %vm1954, %v1953, -inf
        %v2029 = vmax.f32 %v2027, %v2028
        %v2046 = vcombine.high %v1984, %v1984
        %v2048 = vunpack.c.l.s4 1983009808
        %v2049 = vunpack.c.0.s8 %v2048
        %v2050 = vlaneseq
        %v2051 = vshrl.u32 %v2050, 7
        %v2052 = vsub.s32 %v2049, %v2051
        %v2053 = vrot.slane %v1984, %v2052
        %v2055 = vunpack.c.l.s4 1983009808
        %v2056 = vunpack.c.0.s8 %v2055
        %v2057 = vlaneseq
        %v2058 = vshrl.u32 %v2057, 7
        %v2059 = vsub.s32 %v2056, %v2058
        %v2060 = vrot.slane %v2046, %v2059
        %v2061 = vcombine.high %v2053, %v2053
        %v2062 = vcombine.high %v2060, %v2060
        %v2063 = vcombine.high %v1987, %v1987
        %v2065 = vunpack.c.l.s4 1983009808
        %v2066 = vunpack.c.0.s8 %v2065
        %v2067 = vlaneseq
        %v2068 = vshrl.u32 %v2067, 7
        %v2069 = vsub.s32 %v2066, %v2068
        %v2070 = vrot.slane %v1987, %v2069
        %v2072 = vunpack.c.l.s4 1983009808
        %v2073 = vunpack.c.0.s8 %v2072
        %v2074 = vlaneseq
        %v2075 = vshrl.u32 %v2074, 7
        %v2076 = vsub.s32 %v2073, %v2075
        %v2077 = vrot.slane %v2063, %v2076
        %v2078 = vcombine.high %v2070, %v2070
        %v2079 = vcombine.high %v2077, %v2077
        %v2080 = vcombine.high %v1990, %v1990
        %v2082 = vunpack.c.l.s4 1983009808
        %v2083 = vunpack.c.0.s8 %v2082
        %v2084 = vlaneseq
        %v2085 = vshrl.u32 %v2084, 7
        %v2086 = vsub.s32 %v2083, %v2085
        %v2087 = vrot.slane %v1990, %v2086
        %v2089 = vunpack.c.l.s4 1983009808
        %v2090 = vunpack.c.0.s8 %v2089
        %v2091 = vlaneseq
        %v2092 = vshrl.u32 %v2091, 7
        %v2093 = vsub.s32 %v2090, %v2092
        %v2094 = vrot.slane %v2080, %v2093
        %v2095 = vcombine.high %v2087, %v2087
        %v2096 = vcombine.high %v2094, %v2094
        %v2097 = vcombine.high %v1993, %v1993
        %v2099 = vunpack.c.l.s4 1983009808
        %v2100 = vunpack.c.0.s8 %v2099
        %v2101 = vlaneseq
        %v2102 = vshrl.u32 %v2101, 7
        %v2103 = vsub.s32 %v2100, %v2102
        %v2104 = vrot.slane %v1993, %v2103
        %v2106 = vunpack.c.l.s4 1983009808
        %v2107 = vunpack.c.0.s8 %v2106
        %v2108 = vlaneseq
        %v2109 = vshrl.u32 %v2108, 7
        %v2110 = vsub.s32 %v2107, %v2109
        %v2111 = vrot.slane %v2097, %v2110
        %v2112 = vcombine.high %v2104, %v2104
        %v2113 = vcombine.high %v2111, %v2111
        %v2114 = vcombine.high %v1996, %v1996
        %v2116 = vunpack.c.l.s4 1983009808
        %v2117 = vunpack.c.0.s8 %v2116
        %v2118 = vlaneseq
        %v2119 = vshrl.u32 %v2118, 7
        %v2120 = vsub.s32 %v2117, %v2119
        %v2121 = vrot.slane %v1996, %v2120
        %v2123 = vunpack.c.l.s4 1983009808
        %v2124 = vunpack.c.0.s8 %v2123
        %v2125 = vlaneseq
        %v2126 = vshrl.u32 %v2125, 7
        %v2127 = vsub.s32 %v2124, %v2126
        %v2128 = vrot.slane %v2114, %v2127
        %v2129 = vcombine.high %v2121, %v2121
        %v2130 = vcombine.high %v2128, %v2128
        %v2131 = vcombine.high %v1999, %v1999
        %v2133 = vunpack.c.l.s4 1983009808
        %v2134 = vunpack.c.0.s8 %v2133
        %v2135 = vlaneseq
        %v2136 = vshrl.u32 %v2135, 7
        %v2137 = vsub.s32 %v2134, %v2136
        %v2138 = vrot.slane %v1999, %v2137
        %v2140 = vunpack.c.l.s4 1983009808
        %v2141 = vunpack.c.0.s8 %v2140
        %v2142 = vlaneseq
        %v2143 = vshrl.u32 %v2142, 7
        %v2144 = vsub.s32 %v2141, %v2143
        %v2145 = vrot.slane %v2131, %v2144
        %v2146 = vcombine.high %v2138, %v2138
        %v2147 = vcombine.high %v2145, %v2145
        %v2148 = vcombine.high %v2002, %v2002
        %v2150 = vunpack.c.l.s4 1983009808
        %v2151 = vunpack.c.0.s8 %v2150
        %v2152 = vlaneseq
        %v2153 = vshrl.u32 %v2152, 7
        %v2154 = vsub.s32 %v2151, %v2153
        %v2155 = vrot.slane %v2002, %v2154
        %v2157 = vunpack.c.l.s4 1983009808
        %v2158 = vunpack.c.0.s8 %v2157
        %v2159 = vlaneseq
        %v2160 = vshrl.u32 %v2159, 7
        %v2161 = vsub.s32 %v2158, %v2160
        %v2162 = vrot.slane %v2148, %v2161
        %v2163 = vcombine.high %v2155, %v2155
        %v2164 = vcombine.high %v2162, %v2162
        %v2165 = vcombine.high %v2005, %v2005
        %v2167 = vunpack.c.l.s4 1983009808
        %v2168 = vunpack.c.0.s8 %v2167
        %v2169 = vlaneseq
        %v2170 = vshrl.u32 %v2169, 7
        %v2171 = vsub.s32 %v2168, %v2170
        %v2172 = vrot.slane %v2005, %v2171
        %v2174 = vunpack.c.l.s4 1983009808
        %v2175 = vunpack.c.0.s8 %v2174
        %v2176 = vlaneseq
        %v2177 = vshrl.u32 %v2176, 7
        %v2178 = vsub.s32 %v2175, %v2177
        %v2179 = vrot.slane %v2165, %v2178
        %v2180 = vcombine.high %v2172, %v2172
        %v2181 = vcombine.high %v2179, %v2179
        %v2182 = vcombine.high %v2008, %v2008
        %v2184 = vunpack.c.l.s4 1983009808
        %v2185 = vunpack.c.0.s8 %v2184
        %v2186 = vlaneseq
        %v2187 = vshrl.u32 %v2186, 7
        %v2188 = vsub.s32 %v2185, %v2187
        %v2189 = vrot.slane %v2008, %v2188
        %v2191 = vunpack.c.l.s4 1983009808
        %v2192 = vunpack.c.0.s8 %v2191
        %v2193 = vlaneseq
        %v2194 = vshrl.u32 %v2193, 7
        %v2195 = vsub.s32 %v2192, %v2194
        %v2196 = vrot.slane %v2182, %v2195
        %v2197 = vcombine.high %v2189, %v2189
        %v2198 = vcombine.high %v2196, %v2196
        %v2199 = vcombine.high %v2011, %v2011
        %v2201 = vunpack.c.l.s4 1983009808
        %v2202 = vunpack.c.0.s8 %v2201
        %v2203 = vlaneseq
        %v2204 = vshrl.u32 %v2203, 7
        %v2205 = vsub.s32 %v2202, %v2204
        %v2206 = vrot.slane %v2011, %v2205
        %v2208 = vunpack.c.l.s4 1983009808
        %v2209 = vunpack.c.0.s8 %v2208
        %v2210 = vlaneseq
        %v2211 = vshrl.u32 %v2210, 7
        %v2212 = vsub.s32 %v2209, %v2211
        %v2213 = vrot.slane %v2199, %v2212
        %v2214 = vcombine.high %v2206, %v2206
        %v2215 = vcombine.high %v2213, %v2213
        %v2216 = vcombine.high %v2014, %v2014
        %v2218 = vunpack.c.l.s4 1983009808
        %v2219 = vunpack.c.0.s8 %v2218
        %v2220 = vlaneseq
        %v2221 = vshrl.u32 %v2220, 7
        %v2222 = vsub.s32 %v2219, %v2221
        %v2223 = vrot.slane %v2014, %v2222
        %v2225 = vunpack.c.l.s4 1983009808
        %v2226 = vunpack.c.0.s8 %v2225
        %v2227 = vlaneseq
        %v2228 = vshrl.u32 %v2227, 7
        %v2229 = vsub.s32 %v2226, %v2228
        %v2230 = vrot.slane %v2216, %v2229
        %v2231 = vcombine.high %v2223, %v2223
        %v2232 = vcombine.high %v2230, %v2230
        %v2233 = vcombine.high %v2017, %v2017
        %v2235 = vunpack.c.l.s4 1983009808
        %v2236 = vunpack.c.0.s8 %v2235
        %v2237 = vlaneseq
        %v2238 = vshrl.u32 %v2237, 7
        %v2239 = vsub.s32 %v2236, %v2238
        %v2240 = vrot.slane %v2017, %v2239
        %v2242 = vunpack.c.l.s4 1983009808
        %v2243 = vunpack.c.0.s8 %v2242
        %v2244 = vlaneseq
        %v2245 = vshrl.u32 %v2244, 7
        %v2246 = vsub.s32 %v2243, %v2245
        %v2247 = vrot.slane %v2233, %v2246
        %v2248 = vcombine.high %v2240, %v2240
        %v2249 = vcombine.high %v2247, %v2247
        %v2250 = vcombine.high %v2020, %v2020
        %v2252 = vunpack.c.l.s4 1983009808
        %v2253 = vunpack.c.0.s8 %v2252
        %v2254 = vlaneseq
        %v2255 = vshrl.u32 %v2254, 7
        %v2256 = vsub.s32 %v2253, %v2255
        %v2257 = vrot.slane %v2020, %v2256
        %v2259 = vunpack.c.l.s4 1983009808
        %v2260 = vunpack.c.0.s8 %v2259
        %v2261 = vlaneseq
        %v2262 = vshrl.u32 %v2261, 7
        %v2263 = vsub.s32 %v2260, %v2262
        %v2264 = vrot.slane %v2250, %v2263
        %v2265 = vcombine.high %v2257, %v2257
        %v2266 = vcombine.high %v2264, %v2264
        %v2267 = vcombine.high %v2023, %v2023
        %v2269 = vunpack.c.l.s4 1983009808
        %v2270 = vunpack.c.0.s8 %v2269
        %v2271 = vlaneseq
        %v2272 = vshrl.u32 %v2271, 7
        %v2273 = vsub.s32 %v2270, %v2272
        %v2274 = vrot.slane %v2023, %v2273
        %v2276 = vunpack.c.l.s4 1983009808
        %v2277 = vunpack.c.0.s8 %v2276
        %v2278 = vlaneseq
        %v2279 = vshrl.u32 %v2278, 7
        %v2280 = vsub.s32 %v2277, %v2279
        %v2281 = vrot.slane %v2267, %v2280
        %v2282 = vcombine.high %v2274, %v2274
        %v2283 = vcombine.high %v2281, %v2281
        %v2284 = vcombine.high %v2026, %v2026
        %v2286 = vunpack.c.l.s4 1983009808
        %v2287 = vunpack.c.0.s8 %v2286
        %v2288 = vlaneseq
        %v2289 = vshrl.u32 %v2288, 7
        %v2290 = vsub.s32 %v2287, %v2289
        %v2291 = vrot.slane %v2026, %v2290
        %v2293 = vunpack.c.l.s4 1983009808
        %v2294 = vunpack.c.0.s8 %v2293
        %v2295 = vlaneseq
        %v2296 = vshrl.u32 %v2295, 7
        %v2297 = vsub.s32 %v2294, %v2296
        %v2298 = vrot.slane %v2284, %v2297
        %v2299 = vcombine.high %v2291, %v2291
        %v2300 = vcombine.high %v2298, %v2298
        %v2301 = vcombine.high %v2029, %v2029
        %v2303 = vunpack.c.l.s4 1983009808
        %v2304 = vunpack.c.0.s8 %v2303
        %v2305 = vlaneseq
        %v2306 = vshrl.u32 %v2305, 7
        %v2307 = vsub.s32 %v2304, %v2306
        %v2308 = vrot.slane %v2029, %v2307
        %v2310 = vunpack.c.l.s4 1983009808
        %v2311 = vunpack.c.0.s8 %v2310
        %v2312 = vlaneseq
        %v2313 = vshrl.u32 %v2312, 7
        %v2314 = vsub.s32 %v2311, %v2313
        %v2315 = vrot.slane %v2301, %v2314
        %v2316 = vcombine.high %v2308, %v2308
        %v2317 = vcombine.high %v2315, %v2315
        %v2382 = vsel %vm1956, %v2053, -inf
        %v2383 = vrot.slane %v2382, 4
        %v2384 = vmax.f32 %v2382, %v2383
        %v2385 = vrot.slane %v2384, 2
        %v2386 = vmax.f32 %v2384, %v2385
        %v2387 = vrot.slane %v2386, 1
        %v2388 = vmax.f32 %v2386, %v2387
        %v2389 = vsel %vm1956, %v2061, -inf
        %v2390 = vrot.slane %v2389, 4
        %v2391 = vmax.f32 %v2389, %v2390
        %v2392 = vrot.slane %v2391, 2
        %v2393 = vmax.f32 %v2391, %v2392
        %v2394 = vrot.slane %v2393, 1
        %v2395 = vmax.f32 %v2393, %v2394
        %v2396 = vsel %vm1956, %v2060, -inf
        %v2397 = vrot.slane %v2396, 4
        %v2398 = vmax.f32 %v2396, %v2397
        %v2399 = vrot.slane %v2398, 2
        %v2400 = vmax.f32 %v2398, %v2399
        %v2401 = vrot.slane %v2400, 1
        %v2402 = vmax.f32 %v2400, %v2401
        %v2403 = vsel %vm1956, %v2062, -inf
        %v2404 = vrot.slane %v2403, 4
        %v2405 = vmax.f32 %v2403, %v2404
        %v2406 = vrot.slane %v2405, 2
        %v2407 = vmax.f32 %v2405, %v2406
        %v2408 = vrot.slane %v2407, 1
        %v2409 = vmax.f32 %v2407, %v2408
        %v2410 = vsel %vm1956, %v2070, -inf
        %v2411 = vrot.slane %v2410, 4
        %v2412 = vmax.f32 %v2410, %v2411
        %v2413 = vrot.slane %v2412, 2
        %v2414 = vmax.f32 %v2412, %v2413
        %v2415 = vrot.slane %v2414, 1
        %v2416 = vmax.f32 %v2414, %v2415
        %v2417 = vsel %vm1956, %v2078, -inf
        %v2418 = vrot.slane %v2417, 4
        %v2419 = vmax.f32 %v2417, %v2418
        %v2420 = vrot.slane %v2419, 2
        %v2421 = vmax.f32 %v2419, %v2420
        %v2422 = vrot.slane %v2421, 1
        %v2423 = vmax.f32 %v2421, %v2422
        %v2424 = vsel %vm1956, %v2077, -inf
        %v2425 = vrot.slane %v2424, 4
        %v2426 = vmax.f32 %v2424, %v2425
        %v2427 = vrot.slane %v2426, 2
        %v2428 = vmax.f32 %v2426, %v2427
        %v2429 = vrot.slane %v2428, 1
        %v2430 = vmax.f32 %v2428, %v2429
        %v2431 = vsel %vm1956, %v2079, -inf
        %v2432 = vrot.slane %v2431, 4
        %v2433 = vmax.f32 %v2431, %v2432
        %v2434 = vrot.slane %v2433, 2
        %v2435 = vmax.f32 %v2433, %v2434
        %v2436 = vrot.slane %v2435, 1
        %v2437 = vmax.f32 %v2435, %v2436
        %v2438 = vsel %vm1956, %v2087, -inf
        %v2439 = vrot.slane %v2438, 4
        %v2440 = vmax.f32 %v2438, %v2439
        %v2441 = vrot.slane %v2440, 2
        %v2442 = vmax.f32 %v2440, %v2441
        %v2443 = vrot.slane %v2442, 1
        %v2444 = vmax.f32 %v2442, %v2443
        %v2445 = vsel %vm1956, %v2095, -inf
        %v2446 = vrot.slane %v2445, 4
        %v2447 = vmax.f32 %v2445, %v2446
        %v2448 = vrot.slane %v2447, 2
        %v2449 = vmax.f32 %v2447, %v2448
        %v2450 = vrot.slane %v2449, 1
        %v2451 = vmax.f32 %v2449, %v2450
        %v2452 = vsel %vm1956, %v2094, -inf
        %v2453 = vrot.slane %v2452, 4
        %v2454 = vmax.f32 %v2452, %v2453
        %v2455 = vrot.slane %v2454, 2
        %v2456 = vmax.f32 %v2454, %v2455
        %v2457 = vrot.slane %v2456, 1
        %v2458 = vmax.f32 %v2456, %v2457
        %v2459 = vsel %vm1956, %v2096, -inf
        %v2460 = vrot.slane %v2459, 4
        %v2461 = vmax.f32 %v2459, %v2460
        %v2462 = vrot.slane %v2461, 2
        %v2463 = vmax.f32 %v2461, %v2462
        %v2464 = vrot.slane %v2463, 1
        %v2465 = vmax.f32 %v2463, %v2464
        %v2466 = vsel %vm1956, %v2104, -inf
        %v2467 = vrot.slane %v2466, 4
        %v2468 = vmax.f32 %v2466, %v2467
        %v2469 = vrot.slane %v2468, 2
        %v2470 = vmax.f32 %v2468, %v2469
        %v2471 = vrot.slane %v2470, 1
        %v2472 = vmax.f32 %v2470, %v2471
        %v2473 = vsel %vm1956, %v2112, -inf
        %v2474 = vrot.slane %v2473, 4
        %v2475 = vmax.f32 %v2473, %v2474
        %v2476 = vrot.slane %v2475, 2
        %v2477 = vmax.f32 %v2475, %v2476
        %v2478 = vrot.slane %v2477, 1
        %v2479 = vmax.f32 %v2477, %v2478
        %v2480 = vsel %vm1956, %v2111, -inf
        %v2481 = vrot.slane %v2480, 4
        %v2482 = vmax.f32 %v2480, %v2481
        %v2483 = vrot.slane %v2482, 2
        %v2484 = vmax.f32 %v2482, %v2483
        %v2485 = vrot.slane %v2484, 1
        %v2486 = vmax.f32 %v2484, %v2485
        %v2487 = vsel %vm1956, %v2113, -inf
        %v2488 = vrot.slane %v2487, 4
        %v2489 = vmax.f32 %v2487, %v2488
        %v2490 = vrot.slane %v2489, 2
        %v2491 = vmax.f32 %v2489, %v2490
        %v2492 = vrot.slane %v2491, 1
        %v2493 = vmax.f32 %v2491, %v2492
        %v2494 = vsel %vm1956, %v2121, -inf
        %v2495 = vrot.slane %v2494, 4
        %v2496 = vmax.f32 %v2494, %v2495
        %v2497 = vrot.slane %v2496, 2
        %v2498 = vmax.f32 %v2496, %v2497
        %v2499 = vrot.slane %v2498, 1
        %v2500 = vmax.f32 %v2498, %v2499
        %v2501 = vsel %vm1956, %v2129, -inf
        %v2502 = vrot.slane %v2501, 4
        %v2503 = vmax.f32 %v2501, %v2502
        %v2504 = vrot.slane %v2503, 2
        %v2505 = vmax.f32 %v2503, %v2504
        %v2506 = vrot.slane %v2505, 1
        %v2507 = vmax.f32 %v2505, %v2506
        %v2508 = vsel %vm1956, %v2128, -inf
        %v2509 = vrot.slane %v2508, 4
        %v2510 = vmax.f32 %v2508, %v2509
        %v2511 = vrot.slane %v2510, 2
        %v2512 = vmax.f32 %v2510, %v2511
        %v2513 = vrot.slane %v2512, 1
        %v2514 = vmax.f32 %v2512, %v2513
        %v2515 = vsel %vm1956, %v2130, -inf
        %v2516 = vrot.slane %v2515, 4
        %v2517 = vmax.f32 %v2515, %v2516
        %v2518 = vrot.slane %v2517, 2
        %v2519 = vmax.f32 %v2517, %v2518
        %v2520 = vrot.slane %v2519, 1
        %v2521 = vmax.f32 %v2519, %v2520
        %v2522 = vsel %vm1956, %v2138, -inf
        %v2523 = vrot.slane %v2522, 4
        %v2524 = vmax.f32 %v2522, %v2523
        %v2525 = vrot.slane %v2524, 2
        %v2526 = vmax.f32 %v2524, %v2525
        %v2527 = vrot.slane %v2526, 1
        %v2528 = vmax.f32 %v2526, %v2527
        %v2529 = vsel %vm1956, %v2146, -inf
        %v2530 = vrot.slane %v2529, 4
        %v2531 = vmax.f32 %v2529, %v2530
        %v2532 = vrot.slane %v2531, 2
        %v2533 = vmax.f32 %v2531, %v2532
        %v2534 = vrot.slane %v2533, 1
        %v2535 = vmax.f32 %v2533, %v2534
        %v2536 = vsel %vm1956, %v2145, -inf
        %v2537 = vrot.slane %v2536, 4
        %v2538 = vmax.f32 %v2536, %v2537
        %v2539 = vrot.slane %v2538, 2
        %v2540 = vmax.f32 %v2538, %v2539
        %v2541 = vrot.slane %v2540, 1
        %v2542 = vmax.f32 %v2540, %v2541
        %v2543 = vsel %vm1956, %v2147, -inf
        %v2544 = vrot.slane %v2543, 4
        %v2545 = vmax.f32 %v2543, %v2544
        %v2546 = vrot.slane %v2545, 2
        %v2547 = vmax.f32 %v2545, %v2546
        %v2548 = vrot.slane %v2547, 1
        %v2549 = vmax.f32 %v2547, %v2548
        %v2550 = vsel %vm1956, %v2155, -inf
        %v2551 = vrot.slane %v2550, 4
        %v2552 = vmax.f32 %v2550, %v2551
        %v2553 = vrot.slane %v2552, 2
        %v2554 = vmax.f32 %v2552, %v2553
        %v2555 = vrot.slane %v2554, 1
        %v2556 = vmax.f32 %v2554, %v2555
        %v2557 = vsel %vm1956, %v2163, -inf
        %v2558 = vrot.slane %v2557, 4
        %v2559 = vmax.f32 %v2557, %v2558
        %v2560 = vrot.slane %v2559, 2
        %v2561 = vmax.f32 %v2559, %v2560
        %v2562 = vrot.slane %v2561, 1
        %v2563 = vmax.f32 %v2561, %v2562
        %v2564 = vsel %vm1956, %v2162, -inf
        %v2565 = vrot.slane %v2564, 4
        %v2566 = vmax.f32 %v2564, %v2565
        %v2567 = vrot.slane %v2566, 2
        %v2568 = vmax.f32 %v2566, %v2567
        %v2569 = vrot.slane %v2568, 1
        %v2570 = vmax.f32 %v2568, %v2569
        %v2571 = vsel %vm1956, %v2164, -inf
        %v2572 = vrot.slane %v2571, 4
        %v2573 = vmax.f32 %v2571, %v2572
        %v2574 = vrot.slane %v2573, 2
        %v2575 = vmax.f32 %v2573, %v2574
        %v2576 = vrot.slane %v2575, 1
        %v2577 = vmax.f32 %v2575, %v2576
        %v2578 = vsel %vm1956, %v2172, -inf
        %v2579 = vrot.slane %v2578, 4
        %v2580 = vmax.f32 %v2578, %v2579
        %v2581 = vrot.slane %v2580, 2
        %v2582 = vmax.f32 %v2580, %v2581
        %v2583 = vrot.slane %v2582, 1
        %v2584 = vmax.f32 %v2582, %v2583
        %v2585 = vsel %vm1956, %v2180, -inf
        %v2586 = vrot.slane %v2585, 4
        %v2587 = vmax.f32 %v2585, %v2586
        %v2588 = vrot.slane %v2587, 2
        %v2589 = vmax.f32 %v2587, %v2588
        %v2590 = vrot.slane %v2589, 1
        %v2591 = vmax.f32 %v2589, %v2590
        %v2592 = vsel %vm1956, %v2179, -inf
        %v2593 = vrot.slane %v2592, 4
        %v2594 = vmax.f32 %v2592, %v2593
        %v2595 = vrot.slane %v2594, 2
        %v2596 = vmax.f32 %v2594, %v2595
        %v2597 = vrot.slane %v2596, 1
        %v2598 = vmax.f32 %v2596, %v2597
        %v2599 = vsel %vm1956, %v2181, -inf
        %v2600 = vrot.slane %v2599, 4
        %v2601 = vmax.f32 %v2599, %v2600
        %v2602 = vrot.slane %v2601, 2
        %v2603 = vmax.f32 %v2601, %v2602
        %v2604 = vrot.slane %v2603, 1
        %v2605 = vmax.f32 %v2603, %v2604
        %v2606 = vsel %vm1956, %v2189, -inf
        %v2607 = vrot.slane %v2606, 4
        %v2608 = vmax.f32 %v2606, %v2607
        %v2609 = vrot.slane %v2608, 2
        %v2610 = vmax.f32 %v2608, %v2609
        %v2611 = vrot.slane %v2610, 1
        %v2612 = vmax.f32 %v2610, %v2611
        %v2613 = vsel %vm1956, %v2197, -inf
        %v2614 = vrot.slane %v2613, 4
        %v2615 = vmax.f32 %v2613, %v2614
        %v2616 = vrot.slane %v2615, 2
        %v2617 = vmax.f32 %v2615, %v2616
        %v2618 = vrot.slane %v2617, 1
        %v2619 = vmax.f32 %v2617, %v2618
        %v2620 = vsel %vm1956, %v2196, -inf
        %v2621 = vrot.slane %v2620, 4
        %v2622 = vmax.f32 %v2620, %v2621
        %v2623 = vrot.slane %v2622, 2
        %v2624 = vmax.f32 %v2622, %v2623
        %v2625 = vrot.slane %v2624, 1
        %v2626 = vmax.f32 %v2624, %v2625
        %v2627 = vsel %vm1956, %v2198, -inf
        %v2628 = vrot.slane %v2627, 4
        %v2629 = vmax.f32 %v2627, %v2628
        %v2630 = vrot.slane %v2629, 2
        %v2631 = vmax.f32 %v2629, %v2630
        %v2632 = vrot.slane %v2631, 1
        %v2633 = vmax.f32 %v2631, %v2632
        %v2634 = vsel %vm1956, %v2206, -inf
        %v2635 = vrot.slane %v2634, 4
        %v2636 = vmax.f32 %v2634, %v2635
        %v2637 = vrot.slane %v2636, 2
        %v2638 = vmax.f32 %v2636, %v2637
        %v2639 = vrot.slane %v2638, 1
        %v2640 = vmax.f32 %v2638, %v2639
        %v2641 = vsel %vm1956, %v2214, -inf
        %v2642 = vrot.slane %v2641, 4
        %v2643 = vmax.f32 %v2641, %v2642
        %v2644 = vrot.slane %v2643, 2
        %v2645 = vmax.f32 %v2643, %v2644
        %v2646 = vrot.slane %v2645, 1
        %v2647 = vmax.f32 %v2645, %v2646
        %v2648 = vsel %vm1956, %v2213, -inf
        %v2649 = vrot.slane %v2648, 4
        %v2650 = vmax.f32 %v2648, %v2649
        %v2651 = vrot.slane %v2650, 2
        %v2652 = vmax.f32 %v2650, %v2651
        %v2653 = vrot.slane %v2652, 1
        %v2654 = vmax.f32 %v2652, %v2653
        %v2655 = vsel %vm1956, %v2215, -inf
        %v2656 = vrot.slane %v2655, 4
        %v2657 = vmax.f32 %v2655, %v2656
        %v2658 = vrot.slane %v2657, 2
        %v2659 = vmax.f32 %v2657, %v2658
        %v2660 = vrot.slane %v2659, 1
        %v2661 = vmax.f32 %v2659, %v2660
        %v2662 = vsel %vm1956, %v2223, -inf
        %v2663 = vrot.slane %v2662, 4
        %v2664 = vmax.f32 %v2662, %v2663
        %v2665 = vrot.slane %v2664, 2
        %v2666 = vmax.f32 %v2664, %v2665
        %v2667 = vrot.slane %v2666, 1
        %v2668 = vmax.f32 %v2666, %v2667
        %v2669 = vsel %vm1956, %v2231, -inf
        %v2670 = vrot.slane %v2669, 4
        %v2671 = vmax.f32 %v2669, %v2670
        %v2672 = vrot.slane %v2671, 2
        %v2673 = vmax.f32 %v2671, %v2672
        %v2674 = vrot.slane %v2673, 1
        %v2675 = vmax.f32 %v2673, %v2674
        %v2676 = vsel %vm1956, %v2230, -inf
        %v2677 = vrot.slane %v2676, 4
        %v2678 = vmax.f32 %v2676, %v2677
        %v2679 = vrot.slane %v2678, 2
        %v2680 = vmax.f32 %v2678, %v2679
        %v2681 = vrot.slane %v2680, 1
        %v2682 = vmax.f32 %v2680, %v2681
        %v2683 = vsel %vm1956, %v2232, -inf
        %v2684 = vrot.slane %v2683, 4
        %v2685 = vmax.f32 %v2683, %v2684
        %v2686 = vrot.slane %v2685, 2
        %v2687 = vmax.f32 %v2685, %v2686
        %v2688 = vrot.slane %v2687, 1
        %v2689 = vmax.f32 %v2687, %v2688
        %v2690 = vsel %vm1956, %v2240, -inf
        %v2691 = vrot.slane %v2690, 4
        %v2692 = vmax.f32 %v2690, %v2691
        %v2693 = vrot.slane %v2692, 2
        %v2694 = vmax.f32 %v2692, %v2693
        %v2695 = vrot.slane %v2694, 1
        %v2696 = vmax.f32 %v2694, %v2695
        %v2697 = vsel %vm1956, %v2248, -inf
        %v2698 = vrot.slane %v2697, 4
        %v2699 = vmax.f32 %v2697, %v2698
        %v2700 = vrot.slane %v2699, 2
        %v2701 = vmax.f32 %v2699, %v2700
        %v2702 = vrot.slane %v2701, 1
        %v2703 = vmax.f32 %v2701, %v2702
        %v2704 = vsel %vm1956, %v2247, -inf
        %v2705 = vrot.slane %v2704, 4
        %v2706 = vmax.f32 %v2704, %v2705
        %v2707 = vrot.slane %v2706, 2
        %v2708 = vmax.f32 %v2706, %v2707
        %v2709 = vrot.slane %v2708, 1
        %v2710 = vmax.f32 %v2708, %v2709
        %v2711 = vsel %vm1956, %v2249, -inf
        %v2712 = vrot.slane %v2711, 4
        %v2713 = vmax.f32 %v2711, %v2712
        %v2714 = vrot.slane %v2713, 2
        %v2715 = vmax.f32 %v2713, %v2714
        %v2716 = vrot.slane %v2715, 1
        %v2717 = vmax.f32 %v2715, %v2716
        %v2718 = vsel %vm1956, %v2257, -inf
        %v2719 = vrot.slane %v2718, 4
        %v2720 = vmax.f32 %v2718, %v2719
        %v2721 = vrot.slane %v2720, 2
        %v2722 = vmax.f32 %v2720, %v2721
        %v2723 = vrot.slane %v2722, 1
        %v2724 = vmax.f32 %v2722, %v2723
        %v2725 = vsel %vm1956, %v2265, -inf
        %v2726 = vrot.slane %v2725, 4
        %v2727 = vmax.f32 %v2725, %v2726
        %v2728 = vrot.slane %v2727, 2
        %v2729 = vmax.f32 %v2727, %v2728
        %v2730 = vrot.slane %v2729, 1
        %v2731 = vmax.f32 %v2729, %v2730
        %v2732 = vsel %vm1956, %v2264, -inf
        %v2733 = vrot.slane %v2732, 4
        %v2734 = vmax.f32 %v2732, %v2733
        %v2735 = vrot.slane %v2734, 2
        %v2736 = vmax.f32 %v2734, %v2735
        %v2737 = vrot.slane %v2736, 1
        %v2738 = vmax.f32 %v2736, %v2737
        %v2739 = vsel %vm1956, %v2266, -inf
        %v2740 = vrot.slane %v2739, 4
        %v2741 = vmax.f32 %v2739, %v2740
        %v2742 = vrot.slane %v2741, 2
        %v2743 = vmax.f32 %v2741, %v2742
        %v2744 = vrot.slane %v2743, 1
        %v2745 = vmax.f32 %v2743, %v2744
        %v2746 = vsel %vm1956, %v2274, -inf
        %v2747 = vrot.slane %v2746, 4
        %v2748 = vmax.f32 %v2746, %v2747
        %v2749 = vrot.slane %v2748, 2
        %v2750 = vmax.f32 %v2748, %v2749
        %v2751 = vrot.slane %v2750, 1
        %v2752 = vmax.f32 %v2750, %v2751
        %v2753 = vsel %vm1956, %v2282, -inf
        %v2754 = vrot.slane %v2753, 4
        %v2755 = vmax.f32 %v2753, %v2754
        %v2756 = vrot.slane %v2755, 2
        %v2757 = vmax.f32 %v2755, %v2756
        %v2758 = vrot.slane %v2757, 1
        %v2759 = vmax.f32 %v2757, %v2758
        %v2760 = vsel %vm1956, %v2281, -inf
        %v2761 = vrot.slane %v2760, 4
        %v2762 = vmax.f32 %v2760, %v2761
        %v2763 = vrot.slane %v2762, 2
        %v2764 = vmax.f32 %v2762, %v2763
        %v2765 = vrot.slane %v2764, 1
        %v2766 = vmax.f32 %v2764, %v2765
        %v2767 = vsel %vm1956, %v2283, -inf
        %v2768 = vrot.slane %v2767, 4
        %v2769 = vmax.f32 %v2767, %v2768
        %v2770 = vrot.slane %v2769, 2
        %v2771 = vmax.f32 %v2769, %v2770
        %v2772 = vrot.slane %v2771, 1
        %v2773 = vmax.f32 %v2771, %v2772
        %v2774 = vsel %vm1956, %v2291, -inf
        %v2775 = vrot.slane %v2774, 4
        %v2776 = vmax.f32 %v2774, %v2775
        %v2777 = vrot.slane %v2776, 2
        %v2778 = vmax.f32 %v2776, %v2777
        %v2779 = vrot.slane %v2778, 1
        %v2780 = vmax.f32 %v2778, %v2779
        %v2781 = vsel %vm1956, %v2299, -inf
        %v2782 = vrot.slane %v2781, 4
        %v2783 = vmax.f32 %v2781, %v2782
        %v2784 = vrot.slane %v2783, 2
        %v2785 = vmax.f32 %v2783, %v2784
        %v2786 = vrot.slane %v2785, 1
        %v2787 = vmax.f32 %v2785, %v2786
        %v2788 = vsel %vm1956, %v2298, -inf
        %v2789 = vrot.slane %v2788, 4
        %v2790 = vmax.f32 %v2788, %v2789
        %v2791 = vrot.slane %v2790, 2
        %v2792 = vmax.f32 %v2790, %v2791
        %v2793 = vrot.slane %v2792, 1
        %v2794 = vmax.f32 %v2792, %v2793
        %v2795 = vsel %vm1956, %v2300, -inf
        %v2796 = vrot.slane %v2795, 4
        %v2797 = vmax.f32 %v2795, %v2796
        %v2798 = vrot.slane %v2797, 2
        %v2799 = vmax.f32 %v2797, %v2798
        %v2800 = vrot.slane %v2799, 1
        %v2801 = vmax.f32 %v2799, %v2800
        %v2802 = vsel %vm1956, %v2308, -inf
        %v2803 = vrot.slane %v2802, 4
        %v2804 = vmax.f32 %v2802, %v2803
        %v2805 = vrot.slane %v2804, 2
        %v2806 = vmax.f32 %v2804, %v2805
        %v2807 = vrot.slane %v2806, 1
        %v2808 = vmax.f32 %v2806, %v2807
        %v2809 = vsel %vm1956, %v2316, -inf
        %v2810 = vrot.slane %v2809, 4
        %v2811 = vmax.f32 %v2809, %v2810
        %v2812 = vrot.slane %v2811, 2
        %v2813 = vmax.f32 %v2811, %v2812
        %v2814 = vrot.slane %v2813, 1
        %v2815 = vmax.f32 %v2813, %v2814
        %v2816 = vsel %vm1956, %v2315, -inf
        %v2817 = vrot.slane %v2816, 4
        %v2818 = vmax.f32 %v2816, %v2817
        %v2819 = vrot.slane %v2818, 2
        %v2820 = vmax.f32 %v2818, %v2819
        %v2821 = vrot.slane %v2820, 1
        %v2822 = vmax.f32 %v2820, %v2821
        %v2823 = vsel %vm1956, %v2317, -inf
        %v2824 = vrot.slane %v2823, 4
        %v2825 = vmax.f32 %v2823, %v2824
        %v2826 = vrot.slane %v2825, 2
        %v2827 = vmax.f32 %v2825, %v2826
        %v2828 = vrot.slane %v2827, 1
        %v2829 = vmax.f32 %v2827, %v2828
        %vm2894 = vcmask 1041409
        %v2895 = vsel %vm2894, %v2395, %v2388
        %vm2896 = vcmask 1042434
        %v2897 = vsel %vm2896, %v2402, %v2895
        %vm2898 = vcmask 1043459
        %v2899 = vsel %vm2898, %v2409, %v2897
        %vm2900 = vcmask 1044484
        %v2901 = vsel %vm2900, %v2416, %v2899
        %vm2902 = vcmask 1045509
        %v2903 = vsel %vm2902, %v2423, %v2901
        %vm2904 = vcmask 1046534
        %v2905 = vsel %vm2904, %v2430, %v2903
        %vm2906 = vcmask 1047559
        %v2907 = vsel %vm2906, %v2437, %v2905
        %v2908 = vsel %vm2894, %v2451, %v2444
        %v2909 = vsel %vm2896, %v2458, %v2908
        %v2910 = vsel %vm2898, %v2465, %v2909
        %v2911 = vsel %vm2900, %v2472, %v2910
        %v2912 = vsel %vm2902, %v2479, %v2911
        %v2913 = vsel %vm2904, %v2486, %v2912
        %v2914 = vsel %vm2906, %v2493, %v2913
        %v2915 = vsel %vm2894, %v2507, %v2500
        %v2916 = vsel %vm2896, %v2514, %v2915
        %v2917 = vsel %vm2898, %v2521, %v2916
        %v2918 = vsel %vm2900, %v2528, %v2917
        %v2919 = vsel %vm2902, %v2535, %v2918
        %v2920 = vsel %vm2904, %v2542, %v2919
        %v2921 = vsel %vm2906, %v2549, %v2920
        %v2922 = vsel %vm2894, %v2563, %v2556
        %v2923 = vsel %vm2896, %v2570, %v2922
        %v2924 = vsel %vm2898, %v2577, %v2923
        %v2925 = vsel %vm2900, %v2584, %v2924
        %v2926 = vsel %vm2902, %v2591, %v2925
        %v2927 = vsel %vm2904, %v2598, %v2926
        %v2928 = vsel %vm2906, %v2605, %v2927
        %v2929 = vsel %vm2894, %v2619, %v2612
        %v2930 = vsel %vm2896, %v2626, %v2929
        %v2931 = vsel %vm2898, %v2633, %v2930
        %v2932 = vsel %vm2900, %v2640, %v2931
        %v2933 = vsel %vm2902, %v2647, %v2932
        %v2934 = vsel %vm2904, %v2654, %v2933
        %v2935 = vsel %vm2906, %v2661, %v2934
        %v2936 = vsel %vm2894, %v2675, %v2668
        %v2937 = vsel %vm2896, %v2682, %v2936
        %v2938 = vsel %vm2898, %v2689, %v2937
        %v2939 = vsel %vm2900, %v2696, %v2938
        %v2940 = vsel %vm2902, %v2703, %v2939
        %v2941 = vsel %vm2904, %v2710, %v2940
        %v2942 = vsel %vm2906, %v2717, %v2941
        %v2943 = vsel %vm2894, %v2731, %v2724
        %v2944 = vsel %vm2896, %v2738, %v2943
        %v2945 = vsel %vm2898, %v2745, %v2944
        %v2946 = vsel %vm2900, %v2752, %v2945
        %v2947 = vsel %vm2902, %v2759, %v2946
        %v2948 = vsel %vm2904, %v2766, %v2947
        %v2949 = vsel %vm2906, %v2773, %v2948
        %v2950 = vsel %vm2894, %v2787, %v2780
        %v2951 = vsel %vm2896, %v2794, %v2950
        %v2952 = vsel %vm2898, %v2801, %v2951
        %v2953 = vsel %vm2900, %v2808, %v2952
        %v2954 = vsel %vm2902, %v2815, %v2953
        %v2955 = vsel %vm2904, %v2822, %v2954
        %v2956 = vsel %vm2906, %v2829, %v2955
        %s2965 = scalar_lea.vmem [#allocation4], 16
        %2966 = vst.msk [vmem:[%s2965 + $0x1] sm:$0xff] %vm1954, %v2907
        %2967 = vst.msk [vmem:[%s2965 + $0x11] sm:$0xff] %vm1954, %v2914
        %2968 = vst.msk [vmem:[%s2965 + $0x21] sm:$0xff] %vm1954, %v2921
        %2969 = vst.msk [vmem:[%s2965 + $0x31] sm:$0xff] %vm1954, %v2928
        %2970 = vst.msk [vmem:[%s2965 + $0x41] sm:$0xff] %vm1954, %v2935
        %2971 = vst.msk [vmem:[%s2965 + $0x51] sm:$0xff] %vm1954, %v2942
        %2972 = vst.msk [vmem:[%s2965 + $0x61] sm:$0xff] %vm1954, %v2949
        %2973 = vst.msk [vmem:[%s2965 + $0x71] sm:$0xff] %vm1954, %v2956
        %v2974 = vld [vmem:[#allocation4] sm:$0xff]
        %v2975 = vld [vmem:[#allocation4 + $0x8] sm:$0x3]
        %v2976 = vld [vmem:[#allocation4 + $0x10] sm:$0xff]
        %v2977 = vld [vmem:[#allocation4 + $0x18] sm:$0x3]
        %v2978 = vld [vmem:[#allocation4 + $0x20] sm:$0xff]
        %v2979 = vld [vmem:[#allocation4 + $0x28] sm:$0x3]
        %v2980 = vld [vmem:[#allocation4 + $0x30] sm:$0xff]
        %v2981 = vld [vmem:[#allocation4 + $0x38] sm:$0x3]
        %v2982 = vld [vmem:[#allocation4 + $0x40] sm:$0xff]
        %v2983 = vld [vmem:[#allocation4 + $0x48] sm:$0x3]
        %v2984 = vld [vmem:[#allocation4 + $0x50] sm:$0xff]
        %v2985 = vld [vmem:[#allocation4 + $0x58] sm:$0x3]
        %v2986 = vld [vmem:[#allocation4 + $0x60] sm:$0xff]
        %v2987 = vld [vmem:[#allocation4 + $0x68] sm:$0x3]
        %v2988 = vld [vmem:[#allocation4 + $0x70] sm:$0xff]
        %v2989 = vld [vmem:[#allocation4 + $0x78] sm:$0x3]
        %v2990 = vld [vmem:[#allocation4 + $0x80] sm:$0xff]
        %v2991 = vld [vmem:[#allocation4 + $0x88] sm:$0x3]
        %v2992 = vld [vmem:[#allocation4 + $0x90] sm:$0xff]
        %v2993 = vld [vmem:[#allocation4 + $0x98] sm:$0x3]
        %v2994 = vpack.c.bf16 %v2976, %v2974
        %v2995 = vpack.c.bf16 %v2980, %v2978
        %v2996 = vpack.c.bf16 %v2984, %v2982
        %v2997 = vpack.c.bf16 %v2988, %v2986
        %2998 = vst.msk [vmem:[#allocation5] sm:$0xff] %vm1954, %v2994
        %2999 = vst.msk [vmem:[#allocation5 + $0x28] sm:$0xff] %vm1954, %v2995
        %3000 = vst.msk [vmem:[#allocation5 + $0x50] sm:$0xff] %vm1954, %v2996
        %3001 = vst.msk [vmem:[#allocation5 + $0x78] sm:$0xff] %vm1954, %v2997
        %v3002 = vpack.c.bf16 %v2978, %v2976
        %v3003 = vpack.c.bf16 %v2982, %v2980
        %v3004 = vpack.c.bf16 %v2986, %v2984
        %v3005 = vpack.c.bf16 %v2990, %v2988
        %3010 = vrot.lane.b32.xlu0 %v3002, 64
        %v3011 = vpop.permute.xlu0 %3010
        %3012 = vrot.lane.b32.xlu0 %v3003, 64
        %v3013 = vpop.permute.xlu0 %3012
        %3014 = vrot.lane.b32.xlu0 %v3004, 64
        %v3015 = vpop.permute.xlu0 %3014
        %3016 = vrot.lane.b32.xlu0 %v3005, 64
        %v3017 = vpop.permute.xlu0 %3016
        %vm3022 = vcmask 1048064
        %3023 = vst.msk [vmem:[#allocation5 + $0x8] sm:$0xff] %vm3022, %v3011
        %3024 = vst.msk [vmem:[#allocation5 + $0x30] sm:$0xff] %vm3022, %v3013
        %3025 = vst.msk [vmem:[#allocation5 + $0x58] sm:$0xff] %vm3022, %v3015
        %3026 = vst.msk [vmem:[#allocation5 + $0x80] sm:$0xff] %vm3022, %v3017
        %v3027 = vpack.c.bf16 %v2992, %v2990
        %3028 = vst.msk [vmem:[#allocation5 + $0x18] sm:$0xff] %vm1954, %v2995
        %3029 = vst.msk [vmem:[#allocation5 + $0x40] sm:$0xff] %vm1954, %v2996
        %3030 = vst.msk [vmem:[#allocation5 + $0x68] sm:$0xff] %vm1954, %v2997
        %3031 = vst.msk [vmem:[#allocation5 + $0x90] sm:$0xff] %vm1954, %v3027
        %v3048 = vrot.slane %v2974, 1
        %v3049 = vrot.slane %v2975, 1
        %v3050 = vsel %vm952, %v3048, %v3049
        %v3051 = vrot.slane %v2976, 1
        %v3052 = vrot.slane %v2977, 1
        %v3053 = vsel %vm952, %v3051, %v3052
        %v3054 = vrot.slane %v2978, 1
        %v3055 = vrot.slane %v2979, 1
        %v3056 = vsel %vm952, %v3054, %v3055
        %v3057 = vrot.slane %v2980, 1
        %v3058 = vrot.slane %v2981, 1
        %v3059 = vsel %vm952, %v3057, %v3058
        %v3060 = vrot.slane %v2982, 1
        %v3061 = vrot.slane %v2983, 1
        %v3062 = vsel %vm952, %v3060, %v3061
        %v3063 = vrot.slane %v2984, 1
        %v3064 = vrot.slane %v2985, 1
        %v3065 = vsel %vm952, %v3063, %v3064
        %v3066 = vrot.slane %v2986, 1
        %v3067 = vrot.slane %v2987, 1
        %v3068 = vsel %vm952, %v3066, %v3067
        %v3069 = vrot.slane %v2988, 1
        %v3070 = vrot.slane %v2989, 1
        %v3071 = vsel %vm952, %v3069, %v3070
        %v3080 = vpack.c.bf16 %v3053, %v3050
        %v3081 = vpack.c.bf16 %v3059, %v3056
        %v3082 = vpack.c.bf16 %v3065, %v3062
        %v3083 = vpack.c.bf16 %v3071, %v3068
        %3088 = vrot.lane.b32.xlu0 %v3080, 64
        %v3089 = vpop.permute.xlu0 %3088
        %3090 = vrot.lane.b32.xlu0 %v3081, 64
        %v3091 = vpop.permute.xlu0 %3090
        %3092 = vrot.lane.b32.xlu0 %v3082, 64
        %v3093 = vpop.permute.xlu0 %3092
        %3094 = vrot.lane.b32.xlu0 %v3083, 64
        %v3095 = vpop.permute.xlu0 %3094
        %3100 = vst.msk [vmem:[#allocation5] sm:$0xff] %vm3022, %v3089
        %3101 = vst.msk [vmem:[#allocation5 + $0x28] sm:$0xff] %vm3022, %v3091
        %3102 = vst.msk [vmem:[#allocation5 + $0x50] sm:$0xff] %vm3022, %v3093
        %3103 = vst.msk [vmem:[#allocation5 + $0x78] sm:$0xff] %vm3022, %v3095
        %v3106 = vrot.slane %v2990, 1
        %v3107 = vrot.slane %v2991, 1
        %v3108 = vsel %vm952, %v3106, %v3107
        %v3110 = vpack.c.bf16 %v3056, %v3053
        %v3111 = vpack.c.bf16 %v3062, %v3059
        %v3112 = vpack.c.bf16 %v3068, %v3065
        %v3113 = vpack.c.bf16 %v3108, %v3071
        %3114 = vst.msk [vmem:[#allocation5 + $0x10] sm:$0xff] %vm1954, %v3110
        %3115 = vst.msk [vmem:[#allocation5 + $0x38] sm:$0xff] %vm1954, %v3111
        %3116 = vst.msk [vmem:[#allocation5 + $0x60] sm:$0xff] %vm1954, %v3112
        %3117 = vst.msk [vmem:[#allocation5 + $0x88] sm:$0xff] %vm1954, %v3113
        %v3120 = vrot.slane %v2992, 1
        %v3121 = vrot.slane %v2993, 1
        %v3122 = vsel %vm952, %v3120, %v3121
        %v3124 = vpack.c.bf16 %v3122, %v3108
        %3126 = vrot.lane.b32.xlu0 %v3124, 64
        %v3127 = vpop.permute.xlu0 %3126
        %3129 = vst.msk [vmem:[#allocation5 + $0x18] sm:$0xff] %vm3022, %v3091
        %3130 = vst.msk [vmem:[#allocation5 + $0x40] sm:$0xff] %vm3022, %v3093
        %3131 = vst.msk [vmem:[#allocation5 + $0x68] sm:$0xff] %vm3022, %v3095
        %3132 = vst.msk [vmem:[#allocation5 + $0x90] sm:$0xff] %vm3022, %v3127
        %v3133 = vrot.slane %v2974, 2
        %v3134 = vrot.slane %v2975, 2
        %v3135 = vsel %vm1098, %v3133, %v3134
        %v3136 = vrot.slane %v2976, 2
        %v3137 = vrot.slane %v2977, 2
        %v3138 = vsel %vm1098, %v3136, %v3137
        %v3139 = vrot.slane %v2978, 2
        %v3140 = vrot.slane %v2979, 2
        %v3141 = vsel %vm1098, %v3139, %v3140
        %v3142 = vrot.slane %v2980, 2
        %v3143 = vrot.slane %v2981, 2
        %v3144 = vsel %vm1098, %v3142, %v3143
        %v3145 = vrot.slane %v2982, 2
        %v3146 = vrot.slane %v2983, 2
        %v3147 = vsel %vm1098, %v3145, %v3146
        %v3148 = vrot.slane %v2984, 2
        %v3149 = vrot.slane %v2985, 2
        %v3150 = vsel %vm1098, %v3148, %v3149
        %v3151 = vrot.slane %v2986, 2
        %v3152 = vrot.slane %v2987, 2
        %v3153 = vsel %vm1098, %v3151, %v3152
        %v3154 = vrot.slane %v2988, 2
        %v3155 = vrot.slane %v2989, 2
        %v3156 = vsel %vm1098, %v3154, %v3155
        %v3165 = vpack.c.bf16 %v3138, %v3135
        %v3166 = vpack.c.bf16 %v3144, %v3141
        %v3167 = vpack.c.bf16 %v3150, %v3147
        %v3168 = vpack.c.bf16 %v3156, %v3153
        %3169 = vst.msk [vmem:[#allocation5 + $0x8] sm:$0xff] %vm1954, %v3165
        %3170 = vst.msk [vmem:[#allocation5 + $0x30] sm:$0xff] %vm1954, %v3166
        %3171 = vst.msk [vmem:[#allocation5 + $0x58] sm:$0xff] %vm1954, %v3167
        %3172 = vst.msk [vmem:[#allocation5 + $0x80] sm:$0xff] %vm1954, %v3168
        %v3173 = vrot.slane %v2990, 2
        %v3174 = vrot.slane %v2991, 2
        %v3175 = vsel %vm1098, %v3173, %v3174
        %v3177 = vpack.c.bf16 %v3141, %v3138
        %v3178 = vpack.c.bf16 %v3147, %v3144
        %v3179 = vpack.c.bf16 %v3153, %v3150
        %v3180 = vpack.c.bf16 %v3175, %v3156
        %3185 = vrot.lane.b32.xlu0 %v3177, 64
        %v3186 = vpop.permute.xlu0 %3185
        %3187 = vrot.lane.b32.xlu0 %v3178, 64
        %v3188 = vpop.permute.xlu0 %3187
        %3189 = vrot.lane.b32.xlu0 %v3179, 64
        %v3190 = vpop.permute.xlu0 %3189
        %3191 = vrot.lane.b32.xlu0 %v3180, 64
        %v3192 = vpop.permute.xlu0 %3191
        %3197 = vst.msk [vmem:[#allocation5 + $0x10] sm:$0xff] %vm3022, %v3186
        %3198 = vst.msk [vmem:[#allocation5 + $0x38] sm:$0xff] %vm3022, %v3188
        %3199 = vst.msk [vmem:[#allocation5 + $0x60] sm:$0xff] %vm3022, %v3190
        %3200 = vst.msk [vmem:[#allocation5 + $0x88] sm:$0xff] %vm3022, %v3192
        %v3201 = vrot.slane %v2992, 2
        %v3202 = vrot.slane %v2993, 2
        %v3203 = vsel %vm1098, %v3201, %v3202
        %v3205 = vpack.c.bf16 %v3203, %v3175
        %3206 = vst.msk [vmem:[#allocation5 + $0x20] sm:$0xff] %vm1954, %v3166
        %3207 = vst.msk [vmem:[#allocation5 + $0x48] sm:$0xff] %vm1954, %v3167
        %3208 = vst.msk [vmem:[#allocation5 + $0x70] sm:$0xff] %vm1954, %v3168
        %3209 = vst.msk [vmem:[#allocation5 + $0x98] sm:$0xff] %vm1954, %v3205
        %v3210 = vld [vmem:[#allocation5] sm:$0xff]
        %v3211 = vld [vmem:[#allocation5 + $0x8] sm:$0xff]
        %v3212 = vld [vmem:[#allocation5 + $0x10] sm:$0xff]
        %v3213 = vld [vmem:[#allocation5 + $0x18] sm:$0xff]
        %v3214 = vld [vmem:[#allocation5 + $0x20] sm:$0xff]
        %v3215 = vld [vmem:[#allocation5 + $0x28] sm:$0xff]
        %v3216 = vld [vmem:[#allocation5 + $0x30] sm:$0xff]
        %v3217 = vld [vmem:[#allocation5 + $0x38] sm:$0xff]
        %v3218 = vld [vmem:[#allocation5 + $0x40] sm:$0xff]
        %v3219 = vld [vmem:[#allocation5 + $0x48] sm:$0xff]
        %v3220 = vld [vmem:[#allocation5 + $0x50] sm:$0xff]
        %v3221 = vld [vmem:[#allocation5 + $0x58] sm:$0xff]
        %v3222 = vld [vmem:[#allocation5 + $0x60] sm:$0xff]
        %v3223 = vld [vmem:[#allocation5 + $0x68] sm:$0xff]
        %v3224 = vld [vmem:[#allocation5 + $0x70] sm:$0xff]
        %v3225 = vld [vmem:[#allocation5 + $0x78] sm:$0xff]
        %v3226 = vld [vmem:[#allocation5 + $0x80] sm:$0xff]
        %v3227 = vld [vmem:[#allocation5 + $0x88] sm:$0xff]
        %v3228 = vld [vmem:[#allocation5 + $0x90] sm:$0xff]
        %v3229 = vld [vmem:[#allocation5 + $0x98] sm:$0xff]
        %v3230 = vld [vmem:[#allocation16] sm:$0xf]
        %v3231 = vld [vmem:[#allocation16 + $0x4] sm:$0xf]
        %v3232 = vld [vmem:[#allocation16 + $0x8] sm:$0xf]
        %v3233 = vld [vmem:[#allocation16 + $0xc] sm:$0xf]
        %v3234 = vld [vmem:[#allocation16 + $0x10] sm:$0xf]
        %v3235 = vld [vmem:[#allocation16 + $0x14] sm:$0xf]
        %v3236 = vld [vmem:[#allocation16 + $0x18] sm:$0xf]
        %v3237 = vld [vmem:[#allocation16 + $0x1c] sm:$0xf]
        %v3238 = vld [vmem:[#allocation16 + $0x20] sm:$0xf]
        %v3239 = vld [vmem:[#allocation16 + $0x24] sm:$0xf]
        %v3240 = vld [vmem:[#allocation16 + $0x28] sm:$0xf]
        %v3241 = vld [vmem:[#allocation16 + $0x2c] sm:$0xf]
        %v3242 = vld [vmem:[#allocation16 + $0x30] sm:$0xf]
        %v3243 = vld [vmem:[#allocation16 + $0x34] sm:$0xf]
        %v3244 = vld [vmem:[#allocation16 + $0x38] sm:$0xf]
        %v3245 = vld [vmem:[#allocation16 + $0x3c] sm:$0xf]
        %v3246 = vld [vmem:[#allocation16 + $0x40] sm:$0xf]
        %v3247 = vld [vmem:[#allocation16 + $0x44] sm:$0xf]
        %v3248 = vld [vmem:[#allocation16 + $0x48] sm:$0xf]
        %v3249 = vld [vmem:[#allocation16 + $0x4c] sm:$0xf]
        %v3250 = vld [vmem:[#allocation16 + $0x50] sm:$0xf]
        %v3251 = vld [vmem:[#allocation16 + $0x54] sm:$0xf]
        %v3252 = vld [vmem:[#allocation16 + $0x58] sm:$0xf]
        %v3253 = vld [vmem:[#allocation16 + $0x5c] sm:$0xf]
        %v3254 = vld [vmem:[#allocation16 + $0x60] sm:$0xf]
        %v3255 = vld [vmem:[#allocation16 + $0x64] sm:$0xf]
        %v3256 = vld [vmem:[#allocation16 + $0x68] sm:$0xf]
        %v3257 = vld [vmem:[#allocation16 + $0x6c] sm:$0xf]
        %v3258 = vld [vmem:[#allocation16 + $0x70] sm:$0xf]
        %v3259 = vld [vmem:[#allocation16 + $0x74] sm:$0xf]
        %v3260 = vld [vmem:[#allocation16 + $0x78] sm:$0xf]
        %v3261 = vld [vmem:[#allocation16 + $0x7c] sm:$0xf]
        %v3262 = vld [vmem:[#allocation16 + $0x80] sm:$0xf]
        %v3263 = vld [vmem:[#allocation16 + $0x84] sm:$0xf]
        %v3264 = vld [vmem:[#allocation16 + $0x88] sm:$0xf]
        %v3265 = vld [vmem:[#allocation16 + $0x8c] sm:$0xf]
        %v3266 = vld [vmem:[#allocation16 + $0x90] sm:$0xf]
        %v3267 = vld [vmem:[#allocation16 + $0x94] sm:$0xf]
        %v3268 = vld [vmem:[#allocation16 + $0x98] sm:$0xf]
        %v3269 = vld [vmem:[#allocation16 + $0x9c] sm:$0xf]
        %v3270 = vld [vmem:[#allocation16 + $0xa0] sm:$0xf]
        %v3271 = vld [vmem:[#allocation16 + $0xa4] sm:$0xf]
        %v3272 = vld [vmem:[#allocation16 + $0xa8] sm:$0xf]
        %v3273 = vld [vmem:[#allocation16 + $0xac] sm:$0xf]
        %v3274 = vld [vmem:[#allocation16 + $0xb0] sm:$0xf]
        %v3275 = vld [vmem:[#allocation16 + $0xb4] sm:$0xf]
        %v3276 = vld [vmem:[#allocation16 + $0xb8] sm:$0xf]
        %v3277 = vld [vmem:[#allocation16 + $0xbc] sm:$0xf]
        %v3278 = vld [vmem:[#allocation16 + $0xc0] sm:$0xf]
        %v3279 = vld [vmem:[#allocation16 + $0xc4] sm:$0xf]
        %v3280 = vld [vmem:[#allocation16 + $0xc8] sm:$0xf]
        %v3281 = vld [vmem:[#allocation16 + $0xcc] sm:$0xf]
        %v3282 = vld [vmem:[#allocation16 + $0xd0] sm:$0xf]
        %v3283 = vld [vmem:[#allocation16 + $0xd4] sm:$0xf]
        %v3284 = vld [vmem:[#allocation16 + $0xd8] sm:$0xf]
        %v3285 = vld [vmem:[#allocation16 + $0xdc] sm:$0xf]
        %v3286 = vld [vmem:[#allocation16 + $0xe0] sm:$0xf]
        %v3287 = vld [vmem:[#allocation16 + $0xe4] sm:$0xf]
        %v3288 = vld [vmem:[#allocation16 + $0xe8] sm:$0xf]
        %v3289 = vld [vmem:[#allocation16 + $0xec] sm:$0xf]
        %v3290 = vld [vmem:[#allocation16 + $0xf0] sm:$0xf]
        %v3291 = vld [vmem:[#allocation16 + $0xf4] sm:$0xf]
        %v3292 = vld [vmem:[#allocation16 + $0xf8] sm:$0xf]
        %v3293 = vld [vmem:[#allocation16 + $0xfc] sm:$0xf]
        %v3294 = vld [vmem:[#allocation16 + $0x100] sm:$0xf]
        %v3295 = vld [vmem:[#allocation16 + $0x104] sm:$0xf]
        %v3296 = vld [vmem:[#allocation16 + $0x108] sm:$0xf]
        %v3297 = vld [vmem:[#allocation16 + $0x10c] sm:$0xf]
        %v3298 = vld [vmem:[#allocation16 + $0x110] sm:$0xf]
        %v3299 = vld [vmem:[#allocation16 + $0x114] sm:$0xf]
        %v3300 = vld [vmem:[#allocation16 + $0x118] sm:$0xf]
        %v3301 = vld [vmem:[#allocation16 + $0x11c] sm:$0xf]
        %v3302 = vld [vmem:[#allocation18] sm:$0x1]
        %v3303 = vlaneseq
        %v3304 = vshrl.u32 %v3303, 7
        %v3305 = vsub.s32 0, %v3304
        %v3306 = vrot.slane %v3302, %v3305
        %v3379 = vunpack.c.l.b16 %v3230
        %v3380 = vunpack.c.l.b16 %v3231
        %v3381 = vunpack.c.l.b16 %v3232
        %v3382 = vunpack.c.l.b16 %v3233
        %v3383 = vunpack.c.l.b16 %v3234
        %v3384 = vunpack.c.l.b16 %v3235
        %v3385 = vunpack.c.l.b16 %v3236
        %v3386 = vunpack.c.l.b16 %v3237
        %v3387 = vunpack.c.l.b16 %v3238
        %v3388 = vunpack.c.l.b16 %v3239
        %v3389 = vunpack.c.l.b16 %v3240
        %v3390 = vunpack.c.l.b16 %v3241
        %v3391 = vunpack.c.l.b16 %v3242
        %v3392 = vunpack.c.l.b16 %v3243
        %v3393 = vunpack.c.l.b16 %v3244
        %v3394 = vunpack.c.l.b16 %v3245
        %v3395 = vunpack.c.l.b16 %v3246
        %v3396 = vunpack.c.l.b16 %v3247
        %v3397 = vunpack.c.l.b16 %v3248
        %v3398 = vunpack.c.l.b16 %v3249
        %v3399 = vunpack.c.l.b16 %v3250
        %v3400 = vunpack.c.l.b16 %v3251
        %v3401 = vunpack.c.l.b16 %v3252
        %v3402 = vunpack.c.l.b16 %v3253
        %v3403 = vunpack.c.l.b16 %v3254
        %v3404 = vunpack.c.l.b16 %v3255
        %v3405 = vunpack.c.l.b16 %v3256
        %v3406 = vunpack.c.l.b16 %v3257
        %v3407 = vunpack.c.l.b16 %v3258
        %v3408 = vunpack.c.l.b16 %v3259
        %v3409 = vunpack.c.l.b16 %v3260
        %v3410 = vunpack.c.l.b16 %v3261
        %v3411 = vunpack.c.l.b16 %v3262
        %v3412 = vunpack.c.l.b16 %v3263
        %v3413 = vunpack.c.l.b16 %v3264
        %v3414 = vunpack.c.l.b16 %v3265
        %v3415 = vunpack.c.l.b16 %v3266
        %v3416 = vunpack.c.l.b16 %v3267
        %v3417 = vunpack.c.l.b16 %v3268
        %v3418 = vunpack.c.l.b16 %v3269
        %v3419 = vunpack.c.l.b16 %v3270
        %v3420 = vunpack.c.l.b16 %v3271
        %v3421 = vunpack.c.l.b16 %v3272
        %v3422 = vunpack.c.l.b16 %v3273
        %v3423 = vunpack.c.l.b16 %v3274
        %v3424 = vunpack.c.l.b16 %v3275
        %v3425 = vunpack.c.l.b16 %v3276
        %v3426 = vunpack.c.l.b16 %v3277
        %v3427 = vunpack.c.l.b16 %v3278
        %v3428 = vunpack.c.l.b16 %v3279
        %v3429 = vunpack.c.l.b16 %v3280
        %v3430 = vunpack.c.l.b16 %v3281
        %v3431 = vunpack.c.l.b16 %v3282
        %v3432 = vunpack.c.l.b16 %v3283
        %v3433 = vunpack.c.l.b16 %v3284
        %v3434 = vunpack.c.l.b16 %v3285
        %v3435 = vunpack.c.l.b16 %v3286
        %v3436 = vunpack.c.l.b16 %v3287
        %v3437 = vunpack.c.l.b16 %v3288
        %v3438 = vunpack.c.l.b16 %v3289
        %v3439 = vunpack.c.l.b16 %v3290
        %v3440 = vunpack.c.l.b16 %v3291
        %v3441 = vunpack.c.l.b16 %v3292
        %v3442 = vunpack.c.l.b16 %v3293
        %v3443 = vunpack.c.l.b16 %v3294
        %v3444 = vunpack.c.l.b16 %v3295
        %v3445 = vunpack.c.l.b16 %v3296
        %v3446 = vunpack.c.l.b16 %v3297
        %v3447 = vunpack.c.l.b16 %v3298
        %v3448 = vunpack.c.l.b16 %v3299
        %v3449 = vunpack.c.l.b16 %v3300
        %v3450 = vunpack.c.l.b16 %v3301
        %v3451 = vpack.c.b16 %v3380, %v3379
        %v3452 = vpack.c.b16 %v3382, %v3381
        %v3453 = vpack.c.b16 %v3384, %v3383
        %v3454 = vpack.c.b16 %v3386, %v3385
        %v3455 = vpack.c.b16 %v3388, %v3387
        %v3456 = vpack.c.b16 %v3390, %v3389
        %v3457 = vpack.c.b16 %v3392, %v3391
        %v3458 = vpack.c.b16 %v3394, %v3393
        %v3459 = vpack.c.b16 %v3396, %v3395
        %v3460 = vpack.c.b16 %v3398, %v3397
        %v3461 = vpack.c.b16 %v3400, %v3399
        %v3462 = vpack.c.b16 %v3402, %v3401
        %v3463 = vpack.c.b16 %v3404, %v3403
        %v3464 = vpack.c.b16 %v3406, %v3405
        %v3465 = vpack.c.b16 %v3408, %v3407
        %v3466 = vpack.c.b16 %v3410, %v3409
        %v3467 = vpack.c.b16 %v3412, %v3411
        %v3468 = vpack.c.b16 %v3414, %v3413
        %v3469 = vpack.c.b16 %v3416, %v3415
        %v3470 = vpack.c.b16 %v3418, %v3417
        %v3471 = vpack.c.b16 %v3420, %v3419
        %v3472 = vpack.c.b16 %v3422, %v3421
        %v3473 = vpack.c.b16 %v3424, %v3423
        %v3474 = vpack.c.b16 %v3426, %v3425
        %v3475 = vpack.c.b16 %v3428, %v3427
        %v3476 = vpack.c.b16 %v3430, %v3429
        %v3477 = vpack.c.b16 %v3432, %v3431
        %v3478 = vpack.c.b16 %v3434, %v3433
        %v3479 = vpack.c.b16 %v3436, %v3435
        %v3480 = vpack.c.b16 %v3438, %v3437
        %v3481 = vpack.c.b16 %v3440, %v3439
        %v3482 = vpack.c.b16 %v3442, %v3441
        %v3483 = vpack.c.b16 %v3444, %v3443
        %v3484 = vpack.c.b16 %v3446, %v3445
        %v3485 = vpack.c.b16 %v3448, %v3447
        %v3486 = vpack.c.b16 %v3450, %v3449
        %v3524 = vsel %vm1954, %v3214, 0
        %v3527 = vsel %vm1954, %v3219, 0
        %v3530 = vsel %vm1954, %v3224, 0
        %v3533 = vsel %vm1954, %v3229, 0
        %3535 = vmatprep.subr.bf16.mxu0 0
        %3536 = vmatpush1.bf16.msra.mxu0 %v3451
        %3537 = vmatprep.subr.bf16.mxu0 0
        %3538 = vmatpush1.bf16.msra.mxu0 %v3452
        %3539 = vmatprep.subr.bf16.mxu0 0
        %3540 = vmatpush1.bf16.msra.mxu0 %v3453
        %3541 = vmatprep.subr.bf16.mxu0 0
        %3542 = vmatpush1.bf16.msra.mxu0 %v3454
        %3543 = vmatprep.subr.bf16.mxu0 0
        %3544 = vmatpush1.bf16.msra.mxu0 %v3455
        %3545 = vmatprep.subr.bf16.mxu0 0
        %3546 = vmatpush1.bf16.msra.mxu0 %v3456
        %3547 = vmatprep.subr.bf16.mxu0 0
        %3548 = vmatpush1.bf16.msra.mxu0 %v3457
        %3549 = vmatprep.subr.bf16.mxu0 0
        %3550 = vmatpush1.bf16.msra.mxu0 %v3458
        %3551 = vmatprep.subr.bf16.mxu0 0
        %3552 = vmatpush1.bf16.msra.mxu0 %v3459
        %3553 = vmatprep.subr.bf16.mxu0 0
        %3554 = vmatpush1.bf16.msra.mxu0 %v3460
        %3555 = vmatprep.subr.bf16.mxu0 0
        %3556 = vmatpush1.bf16.msra.mxu0 %v3461
        %3557 = vmatprep.subr.bf16.mxu0 0
        %3558 = vmatpush1.bf16.msra.mxu0 %v3462
        %3559 = vmatprep.subr.bf16.mxu0 0
        %3560 = vmatpush1.bf16.msra.mxu0 %v3463
        %3561 = vmatprep.subr.bf16.mxu0 0
        %3562 = vmatpush1.bf16.msra.mxu0 %v3464
        %3563 = vmatprep.subr.bf16.mxu0 0
        %3564 = vmatpush1.bf16.msra.mxu0 %v3465
        %3565 = vmatprep.subr.bf16.mxu0 0
        %3566 = vmatpush1.bf16.msra.mxu0 %v3466
        %3567 = vmatprep.mubr.bf16.mxu0 %v3211
        %3568 = vmatmul.mubr.bf16.gmra.mrb[0].mxu0 %v3210
        %v3569 = vpop.f32.mrb[0].mxu0
        %v3570 = vadd.f32 %v3306, %v3569
        %v3571 = vpop.f32.mrb[0].mxu0
        %v3572 = vpop.f32.mrb[0].mxu0
        %v3573 = vadd.f32 %v3306, %v3572
        %v3574 = vpop.f32.mrb[0].mxu0
        %3575 = vmatprep.mubr.bf16.mxu0 %v3216
        %3576 = vmatmul.mubr.bf16.gmra.mrb[0].mxu0 %v3215
        %v3577 = vpop.f32.mrb[0].mxu0
        %v3578 = vadd.f32 %v3306, %v3577
        %v3579 = vpop.f32.mrb[0].mxu0
        %v3580 = vpop.f32.mrb[0].mxu0
        %v3581 = vadd.f32 %v3306, %v3580
        %v3582 = vpop.f32.mrb[0].mxu0
        %3583 = vmatprep.mubr.bf16.mxu0 %v3221
        %3584 = vmatmul.mubr.bf16.gmra.mrb[0].mxu0 %v3220
        %v3585 = vpop.f32.mrb[0].mxu0
        %v3586 = vadd.f32 %v3306, %v3585
        %v3587 = vpop.f32.mrb[0].mxu0
        %v3588 = vpop.f32.mrb[0].mxu0
        %v3589 = vadd.f32 %v3306, %v3588
        %v3590 = vpop.f32.mrb[0].mxu0
        %3591 = vmatprep.mubr.bf16.mxu0 %v3226
        %3592 = vmatmul.mubr.bf16.gmra.mrb[0].mxu0 %v3225
        %v3593 = vpop.f32.mrb[0].mxu0
        %v3594 = vadd.f32 %v3306, %v3593
        %v3595 = vpop.f32.mrb[0].mxu0
        %v3596 = vpop.f32.mrb[0].mxu0
        %v3597 = vadd.f32 %v3306, %v3596
        %v3598 = vpop.f32.mrb[0].mxu0
        %3599 = vdwg.mxu0
        %3600 = vmatprep.subr.bf16.mxu0 0
        %3601 = vmatpush1.bf16.msra.mxu0 %v3467
        %3602 = vmatprep.subr.bf16.mxu0 0
        %3603 = vmatpush1.bf16.msra.mxu0 %v3468
        %3604 = vmatprep.subr.bf16.mxu0 0
        %3605 = vmatpush1.bf16.msra.mxu0 %v3469
        %3606 = vmatprep.subr.bf16.mxu0 0
        %3607 = vmatpush1.bf16.msra.mxu0 %v3470
        %3608 = vmatprep.subr.bf16.mxu0 0
        %3609 = vmatpush1.bf16.msra.mxu0 %v3471
        %3610 = vmatprep.subr.bf16.mxu0 0
        %3611 = vmatpush1.bf16.msra.mxu0 %v3472
        %3612 = vmatprep.subr.bf16.mxu0 0
        %3613 = vmatpush1.bf16.msra.mxu0 %v3473
        %3614 = vmatprep.subr.bf16.mxu0 0
        %3615 = vmatpush1.bf16.msra.mxu0 %v3474
        %3616 = vmatprep.subr.bf16.mxu0 0
        %3617 = vmatpush1.bf16.msra.mxu0 %v3475
        %3618 = vmatprep.subr.bf16.mxu0 0
        %3619 = vmatpush1.bf16.msra.mxu0 %v3476
        %3620 = vmatprep.subr.bf16.mxu0 0
        %3621 = vmatpush1.bf16.msra.mxu0 %v3477
        %3622 = vmatprep.subr.bf16.mxu0 0
        %3623 = vmatpush1.bf16.msra.mxu0 %v3478
        %3624 = vmatprep.subr.bf16.mxu0 0
        %3625 = vmatpush1.bf16.msra.mxu0 %v3479
        %3626 = vmatprep.subr.bf16.mxu0 0
        %3627 = vmatpush1.bf16.msra.mxu0 %v3480
        %3628 = vmatprep.subr.bf16.mxu0 0
        %3629 = vmatpush1.bf16.msra.mxu0 %v3481
        %3630 = vmatprep.subr.bf16.mxu0 0
        %3631 = vmatpush1.bf16.msra.mxu0 %v3482
        %3632 = vmatprep.mubr.bf16.mxu0 %v3213
        %3633 = vmatmul.mubr.bf16.gmra.mrb[0].mxu0 %v3212
        %v3634 = vpop.f32.mrb[0].mxu0
        %v3635 = vadd.f32 %v3570, %v3634
        %v3636 = vpop.f32.mrb[0].mxu0
        %v3637 = vpop.f32.mrb[0].mxu0
        %v3638 = vadd.f32 %v3573, %v3637
        %v3639 = vpop.f32.mrb[0].mxu0
        %3640 = vmatprep.mubr.bf16.mxu0 %v3218
        %3641 = vmatmul.mubr.bf16.gmra.mrb[0].mxu0 %v3217
        %v3642 = vpop.f32.mrb[0].mxu0
        %v3643 = vadd.f32 %v3578, %v3642
        %v3644 = vpop.f32.mrb[0].mxu0
        %v3645 = vpop.f32.mrb[0].mxu0
        %v3646 = vadd.f32 %v3581, %v3645
        %v3647 = vpop.f32.mrb[0].mxu0
        %3648 = vmatprep.mubr.bf16.mxu0 %v3223
        %3649 = vmatmul.mubr.bf16.gmra.mrb[0].mxu0 %v3222
        %v3650 = vpop.f32.mrb[0].mxu0
        %v3651 = vadd.f32 %v3586, %v3650
        %v3652 = vpop.f32.mrb[0].mxu0
        %v3653 = vpop.f32.mrb[0].mxu0
        %v3654 = vadd.f32 %v3589, %v3653
        %v3655 = vpop.f32.mrb[0].mxu0
        %3656 = vmatprep.mubr.bf16.mxu0 %v3228
        %3657 = vmatmul.mubr.bf16.gmra.mrb[0].mxu0 %v3227
        %v3658 = vpop.f32.mrb[0].mxu0
        %v3659 = vadd.f32 %v3594, %v3658
        %v3660 = vpop.f32.mrb[0].mxu0
        %v3661 = vpop.f32.mrb[0].mxu0
        %v3662 = vadd.f32 %v3597, %v3661
        %v3663 = vpop.f32.mrb[0].mxu0
        %3664 = vdwg.mxu0
        %3665 = vmatprep.subr.bf16.mxu0 0
        %3666 = vmatpush1.bf16.msra.mxu0 %v3483
        %3667 = vmatprep.subr.bf16.mxu0 0
        %3668 = vmatpush1.bf16.msra.mxu0 %v3484
        %3669 = vmatprep.subr.bf16.mxu0 0
        %3670 = vmatpush1.bf16.msra.mxu0 %v3485
        %3671 = vmatprep.subr.bf16.mxu0 0
        %3672 = vmatpush1.bf16.msra.mxu0 %v3486
        %3673 = vmatprep.subr.bf16.mxu0 0
        %3674 = vmatpush1.bf16.msra.mxu0 0
        %3675 = vmatprep.subr.bf16.mxu0 0
        %3676 = vmatpush1.bf16.msra.mxu0 0
        %3677 = vmatprep.subr.bf16.mxu0 0
        %3678 = vmatpush1.bf16.msra.mxu0 0
        %3679 = vmatprep.subr.bf16.mxu0 0
        %3680 = vmatpush1.bf16.msra.mxu0 0
        %3681 = vmatprep.subr.bf16.mxu0 0
        %3682 = vmatpush1.bf16.msra.mxu0 0
        %3683 = vmatprep.subr.bf16.mxu0 0
        %3684 = vmatpush1.bf16.msra.mxu0 0
        %3685 = vmatprep.subr.bf16.mxu0 0
        %3686 = vmatpush1.bf16.msra.mxu0 0
        %3687 = vmatprep.subr.bf16.mxu0 0
        %3688 = vmatpush1.bf16.msra.mxu0 0
        %3689 = vmatprep.subr.bf16.mxu0 0
        %3690 = vmatpush1.bf16.msra.mxu0 0
        %3691 = vmatprep.subr.bf16.mxu0 0
        %3692 = vmatpush1.bf16.msra.mxu0 0
        %3693 = vmatprep.subr.bf16.mxu0 0
        %3694 = vmatpush1.bf16.msra.mxu0 0
        %3695 = vmatprep.subr.bf16.mxu0 0
        %3696 = vmatpush1.bf16.msra.mxu0 0
        %3697 = vmatprep.mubr.bf16.mxu0 0
        %3698 = vmatmul.mubr.bf16.gmra.mrb[0].mxu0 %v3524
        %v3699 = vpop.f32.mrb[0].mxu0
        %v3700 = vadd.f32 %v3635, %v3699
        %v3701 = vpop.f32.mrb[0].mxu0
        %v3702 = vpop.f32.mrb[0].mxu0
        %v3703 = vadd.f32 %v3638, %v3702
        %v3704 = vpop.f32.mrb[0].mxu0
        %3705 = vmatprep.mubr.bf16.mxu0 0
        %3706 = vmatmul.mubr.bf16.gmra.mrb[0].mxu0 %v3527
        %v3707 = vpop.f32.mrb[0].mxu0
        %v3708 = vadd.f32 %v3643, %v3707
        %v3709 = vpop.f32.mrb[0].mxu0
        %v3710 = vpop.f32.mrb[0].mxu0
        %v3711 = vadd.f32 %v3646, %v3710
        %v3712 = vpop.f32.mrb[0].mxu0
        %3713 = vmatprep.mubr.bf16.mxu0 0
        %3714 = vmatmul.mubr.bf16.gmra.mrb[0].mxu0 %v3530
        %v3715 = vpop.f32.mrb[0].mxu0
        %v3716 = vadd.f32 %v3651, %v3715
        %v3717 = vpop.f32.mrb[0].mxu0
        %v3718 = vpop.f32.mrb[0].mxu0
        %v3719 = vadd.f32 %v3654, %v3718
        %v3720 = vpop.f32.mrb[0].mxu0
        %3721 = vmatprep.mubr.bf16.mxu0 0
        %3722 = vmatmul.mubr.bf16.gmra.mrb[0].mxu0 %v3533
        %v3723 = vpop.f32.mrb[0].mxu0
        %v3724 = vadd.f32 %v3659, %v3723
        %v3725 = vpop.f32.mrb[0].mxu0
        %v3726 = vpop.f32.mrb[0].mxu0
        %v3727 = vadd.f32 %v3662, %v3726
        %v3728 = vpop.f32.mrb[0].mxu0
        %3729 = vdwg.mxu0
        %s3730 = scalar_lea.vmem [#allocation16], 288
        %v3731 = vld [vmem:[%s3730] sm:$0xf]
        %v3732 = vld [vmem:[%s3730 + $0x4] sm:$0xf]
        %v3733 = vld [vmem:[%s3730 + $0x8] sm:$0xf]
        %v3734 = vld [vmem:[%s3730 + $0xc] sm:$0xf]
        %v3735 = vld [vmem:[%s3730 + $0x10] sm:$0xf]
        %v3736 = vld [vmem:[%s3730 + $0x14] sm:$0xf]
        %v3737 = vld [vmem:[%s3730 + $0x18] sm:$0xf]
        %v3738 = vld [vmem:[%s3730 + $0x1c] sm:$0xf]
        %v3739 = vld [vmem:[%s3730 + $0x20] sm:$0xf]
        %v3740 = vld [vmem:[%s3730 + $0x24] sm:$0xf]
        %v3741 = vld [vmem:[%s3730 + $0x28] sm:$0xf]
        %v3742 = vld [vmem:[%s3730 + $0x2c] sm:$0xf]
        %v3743 = vld [vmem:[%s3730 + $0x30] sm:$0xf]
        %v3744 = vld [vmem:[%s3730 + $0x34] sm:$0xf]
        %v3745 = vld [vmem:[%s3730 + $0x38] sm:$0xf]
        %v3746 = vld [vmem:[%s3730 + $0x3c] sm:$0xf]
        %v3747 = vld [vmem:[%s3730 + $0x40] sm:$0xf]
        %v3748 = vld [vmem:[%s3730 + $0x44] sm:$0xf]
        %v3749 = vld [vmem:[%s3730 + $0x48] sm:$0xf]
        %v3750 = vld [vmem:[%s3730 + $0x4c] sm:$0xf]
        %v3751 = vld [vmem:[%s3730 + $0x50] sm:$0xf]
        %v3752 = vld [vmem:[%s3730 + $0x54] sm:$0xf]
        %v3753 = vld [vmem:[%s3730 + $0x58] sm:$0xf]
        %v3754 = vld [vmem:[%s3730 + $0x5c] sm:$0xf]
        %v3755 = vld [vmem:[%s3730 + $0x60] sm:$0xf]
        %v3756 = vld [vmem:[%s3730 + $0x64] sm:$0xf]
        %v3757 = vld [vmem:[%s3730 + $0x68] sm:$0xf]
        %v3758 = vld [vmem:[%s3730 + $0x6c] sm:$0xf]
        %v3759 = vld [vmem:[%s3730 + $0x70] sm:$0xf]
        %v3760 = vld [vmem:[%s3730 + $0x74] sm:$0xf]
        %v3761 = vld [vmem:[%s3730 + $0x78] sm:$0xf]
        %v3762 = vld [vmem:[%s3730 + $0x7c] sm:$0xf]
        %v3763 = vld [vmem:[%s3730 + $0x80] sm:$0xf]
        %v3764 = vld [vmem:[%s3730 + $0x84] sm:$0xf]
        %v3765 = vld [vmem:[%s3730 + $0x88] sm:$0xf]
        %v3766 = vld [vmem:[%s3730 + $0x8c] sm:$0xf]
        %v3767 = vld [vmem:[%s3730 + $0x90] sm:$0xf]
        %v3768 = vld [vmem:[%s3730 + $0x94] sm:$0xf]
        %v3769 = vld [vmem:[%s3730 + $0x98] sm:$0xf]
        %v3770 = vld [vmem:[%s3730 + $0x9c] sm:$0xf]
        %v3771 = vld [vmem:[%s3730 + $0xa0] sm:$0xf]
        %v3772 = vld [vmem:[%s3730 + $0xa4] sm:$0xf]
        %v3773 = vld [vmem:[%s3730 + $0xa8] sm:$0xf]
        %v3774 = vld [vmem:[%s3730 + $0xac] sm:$0xf]
        %v3775 = vld [vmem:[%s3730 + $0xb0] sm:$0xf]
        %v3776 = vld [vmem:[%s3730 + $0xb4] sm:$0xf]
        %v3777 = vld [vmem:[%s3730 + $0xb8] sm:$0xf]
        %v3778 = vld [vmem:[%s3730 + $0xbc] sm:$0xf]
        %v3779 = vld [vmem:[%s3730 + $0xc0] sm:$0xf]
        %v3780 = vld [vmem:[%s3730 + $0xc4] sm:$0xf]
        %v3781 = vld [vmem:[%s3730 + $0xc8] sm:$0xf]
        %v3782 = vld [vmem:[%s3730 + $0xcc] sm:$0xf]
        %v3783 = vld [vmem:[%s3730 + $0xd0] sm:$0xf]
        %v3784 = vld [vmem:[%s3730 + $0xd4] sm:$0xf]
        %v3785 = vld [vmem:[%s3730 + $0xd8] sm:$0xf]
        %v3786 = vld [vmem:[%s3730 + $0xdc] sm:$0xf]
        %v3787 = vld [vmem:[%s3730 + $0xe0] sm:$0xf]
        %v3788 = vld [vmem:[%s3730 + $0xe4] sm:$0xf]
        %v3789 = vld [vmem:[%s3730 + $0xe8] sm:$0xf]
        %v3790 = vld [vmem:[%s3730 + $0xec] sm:$0xf]
        %v3791 = vld [vmem:[%s3730 + $0xf0] sm:$0xf]
        %v3792 = vld [vmem:[%s3730 + $0xf4] sm:$0xf]
        %v3793 = vld [vmem:[%s3730 + $0xf8] sm:$0xf]
        %v3794 = vld [vmem:[%s3730 + $0xfc] sm:$0xf]
        %v3795 = vld [vmem:[%s3730 + $0x100] sm:$0xf]
        %v3796 = vld [vmem:[%s3730 + $0x104] sm:$0xf]
        %v3797 = vld [vmem:[%s3730 + $0x108] sm:$0xf]
        %v3798 = vld [vmem:[%s3730 + $0x10c] sm:$0xf]
        %v3799 = vld [vmem:[%s3730 + $0x110] sm:$0xf]
        %v3800 = vld [vmem:[%s3730 + $0x114] sm:$0xf]
        %v3801 = vld [vmem:[%s3730 + $0x118] sm:$0xf]
        %v3802 = vld [vmem:[%s3730 + $0x11c] sm:$0xf]
        %v3803 = vld [vmem:[#allocation18 + $0x1] sm:$0x1]
        %v3804 = vlaneseq
        %v3805 = vshrl.u32 %v3804, 7
        %v3806 = vsub.s32 0, %v3805
        %v3807 = vrot.slane %v3803, %v3806
        %v3880 = vunpack.c.l.b16 %v3731
        %v3881 = vunpack.c.l.b16 %v3732
        %v3882 = vunpack.c.l.b16 %v3733
        %v3883 = vunpack.c.l.b16 %v3734
        %v3884 = vunpack.c.l.b16 %v3735
        %v3885 = vunpack.c.l.b16 %v3736
        %v3886 = vunpack.c.l.b16 %v3737
        %v3887 = vunpack.c.l.b16 %v3738
        %v3888 = vunpack.c.l.b16 %v3739
        %v3889 = vunpack.c.l.b16 %v3740
        %v3890 = vunpack.c.l.b16 %v3741
        %v3891 = vunpack.c.l.b16 %v3742
        %v3892 = vunpack.c.l.b16 %v3743
        %v3893 = vunpack.c.l.b16 %v3744
        %v3894 = vunpack.c.l.b16 %v3745
        %v3895 = vunpack.c.l.b16 %v3746
        %v3896 = vunpack.c.l.b16 %v3747
        %v3897 = vunpack.c.l.b16 %v3748
        %v3898 = vunpack.c.l.b16 %v3749
        %v3899 = vunpack.c.l.b16 %v3750
        %v3900 = vunpack.c.l.b16 %v3751
        %v3901 = vunpack.c.l.b16 %v3752
        %v3902 = vunpack.c.l.b16 %v3753
        %v3903 = vunpack.c.l.b16 %v3754
        %v3904 = vunpack.c.l.b16 %v3755
        %v3905 = vunpack.c.l.b16 %v3756
        %v3906 = vunpack.c.l.b16 %v3757
        %v3907 = vunpack.c.l.b16 %v3758
        %v3908 = vunpack.c.l.b16 %v3759
        %v3909 = vunpack.c.l.b16 %v3760
        %v3910 = vunpack.c.l.b16 %v3761
        %v3911 = vunpack.c.l.b16 %v3762
        %v3912 = vunpack.c.l.b16 %v3763
        %v3913 = vunpack.c.l.b16 %v3764
        %v3914 = vunpack.c.l.b16 %v3765
        %v3915 = vunpack.c.l.b16 %v3766
        %v3916 = vunpack.c.l.b16 %v3767
        %v3917 = vunpack.c.l.b16 %v3768
        %v3918 = vunpack.c.l.b16 %v3769
        %v3919 = vunpack.c.l.b16 %v3770
        %v3920 = vunpack.c.l.b16 %v3771
        %v3921 = vunpack.c.l.b16 %v3772
        %v3922 = vunpack.c.l.b16 %v3773
        %v3923 = vunpack.c.l.b16 %v3774
        %v3924 = vunpack.c.l.b16 %v3775
        %v3925 = vunpack.c.l.b16 %v3776
        %v3926 = vunpack.c.l.b16 %v3777
        %v3927 = vunpack.c.l.b16 %v3778
        %v3928 = vunpack.c.l.b16 %v3779
        %v3929 = vunpack.c.l.b16 %v3780
        %v3930 = vunpack.c.l.b16 %v3781
        %v3931 = vunpack.c.l.b16 %v3782
        %v3932 = vunpack.c.l.b16 %v3783
        %v3933 = vunpack.c.l.b16 %v3784
        %v3934 = vunpack.c.l.b16 %v3785
        %v3935 = vunpack.c.l.b16 %v3786
        %v3936 = vunpack.c.l.b16 %v3787
        %v3937 = vunpack.c.l.b16 %v3788
        %v3938 = vunpack.c.l.b16 %v3789
        %v3939 = vunpack.c.l.b16 %v3790
        %v3940 = vunpack.c.l.b16 %v3791
        %v3941 = vunpack.c.l.b16 %v3792
        %v3942 = vunpack.c.l.b16 %v3793
        %v3943 = vunpack.c.l.b16 %v3794
        %v3944 = vunpack.c.l.b16 %v3795
        %v3945 = vunpack.c.l.b16 %v3796
        %v3946 = vunpack.c.l.b16 %v3797
        %v3947 = vunpack.c.l.b16 %v3798
        %v3948 = vunpack.c.l.b16 %v3799
        %v3949 = vunpack.c.l.b16 %v3800
        %v3950 = vunpack.c.l.b16 %v3801
        %v3951 = vunpack.c.l.b16 %v3802
        %v3952 = vpack.c.b16 %v3881, %v3880
        %v3953 = vpack.c.b16 %v3883, %v3882
        %v3954 = vpack.c.b16 %v3885, %v3884
        %v3955 = vpack.c.b16 %v3887, %v3886
        %v3956 = vpack.c.b16 %v3889, %v3888
        %v3957 = vpack.c.b16 %v3891, %v3890
        %v3958 = vpack.c.b16 %v3893, %v3892
        %v3959 = vpack.c.b16 %v3895, %v3894
        %v3960 = vpack.c.b16 %v3897, %v3896
        %v3961 = vpack.c.b16 %v3899, %v3898
        %v3962 = vpack.c.b16 %v3901, %v3900
        %v3963 = vpack.c.b16 %v3903, %v3902
        %v3964 = vpack.c.b16 %v3905, %v3904
        %v3965 = vpack.c.b16 %v3907, %v3906
        %v3966 = vpack.c.b16 %v3909, %v3908
        %v3967 = vpack.c.b16 %v3911, %v3910
        %v3968 = vpack.c.b16 %v3913, %v3912
        %v3969 = vpack.c.b16 %v3915, %v3914
        %v3970 = vpack.c.b16 %v3917, %v3916
        %v3971 = vpack.c.b16 %v3919, %v3918
        %v3972 = vpack.c.b16 %v3921, %v3920
        %v3973 = vpack.c.b16 %v3923, %v3922
        %v3974 = vpack.c.b16 %v3925, %v3924
        %v3975 = vpack.c.b16 %v3927, %v3926
        %v3976 = vpack.c.b16 %v3929, %v3928
        %v3977 = vpack.c.b16 %v3931, %v3930
        %v3978 = vpack.c.b16 %v3933, %v3932
        %v3979 = vpack.c.b16 %v3935, %v3934
        %v3980 = vpack.c.b16 %v3937, %v3936
        %v3981 = vpack.c.b16 %v3939, %v3938
        %v3982 = vpack.c.b16 %v3941, %v3940
        %v3983 = vpack.c.b16 %v3943, %v3942
        %v3984 = vpack.c.b16 %v3945, %v3944
        %v3985 = vpack.c.b16 %v3947, %v3946
        %v3986 = vpack.c.b16 %v3949, %v3948
        %v3987 = vpack.c.b16 %v3951, %v3950
        %4024 = vmatprep.subr.bf16.mxu0 0
        %4025 = vmatpush1.bf16.msra.mxu0 %v3952
        %4026 = vmatprep.subr.bf16.mxu0 0
        %4027 = vmatpush1.bf16.msra.mxu0 %v3953
        %4028 = vmatprep.subr.bf16.mxu0 0
        %4029 = vmatpush1.bf16.msra.mxu0 %v3954
        %4030 = vmatprep.subr.bf16.mxu0 0
        %4031 = vmatpush1.bf16.msra.mxu0 %v3955
        %4032 = vmatprep.subr.bf16.mxu0 0
        %4033 = vmatpush1.bf16.msra.mxu0 %v3956
        %4034 = vmatprep.subr.bf16.mxu0 0
        %4035 = vmatpush1.bf16.msra.mxu0 %v3957
        %4036 = vmatprep.subr.bf16.mxu0 0
        %4037 = vmatpush1.bf16.msra.mxu0 %v3958
        %4038 = vmatprep.subr.bf16.mxu0 0
        %4039 = vmatpush1.bf16.msra.mxu0 %v3959
        %4040 = vmatprep.subr.bf16.mxu0 0
        %4041 = vmatpush1.bf16.msra.mxu0 %v3960
        %4042 = vmatprep.subr.bf16.mxu0 0
        %4043 = vmatpush1.bf16.msra.mxu0 %v3961
        %4044 = vmatprep.subr.bf16.mxu0 0
        %4045 = vmatpush1.bf16.msra.mxu0 %v3962
        %4046 = vmatprep.subr.bf16.mxu0 0
        %4047 = vmatpush1.bf16.msra.mxu0 %v3963
        %4048 = vmatprep.subr.bf16.mxu0 0
        %4049 = vmatpush1.bf16.msra.mxu0 %v3964
        %4050 = vmatprep.subr.bf16.mxu0 0
        %4051 = vmatpush1.bf16.msra.mxu0 %v3965
        %4052 = vmatprep.subr.bf16.mxu0 0
        %4053 = vmatpush1.bf16.msra.mxu0 %v3966
        %4054 = vmatprep.subr.bf16.mxu0 0
        %4055 = vmatpush1.bf16.msra.mxu0 %v3967
        %4056 = vmatprep.mubr.bf16.mxu0 %v3211
        %4057 = vmatmul.mubr.bf16.gmra.mrb[0].mxu0 %v3210
        %v4058 = vpop.f32.mrb[0].mxu0
        %v4059 = vadd.f32 %v3807, %v4058
        %v4060 = vpop.f32.mrb[0].mxu0
        %v4061 = vpop.f32.mrb[0].mxu0
        %v4062 = vadd.f32 %v3807, %v4061
        %v4063 = vpop.f32.mrb[0].mxu0
        %4064 = vmatprep.mubr.bf16.mxu0 %v3216
        %4065 = vmatmul.mubr.bf16.gmra.mrb[0].mxu0 %v3215
        %v4066 = vpop.f32.mrb[0].mxu0
        %v4067 = vadd.f32 %v3807, %v4066
        %v4068 = vpop.f32.mrb[0].mxu0
        %v4069 = vpop.f32.mrb[0].mxu0
        %v4070 = vadd.f32 %v3807, %v4069
        %v4071 = vpop.f32.mrb[0].mxu0
        %4072 = vmatprep.mubr.bf16.mxu0 %v3221
        %4073 = vmatmul.mubr.bf16.gmra.mrb[0].mxu0 %v3220
        %v4074 = vpop.f32.mrb[0].mxu0
        %v4075 = vadd.f32 %v3807, %v4074
        %v4076 = vpop.f32.mrb[0].mxu0
        %v4077 = vpop.f32.mrb[0].mxu0
        %v4078 = vadd.f32 %v3807, %v4077
        %v4079 = vpop.f32.mrb[0].mxu0
        %4080 = vmatprep.mubr.bf16.mxu0 %v3226
        %4081 = vmatmul.mubr.bf16.gmra.mrb[0].mxu0 %v3225
        %v4082 = vpop.f32.mrb[0].mxu0
        %v4083 = vadd.f32 %v3807, %v4082
        %v4084 = vpop.f32.mrb[0].mxu0
        %v4085 = vpop.f32.mrb[0].mxu0
        %v4086 = vadd.f32 %v3807, %v4085
        %v4087 = vpop.f32.mrb[0].mxu0
        %4088 = vdwg.mxu0
        %4089 = vmatprep.subr.bf16.mxu0 0
        %4090 = vmatpush1.bf16.msra.mxu0 %v3968
        %4091 = vmatprep.subr.bf16.mxu0 0
        %4092 = vmatpush1.bf16.msra.mxu0 %v3969
        %4093 = vmatprep.subr.bf16.mxu0 0
        %4094 = vmatpush1.bf16.msra.mxu0 %v3970
        %4095 = vmatprep.subr.bf16.mxu0 0
        %4096 = vmatpush1.bf16.msra.mxu0 %v3971
        %4097 = vmatprep.subr.bf16.mxu0 0
        %4098 = vmatpush1.bf16.msra.mxu0 %v3972
        %4099 = vmatprep.subr.bf16.mxu0 0
        %4100 = vmatpush1.bf16.msra.mxu0 %v3973
        %4101 = vmatprep.subr.bf16.mxu0 0
        %4102 = vmatpush1.bf16.msra.mxu0 %v3974
        %4103 = vmatprep.subr.bf16.mxu0 0
        %4104 = vmatpush1.bf16.msra.mxu0 %v3975
        %4105 = vmatprep.subr.bf16.mxu0 0
        %4106 = vmatpush1.bf16.msra.mxu0 %v3976
        %4107 = vmatprep.subr.bf16.mxu0 0
        %4108 = vmatpush1.bf16.msra.mxu0 %v3977
        %4109 = vmatprep.subr.bf16.mxu0 0
        %4110 = vmatpush1.bf16.msra.mxu0 %v3978
        %4111 = vmatprep.subr.bf16.mxu0 0
        %4112 = vmatpush1.bf16.msra.mxu0 %v3979
        %4113 = vmatprep.subr.bf16.mxu0 0
        %4114 = vmatpush1.bf16.msra.mxu0 %v3980
        %4115 = vmatprep.subr.bf16.mxu0 0
        %4116 = vmatpush1.bf16.msra.mxu0 %v3981
        %4117 = vmatprep.subr.bf16.mxu0 0
        %4118 = vmatpush1.bf16.msra.mxu0 %v3982
        %4119 = vmatprep.subr.bf16.mxu0 0
        %4120 = vmatpush1.bf16.msra.mxu0 %v3983
        %4121 = vmatprep.mubr.bf16.mxu0 %v3213
        %4122 = vmatmul.mubr.bf16.gmra.mrb[0].mxu0 %v3212
        %v4123 = vpop.f32.mrb[0].mxu0
        %v4124 = vadd.f32 %v4059, %v4123
        %v4125 = vpop.f32.mrb[0].mxu0
        %v4126 = vpop.f32.mrb[0].mxu0
        %v4127 = vadd.f32 %v4062, %v4126
        %v4128 = vpop.f32.mrb[0].mxu0
        %4129 = vmatprep.mubr.bf16.mxu0 %v3218
        %4130 = vmatmul.mubr.bf16.gmra.mrb[0].mxu0 %v3217
        %v4131 = vpop.f32.mrb[0].mxu0
        %v4132 = vadd.f32 %v4067, %v4131
        %v4133 = vpop.f32.mrb[0].mxu0
        %v4134 = vpop.f32.mrb[0].mxu0
        %v4135 = vadd.f32 %v4070, %v4134
        %v4136 = vpop.f32.mrb[0].mxu0
        %4137 = vmatprep.mubr.bf16.mxu0 %v3223
        %4138 = vmatmul.mubr.bf16.gmra.mrb[0].mxu0 %v3222
        %v4139 = vpop.f32.mrb[0].mxu0
        %v4140 = vadd.f32 %v4075, %v4139
        %v4141 = vpop.f32.mrb[0].mxu0
        %v4142 = vpop.f32.mrb[0].mxu0
        %v4143 = vadd.f32 %v4078, %v4142
        %v4144 = vpop.f32.mrb[0].mxu0
        %4145 = vmatprep.mubr.bf16.mxu0 %v3228
        %4146 = vmatmul.mubr.bf16.gmra.mrb[0].mxu0 %v3227
        %v4147 = vpop.f32.mrb[0].mxu0
        %v4148 = vadd.f32 %v4083, %v4147
        %v4149 = vpop.f32.mrb[0].mxu0
        %v4150 = vpop.f32.mrb[0].mxu0
        %v4151 = vadd.f32 %v4086, %v4150
        %v4152 = vpop.f32.mrb[0].mxu0
        %4153 = vdwg.mxu0
        %4154 = vmatprep.subr.bf16.mxu0 0
        %4155 = vmatpush1.bf16.msra.mxu0 %v3984
        %4156 = vmatprep.subr.bf16.mxu0 0
        %4157 = vmatpush1.bf16.msra.mxu0 %v3985
        %4158 = vmatprep.subr.bf16.mxu0 0
        %4159 = vmatpush1.bf16.msra.mxu0 %v3986
        %4160 = vmatprep.subr.bf16.mxu0 0
        %4161 = vmatpush1.bf16.msra.mxu0 %v3987
        %4162 = vmatprep.subr.bf16.mxu0 0
        %4163 = vmatpush1.bf16.msra.mxu0 0
        %4164 = vmatprep.subr.bf16.mxu0 0
        %4165 = vmatpush1.bf16.msra.mxu0 0
        %4166 = vmatprep.subr.bf16.mxu0 0
        %4167 = vmatpush1.bf16.msra.mxu0 0
        %4168 = vmatprep.subr.bf16.mxu0 0
        %4169 = vmatpush1.bf16.msra.mxu0 0
        %4170 = vmatprep.subr.bf16.mxu0 0
        %4171 = vmatpush1.bf16.msra.mxu0 0
        %4172 = vmatprep.subr.bf16.mxu0 0
        %4173 = vmatpush1.bf16.msra.mxu0 0
        %4174 = vmatprep.subr.bf16.mxu0 0
        %4175 = vmatpush1.bf16.msra.mxu0 0
        %4176 = vmatprep.subr.bf16.mxu0 0
        %4177 = vmatpush1.bf16.msra.mxu0 0
        %4178 = vmatprep.subr.bf16.mxu0 0
        %4179 = vmatpush1.bf16.msra.mxu0 0
        %4180 = vmatprep.subr.bf16.mxu0 0
        %4181 = vmatpush1.bf16.msra.mxu0 0
        %4182 = vmatprep.subr.bf16.mxu0 0
        %4183 = vmatpush1.bf16.msra.mxu0 0
        %4184 = vmatprep.subr.bf16.mxu0 0
        %4185 = vmatpush1.bf16.msra.mxu0 0
        %4186 = vmatprep.mubr.bf16.mxu0 0
        %4187 = vmatmul.mubr.bf16.gmra.mrb[0].mxu0 %v3524
        %v4188 = vpop.f32.mrb[0].mxu0
        %v4189 = vadd.f32 %v4124, %v4188
        %v4190 = vpop.f32.mrb[0].mxu0
        %v4191 = vpop.f32.mrb[0].mxu0
        %v4192 = vadd.f32 %v4127, %v4191
        %v4193 = vpop.f32.mrb[0].mxu0
        %4194 = vmatprep.mubr.bf16.mxu0 0
        %4195 = vmatmul.mubr.bf16.gmra.mrb[0].mxu0 %v3527
        %v4196 = vpop.f32.mrb[0].mxu0
        %v4197 = vadd.f32 %v4132, %v4196
        %v4198 = vpop.f32.mrb[0].mxu0
        %v4199 = vpop.f32.mrb[0].mxu0
        %v4200 = vadd.f32 %v4135, %v4199
        %v4201 = vpop.f32.mrb[0].mxu0
        %4202 = vmatprep.mubr.bf16.mxu0 0
        %4203 = vmatmul.mubr.bf16.gmra.mrb[0].mxu0 %v3530
        %v4204 = vpop.f32.mrb[0].mxu0
        %v4205 = vadd.f32 %v4140, %v4204
        %v4206 = vpop.f32.mrb[0].mxu0
        %v4207 = vpop.f32.mrb[0].mxu0
        %v4208 = vadd.f32 %v4143, %v4207
        %v4209 = vpop.f32.mrb[0].mxu0
        %4210 = vmatprep.mubr.bf16.mxu0 0
        %4211 = vmatmul.mubr.bf16.gmra.mrb[0].mxu0 %v3533
        %v4212 = vpop.f32.mrb[0].mxu0
        %v4213 = vadd.f32 %v4148, %v4212
        %v4214 = vpop.f32.mrb[0].mxu0
        %v4215 = vpop.f32.mrb[0].mxu0
        %v4216 = vadd.f32 %v4151, %v4215
        %v4217 = vpop.f32.mrb[0].mxu0
        %4218 = vdwg.mxu0
        %v4219 = vmax.f32 %v3700, %v4189
        %v4220 = vmax.f32 %v3703, %v4192
        %v4221 = vmax.f32 %v3708, %v4197
        %v4222 = vmax.f32 %v3711, %v4200
        %v4223 = vmax.f32 %v3716, %v4205
        %v4224 = vmax.f32 %v3719, %v4208
        %v4225 = vmax.f32 %v3724, %v4213
        %v4226 = vmax.f32 %v3727, %v4216
        %vm4227 = vcmask 521216
        %4228 = vst.msk [vmem:[#allocation6] sm:$0x3f] %vm4227, 0.0
        %s4229 = scalar_lea.vmem [#allocation6], 40
        %4230 = vst.msk [vmem:[%s4229] sm:$0x3f] %vm4227, 0.0
        %4231 = vst.msk [vmem:[#allocation6] sm:$0x1] %vm1961, 0.0
        %4232 = vst.msk [vmem:[#allocation6 + $0x8] sm:$0x1] %vm1961, 0.0
        %4233 = vst.msk [vmem:[#allocation6 + $0x10] sm:$0x1] %vm1961, 0.0
        %4234 = vst.msk [vmem:[#allocation6 + $0x18] sm:$0x1] %vm1961, 0.0
        %4235 = vst.msk [vmem:[#allocation6 + $0x20] sm:$0x1] %vm1961, 0.0
        %4236 = vst.msk [vmem:[#allocation6 + $0x28] sm:$0x1] %vm1961, 0.0
        %4237 = vst.msk [vmem:[#allocation6 + $0x5] sm:$0x1] %vm1961, 0.0
        %4238 = vst.msk [vmem:[#allocation6 + $0xd] sm:$0x1] %vm1961, 0.0
        %4239 = vst.msk [vmem:[#allocation6 + $0x15] sm:$0x1] %vm1961, 0.0
        %4240 = vst.msk [vmem:[#allocation6 + $0x1d] sm:$0x1] %vm1961, 0.0
        %4241 = vst.msk [vmem:[#allocation6 + $0x25] sm:$0x1] %vm1961, 0.0
        %4242 = vst.msk [vmem:[#allocation6 + $0x2d] sm:$0x1] %vm1961, 0.0
        %v4243 = vsel %vm1954, %v4219, -inf
        %v4244 = vsel %vm1954, %v4220, -inf
        %v4245 = vmax.f32 %v4243, %v4244
        %v4246 = vsel %vm1954, %v4221, -inf
        %v4247 = vsel %vm1954, %v4222, -inf
        %v4248 = vmax.f32 %v4246, %v4247
        %v4249 = vsel %vm1954, %v4223, -inf
        %v4250 = vsel %vm1954, %v4224, -inf
        %v4251 = vmax.f32 %v4249, %v4250
        %v4252 = vsel %vm1954, %v4225, -inf
        %v4253 = vsel %vm1954, %v4226, -inf
        %v4254 = vmax.f32 %v4252, %v4253
        %v4259 = vcombine.high %v4245, %v4245
        %v4261 = vunpack.c.l.s4 1983009808
        %v4262 = vunpack.c.0.s8 %v4261
        %v4263 = vlaneseq
        %v4264 = vshrl.u32 %v4263, 7
        %v4265 = vsub.s32 %v4262, %v4264
        %v4266 = vrot.slane %v4245, %v4265
        %v4268 = vunpack.c.l.s4 1983009808
        %v4269 = vunpack.c.0.s8 %v4268
        %v4270 = vlaneseq
        %v4271 = vshrl.u32 %v4270, 7
        %v4272 = vsub.s32 %v4269, %v4271
        %v4273 = vrot.slane %v4259, %v4272
        %v4274 = vcombine.high %v4266, %v4266
        %v4275 = vcombine.high %v4273, %v4273
        %v4276 = vcombine.high %v4248, %v4248
        %v4278 = vunpack.c.l.s4 1983009808
        %v4279 = vunpack.c.0.s8 %v4278
        %v4280 = vlaneseq
        %v4281 = vshrl.u32 %v4280, 7
        %v4282 = vsub.s32 %v4279, %v4281
        %v4283 = vrot.slane %v4248, %v4282
        %v4285 = vunpack.c.l.s4 1983009808
        %v4286 = vunpack.c.0.s8 %v4285
        %v4287 = vlaneseq
        %v4288 = vshrl.u32 %v4287, 7
        %v4289 = vsub.s32 %v4286, %v4288
        %v4290 = vrot.slane %v4276, %v4289
        %v4291 = vcombine.high %v4283, %v4283
        %v4292 = vcombine.high %v4290, %v4290
        %v4293 = vcombine.high %v4251, %v4251
        %v4295 = vunpack.c.l.s4 1983009808
        %v4296 = vunpack.c.0.s8 %v4295
        %v4297 = vlaneseq
        %v4298 = vshrl.u32 %v4297, 7
        %v4299 = vsub.s32 %v4296, %v4298
        %v4300 = vrot.slane %v4251, %v4299
        %v4302 = vunpack.c.l.s4 1983009808
        %v4303 = vunpack.c.0.s8 %v4302
        %v4304 = vlaneseq
        %v4305 = vshrl.u32 %v4304, 7
        %v4306 = vsub.s32 %v4303, %v4305
        %v4307 = vrot.slane %v4293, %v4306
        %v4308 = vcombine.high %v4300, %v4300
        %v4309 = vcombine.high %v4307, %v4307
        %v4310 = vcombine.high %v4254, %v4254
        %v4312 = vunpack.c.l.s4 1983009808
        %v4313 = vunpack.c.0.s8 %v4312
        %v4314 = vlaneseq
        %v4315 = vshrl.u32 %v4314, 7
        %v4316 = vsub.s32 %v4313, %v4315
        %v4317 = vrot.slane %v4254, %v4316
        %v4319 = vunpack.c.l.s4 1983009808
        %v4320 = vunpack.c.0.s8 %v4319
        %v4321 = vlaneseq
        %v4322 = vshrl.u32 %v4321, 7
        %v4323 = vsub.s32 %v4320, %v4322
        %v4324 = vrot.slane %v4310, %v4323
        %v4325 = vcombine.high %v4317, %v4317
        %v4326 = vcombine.high %v4324, %v4324
        %v4343 = vsel %vm1956, %v4266, -inf
        %v4344 = vrot.slane %v4343, 4
        %v4345 = vmax.f32 %v4343, %v4344
        %v4346 = vrot.slane %v4345, 2
        %v4347 = vmax.f32 %v4345, %v4346
        %v4348 = vrot.slane %v4347, 1
        %v4349 = vmax.f32 %v4347, %v4348
        %v4350 = vsel %vm1956, %v4274, -inf
        %v4351 = vrot.slane %v4350, 4
        %v4352 = vmax.f32 %v4350, %v4351
        %v4353 = vrot.slane %v4352, 2
        %v4354 = vmax.f32 %v4352, %v4353
        %v4355 = vrot.slane %v4354, 1
        %v4356 = vmax.f32 %v4354, %v4355
        %v4357 = vsel %vm1956, %v4273, -inf
        %v4358 = vrot.slane %v4357, 4
        %v4359 = vmax.f32 %v4357, %v4358
        %v4360 = vrot.slane %v4359, 2
        %v4361 = vmax.f32 %v4359, %v4360
        %v4362 = vrot.slane %v4361, 1
        %v4363 = vmax.f32 %v4361, %v4362
        %v4364 = vsel %vm1956, %v4275, -inf
        %v4365 = vrot.slane %v4364, 4
        %v4366 = vmax.f32 %v4364, %v4365
        %v4367 = vrot.slane %v4366, 2
        %v4368 = vmax.f32 %v4366, %v4367
        %v4369 = vrot.slane %v4368, 1
        %v4370 = vmax.f32 %v4368, %v4369
        %v4371 = vsel %vm1956, %v4283, -inf
        %v4372 = vrot.slane %v4371, 4
        %v4373 = vmax.f32 %v4371, %v4372
        %v4374 = vrot.slane %v4373, 2
        %v4375 = vmax.f32 %v4373, %v4374
        %v4376 = vrot.slane %v4375, 1
        %v4377 = vmax.f32 %v4375, %v4376
        %v4378 = vsel %vm1956, %v4291, -inf
        %v4379 = vrot.slane %v4378, 4
        %v4380 = vmax.f32 %v4378, %v4379
        %v4381 = vrot.slane %v4380, 2
        %v4382 = vmax.f32 %v4380, %v4381
        %v4383 = vrot.slane %v4382, 1
        %v4384 = vmax.f32 %v4382, %v4383
        %v4385 = vsel %vm1956, %v4290, -inf
        %v4386 = vrot.slane %v4385, 4
        %v4387 = vmax.f32 %v4385, %v4386
        %v4388 = vrot.slane %v4387, 2
        %v4389 = vmax.f32 %v4387, %v4388
        %v4390 = vrot.slane %v4389, 1
        %v4391 = vmax.f32 %v4389, %v4390
        %v4392 = vsel %vm1956, %v4292, -inf
        %v4393 = vrot.slane %v4392, 4
        %v4394 = vmax.f32 %v4392, %v4393
        %v4395 = vrot.slane %v4394, 2
        %v4396 = vmax.f32 %v4394, %v4395
        %v4397 = vrot.slane %v4396, 1
        %v4398 = vmax.f32 %v4396, %v4397
        %v4399 = vsel %vm1956, %v4300, -inf
        %v4400 = vrot.slane %v4399, 4
        %v4401 = vmax.f32 %v4399, %v4400
        %v4402 = vrot.slane %v4401, 2
        %v4403 = vmax.f32 %v4401, %v4402
        %v4404 = vrot.slane %v4403, 1
        %v4405 = vmax.f32 %v4403, %v4404
        %v4406 = vsel %vm1956, %v4308, -inf
        %v4407 = vrot.slane %v4406, 4
        %v4408 = vmax.f32 %v4406, %v4407
        %v4409 = vrot.slane %v4408, 2
        %v4410 = vmax.f32 %v4408, %v4409
        %v4411 = vrot.slane %v4410, 1
        %v4412 = vmax.f32 %v4410, %v4411
        %v4413 = vsel %vm1956, %v4307, -inf
        %v4414 = vrot.slane %v4413, 4
        %v4415 = vmax.f32 %v4413, %v4414
        %v4416 = vrot.slane %v4415, 2
        %v4417 = vmax.f32 %v4415, %v4416
        %v4418 = vrot.slane %v4417, 1
        %v4419 = vmax.f32 %v4417, %v4418
        %v4420 = vsel %vm1956, %v4309, -inf
        %v4421 = vrot.slane %v4420, 4
        %v4422 = vmax.f32 %v4420, %v4421
        %v4423 = vrot.slane %v4422, 2
        %v4424 = vmax.f32 %v4422, %v4423
        %v4425 = vrot.slane %v4424, 1
        %v4426 = vmax.f32 %v4424, %v4425
        %v4427 = vsel %vm1956, %v4317, -inf
        %v4428 = vrot.slane %v4427, 4
        %v4429 = vmax.f32 %v4427, %v4428
        %v4430 = vrot.slane %v4429, 2
        %v4431 = vmax.f32 %v4429, %v4430
        %v4432 = vrot.slane %v4431, 1
        %v4433 = vmax.f32 %v4431, %v4432
        %v4434 = vsel %vm1956, %v4325, -inf
        %v4435 = vrot.slane %v4434, 4
        %v4436 = vmax.f32 %v4434, %v4435
        %v4437 = vrot.slane %v4436, 2
        %v4438 = vmax.f32 %v4436, %v4437
        %v4439 = vrot.slane %v4438, 1
        %v4440 = vmax.f32 %v4438, %v4439
        %v4441 = vsel %vm1956, %v4324, -inf
        %v4442 = vrot.slane %v4441, 4
        %v4443 = vmax.f32 %v4441, %v4442
        %v4444 = vrot.slane %v4443, 2
        %v4445 = vmax.f32 %v4443, %v4444
        %v4446 = vrot.slane %v4445, 1
        %v4447 = vmax.f32 %v4445, %v4446
        %v4448 = vsel %vm1956, %v4326, -inf
        %v4449 = vrot.slane %v4448, 4
        %v4450 = vmax.f32 %v4448, %v4449
        %v4451 = vrot.slane %v4450, 2
        %v4452 = vmax.f32 %v4450, %v4451
        %v4453 = vrot.slane %v4452, 1
        %v4454 = vmax.f32 %v4452, %v4453
        %v4471 = vsel %vm2894, %v4356, %v4349
        %v4472 = vsel %vm2896, %v4363, %v4471
        %v4473 = vsel %vm2898, %v4370, %v4472
        %v4474 = vsel %vm2894, %v4384, %v4377
        %v4475 = vsel %vm2896, %v4391, %v4474
        %v4476 = vsel %vm2898, %v4398, %v4475
        %v4477 = vsel %vm2894, %v4412, %v4405
        %v4478 = vsel %vm2896, %v4419, %v4477
        %v4479 = vsel %vm2898, %v4426, %v4478
        %v4480 = vsel %vm2894, %v4440, %v4433
        %v4481 = vsel %vm2896, %v4447, %v4480
        %v4482 = vsel %vm2898, %v4454, %v4481
        %s4487 = scalar_lea.vmem [#allocation6], 8
        %vm4488 = vcmask 519168
        %4489 = vst.msk [vmem:[%s4487 + $0x1] sm:$0xf] %vm4488, %v4473
        %4490 = vst.msk [vmem:[%s4487 + $0x9] sm:$0xf] %vm4488, %v4476
        %4491 = vst.msk [vmem:[%s4487 + $0x11] sm:$0xf] %vm4488, %v4479
        %4492 = vst.msk [vmem:[%s4487 + $0x19] sm:$0xf] %vm4488, %v4482
        %v4493 = vld [vmem:[#allocation6] sm:$0x3f]
        %v4494 = vld [vmem:[#allocation6 + $0x8] sm:$0x3f]
        %v4495 = vld [vmem:[#allocation6 + $0x10] sm:$0x3f]
        %v4496 = vld [vmem:[#allocation6 + $0x18] sm:$0x3f]
        %v4497 = vld [vmem:[#allocation6 + $0x20] sm:$0x3f]
        %v4498 = vld [vmem:[#allocation6 + $0x28] sm:$0x3f]
        %v4503 = vcombine.low %v4493, %v4494
        %v4504 = vcombine.low %v4495, %v4496
        %v4507 = vpack.c.bf16 %v4504, %v4503
        %4508 = vst.msk [vmem:[#allocation7] sm:$0xff] %vm1954, %v4507
        %v4510 = vcombine.low %v4494, %v4495
        %v4511 = vcombine.low %v4496, %v4497
        %v4514 = vpack.c.bf16 %v4511, %v4510
        %4516 = vrot.lane.b32.xlu0 %v4514, 64
        %v4517 = vpop.permute.xlu0 %4516
        %4519 = vst.msk [vmem:[#allocation7 + $0x8] sm:$0xff] %vm3022, %v4517
        %v4521 = vcombine.low %v4497, %v4498
        %v4523 = vpack.c.bf16 %v4521, %v4504
        %4524 = vst.msk [vmem:[#allocation7 + $0x18] sm:$0xff] %vm1954, %v4523
        %v4525 = vcombine.high %v4493, %v4493
        %v4526 = vcombine.high %v4494, %v4494
        %v4527 = vcombine.high %v4495, %v4495
        %v4528 = vcombine.high %v4496, %v4496
        %vm4529 = vcmask 1042432
        %vm4530 = vcmask 1046532
        %vm4531 = vmor %vm4529, %vm4530
        %v4532 = vrot.slane %v4493, 5
        %v4533 = vrot.slane %v4532, 4
        %v4534 = vrot.slane %v4525, 5
        %v4535 = vsel %vm4531, %v4533, %v4534
        %v4536 = vrot.slane %v4494, 5
        %v4537 = vrot.slane %v4536, 4
        %v4538 = vrot.slane %v4526, 5
        %v4539 = vsel %vm4531, %v4537, %v4538
        %v4540 = vrot.slane %v4495, 5
        %v4541 = vrot.slane %v4540, 4
        %v4542 = vrot.slane %v4527, 5
        %v4543 = vsel %vm4531, %v4541, %v4542
        %v4544 = vrot.slane %v4496, 5
        %v4545 = vrot.slane %v4544, 4
        %v4546 = vrot.slane %v4528, 5
        %v4547 = vsel %vm4531, %v4545, %v4546
        %v4548 = vcombine.low %v4535, %v4539
        %v4549 = vcombine.low %v4543, %v4547
        %v4552 = vpack.c.bf16 %v4549, %v4548
        %4554 = vrot.lane.b32.xlu0 %v4552, 64
        %v4555 = vpop.permute.xlu0 %4554
        %4557 = vst.msk [vmem:[#allocation7] sm:$0xff] %vm3022, %v4555
        %v4558 = vcombine.high %v4497, %v4497
        %v4559 = vrot.slane %v4497, 5
        %v4560 = vrot.slane %v4559, 4
        %v4561 = vrot.slane %v4558, 5
        %v4562 = vsel %vm4531, %v4560, %v4561
        %v4563 = vcombine.low %v4539, %v4543
        %v4564 = vcombine.low %v4547, %v4562
        %v4567 = vpack.c.bf16 %v4564, %v4563
        %4568 = vst.msk [vmem:[#allocation7 + $0x10] sm:$0xff] %vm1954, %v4567
        %v4569 = vcombine.high %v4498, %v4498
        %v4570 = vrot.slane %v4498, 5
        %v4571 = vrot.slane %v4570, 4
        %v4572 = vrot.slane %v4569, 5
        %v4573 = vsel %vm4531, %v4571, %v4572
        %v4574 = vcombine.low %v4562, %v4573
        %v4576 = vpack.c.bf16 %v4574, %v4549
        %4578 = vrot.lane.b32.xlu0 %v4576, 64
        %v4579 = vpop.permute.xlu0 %4578
        %4581 = vst.msk [vmem:[#allocation7 + $0x18] sm:$0xff] %vm3022, %v4579
        %vm4582 = vcmask 1041408
        %vm4583 = vcmask 1045508
        %vm4584 = vmor %vm4582, %vm4583
        %v4585 = vrot.slane %v4493, 6
        %v4586 = vrot.slane %v4585, 4
        %v4587 = vrot.slane %v4525, 6
        %v4588 = vsel %vm4584, %v4586, %v4587
        %v4589 = vrot.slane %v4494, 6
        %v4590 = vrot.slane %v4589, 4
        %v4591 = vrot.slane %v4526, 6
        %v4592 = vsel %vm4584, %v4590, %v4591
        %v4593 = vrot.slane %v4495, 6
        %v4594 = vrot.slane %v4593, 4
        %v4595 = vrot.slane %v4527, 6
        %v4596 = vsel %vm4584, %v4594, %v4595
        %v4597 = vrot.slane %v4496, 6
        %v4598 = vrot.slane %v4597, 4
        %v4599 = vrot.slane %v4528, 6
        %v4600 = vsel %vm4584, %v4598, %v4599
        %v4601 = vcombine.low %v4588, %v4592
        %v4602 = vcombine.low %v4596, %v4600
        %v4605 = vpack.c.bf16 %v4602, %v4601
        %4606 = vst.msk [vmem:[#allocation7 + $0x8] sm:$0xff] %vm1954, %v4605
        %v4607 = vrot.slane %v4497, 6
        %v4608 = vrot.slane %v4607, 4
        %v4609 = vrot.slane %v4558, 6
        %v4610 = vsel %vm4584, %v4608, %v4609
        %v4611 = vcombine.low %v4592, %v4596
        %v4612 = vcombine.low %v4600, %v4610
        %v4615 = vpack.c.bf16 %v4612, %v4611
        %4617 = vrot.lane.b32.xlu0 %v4615, 64
        %v4618 = vpop.permute.xlu0 %4617
        %4620 = vst.msk [vmem:[#allocation7 + $0x10] sm:$0xff] %vm3022, %v4618
        %v4621 = vrot.slane %v4498, 6
        %v4622 = vrot.slane %v4621, 4
        %v4623 = vrot.slane %v4569, 6
        %v4624 = vsel %vm4584, %v4622, %v4623
        %v4625 = vcombine.low %v4610, %v4624
        %v4627 = vpack.c.bf16 %v4625, %v4602
        %4628 = vst.msk [vmem:[#allocation7 + $0x20] sm:$0xff] %vm1954, %v4627
        %v4629 = vld [vmem:[#allocation7] sm:$0xff]
        %v4630 = vld [vmem:[#allocation7 + $0x8] sm:$0xff]
        %v4631 = vld [vmem:[#allocation7 + $0x10] sm:$0xff]
        %v4632 = vld [vmem:[#allocation7 + $0x18] sm:$0xff]
        %v4633 = vld [vmem:[#allocation7 + $0x20] sm:$0xff]
        %v4634 = vld [vmem:[#allocation19] sm:$0xff]
        %v4635 = vld [vmem:[#allocation19 + $0x8] sm:$0xff]
        %v4636 = vld [vmem:[#allocation19 + $0x10] sm:$0xff]
        %v4637 = vld [vmem:[#allocation19 + $0x18] sm:$0xff]
        %v4638 = vld [vmem:[#allocation19 + $0x20] sm:$0xff]
        %v4639 = vld [vmem:[#allocation19 + $0x28] sm:$0xff]
        %v4640 = vld [vmem:[#allocation19 + $0x30] sm:$0xff]
        %v4641 = vld [vmem:[#allocation19 + $0x38] sm:$0xff]
        %v4642 = vld [vmem:[#allocation19 + $0x40] sm:$0xff]
        %v4643 = vld [vmem:[#allocation19 + $0x48] sm:$0xff]
        %v4644 = vld [vmem:[#allocation19 + $0x50] sm:$0xff]
        %v4645 = vld [vmem:[#allocation19 + $0x58] sm:$0xff]
        %v4646 = vld [vmem:[#allocation19 + $0x60] sm:$0xff]
        %v4647 = vld [vmem:[#allocation19 + $0x68] sm:$0xff]
        %v4648 = vld [vmem:[#allocation19 + $0x70] sm:$0xff]
        %v4649 = vld [vmem:[#allocation19 + $0x78] sm:$0xff]
        %v4650 = vld [vmem:[#allocation19 + $0x80] sm:$0xff]
        %v4651 = vld [vmem:[#allocation19 + $0x88] sm:$0xff]
        %v4652 = vld [vmem:[#allocation19 + $0x90] sm:$0xff]
        %v4653 = vld [vmem:[#allocation19 + $0x98] sm:$0xff]
        %v4654 = vld [vmem:[#allocation19 + $0xa0] sm:$0xff]
        %v4655 = vld [vmem:[#allocation19 + $0xa8] sm:$0xff]
        %v4656 = vld [vmem:[#allocation19 + $0xb0] sm:$0xff]
        %v4657 = vld [vmem:[#allocation19 + $0xb8] sm:$0xff]
        %v4658 = vld [vmem:[#allocation19 + $0xc0] sm:$0xff]
        %v4659 = vld [vmem:[#allocation19 + $0xc8] sm:$0xff]
        %v4660 = vld [vmem:[#allocation19 + $0xd0] sm:$0xff]
        %v4661 = vld [vmem:[#allocation19 + $0xd8] sm:$0xff]
        %v4662 = vld [vmem:[#allocation19 + $0xe0] sm:$0xff]
        %v4663 = vld [vmem:[#allocation19 + $0xe8] sm:$0xff]
        %v4664 = vld [vmem:[#allocation19 + $0xf0] sm:$0xff]
        %v4665 = vld [vmem:[#allocation19 + $0xf8] sm:$0xff]
        %v4666 = vld [vmem:[#allocation19 + $0x100] sm:$0xff]
        %v4667 = vld [vmem:[#allocation19 + $0x108] sm:$0xff]
        %v4668 = vld [vmem:[#allocation19 + $0x110] sm:$0xff]
        %v4669 = vld [vmem:[#allocation19 + $0x118] sm:$0xff]
        %v4670 = vld [vmem:[#allocation19 + $0x120] sm:$0xff]
        %v4671 = vld [vmem:[#allocation19 + $0x128] sm:$0xff]
        %v4672 = vld [vmem:[#allocation19 + $0x130] sm:$0xff]
        %v4673 = vld [vmem:[#allocation19 + $0x138] sm:$0xff]
        %v4674 = vld [vmem:[#allocation19 + $0x140] sm:$0xff]
        %v4675 = vld [vmem:[#allocation19 + $0x148] sm:$0xff]
        %v4676 = vld [vmem:[#allocation19 + $0x150] sm:$0xff]
        %v4677 = vld [vmem:[#allocation19 + $0x158] sm:$0xff]
        %v4678 = vld [vmem:[#allocation19 + $0x160] sm:$0xff]
        %v4679 = vld [vmem:[#allocation19 + $0x168] sm:$0xff]
        %v4680 = vld [vmem:[#allocation19 + $0x170] sm:$0xff]
        %v4681 = vld [vmem:[#allocation19 + $0x178] sm:$0xff]
        %v4682 = vld [vmem:[#allocation19 + $0x180] sm:$0xff]
        %v4683 = vld [vmem:[#allocation19 + $0x188] sm:$0xff]
        %v4684 = vld [vmem:[#allocation19 + $0x190] sm:$0xff]
        %v4685 = vld [vmem:[#allocation19 + $0x198] sm:$0xff]
        %v4686 = vld [vmem:[#allocation19 + $0x1a0] sm:$0xff]
        %v4687 = vld [vmem:[#allocation19 + $0x1a8] sm:$0xff]
        %v4688 = vld [vmem:[#allocation19 + $0x1b0] sm:$0xff]
        %v4689 = vld [vmem:[#allocation19 + $0x1b8] sm:$0xff]
        %v4690 = vld [vmem:[#allocation19 + $0x1c0] sm:$0xff]
        %v4691 = vld [vmem:[#allocation19 + $0x1c8] sm:$0xff]
        %v4692 = vld [vmem:[#allocation19 + $0x1d0] sm:$0xff]
        %v4693 = vld [vmem:[#allocation19 + $0x1d8] sm:$0xff]
        %v4694 = vld [vmem:[#allocation19 + $0x1e0] sm:$0xff]
        %v4695 = vld [vmem:[#allocation19 + $0x1e8] sm:$0xff]
        %v4696 = vld [vmem:[#allocation19 + $0x1f0] sm:$0xff]
        %v4697 = vld [vmem:[#allocation19 + $0x1f8] sm:$0xff]
        %v4698 = vld [vmem:[#allocation19 + $0x200] sm:$0xff]
        %v4699 = vld [vmem:[#allocation19 + $0x208] sm:$0xff]
        %v4700 = vld [vmem:[#allocation19 + $0x210] sm:$0xff]
        %v4701 = vld [vmem:[#allocation19 + $0x218] sm:$0xff]
        %v4702 = vld [vmem:[#allocation19 + $0x220] sm:$0xff]
        %v4703 = vld [vmem:[#allocation19 + $0x228] sm:$0xff]
        %v4704 = vld [vmem:[#allocation19 + $0x230] sm:$0xff]
        %v4705 = vld [vmem:[#allocation19 + $0x238] sm:$0xff]
        %v4706 = vld [vmem:[#allocation21] sm:$0x3]
        %v4708 = vlaneseq
        %v4709 = vshrl.u32 %v4708, 7
        %v4710 = vsub.s32 0, %v4709
        %v4711 = vrot.slane %v4706, %v4710
        %v4712 = vlaneseq
        %v4713 = vshrl.u32 %v4712, 7
        %v4714 = vsub.s32 1, %v4713
        %v4715 = vrot.slane %v4706, %v4714
        %v4790 = vunpack.c.l.b16 %v4634
        %v4791 = vunpack.c.h.b16 %v4634
        %v4792 = vunpack.c.l.b16 %v4635
        %v4793 = vunpack.c.h.b16 %v4635
        %v4794 = vunpack.c.l.b16 %v4636
        %v4795 = vunpack.c.h.b16 %v4636
        %v4796 = vunpack.c.l.b16 %v4637
        %v4797 = vunpack.c.h.b16 %v4637
        %v4798 = vunpack.c.l.b16 %v4638
        %v4799 = vunpack.c.h.b16 %v4638
        %v4800 = vunpack.c.l.b16 %v4639
        %v4801 = vunpack.c.h.b16 %v4639
        %v4802 = vunpack.c.l.b16 %v4640
        %v4803 = vunpack.c.h.b16 %v4640
        %v4804 = vunpack.c.l.b16 %v4641
        %v4805 = vunpack.c.h.b16 %v4641
        %v4806 = vunpack.c.l.b16 %v4642
        %v4807 = vunpack.c.h.b16 %v4642
        %v4808 = vunpack.c.l.b16 %v4643
        %v4809 = vunpack.c.h.b16 %v4643
        %v4810 = vunpack.c.l.b16 %v4644
        %v4811 = vunpack.c.h.b16 %v4644
        %v4812 = vunpack.c.l.b16 %v4645
        %v4813 = vunpack.c.h.b16 %v4645
        %v4814 = vunpack.c.l.b16 %v4646
        %v4815 = vunpack.c.h.b16 %v4646
        %v4816 = vunpack.c.l.b16 %v4647
        %v4817 = vunpack.c.h.b16 %v4647
        %v4818 = vunpack.c.l.b16 %v4648
        %v4819 = vunpack.c.h.b16 %v4648
        %v4820 = vunpack.c.l.b16 %v4649
        %v4821 = vunpack.c.h.b16 %v4649
        %v4822 = vunpack.c.l.b16 %v4650
        %v4823 = vunpack.c.h.b16 %v4650
        %v4824 = vunpack.c.l.b16 %v4651
        %v4825 = vunpack.c.h.b16 %v4651
        %v4826 = vunpack.c.l.b16 %v4652
        %v4827 = vunpack.c.h.b16 %v4652
        %v4828 = vunpack.c.l.b16 %v4653
        %v4829 = vunpack.c.h.b16 %v4653
        %v4830 = vunpack.c.l.b16 %v4654
        %v4831 = vunpack.c.h.b16 %v4654
        %v4832 = vunpack.c.l.b16 %v4655
        %v4833 = vunpack.c.h.b16 %v4655
        %v4834 = vunpack.c.l.b16 %v4656
        %v4835 = vunpack.c.h.b16 %v4656
        %v4836 = vunpack.c.l.b16 %v4657
        %v4837 = vunpack.c.h.b16 %v4657
        %v4838 = vunpack.c.l.b16 %v4658
        %v4839 = vunpack.c.h.b16 %v4658
        %v4840 = vunpack.c.l.b16 %v4659
        %v4841 = vunpack.c.h.b16 %v4659
        %v4842 = vunpack.c.l.b16 %v4660
        %v4843 = vunpack.c.h.b16 %v4660
        %v4844 = vunpack.c.l.b16 %v4661
        %v4845 = vunpack.c.h.b16 %v4661
        %v4846 = vunpack.c.l.b16 %v4662
        %v4847 = vunpack.c.h.b16 %v4662
        %v4848 = vunpack.c.l.b16 %v4663
        %v4849 = vunpack.c.h.b16 %v4663
        %v4850 = vunpack.c.l.b16 %v4664
        %v4851 = vunpack.c.h.b16 %v4664
        %v4852 = vunpack.c.l.b16 %v4665
        %v4853 = vunpack.c.h.b16 %v4665
        %v4854 = vunpack.c.l.b16 %v4666
        %v4855 = vunpack.c.h.b16 %v4666
        %v4856 = vunpack.c.l.b16 %v4667
        %v4857 = vunpack.c.h.b16 %v4667
        %v4858 = vunpack.c.l.b16 %v4668
        %v4859 = vunpack.c.h.b16 %v4668
        %v4860 = vunpack.c.l.b16 %v4669
        %v4861 = vunpack.c.h.b16 %v4669
        %v4862 = vunpack.c.l.b16 %v4670
        %v4863 = vunpack.c.h.b16 %v4670
        %v4864 = vunpack.c.l.b16 %v4671
        %v4865 = vunpack.c.h.b16 %v4671
        %v4866 = vunpack.c.l.b16 %v4672
        %v4867 = vunpack.c.h.b16 %v4672
        %v4868 = vunpack.c.l.b16 %v4673
        %v4869 = vunpack.c.h.b16 %v4673
        %v4870 = vunpack.c.l.b16 %v4674
        %v4871 = vunpack.c.h.b16 %v4674
        %v4872 = vunpack.c.l.b16 %v4675
        %v4873 = vunpack.c.h.b16 %v4675
        %v4874 = vunpack.c.l.b16 %v4676
        %v4875 = vunpack.c.h.b16 %v4676
        %v4876 = vunpack.c.l.b16 %v4677
        %v4877 = vunpack.c.h.b16 %v4677
        %v4878 = vunpack.c.l.b16 %v4678
        %v4879 = vunpack.c.h.b16 %v4678
        %v4880 = vunpack.c.l.b16 %v4679
        %v4881 = vunpack.c.h.b16 %v4679
        %v4882 = vunpack.c.l.b16 %v4680
        %v4883 = vunpack.c.h.b16 %v4680
        %v4884 = vunpack.c.l.b16 %v4681
        %v4885 = vunpack.c.h.b16 %v4681
        %v4886 = vunpack.c.l.b16 %v4682
        %v4887 = vunpack.c.h.b16 %v4682
        %v4888 = vunpack.c.l.b16 %v4683
        %v4889 = vunpack.c.h.b16 %v4683
        %v4890 = vunpack.c.l.b16 %v4684
        %v4891 = vunpack.c.h.b16 %v4684
        %v4892 = vunpack.c.l.b16 %v4685
        %v4893 = vunpack.c.h.b16 %v4685
        %v4894 = vunpack.c.l.b16 %v4686
        %v4895 = vunpack.c.h.b16 %v4686
        %v4896 = vunpack.c.l.b16 %v4687
        %v4897 = vunpack.c.h.b16 %v4687
        %v4898 = vunpack.c.l.b16 %v4688
        %v4899 = vunpack.c.h.b16 %v4688
        %v4900 = vunpack.c.l.b16 %v4689
        %v4901 = vunpack.c.h.b16 %v4689
        %v4902 = vunpack.c.l.b16 %v4690
        %v4903 = vunpack.c.h.b16 %v4690
        %v4904 = vunpack.c.l.b16 %v4691
        %v4905 = vunpack.c.h.b16 %v4691
        %v4906 = vunpack.c.l.b16 %v4692
        %v4907 = vunpack.c.h.b16 %v4692
        %v4908 = vunpack.c.l.b16 %v4693
        %v4909 = vunpack.c.h.b16 %v4693
        %v4910 = vunpack.c.l.b16 %v4694
        %v4911 = vunpack.c.h.b16 %v4694
        %v4912 = vunpack.c.l.b16 %v4695
        %v4913 = vunpack.c.h.b16 %v4695
        %v4914 = vunpack.c.l.b16 %v4696
        %v4915 = vunpack.c.h.b16 %v4696
        %v4916 = vunpack.c.l.b16 %v4697
        %v4917 = vunpack.c.h.b16 %v4697
        %v4918 = vunpack.c.l.b16 %v4698
        %v4919 = vunpack.c.h.b16 %v4698
        %v4920 = vunpack.c.l.b16 %v4699
        %v4921 = vunpack.c.h.b16 %v4699
        %v4922 = vunpack.c.l.b16 %v4700
        %v4923 = vunpack.c.h.b16 %v4700
        %v4924 = vunpack.c.l.b16 %v4701
        %v4925 = vunpack.c.h.b16 %v4701
        %v4926 = vunpack.c.l.b16 %v4702
        %v4927 = vunpack.c.h.b16 %v4702
        %v4928 = vunpack.c.l.b16 %v4703
        %v4929 = vunpack.c.h.b16 %v4703
        %v4930 = vunpack.c.l.b16 %v4704
        %v4931 = vunpack.c.h.b16 %v4704
        %v4932 = vunpack.c.l.b16 %v4705
        %v4933 = vunpack.c.h.b16 %v4705
        %v4934 = vpack.c.b16 %v4792, %v4790
        %v4935 = vpack.c.b16 %v4793, %v4791
        %v4936 = vpack.c.b16 %v4796, %v4794
        %v4937 = vpack.c.b16 %v4797, %v4795
        %v4938 = vpack.c.b16 %v4800, %v4798
        %v4939 = vpack.c.b16 %v4801, %v4799
        %v4940 = vpack.c.b16 %v4804, %v4802
        %v4941 = vpack.c.b16 %v4805, %v4803
        %v4942 = vpack.c.b16 %v4808, %v4806
        %v4943 = vpack.c.b16 %v4809, %v4807
        %v4944 = vpack.c.b16 %v4812, %v4810
        %v4945 = vpack.c.b16 %v4813, %v4811
        %v4946 = vpack.c.b16 %v4816, %v4814
        %v4947 = vpack.c.b16 %v4817, %v4815
        %v4948 = vpack.c.b16 %v4820, %v4818
        %v4949 = vpack.c.b16 %v4821, %v4819
        %v4950 = vpack.c.b16 %v4824, %v4822
        %v4951 = vpack.c.b16 %v4825, %v4823
        %v4952 = vpack.c.b16 %v4828, %v4826
        %v4953 = vpack.c.b16 %v4829, %v4827
        %v4954 = vpack.c.b16 %v4832, %v4830
        %v4955 = vpack.c.b16 %v4833, %v4831
        %v4956 = vpack.c.b16 %v4836, %v4834
        %v4957 = vpack.c.b16 %v4837, %v4835
        %v4958 = vpack.c.b16 %v4840, %v4838
        %v4959 = vpack.c.b16 %v4841, %v4839
        %v4960 = vpack.c.b16 %v4844, %v4842
        %v4961 = vpack.c.b16 %v4845, %v4843
        %v4962 = vpack.c.b16 %v4848, %v4846
        %v4963 = vpack.c.b16 %v4849, %v4847
        %v4964 = vpack.c.b16 %v4852, %v4850
        %v4965 = vpack.c.b16 %v4853, %v4851
        %v4966 = vpack.c.b16 %v4856, %v4854
        %v4967 = vpack.c.b16 %v4857, %v4855
        %v4968 = vpack.c.b16 %v4860, %v4858
        %v4969 = vpack.c.b16 %v4861, %v4859
        %v4970 = vpack.c.b16 %v4864, %v4862
        %v4971 = vpack.c.b16 %v4865, %v4863
        %v4972 = vpack.c.b16 %v4868, %v4866
        %v4973 = vpack.c.b16 %v4869, %v4867
        %v4974 = vpack.c.b16 %v4872, %v4870
        %v4975 = vpack.c.b16 %v4873, %v4871
        %v4976 = vpack.c.b16 %v4876, %v4874
        %v4977 = vpack.c.b16 %v4877, %v4875
        %v4978 = vpack.c.b16 %v4880, %v4878
        %v4979 = vpack.c.b16 %v4881, %v4879
        %v4980 = vpack.c.b16 %v4884, %v4882
        %v4981 = vpack.c.b16 %v4885, %v4883
        %v4982 = vpack.c.b16 %v4888, %v4886
        %v4983 = vpack.c.b16 %v4889, %v4887
        %v4984 = vpack.c.b16 %v4892, %v4890
        %v4985 = vpack.c.b16 %v4893, %v4891
        %v4986 = vpack.c.b16 %v4896, %v4894
        %v4987 = vpack.c.b16 %v4897, %v4895
        %v4988 = vpack.c.b16 %v4900, %v4898
        %v4989 = vpack.c.b16 %v4901, %v4899
        %v4990 = vpack.c.b16 %v4904, %v4902
        %v4991 = vpack.c.b16 %v4905, %v4903
        %v4992 = vpack.c.b16 %v4908, %v4906
        %v4993 = vpack.c.b16 %v4909, %v4907
        %v4994 = vpack.c.b16 %v4912, %v4910
        %v4995 = vpack.c.b16 %v4913, %v4911
        %v4996 = vpack.c.b16 %v4916, %v4914
        %v4997 = vpack.c.b16 %v4917, %v4915
        %v4998 = vpack.c.b16 %v4920, %v4918
        %v4999 = vpack.c.b16 %v4921, %v4919
        %v5000 = vpack.c.b16 %v4924, %v4922
        %v5001 = vpack.c.b16 %v4925, %v4923
        %v5002 = vpack.c.b16 %v4928, %v4926
        %v5003 = vpack.c.b16 %v4929, %v4927
        %v5004 = vpack.c.b16 %v4932, %v4930
        %v5005 = vpack.c.b16 %v4933, %v4931
        %v5079 = vsel %vm1954, %v4633, 0
        %5081 = vmatprep.subr.bf16.mxu0 %v4935
        %5082 = vmatpush1.bf16.msra.mxu0 %v4934
        %5083 = vmatprep.subr.bf16.mxu0 %v4937
        %5084 = vmatpush1.bf16.msra.mxu0 %v4936
        %5085 = vmatprep.subr.bf16.mxu0 %v4939
        %5086 = vmatpush1.bf16.msra.mxu0 %v4938
        %5087 = vmatprep.subr.bf16.mxu0 %v4941
        %5088 = vmatpush1.bf16.msra.mxu0 %v4940
        %5089 = vmatprep.subr.bf16.mxu0 %v4943
        %5090 = vmatpush1.bf16.msra.mxu0 %v4942
        %5091 = vmatprep.subr.bf16.mxu0 %v4945
        %5092 = vmatpush1.bf16.msra.mxu0 %v4944
        %5093 = vmatprep.subr.bf16.mxu0 %v4947
        %5094 = vmatpush1.bf16.msra.mxu0 %v4946
        %5095 = vmatprep.subr.bf16.mxu0 %v4949
        %5096 = vmatpush1.bf16.msra.mxu0 %v4948
        %5097 = vmatprep.subr.bf16.mxu0 %v4951
        %5098 = vmatpush1.bf16.msra.mxu0 %v4950
        %5099 = vmatprep.subr.bf16.mxu0 %v4953
        %5100 = vmatpush1.bf16.msra.mxu0 %v4952
        %5101 = vmatprep.subr.bf16.mxu0 %v4955
        %5102 = vmatpush1.bf16.msra.mxu0 %v4954
        %5103 = vmatprep.subr.bf16.mxu0 %v4957
        %5104 = vmatpush1.bf16.msra.mxu0 %v4956
        %5105 = vmatprep.subr.bf16.mxu0 %v4959
        %5106 = vmatpush1.bf16.msra.mxu0 %v4958
        %5107 = vmatprep.subr.bf16.mxu0 %v4961
        %5108 = vmatpush1.bf16.msra.mxu0 %v4960
        %5109 = vmatprep.subr.bf16.mxu0 %v4963
        %5110 = vmatpush1.bf16.msra.mxu0 %v4962
        %5111 = vmatprep.subr.bf16.mxu0 %v4965
        %5112 = vmatpush1.bf16.msra.mxu0 %v4964
        %5113 = vmatprep.mubr.bf16.mxu0 %v4630
        %5114 = vmatmul.mubr.bf16.gmra.mrb[0].mxu0 %v4629
        %v5115 = vpop.f32.mrb[0].mxu0
        %v5116 = vadd.f32 %v4711, %v5115
        %v5117 = vpop.f32.mrb[0].mxu0
        %v5118 = vadd.f32 %v4715, %v5117
        %v5119 = vpop.f32.mrb[0].mxu0
        %v5120 = vadd.f32 %v4711, %v5119
        %v5121 = vpop.f32.mrb[0].mxu0
        %v5122 = vadd.f32 %v4715, %v5121
        %5123 = vdwg.mxu0
        %5124 = vmatprep.subr.bf16.mxu0 %v4967
        %5125 = vmatpush1.bf16.msra.mxu0 %v4966
        %5126 = vmatprep.subr.bf16.mxu0 %v4969
        %5127 = vmatpush1.bf16.msra.mxu0 %v4968
        %5128 = vmatprep.subr.bf16.mxu0 %v4971
        %5129 = vmatpush1.bf16.msra.mxu0 %v4970
        %5130 = vmatprep.subr.bf16.mxu0 %v4973
        %5131 = vmatpush1.bf16.msra.mxu0 %v4972
        %5132 = vmatprep.subr.bf16.mxu0 %v4975
        %5133 = vmatpush1.bf16.msra.mxu0 %v4974
        %5134 = vmatprep.subr.bf16.mxu0 %v4977
        %5135 = vmatpush1.bf16.msra.mxu0 %v4976
        %5136 = vmatprep.subr.bf16.mxu0 %v4979
        %5137 = vmatpush1.bf16.msra.mxu0 %v4978
        %5138 = vmatprep.subr.bf16.mxu0 %v4981
        %5139 = vmatpush1.bf16.msra.mxu0 %v4980
        %5140 = vmatprep.subr.bf16.mxu0 %v4983
        %5141 = vmatpush1.bf16.msra.mxu0 %v4982
        %5142 = vmatprep.subr.bf16.mxu0 %v4985
        %5143 = vmatpush1.bf16.msra.mxu0 %v4984
        %5144 = vmatprep.subr.bf16.mxu0 %v4987
        %5145 = vmatpush1.bf16.msra.mxu0 %v4986
        %5146 = vmatprep.subr.bf16.mxu0 %v4989
        %5147 = vmatpush1.bf16.msra.mxu0 %v4988
        %5148 = vmatprep.subr.bf16.mxu0 %v4991
        %5149 = vmatpush1.bf16.msra.mxu0 %v4990
        %5150 = vmatprep.subr.bf16.mxu0 %v4993
        %5151 = vmatpush1.bf16.msra.mxu0 %v4992
        %5152 = vmatprep.subr.bf16.mxu0 %v4995
        %5153 = vmatpush1.bf16.msra.mxu0 %v4994
        %5154 = vmatprep.subr.bf16.mxu0 %v4997
        %5155 = vmatpush1.bf16.msra.mxu0 %v4996
        %5156 = vmatprep.mubr.bf16.mxu0 %v4632
        %5157 = vmatmul.mubr.bf16.gmra.mrb[0].mxu0 %v4631
        %v5158 = vpop.f32.mrb[0].mxu0
        %v5159 = vadd.f32 %v5116, %v5158
        %v5160 = vpop.f32.mrb[0].mxu0
        %v5161 = vadd.f32 %v5118, %v5160
        %v5162 = vpop.f32.mrb[0].mxu0
        %v5163 = vadd.f32 %v5120, %v5162
        %v5164 = vpop.f32.mrb[0].mxu0
        %v5165 = vadd.f32 %v5122, %v5164
        %5166 = vdwg.mxu0
        %5167 = vmatprep.subr.bf16.mxu0 %v4999
        %5168 = vmatpush1.bf16.msra.mxu0 %v4998
        %5169 = vmatprep.subr.bf16.mxu0 %v5001
        %5170 = vmatpush1.bf16.msra.mxu0 %v5000
        %5171 = vmatprep.subr.bf16.mxu0 %v5003
        %5172 = vmatpush1.bf16.msra.mxu0 %v5002
        %5173 = vmatprep.subr.bf16.mxu0 %v5005
        %5174 = vmatpush1.bf16.msra.mxu0 %v5004
        %5175 = vmatprep.subr.bf16.mxu0 0
        %5176 = vmatpush1.bf16.msra.mxu0 0
        %5177 = vmatprep.subr.bf16.mxu0 0
        %5178 = vmatpush1.bf16.msra.mxu0 0
        %5179 = vmatprep.subr.bf16.mxu0 0
        %5180 = vmatpush1.bf16.msra.mxu0 0
        %5181 = vmatprep.subr.bf16.mxu0 0
        %5182 = vmatpush1.bf16.msra.mxu0 0
        %5183 = vmatprep.subr.bf16.mxu0 0
        %5184 = vmatpush1.bf16.msra.mxu0 0
        %5185 = vmatprep.subr.bf16.mxu0 0
        %5186 = vmatpush1.bf16.msra.mxu0 0
        %5187 = vmatprep.subr.bf16.mxu0 0
        %5188 = vmatpush1.bf16.msra.mxu0 0
        %5189 = vmatprep.subr.bf16.mxu0 0
        %5190 = vmatpush1.bf16.msra.mxu0 0
        %5191 = vmatprep.subr.bf16.mxu0 0
        %5192 = vmatpush1.bf16.msra.mxu0 0
        %5193 = vmatprep.subr.bf16.mxu0 0
        %5194 = vmatpush1.bf16.msra.mxu0 0
        %5195 = vmatprep.subr.bf16.mxu0 0
        %5196 = vmatpush1.bf16.msra.mxu0 0
        %5197 = vmatprep.subr.bf16.mxu0 0
        %5198 = vmatpush1.bf16.msra.mxu0 0
        %5199 = vmatprep.mubr.bf16.mxu0 0
        %5200 = vmatmul.mubr.bf16.gmra.mrb[0].mxu0 %v5079
        %v5201 = vpop.f32.mrb[0].mxu0
        %v5202 = vadd.f32 %v5159, %v5201
        %v5203 = vpop.f32.mrb[0].mxu0
        %v5204 = vadd.f32 %v5161, %v5203
        %v5205 = vpop.f32.mrb[0].mxu0
        %v5206 = vadd.f32 %v5163, %v5205
        %v5207 = vpop.f32.mrb[0].mxu0
        %v5208 = vadd.f32 %v5165, %v5207
        %5209 = vdwg.mxu0
        %v5210 = vmax.f32 %v5202, %v5204
        %v5211 = vmax.f32 %v5206, %v5208
        %5212 = vst [vmem:[#allocation8] sm:$0xf] 0.0
        %s5213 = scalar_lea.vmem [#allocation8], 12
        %5214 = vst [vmem:[%s5213] sm:$0xf] 0.0
        %5215 = vst [vmem:[#allocation8] sm:$0x1] 0.0
        %5216 = vst [vmem:[#allocation8 + $0x4] sm:$0x1] 0.0
        %5217 = vst [vmem:[#allocation8 + $0x8] sm:$0x1] 0.0
        %5218 = vst [vmem:[#allocation8 + $0xc] sm:$0x1] 0.0
        %5219 = vst [vmem:[#allocation8 + $0x3] sm:$0x1] 0.0
        %5220 = vst [vmem:[#allocation8 + $0x7] sm:$0x1] 0.0
        %5221 = vst [vmem:[#allocation8 + $0xb] sm:$0x1] 0.0
        %5222 = vst [vmem:[#allocation8 + $0xf] sm:$0x1] 0.0
        %v5225 = vcombine.high %v5210, %v5210
        %v5226 = vcombine.high %v5211, %v5211
        %vm5229 = vcmask 1043456
        %v5230 = vsel %vm5229, %v5210, -inf
        %v5231 = vsel %vm5229, %v5225, -inf
        %v5232 = vmax.f32 %v5230, %v5231
        %v5233 = vsel %vm5229, %v5211, -inf
        %v5234 = vsel %vm5229, %v5226, -inf
        %v5235 = vmax.f32 %v5233, %v5234
        %v5239 = vunpack.c.l.s4 1983009808
        %v5240 = vunpack.c.0.s8 %v5239
        %v5241 = vlaneseq
        %v5242 = vshrl.u32 %v5241, 7
        %v5243 = vsub.s32 %v5240, %v5242
        %v5244 = vrot.slane %v5232, %v5243
        %v5245 = vcombine.high %v5244, %v5244
        %v5247 = vunpack.c.l.s4 1983009808
        %v5248 = vunpack.c.0.s8 %v5247
        %v5249 = vlaneseq
        %v5250 = vshrl.u32 %v5249, 7
        %v5251 = vsub.s32 %v5248, %v5250
        %v5252 = vrot.slane %v5235, %v5251
        %v5253 = vcombine.high %v5252, %v5252
        %v5258 = vsel %vm4582, %v5244, -inf
        %v5259 = vrot.slane %v5258, 4
        %v5260 = vmax.f32 %v5258, %v5259
        %v5261 = vrot.slane %v5260, 2
        %v5262 = vmax.f32 %v5260, %v5261
        %v5263 = vrot.slane %v5262, 1
        %v5264 = vmax.f32 %v5262, %v5263
        %v5265 = vsel %vm4582, %v5245, -inf
        %v5266 = vrot.slane %v5265, 4
        %v5267 = vmax.f32 %v5265, %v5266
        %v5268 = vrot.slane %v5267, 2
        %v5269 = vmax.f32 %v5267, %v5268
        %v5270 = vrot.slane %v5269, 1
        %v5271 = vmax.f32 %v5269, %v5270
        %v5272 = vsel %vm4582, %v5252, -inf
        %v5273 = vrot.slane %v5272, 4
        %v5274 = vmax.f32 %v5272, %v5273
        %v5275 = vrot.slane %v5274, 2
        %v5276 = vmax.f32 %v5274, %v5275
        %v5277 = vrot.slane %v5276, 1
        %v5278 = vmax.f32 %v5276, %v5277
        %v5279 = vsel %vm4582, %v5253, -inf
        %v5280 = vrot.slane %v5279, 4
        %v5281 = vmax.f32 %v5279, %v5280
        %v5282 = vrot.slane %v5281, 2
        %v5283 = vmax.f32 %v5281, %v5282
        %v5284 = vrot.slane %v5283, 1
        %v5285 = vmax.f32 %v5283, %v5284
        %v5290 = vsel %vm2894, %v5271, %v5264
        %v5291 = vsel %vm2894, %v5285, %v5278
        %s5294 = scalar_lea.vmem [#allocation8], 4
        %5295 = vst [vmem:[%s5294 + $0x1] sm:$0x3] %v5290
        %5296 = vst [vmem:[%s5294 + $0x5] sm:$0x3] %v5291
        %v5297 = vld [vmem:[#allocation8] sm:$0xf]
        %v5298 = vld [vmem:[#allocation8 + $0x4] sm:$0xf]
        %v5299 = vld [vmem:[#allocation8 + $0x8] sm:$0xf]
        %v5300 = vld [vmem:[#allocation8 + $0xc] sm:$0xf]
        %v5303 = vcombine.low %v5297, %v5298
        %v5305 = vunpack.c.l.s4 1983009808
        %v5306 = vunpack.c.0.s8 %v5305
        %v5307 = vlaneseq
        %v5308 = vshrl.u32 %v5307, 7
        %v5309 = vsub.s32 %v5306, %v5308
        %v5310 = vrot.slane %v5303, %v5309
        %v5312 = vpack.c.bf16 %v5310, %v5310
        %5313 = vst [vmem:[#allocation9] sm:$0x3] %v5312
        %v5315 = vcombine.low %v5298, %v5299
        %v5317 = vunpack.c.l.s4 1983009808
        %v5318 = vunpack.c.0.s8 %v5317
        %v5319 = vlaneseq
        %v5320 = vshrl.u32 %v5319, 7
        %v5321 = vsub.s32 %v5318, %v5320
        %v5322 = vrot.slane %v5315, %v5321
        %v5324 = vpack.c.bf16 %v5322, %v5322
        %5325 = vst [vmem:[#allocation9 + $0x6] sm:$0x3] %v5324
        %v5327 = vcombine.low %v5299, %v5300
        %v5329 = vunpack.c.l.s4 1983009808
        %v5330 = vunpack.c.0.s8 %v5329
        %v5331 = vlaneseq
        %v5332 = vshrl.u32 %v5331, 7
        %v5333 = vsub.s32 %v5330, %v5332
        %v5334 = vrot.slane %v5327, %v5333
        %v5336 = vpack.c.bf16 %v5334, %v5334
        %5337 = vst [vmem:[#allocation9 + $0xc] sm:$0x3] %v5336
        %v5339 = vunpack.c.l.s4 1983009808
        %v5340 = vunpack.c.0.s8 %v5339
        %v5341 = vlaneseq
        %v5342 = vshrl.u32 %v5341, 7
        %v5343 = vsub.s32 %v5340, %v5342
        %v5344 = vrot.slane %v5297, %v5343
        %v5345 = vcombine.high %v5344, %v5344
        %v5347 = vunpack.c.l.s4 1983009808
        %v5348 = vunpack.c.0.s8 %v5347
        %v5349 = vlaneseq
        %v5350 = vshrl.u32 %v5349, 7
        %v5351 = vsub.s32 %v5348, %v5350
        %v5352 = vrot.slane %v5298, %v5351
        %v5353 = vcombine.high %v5352, %v5352
        %vm5354 = vcmask 1040384
        %vm5355 = vmor %vm5354, %vm2896
        %vm5356 = vmor %vm5355, %vm2900
        %vm5357 = vmor %vm5356, %vm2904
        %v5358 = vrot.slane %v5344, 7
        %v5359 = vrot.slane %v5358, 2
        %v5360 = vrot.slane %v5345, 7
        %v5361 = vsel %vm5357, %v5359, %v5360
        %v5362 = vrot.slane %v5352, 7
        %v5363 = vrot.slane %v5362, 2
        %v5364 = vrot.slane %v5353, 7
        %v5365 = vsel %vm5357, %v5363, %v5364
        %v5366 = vcombine.low %v5361, %v5365
        %v5368 = vunpack.c.l.s4 1983009808
        %v5369 = vunpack.c.0.s8 %v5368
        %v5370 = vlaneseq
        %v5371 = vshrl.u32 %v5370, 7
        %v5372 = vsub.s32 %v5369, %v5371
        %v5373 = vrot.slane %v5366, %v5372
        %v5375 = vpack.c.bf16 %v5373, %v5373
        %5376 = vst [vmem:[#allocation9 + $0x2] sm:$0x3] %v5375
        %v5378 = vunpack.c.l.s4 1983009808
        %v5379 = vunpack.c.0.s8 %v5378
        %v5380 = vlaneseq
        %v5381 = vshrl.u32 %v5380, 7
        %v5382 = vsub.s32 %v5379, %v5381
        %v5383 = vrot.slane %v5299, %v5382
        %v5384 = vcombine.high %v5383, %v5383
        %v5385 = vrot.slane %v5383, 7
        %v5386 = vrot.slane %v5385, 2
        %v5387 = vrot.slane %v5384, 7
        %v5388 = vsel %vm5357, %v5386, %v5387
        %v5389 = vcombine.low %v5365, %v5388
        %v5391 = vunpack.c.l.s4 1983009808
        %v5392 = vunpack.c.0.s8 %v5391
        %v5393 = vlaneseq
        %v5394 = vshrl.u32 %v5393, 7
        %v5395 = vsub.s32 %v5392, %v5394
        %v5396 = vrot.slane %v5389, %v5395
        %v5398 = vpack.c.bf16 %v5396, %v5396
        %5399 = vst [vmem:[#allocation9 + $0x8] sm:$0x3] %v5398
        %v5401 = vunpack.c.l.s4 1983009808
        %v5402 = vunpack.c.0.s8 %v5401
        %v5403 = vlaneseq
        %v5404 = vshrl.u32 %v5403, 7
        %v5405 = vsub.s32 %v5402, %v5404
        %v5406 = vrot.slane %v5300, %v5405
        %v5407 = vcombine.high %v5406, %v5406
        %v5408 = vrot.slane %v5406, 7
        %v5409 = vrot.slane %v5408, 2
        %v5410 = vrot.slane %v5407, 7
        %v5411 = vsel %vm5357, %v5409, %v5410
        %v5412 = vcombine.low %v5388, %v5411
        %v5414 = vunpack.c.l.s4 1983009808
        %v5415 = vunpack.c.0.s8 %v5414
        %v5416 = vlaneseq
        %v5417 = vshrl.u32 %v5416, 7
        %v5418 = vsub.s32 %v5415, %v5417
        %v5419 = vrot.slane %v5412, %v5418
        %v5421 = vpack.c.bf16 %v5419, %v5419
        %5422 = vst [vmem:[#allocation9 + $0xe] sm:$0x3] %v5421
        %v5423 = vcombine.low %v5345, %v5353
        %v5425 = vunpack.c.l.s4 1983009808
        %v5426 = vunpack.c.0.s8 %v5425
        %v5427 = vlaneseq
        %v5428 = vshrl.u32 %v5427, 7
        %v5429 = vsub.s32 %v5426, %v5428
        %v5430 = vrot.slane %v5423, %v5429
        %v5432 = vpack.c.bf16 %v5430, %v5430
        %5433 = vst [vmem:[#allocation9 + $0x4] sm:$0x3] %v5432
        %v5434 = vcombine.low %v5353, %v5384
        %v5436 = vunpack.c.l.s4 1983009808
        %v5437 = vunpack.c.0.s8 %v5436
        %v5438 = vlaneseq
        %v5439 = vshrl.u32 %v5438, 7
        %v5440 = vsub.s32 %v5437, %v5439
        %v5441 = vrot.slane %v5434, %v5440
        %v5443 = vpack.c.bf16 %v5441, %v5441
        %5444 = vst [vmem:[#allocation9 + $0xa] sm:$0x3] %v5443
        %v5445 = vcombine.low %v5384, %v5407
        %v5447 = vunpack.c.l.s4 1983009808
        %v5448 = vunpack.c.0.s8 %v5447
        %v5449 = vlaneseq
        %v5450 = vshrl.u32 %v5449, 7
        %v5451 = vsub.s32 %v5448, %v5450
        %v5452 = vrot.slane %v5445, %v5451
        %v5454 = vpack.c.bf16 %v5452, %v5452
        %5455 = vst [vmem:[#allocation9 + $0x10] sm:$0x3] %v5454
        %v5456 = vld [vmem:[#allocation9] sm:$0xff]
        %v5457 = vld [vmem:[#allocation9 + $0x8] sm:$0xff]
        %v5458 = vld [vmem:[#allocation9 + $0x10] sm:$0x3]
        %v5459 = vld [vmem:[#allocation22] sm:$0xff]
        %v5460 = vld [vmem:[#allocation22 + $0x8] sm:$0xff]
        %v5461 = vld [vmem:[#allocation22 + $0x10] sm:$0xff]
        %v5462 = vld [vmem:[#allocation22 + $0x18] sm:$0xff]
        %v5463 = vld [vmem:[#allocation22 + $0x20] sm:$0xff]
        %v5464 = vld [vmem:[#allocation22 + $0x28] sm:$0xff]
        %v5465 = vld [vmem:[#allocation22 + $0x30] sm:$0xff]
        %v5466 = vld [vmem:[#allocation22 + $0x38] sm:$0xff]
        %v5467 = vld [vmem:[#allocation22 + $0x40] sm:$0xff]
        %v5468 = vld [vmem:[#allocation22 + $0x48] sm:$0xff]
        %v5469 = vld [vmem:[#allocation22 + $0x50] sm:$0xff]
        %v5470 = vld [vmem:[#allocation22 + $0x58] sm:$0xff]
        %v5471 = vld [vmem:[#allocation22 + $0x60] sm:$0xff]
        %v5472 = vld [vmem:[#allocation22 + $0x68] sm:$0xff]
        %v5473 = vld [vmem:[#allocation22 + $0x70] sm:$0xff]
        %v5474 = vld [vmem:[#allocation22 + $0x78] sm:$0xff]
        %v5475 = vld [vmem:[#allocation22 + $0x80] sm:$0xff]
        %v5476 = vld [vmem:[#allocation22 + $0x88] sm:$0xff]
        %v5477 = vld [vmem:[#allocation22 + $0x90] sm:$0xff]
        %v5478 = vld [vmem:[#allocation22 + $0x98] sm:$0xff]
        %v5479 = vld [vmem:[#allocation22 + $0xa0] sm:$0xff]
        %v5480 = vld [vmem:[#allocation22 + $0xa8] sm:$0xff]
        %v5481 = vld [vmem:[#allocation22 + $0xb0] sm:$0xff]
        %v5482 = vld [vmem:[#allocation22 + $0xb8] sm:$0xff]
        %v5483 = vld [vmem:[#allocation22 + $0xc0] sm:$0xff]
        %v5484 = vld [vmem:[#allocation22 + $0xc8] sm:$0xff]
        %v5485 = vld [vmem:[#allocation22 + $0xd0] sm:$0xff]
        %v5486 = vld [vmem:[#allocation22 + $0xd8] sm:$0xff]
        %v5487 = vld [vmem:[#allocation22 + $0xe0] sm:$0xff]
        %v5488 = vld [vmem:[#allocation22 + $0xe8] sm:$0xff]
        %v5489 = vld [vmem:[#allocation22 + $0xf0] sm:$0xff]
        %v5490 = vld [vmem:[#allocation22 + $0xf8] sm:$0xff]
        %v5491 = vld [vmem:[#allocation22 + $0x100] sm:$0xff]
        %v5492 = vld [vmem:[#allocation22 + $0x108] sm:$0xff]
        %v5493 = vld [vmem:[#allocation22 + $0x110] sm:$0xff]
        %v5494 = vld [vmem:[#allocation22 + $0x118] sm:$0xff]
        %v5495 = vld [vmem:[#allocation22 + $0x120] sm:$0xff]
        %v5496 = vld [vmem:[#allocation22 + $0x128] sm:$0xff]
        %v5497 = vld [vmem:[#allocation22 + $0x130] sm:$0xff]
        %v5498 = vld [vmem:[#allocation22 + $0x138] sm:$0xff]
        %v5499 = vld [vmem:[#allocation22 + $0x140] sm:$0xff]
        %v5500 = vld [vmem:[#allocation22 + $0x148] sm:$0xff]
        %v5501 = vld [vmem:[#allocation22 + $0x150] sm:$0xff]
        %v5502 = vld [vmem:[#allocation22 + $0x158] sm:$0xff]
        %v5503 = vld [vmem:[#allocation22 + $0x160] sm:$0xff]
        %v5504 = vld [vmem:[#allocation22 + $0x168] sm:$0xff]
        %v5505 = vld [vmem:[#allocation22 + $0x170] sm:$0xff]
        %v5506 = vld [vmem:[#allocation22 + $0x178] sm:$0xff]
        %v5507 = vld [vmem:[#allocation22 + $0x180] sm:$0xff]
        %v5508 = vld [vmem:[#allocation22 + $0x188] sm:$0xff]
        %v5509 = vld [vmem:[#allocation22 + $0x190] sm:$0xff]
        %v5510 = vld [vmem:[#allocation22 + $0x198] sm:$0xff]
        %v5511 = vld [vmem:[#allocation22 + $0x1a0] sm:$0xff]
        %v5512 = vld [vmem:[#allocation22 + $0x1a8] sm:$0xff]
        %v5513 = vld [vmem:[#allocation22 + $0x1b0] sm:$0xff]
        %v5514 = vld [vmem:[#allocation22 + $0x1b8] sm:$0xff]
        %v5515 = vld [vmem:[#allocation22 + $0x1c0] sm:$0xff]
        %v5516 = vld [vmem:[#allocation22 + $0x1c8] sm:$0xff]
        %v5517 = vld [vmem:[#allocation22 + $0x1d0] sm:$0xff]
        %v5518 = vld [vmem:[#allocation22 + $0x1d8] sm:$0xff]
        %v5519 = vld [vmem:[#allocation22 + $0x1e0] sm:$0xff]
        %v5520 = vld [vmem:[#allocation22 + $0x1e8] sm:$0xff]
        %v5521 = vld [vmem:[#allocation22 + $0x1f0] sm:$0xff]
        %v5522 = vld [vmem:[#allocation22 + $0x1f8] sm:$0xff]
        %v5523 = vld [vmem:[#allocation22 + $0x200] sm:$0xff]
        %v5524 = vld [vmem:[#allocation22 + $0x208] sm:$0xff]
        %v5525 = vld [vmem:[#allocation22 + $0x210] sm:$0xff]
        %v5526 = vld [vmem:[#allocation22 + $0x218] sm:$0xff]
        %v5527 = vld [vmem:[#allocation22 + $0x220] sm:$0xff]
        %v5528 = vld [vmem:[#allocation22 + $0x228] sm:$0xff]
        %v5529 = vld [vmem:[#allocation22 + $0x230] sm:$0xff]
        %v5530 = vld [vmem:[#allocation22 + $0x238] sm:$0xff]
        %v5531 = vld [vmem:[#allocation22 + $0x240] sm:$0xff]
        %v5532 = vld [vmem:[#allocation22 + $0x248] sm:$0xff]
        %v5533 = vld [vmem:[#allocation22 + $0x250] sm:$0xff]
        %v5534 = vld [vmem:[#allocation22 + $0x258] sm:$0xff]
        %v5535 = vld [vmem:[#allocation22 + $0x260] sm:$0xff]
        %v5536 = vld [vmem:[#allocation22 + $0x268] sm:$0xff]
        %v5537 = vld [vmem:[#allocation22 + $0x270] sm:$0xff]
        %v5538 = vld [vmem:[#allocation22 + $0x278] sm:$0xff]
        %v5539 = vld [vmem:[#allocation22 + $0x280] sm:$0xff]
        %v5540 = vld [vmem:[#allocation22 + $0x288] sm:$0xff]
        %v5541 = vld [vmem:[#allocation22 + $0x290] sm:$0xff]
        %v5542 = vld [vmem:[#allocation22 + $0x298] sm:$0xff]
        %v5543 = vld [vmem:[#allocation22 + $0x2a0] sm:$0xff]
        %v5544 = vld [vmem:[#allocation22 + $0x2a8] sm:$0xff]
        %v5545 = vld [vmem:[#allocation22 + $0x2b0] sm:$0xff]
        %v5546 = vld [vmem:[#allocation22 + $0x2b8] sm:$0xff]
        %v5547 = vld [vmem:[#allocation22 + $0x2c0] sm:$0xff]
        %v5548 = vld [vmem:[#allocation22 + $0x2c8] sm:$0xff]
        %v5549 = vld [vmem:[#allocation22 + $0x2d0] sm:$0xff]
        %v5550 = vld [vmem:[#allocation22 + $0x2d8] sm:$0xff]
        %v5551 = vld [vmem:[#allocation22 + $0x2e0] sm:$0xff]
        %v5552 = vld [vmem:[#allocation22 + $0x2e8] sm:$0xff]
        %v5553 = vld [vmem:[#allocation22 + $0x2f0] sm:$0xff]
        %v5554 = vld [vmem:[#allocation22 + $0x2f8] sm:$0xff]
        %v5555 = vld [vmem:[#allocation22 + $0x300] sm:$0xff]
        %v5556 = vld [vmem:[#allocation22 + $0x308] sm:$0xff]
        %v5557 = vld [vmem:[#allocation22 + $0x310] sm:$0xff]
        %v5558 = vld [vmem:[#allocation22 + $0x318] sm:$0xff]
        %v5559 = vld [vmem:[#allocation22 + $0x320] sm:$0xff]
        %v5560 = vld [vmem:[#allocation22 + $0x328] sm:$0xff]
        %v5561 = vld [vmem:[#allocation22 + $0x330] sm:$0xff]
        %v5562 = vld [vmem:[#allocation22 + $0x338] sm:$0xff]
        %v5563 = vld [vmem:[#allocation22 + $0x340] sm:$0xff]
        %v5564 = vld [vmem:[#allocation22 + $0x348] sm:$0xff]
        %v5565 = vld [vmem:[#allocation22 + $0x350] sm:$0xff]
        %v5566 = vld [vmem:[#allocation22 + $0x358] sm:$0xff]
        %v5567 = vld [vmem:[#allocation22 + $0x360] sm:$0xff]
        %v5568 = vld [vmem:[#allocation22 + $0x368] sm:$0xff]
        %v5569 = vld [vmem:[#allocation22 + $0x370] sm:$0xff]
        %v5570 = vld [vmem:[#allocation22 + $0x378] sm:$0xff]
        %v5571 = vld [vmem:[#allocation22 + $0x380] sm:$0xff]
        %v5572 = vld [vmem:[#allocation22 + $0x388] sm:$0xff]
        %v5573 = vld [vmem:[#allocation22 + $0x390] sm:$0xff]
        %v5574 = vld [vmem:[#allocation22 + $0x398] sm:$0xff]
        %v5575 = vld [vmem:[#allocation22 + $0x3a0] sm:$0xff]
        %v5576 = vld [vmem:[#allocation22 + $0x3a8] sm:$0xff]
        %v5577 = vld [vmem:[#allocation22 + $0x3b0] sm:$0xff]
        %v5578 = vld [vmem:[#allocation22 + $0x3b8] sm:$0xff]
        %v5579 = vld [vmem:[#allocation22 + $0x3c0] sm:$0xff]
        %v5580 = vld [vmem:[#allocation22 + $0x3c8] sm:$0xff]
        %v5581 = vld [vmem:[#allocation22 + $0x3d0] sm:$0xff]
        %v5582 = vld [vmem:[#allocation22 + $0x3d8] sm:$0xff]
        %v5583 = vld [vmem:[#allocation22 + $0x3e0] sm:$0xff]
        %v5584 = vld [vmem:[#allocation22 + $0x3e8] sm:$0xff]
        %v5585 = vld [vmem:[#allocation22 + $0x3f0] sm:$0xff]
        %v5586 = vld [vmem:[#allocation22 + $0x3f8] sm:$0xff]
        %v5587 = vld [vmem:[#allocation22 + $0x400] sm:$0xff]
        %v5588 = vld [vmem:[#allocation22 + $0x408] sm:$0xff]
        %v5589 = vld [vmem:[#allocation22 + $0x410] sm:$0xff]
        %v5590 = vld [vmem:[#allocation22 + $0x418] sm:$0xff]
        %v5591 = vld [vmem:[#allocation22 + $0x420] sm:$0xff]
        %v5592 = vld [vmem:[#allocation22 + $0x428] sm:$0xff]
        %v5593 = vld [vmem:[#allocation22 + $0x430] sm:$0xff]
        %v5594 = vld [vmem:[#allocation22 + $0x438] sm:$0xff]
        %v5595 = vld [vmem:[#allocation22 + $0x440] sm:$0xff]
        %v5596 = vld [vmem:[#allocation22 + $0x448] sm:$0xff]
        %v5597 = vld [vmem:[#allocation22 + $0x450] sm:$0xff]
        %v5598 = vld [vmem:[#allocation22 + $0x458] sm:$0xff]
        %v5599 = vld [vmem:[#allocation22 + $0x460] sm:$0xff]
        %v5600 = vld [vmem:[#allocation22 + $0x468] sm:$0xff]
        %v5601 = vld [vmem:[#allocation22 + $0x470] sm:$0xff]
        %v5602 = vld [vmem:[#allocation22 + $0x478] sm:$0xff]
        %v5603 = vld [vmem:[#allocation24] sm:$0x3]
        %v5605 = vlaneseq
        %v5606 = vshrl.u32 %v5605, 7
        %v5607 = vsub.s32 0, %v5606
        %v5608 = vrot.slane %v5603, %v5607
        %v5609 = vlaneseq
        %v5610 = vshrl.u32 %v5609, 7
        %v5611 = vsub.s32 1, %v5610
        %v5612 = vrot.slane %v5603, %v5611
        %v5618 = vcombine.high %v5456, %v5456
        %v5620 = vunpack.c.l.s4 1983009808
        %v5621 = vunpack.c.0.s8 %v5620
        %v5622 = vlaneseq
        %v5623 = vshrl.u32 %v5622, 7
        %v5624 = vsub.s32 %v5621, %v5623
        %v5625 = vrot.slane %v5456, %v5624
        %v5627 = vunpack.c.l.s4 1983009808
        %v5628 = vunpack.c.0.s8 %v5627
        %v5629 = vlaneseq
        %v5630 = vshrl.u32 %v5629, 7
        %v5631 = vsub.s32 %v5628, %v5630
        %v5632 = vrot.slane %v5618, %v5631
        %v5633 = vcombine.high %v5625, %v5625
        %v5634 = vcombine.high %v5632, %v5632
        %v5635 = vcombine.high %v5457, %v5457
        %v5637 = vunpack.c.l.s4 1983009808
        %v5638 = vunpack.c.0.s8 %v5637
        %v5639 = vlaneseq
        %v5640 = vshrl.u32 %v5639, 7
        %v5641 = vsub.s32 %v5638, %v5640
        %v5642 = vrot.slane %v5457, %v5641
        %v5644 = vunpack.c.l.s4 1983009808
        %v5645 = vunpack.c.0.s8 %v5644
        %v5646 = vlaneseq
        %v5647 = vshrl.u32 %v5646, 7
        %v5648 = vsub.s32 %v5645, %v5647
        %v5649 = vrot.slane %v5635, %v5648
        %v5650 = vcombine.high %v5642, %v5642
        %v5651 = vcombine.high %v5649, %v5649
        %v5653 = vunpack.c.l.s4 1983009808
        %v5654 = vunpack.c.0.s8 %v5653
        %v5655 = vlaneseq
        %v5656 = vshrl.u32 %v5655, 7
        %v5657 = vsub.s32 %v5654, %v5656
        %v5658 = vrot.slane %v5458, %v5657
        %v5812 = vunpack.c.l.b16 %v5459
        %v5813 = vunpack.c.h.b16 %v5459
        %v5814 = vunpack.c.l.b16 %v5460
        %v5815 = vunpack.c.h.b16 %v5460
        %v5816 = vunpack.c.l.b16 %v5461
        %v5817 = vunpack.c.h.b16 %v5461
        %v5818 = vunpack.c.l.b16 %v5462
        %v5819 = vunpack.c.h.b16 %v5462
        %v5820 = vunpack.c.l.b16 %v5463
        %v5821 = vunpack.c.h.b16 %v5463
        %v5822 = vunpack.c.l.b16 %v5464
        %v5823 = vunpack.c.h.b16 %v5464
        %v5824 = vunpack.c.l.b16 %v5465
        %v5825 = vunpack.c.h.b16 %v5465
        %v5826 = vunpack.c.l.b16 %v5466
        %v5827 = vunpack.c.h.b16 %v5466
        %v5828 = vunpack.c.l.b16 %v5467
        %v5829 = vunpack.c.h.b16 %v5467
        %v5830 = vunpack.c.l.b16 %v5468
        %v5831 = vunpack.c.h.b16 %v5468
        %v5832 = vunpack.c.l.b16 %v5469
        %v5833 = vunpack.c.h.b16 %v5469
        %v5834 = vunpack.c.l.b16 %v5470
        %v5835 = vunpack.c.h.b16 %v5470
        %v5836 = vunpack.c.l.b16 %v5471
        %v5837 = vunpack.c.h.b16 %v5471
        %v5838 = vunpack.c.l.b16 %v5472
        %v5839 = vunpack.c.h.b16 %v5472
        %v5840 = vunpack.c.l.b16 %v5473
        %v5841 = vunpack.c.h.b16 %v5473
        %v5842 = vunpack.c.l.b16 %v5474
        %v5843 = vunpack.c.h.b16 %v5474
        %v5844 = vunpack.c.l.b16 %v5475
        %v5845 = vunpack.c.h.b16 %v5475
        %v5846 = vunpack.c.l.b16 %v5476
        %v5847 = vunpack.c.h.b16 %v5476
        %v5848 = vunpack.c.l.b16 %v5477
        %v5849 = vunpack.c.h.b16 %v5477
        %v5850 = vunpack.c.l.b16 %v5478
        %v5851 = vunpack.c.h.b16 %v5478
        %v5852 = vunpack.c.l.b16 %v5479
        %v5853 = vunpack.c.h.b16 %v5479
        %v5854 = vunpack.c.l.b16 %v5480
        %v5855 = vunpack.c.h.b16 %v5480
        %v5856 = vunpack.c.l.b16 %v5481
        %v5857 = vunpack.c.h.b16 %v5481
        %v5858 = vunpack.c.l.b16 %v5482
        %v5859 = vunpack.c.h.b16 %v5482
        %v5860 = vunpack.c.l.b16 %v5483
        %v5861 = vunpack.c.h.b16 %v5483
        %v5862 = vunpack.c.l.b16 %v5484
        %v5863 = vunpack.c.h.b16 %v5484
        %v5864 = vunpack.c.l.b16 %v5485
        %v5865 = vunpack.c.h.b16 %v5485
        %v5866 = vunpack.c.l.b16 %v5486
        %v5867 = vunpack.c.h.b16 %v5486
        %v5868 = vunpack.c.l.b16 %v5487
        %v5869 = vunpack.c.h.b16 %v5487
        %v5870 = vunpack.c.l.b16 %v5488
        %v5871 = vunpack.c.h.b16 %v5488
        %v5872 = vunpack.c.l.b16 %v5489
        %v5873 = vunpack.c.h.b16 %v5489
        %v5874 = vunpack.c.l.b16 %v5490
        %v5875 = vunpack.c.h.b16 %v5490
        %v5876 = vunpack.c.l.b16 %v5491
        %v5877 = vunpack.c.h.b16 %v5491
        %v5878 = vunpack.c.l.b16 %v5492
        %v5879 = vunpack.c.h.b16 %v5492
        %v5880 = vunpack.c.l.b16 %v5493
        %v5881 = vunpack.c.h.b16 %v5493
        %v5882 = vunpack.c.l.b16 %v5494
        %v5883 = vunpack.c.h.b16 %v5494
        %v5884 = vunpack.c.l.b16 %v5495
        %v5885 = vunpack.c.h.b16 %v5495
        %v5886 = vunpack.c.l.b16 %v5496
        %v5887 = vunpack.c.h.b16 %v5496
        %v5888 = vunpack.c.l.b16 %v5497
        %v5889 = vunpack.c.h.b16 %v5497
        %v5890 = vunpack.c.l.b16 %v5498
        %v5891 = vunpack.c.h.b16 %v5498
        %v5892 = vunpack.c.l.b16 %v5499
        %v5893 = vunpack.c.h.b16 %v5499
        %v5894 = vunpack.c.l.b16 %v5500
        %v5895 = vunpack.c.h.b16 %v5500
        %v5896 = vunpack.c.l.b16 %v5501
        %v5897 = vunpack.c.h.b16 %v5501
        %v5898 = vunpack.c.l.b16 %v5502
        %v5899 = vunpack.c.h.b16 %v5502
        %v5900 = vunpack.c.l.b16 %v5503
        %v5901 = vunpack.c.h.b16 %v5503
        %v5902 = vunpack.c.l.b16 %v5504
        %v5903 = vunpack.c.h.b16 %v5504
        %v5904 = vunpack.c.l.b16 %v5505
        %v5905 = vunpack.c.h.b16 %v5505
        %v5906 = vunpack.c.l.b16 %v5506
        %v5907 = vunpack.c.h.b16 %v5506
        %v5908 = vunpack.c.l.b16 %v5507
        %v5909 = vunpack.c.h.b16 %v5507
        %v5910 = vunpack.c.l.b16 %v5508
        %v5911 = vunpack.c.h.b16 %v5508
        %v5912 = vunpack.c.l.b16 %v5509
        %v5913 = vunpack.c.h.b16 %v5509
        %v5914 = vunpack.c.l.b16 %v5510
        %v5915 = vunpack.c.h.b16 %v5510
        %v5916 = vunpack.c.l.b16 %v5511
        %v5917 = vunpack.c.h.b16 %v5511
        %v5918 = vunpack.c.l.b16 %v5512
        %v5919 = vunpack.c.h.b16 %v5512
        %v5920 = vunpack.c.l.b16 %v5513
        %v5921 = vunpack.c.h.b16 %v5513
        %v5922 = vunpack.c.l.b16 %v5514
        %v5923 = vunpack.c.h.b16 %v5514
        %v5924 = vunpack.c.l.b16 %v5515
        %v5925 = vunpack.c.h.b16 %v5515
        %v5926 = vunpack.c.l.b16 %v5516
        %v5927 = vunpack.c.h.b16 %v5516
        %v5928 = vunpack.c.l.b16 %v5517
        %v5929 = vunpack.c.h.b16 %v5517
        %v5930 = vunpack.c.l.b16 %v5518
        %v5931 = vunpack.c.h.b16 %v5518
        %v5932 = vunpack.c.l.b16 %v5519
        %v5933 = vunpack.c.h.b16 %v5519
        %v5934 = vunpack.c.l.b16 %v5520
        %v5935 = vunpack.c.h.b16 %v5520
        %v5936 = vunpack.c.l.b16 %v5521
        %v5937 = vunpack.c.h.b16 %v5521
        %v5938 = vunpack.c.l.b16 %v5522
        %v5939 = vunpack.c.h.b16 %v5522
        %v5940 = vunpack.c.l.b16 %v5523
        %v5941 = vunpack.c.h.b16 %v5523
        %v5942 = vunpack.c.l.b16 %v5524
        %v5943 = vunpack.c.h.b16 %v5524
        %v5944 = vunpack.c.l.b16 %v5525
        %v5945 = vunpack.c.h.b16 %v5525
        %v5946 = vunpack.c.l.b16 %v5526
        %v5947 = vunpack.c.h.b16 %v5526
        %v5948 = vunpack.c.l.b16 %v5527
        %v5949 = vunpack.c.h.b16 %v5527
        %v5950 = vunpack.c.l.b16 %v5528
        %v5951 = vunpack.c.h.b16 %v5528
        %v5952 = vunpack.c.l.b16 %v5529
        %v5953 = vunpack.c.h.b16 %v5529
        %v5954 = vunpack.c.l.b16 %v5530
        %v5955 = vunpack.c.h.b16 %v5530
        %v5956 = vunpack.c.l.b16 %v5531
        %v5957 = vunpack.c.h.b16 %v5531
        %v5958 = vunpack.c.l.b16 %v5532
        %v5959 = vunpack.c.h.b16 %v5532
        %v5960 = vunpack.c.l.b16 %v5533
        %v5961 = vunpack.c.h.b16 %v5533
        %v5962 = vunpack.c.l.b16 %v5534
        %v5963 = vunpack.c.h.b16 %v5534
        %v5964 = vunpack.c.l.b16 %v5535
        %v5965 = vunpack.c.h.b16 %v5535
        %v5966 = vunpack.c.l.b16 %v5536
        %v5967 = vunpack.c.h.b16 %v5536
        %v5968 = vunpack.c.l.b16 %v5537
        %v5969 = vunpack.c.h.b16 %v5537
        %v5970 = vunpack.c.l.b16 %v5538
        %v5971 = vunpack.c.h.b16 %v5538
        %v5972 = vunpack.c.l.b16 %v5539
        %v5973 = vunpack.c.h.b16 %v5539
        %v5974 = vunpack.c.l.b16 %v5540
        %v5975 = vunpack.c.h.b16 %v5540
        %v5976 = vunpack.c.l.b16 %v5541
        %v5977 = vunpack.c.h.b16 %v5541
        %v5978 = vunpack.c.l.b16 %v5542
        %v5979 = vunpack.c.h.b16 %v5542
        %v5980 = vunpack.c.l.b16 %v5543
        %v5981 = vunpack.c.h.b16 %v5543
        %v5982 = vunpack.c.l.b16 %v5544
        %v5983 = vunpack.c.h.b16 %v5544
        %v5984 = vunpack.c.l.b16 %v5545
        %v5985 = vunpack.c.h.b16 %v5545
        %v5986 = vunpack.c.l.b16 %v5546
        %v5987 = vunpack.c.h.b16 %v5546
        %v5988 = vunpack.c.l.b16 %v5547
        %v5989 = vunpack.c.h.b16 %v5547
        %v5990 = vunpack.c.l.b16 %v5548
        %v5991 = vunpack.c.h.b16 %v5548
        %v5992 = vunpack.c.l.b16 %v5549
        %v5993 = vunpack.c.h.b16 %v5549
        %v5994 = vunpack.c.l.b16 %v5550
        %v5995 = vunpack.c.h.b16 %v5550
        %v5996 = vunpack.c.l.b16 %v5551
        %v5997 = vunpack.c.h.b16 %v5551
        %v5998 = vunpack.c.l.b16 %v5552
        %v5999 = vunpack.c.h.b16 %v5552
        %v6000 = vunpack.c.l.b16 %v5553
        %v6001 = vunpack.c.h.b16 %v5553
        %v6002 = vunpack.c.l.b16 %v5554
        %v6003 = vunpack.c.h.b16 %v5554
        %v6004 = vunpack.c.l.b16 %v5555
        %v6005 = vunpack.c.h.b16 %v5555
        %v6006 = vunpack.c.l.b16 %v5556
        %v6007 = vunpack.c.h.b16 %v5556
        %v6008 = vunpack.c.l.b16 %v5557
        %v6009 = vunpack.c.h.b16 %v5557
        %v6010 = vunpack.c.l.b16 %v5558
        %v6011 = vunpack.c.h.b16 %v5558
        %v6012 = vunpack.c.l.b16 %v5559
        %v6013 = vunpack.c.h.b16 %v5559
        %v6014 = vunpack.c.l.b16 %v5560
        %v6015 = vunpack.c.h.b16 %v5560
        %v6016 = vunpack.c.l.b16 %v5561
        %v6017 = vunpack.c.h.b16 %v5561
        %v6018 = vunpack.c.l.b16 %v5562
        %v6019 = vunpack.c.h.b16 %v5562
        %v6020 = vunpack.c.l.b16 %v5563
        %v6021 = vunpack.c.h.b16 %v5563
        %v6022 = vunpack.c.l.b16 %v5564
        %v6023 = vunpack.c.h.b16 %v5564
        %v6024 = vunpack.c.l.b16 %v5565
        %v6025 = vunpack.c.h.b16 %v5565
        %v6026 = vunpack.c.l.b16 %v5566
        %v6027 = vunpack.c.h.b16 %v5566
        %v6028 = vunpack.c.l.b16 %v5567
        %v6029 = vunpack.c.h.b16 %v5567
        %v6030 = vunpack.c.l.b16 %v5568
        %v6031 = vunpack.c.h.b16 %v5568
        %v6032 = vunpack.c.l.b16 %v5569
        %v6033 = vunpack.c.h.b16 %v5569
        %v6034 = vunpack.c.l.b16 %v5570
        %v6035 = vunpack.c.h.b16 %v5570
        %v6036 = vunpack.c.l.b16 %v5571
        %v6037 = vunpack.c.h.b16 %v5571
        %v6038 = vunpack.c.l.b16 %v5572
        %v6039 = vunpack.c.h.b16 %v5572
        %v6040 = vunpack.c.l.b16 %v5573
        %v6041 = vunpack.c.h.b16 %v5573
        %v6042 = vunpack.c.l.b16 %v5574
        %v6043 = vunpack.c.h.b16 %v5574
        %v6044 = vunpack.c.l.b16 %v5575
        %v6045 = vunpack.c.h.b16 %v5575
        %v6046 = vunpack.c.l.b16 %v5576
        %v6047 = vunpack.c.h.b16 %v5576
        %v6048 = vunpack.c.l.b16 %v5577
        %v6049 = vunpack.c.h.b16 %v5577
        %v6050 = vunpack.c.l.b16 %v5578
        %v6051 = vunpack.c.h.b16 %v5578
        %v6052 = vunpack.c.l.b16 %v5579
        %v6053 = vunpack.c.h.b16 %v5579
        %v6054 = vunpack.c.l.b16 %v5580
        %v6055 = vunpack.c.h.b16 %v5580
        %v6056 = vunpack.c.l.b16 %v5581
        %v6057 = vunpack.c.h.b16 %v5581
        %v6058 = vunpack.c.l.b16 %v5582
        %v6059 = vunpack.c.h.b16 %v5582
        %v6060 = vunpack.c.l.b16 %v5583
        %v6061 = vunpack.c.h.b16 %v5583
        %v6062 = vunpack.c.l.b16 %v5584
        %v6063 = vunpack.c.h.b16 %v5584
        %v6064 = vunpack.c.l.b16 %v5585
        %v6065 = vunpack.c.h.b16 %v5585
        %v6066 = vunpack.c.l.b16 %v5586
        %v6067 = vunpack.c.h.b16 %v5586
        %v6068 = vunpack.c.l.b16 %v5587
        %v6069 = vunpack.c.h.b16 %v5587
        %v6070 = vunpack.c.l.b16 %v5588
        %v6071 = vunpack.c.h.b16 %v5588
        %v6072 = vunpack.c.l.b16 %v5589
        %v6073 = vunpack.c.h.b16 %v5589
        %v6074 = vunpack.c.l.b16 %v5590
        %v6075 = vunpack.c.h.b16 %v5590
        %v6076 = vunpack.c.l.b16 %v5591
        %v6077 = vunpack.c.h.b16 %v5591
        %v6078 = vunpack.c.l.b16 %v5592
        %v6079 = vunpack.c.h.b16 %v5592
        %v6080 = vunpack.c.l.b16 %v5593
        %v6081 = vunpack.c.h.b16 %v5593
        %v6082 = vunpack.c.l.b16 %v5594
        %v6083 = vunpack.c.h.b16 %v5594
        %v6084 = vunpack.c.l.b16 %v5595
        %v6085 = vunpack.c.h.b16 %v5595
        %v6086 = vunpack.c.l.b16 %v5596
        %v6087 = vunpack.c.h.b16 %v5596
        %v6088 = vunpack.c.l.b16 %v5597
        %v6089 = vunpack.c.h.b16 %v5597
        %v6090 = vunpack.c.l.b16 %v5598
        %v6091 = vunpack.c.h.b16 %v5598
        %v6092 = vunpack.c.l.b16 %v5599
        %v6093 = vunpack.c.h.b16 %v5599
        %v6094 = vunpack.c.l.b16 %v5600
        %v6095 = vunpack.c.h.b16 %v5600
        %v6096 = vunpack.c.l.b16 %v5601
        %v6097 = vunpack.c.h.b16 %v5601
        %v6098 = vunpack.c.l.b16 %v5602
        %v6099 = vunpack.c.h.b16 %v5602
        %v6100 = vpack.c.b16 %v5814, %v5812
        %v6101 = vpack.c.b16 %v5815, %v5813
        %v6102 = vpack.c.b16 %v5818, %v5816
        %v6103 = vpack.c.b16 %v5819, %v5817
        %v6104 = vpack.c.b16 %v5822, %v5820
        %v6105 = vpack.c.b16 %v5823, %v5821
        %v6106 = vpack.c.b16 %v5826, %v5824
        %v6107 = vpack.c.b16 %v5827, %v5825
        %v6108 = vpack.c.b16 %v5830, %v5828
        %v6109 = vpack.c.b16 %v5831, %v5829
        %v6110 = vpack.c.b16 %v5834, %v5832
        %v6111 = vpack.c.b16 %v5835, %v5833
        %v6112 = vpack.c.b16 %v5838, %v5836
        %v6113 = vpack.c.b16 %v5839, %v5837
        %v6114 = vpack.c.b16 %v5842, %v5840
        %v6115 = vpack.c.b16 %v5843, %v5841
        %v6116 = vpack.c.b16 %v5846, %v5844
        %v6117 = vpack.c.b16 %v5847, %v5845
        %v6118 = vpack.c.b16 %v5850, %v5848
        %v6119 = vpack.c.b16 %v5851, %v5849
        %v6120 = vpack.c.b16 %v5854, %v5852
        %v6121 = vpack.c.b16 %v5855, %v5853
        %v6122 = vpack.c.b16 %v5858, %v5856
        %v6123 = vpack.c.b16 %v5859, %v5857
        %v6124 = vpack.c.b16 %v5862, %v5860
        %v6125 = vpack.c.b16 %v5863, %v5861
        %v6126 = vpack.c.b16 %v5866, %v5864
        %v6127 = vpack.c.b16 %v5867, %v5865
        %v6128 = vpack.c.b16 %v5870, %v5868
        %v6129 = vpack.c.b16 %v5871, %v5869
        %v6130 = vpack.c.b16 %v5874, %v5872
        %v6131 = vpack.c.b16 %v5875, %v5873
        %v6132 = vpack.c.b16 %v5878, %v5876
        %v6133 = vpack.c.b16 %v5879, %v5877
        %v6134 = vpack.c.b16 %v5882, %v5880
        %v6135 = vpack.c.b16 %v5883, %v5881
        %v6136 = vpack.c.b16 %v5886, %v5884
        %v6137 = vpack.c.b16 %v5887, %v5885
        %v6138 = vpack.c.b16 %v5890, %v5888
        %v6139 = vpack.c.b16 %v5891, %v5889
        %v6140 = vpack.c.b16 %v5894, %v5892
        %v6141 = vpack.c.b16 %v5895, %v5893
        %v6142 = vpack.c.b16 %v5898, %v5896
        %v6143 = vpack.c.b16 %v5899, %v5897
        %v6144 = vpack.c.b16 %v5902, %v5900
        %v6145 = vpack.c.b16 %v5903, %v5901
        %v6146 = vpack.c.b16 %v5906, %v5904
        %v6147 = vpack.c.b16 %v5907, %v5905
        %v6148 = vpack.c.b16 %v5910, %v5908
        %v6149 = vpack.c.b16 %v5911, %v5909
        %v6150 = vpack.c.b16 %v5914, %v5912
        %v6151 = vpack.c.b16 %v5915, %v5913
        %v6152 = vpack.c.b16 %v5918, %v5916
        %v6153 = vpack.c.b16 %v5919, %v5917
        %v6154 = vpack.c.b16 %v5922, %v5920
        %v6155 = vpack.c.b16 %v5923, %v5921
        %v6156 = vpack.c.b16 %v5926, %v5924
        %v6157 = vpack.c.b16 %v5927, %v5925
        %v6158 = vpack.c.b16 %v5930, %v5928
        %v6159 = vpack.c.b16 %v5931, %v5929
        %v6160 = vpack.c.b16 %v5934, %v5932
        %v6161 = vpack.c.b16 %v5935, %v5933
        %v6162 = vpack.c.b16 %v5938, %v5936
        %v6163 = vpack.c.b16 %v5939, %v5937
        %v6164 = vpack.c.b16 %v5942, %v5940
        %v6165 = vpack.c.b16 %v5943, %v5941
        %v6166 = vpack.c.b16 %v5946, %v5944
        %v6167 = vpack.c.b16 %v5947, %v5945
        %v6168 = vpack.c.b16 %v5950, %v5948
        %v6169 = vpack.c.b16 %v5951, %v5949
        %v6170 = vpack.c.b16 %v5954, %v5952
        %v6171 = vpack.c.b16 %v5955, %v5953
        %v6172 = vpack.c.b16 %v5958, %v5956
        %v6173 = vpack.c.b16 %v5959, %v5957
        %v6174 = vpack.c.b16 %v5962, %v5960
        %v6175 = vpack.c.b16 %v5963, %v5961
        %v6176 = vpack.c.b16 %v5966, %v5964
        %v6177 = vpack.c.b16 %v5967, %v5965
        %v6178 = vpack.c.b16 %v5970, %v5968
        %v6179 = vpack.c.b16 %v5971, %v5969
        %v6180 = vpack.c.b16 %v5974, %v5972
        %v6181 = vpack.c.b16 %v5975, %v5973
        %v6182 = vpack.c.b16 %v5978, %v5976
        %v6183 = vpack.c.b16 %v5979, %v5977
        %v6184 = vpack.c.b16 %v5982, %v5980
        %v6185 = vpack.c.b16 %v5983, %v5981
        %v6186 = vpack.c.b16 %v5986, %v5984
        %v6187 = vpack.c.b16 %v5987, %v5985
        %v6188 = vpack.c.b16 %v5990, %v5988
        %v6189 = vpack.c.b16 %v5991, %v5989
        %v6190 = vpack.c.b16 %v5994, %v5992
        %v6191 = vpack.c.b16 %v5995, %v5993
        %v6192 = vpack.c.b16 %v5998, %v5996
        %v6193 = vpack.c.b16 %v5999, %v5997
        %v6194 = vpack.c.b16 %v6002, %v6000
        %v6195 = vpack.c.b16 %v6003, %v6001
        %v6196 = vpack.c.b16 %v6006, %v6004
        %v6197 = vpack.c.b16 %v6007, %v6005
        %v6198 = vpack.c.b16 %v6010, %v6008
        %v6199 = vpack.c.b16 %v6011, %v6009
        %v6200 = vpack.c.b16 %v6014, %v6012
        %v6201 = vpack.c.b16 %v6015, %v6013
        %v6202 = vpack.c.b16 %v6018, %v6016
        %v6203 = vpack.c.b16 %v6019, %v6017
        %v6204 = vpack.c.b16 %v6022, %v6020
        %v6205 = vpack.c.b16 %v6023, %v6021
        %v6206 = vpack.c.b16 %v6026, %v6024
        %v6207 = vpack.c.b16 %v6027, %v6025
        %v6208 = vpack.c.b16 %v6030, %v6028
        %v6209 = vpack.c.b16 %v6031, %v6029
        %v6210 = vpack.c.b16 %v6034, %v6032
        %v6211 = vpack.c.b16 %v6035, %v6033
        %v6212 = vpack.c.b16 %v6038, %v6036
        %v6213 = vpack.c.b16 %v6039, %v6037
        %v6214 = vpack.c.b16 %v6042, %v6040
        %v6215 = vpack.c.b16 %v6043, %v6041
        %v6216 = vpack.c.b16 %v6046, %v6044
        %v6217 = vpack.c.b16 %v6047, %v6045
        %v6218 = vpack.c.b16 %v6050, %v6048
        %v6219 = vpack.c.b16 %v6051, %v6049
        %v6220 = vpack.c.b16 %v6054, %v6052
        %v6221 = vpack.c.b16 %v6055, %v6053
        %v6222 = vpack.c.b16 %v6058, %v6056
        %v6223 = vpack.c.b16 %v6059, %v6057
        %v6224 = vpack.c.b16 %v6062, %v6060
        %v6225 = vpack.c.b16 %v6063, %v6061
        %v6226 = vpack.c.b16 %v6066, %v6064
        %v6227 = vpack.c.b16 %v6067, %v6065
        %v6228 = vpack.c.b16 %v6070, %v6068
        %v6229 = vpack.c.b16 %v6071, %v6069
        %v6230 = vpack.c.b16 %v6074, %v6072
        %v6231 = vpack.c.b16 %v6075, %v6073
        %v6232 = vpack.c.b16 %v6078, %v6076
        %v6233 = vpack.c.b16 %v6079, %v6077
        %v6234 = vpack.c.b16 %v6082, %v6080
        %v6235 = vpack.c.b16 %v6083, %v6081
        %v6236 = vpack.c.b16 %v6086, %v6084
        %v6237 = vpack.c.b16 %v6087, %v6085
        %v6238 = vpack.c.b16 %v6090, %v6088
        %v6239 = vpack.c.b16 %v6091, %v6089
        %v6240 = vpack.c.b16 %v6094, %v6092
        %v6241 = vpack.c.b16 %v6095, %v6093
        %v6242 = vpack.c.b16 %v6098, %v6096
        %v6243 = vpack.c.b16 %v6099, %v6097
        %6388 = vmatprep.subr.bf16.mxu0 %v6101
        %6389 = vmatpush1.bf16.msra.mxu0 %v6100
        %6390 = vmatprep.subr.bf16.mxu0 %v6103
        %6391 = vmatpush1.bf16.msra.mxu0 %v6102
        %6392 = vmatprep.subr.bf16.mxu0 %v6105
        %6393 = vmatpush1.bf16.msra.mxu0 %v6104
        %6394 = vmatprep.subr.bf16.mxu0 %v6107
        %6395 = vmatpush1.bf16.msra.mxu0 %v6106
        %6396 = vmatprep.subr.bf16.mxu0 %v6109
        %6397 = vmatpush1.bf16.msra.mxu0 %v6108
        %6398 = vmatprep.subr.bf16.mxu0 %v6111
        %6399 = vmatpush1.bf16.msra.mxu0 %v6110
        %6400 = vmatprep.subr.bf16.mxu0 %v6113
        %6401 = vmatpush1.bf16.msra.mxu0 %v6112
        %6402 = vmatprep.subr.bf16.mxu0 %v6115
        %6403 = vmatpush1.bf16.msra.mxu0 %v6114
        %6404 = vmatprep.subr.bf16.mxu0 %v6117
        %6405 = vmatpush1.bf16.msra.mxu0 %v6116
        %6406 = vmatprep.subr.bf16.mxu0 %v6119
        %6407 = vmatpush1.bf16.msra.mxu0 %v6118
        %6408 = vmatprep.subr.bf16.mxu0 %v6121
        %6409 = vmatpush1.bf16.msra.mxu0 %v6120
        %6410 = vmatprep.subr.bf16.mxu0 %v6123
        %6411 = vmatpush1.bf16.msra.mxu0 %v6122
        %6412 = vmatprep.subr.bf16.mxu0 %v6125
        %6413 = vmatpush1.bf16.msra.mxu0 %v6124
        %6414 = vmatprep.subr.bf16.mxu0 %v6127
        %6415 = vmatpush1.bf16.msra.mxu0 %v6126
        %6416 = vmatprep.subr.bf16.mxu0 %v6129
        %6417 = vmatpush1.bf16.msra.mxu0 %v6128
        %6418 = vmatprep.subr.bf16.mxu0 %v6131
        %6419 = vmatpush1.bf16.msra.mxu0 %v6130
        %6420 = vmatprep.mubr.bf16.mxu0 %v5633
        %6421 = vmatmul.mubr.bf16.gmra.mrb[0].mxu0 %v5625
        %v6422 = vpop.f32.mrb[0].mxu0
        %v6423 = vadd.f32 %v5608, %v6422
        %v6424 = vpop.f32.mrb[0].mxu0
        %v6425 = vadd.f32 %v5612, %v6424
        %v6426 = vpop.f32.mrb[0].mxu0
        %v6427 = vpop.f32.mrb[0].mxu0
        %6428 = vdwg.mxu0
        %6429 = vmatprep.subr.bf16.mxu0 %v6133
        %6430 = vmatpush1.bf16.msra.mxu0 %v6132
        %6431 = vmatprep.subr.bf16.mxu0 %v6135
        %6432 = vmatpush1.bf16.msra.mxu0 %v6134
        %6433 = vmatprep.subr.bf16.mxu0 %v6137
        %6434 = vmatpush1.bf16.msra.mxu0 %v6136
        %6435 = vmatprep.subr.bf16.mxu0 %v6139
        %6436 = vmatpush1.bf16.msra.mxu0 %v6138
        %6437 = vmatprep.subr.bf16.mxu0 %v6141
        %6438 = vmatpush1.bf16.msra.mxu0 %v6140
        %6439 = vmatprep.subr.bf16.mxu0 %v6143
        %6440 = vmatpush1.bf16.msra.mxu0 %v6142
        %6441 = vmatprep.subr.bf16.mxu0 %v6145
        %6442 = vmatpush1.bf16.msra.mxu0 %v6144
        %6443 = vmatprep.subr.bf16.mxu0 %v6147
        %6444 = vmatpush1.bf16.msra.mxu0 %v6146
        %6445 = vmatprep.subr.bf16.mxu0 %v6149
        %6446 = vmatpush1.bf16.msra.mxu0 %v6148
        %6447 = vmatprep.subr.bf16.mxu0 %v6151
        %6448 = vmatpush1.bf16.msra.mxu0 %v6150
        %6449 = vmatprep.subr.bf16.mxu0 %v6153
        %6450 = vmatpush1.bf16.msra.mxu0 %v6152
        %6451 = vmatprep.subr.bf16.mxu0 %v6155
        %6452 = vmatpush1.bf16.msra.mxu0 %v6154
        %6453 = vmatprep.subr.bf16.mxu0 %v6157
        %6454 = vmatpush1.bf16.msra.mxu0 %v6156
        %6455 = vmatprep.subr.bf16.mxu0 %v6159
        %6456 = vmatpush1.bf16.msra.mxu0 %v6158
        %6457 = vmatprep.subr.bf16.mxu0 %v6161
        %6458 = vmatpush1.bf16.msra.mxu0 %v6160
        %6459 = vmatprep.subr.bf16.mxu0 %v6163
        %6460 = vmatpush1.bf16.msra.mxu0 %v6162
        %6461 = vmatprep.mubr.bf16.mxu0 %v5634
        %6462 = vmatmul.mubr.bf16.gmra.mrb[0].mxu0 %v5632
        %v6463 = vpop.f32.mrb[0].mxu0
        %v6464 = vadd.f32 %v6423, %v6463
        %v6465 = vpop.f32.mrb[0].mxu0
        %v6466 = vadd.f32 %v6425, %v6465
        %v6467 = vpop.f32.mrb[0].mxu0
        %v6468 = vpop.f32.mrb[0].mxu0
        %6469 = vdwg.mxu0
        %6470 = vmatprep.subr.bf16.mxu0 %v6165
        %6471 = vmatpush1.bf16.msra.mxu0 %v6164
        %6472 = vmatprep.subr.bf16.mxu0 %v6167
        %6473 = vmatpush1.bf16.msra.mxu0 %v6166
        %6474 = vmatprep.subr.bf16.mxu0 %v6169
        %6475 = vmatpush1.bf16.msra.mxu0 %v6168
        %6476 = vmatprep.subr.bf16.mxu0 %v6171
        %6477 = vmatpush1.bf16.msra.mxu0 %v6170
        %6478 = vmatprep.subr.bf16.mxu0 %v6173
        %6479 = vmatpush1.bf16.msra.mxu0 %v6172
        %6480 = vmatprep.subr.bf16.mxu0 %v6175
        %6481 = vmatpush1.bf16.msra.mxu0 %v6174
        %6482 = vmatprep.subr.bf16.mxu0 %v6177
        %6483 = vmatpush1.bf16.msra.mxu0 %v6176
        %6484 = vmatprep.subr.bf16.mxu0 %v6179
        %6485 = vmatpush1.bf16.msra.mxu0 %v6178
        %6486 = vmatprep.subr.bf16.mxu0 %v6181
        %6487 = vmatpush1.bf16.msra.mxu0 %v6180
        %6488 = vmatprep.subr.bf16.mxu0 %v6183
        %6489 = vmatpush1.bf16.msra.mxu0 %v6182
        %6490 = vmatprep.subr.bf16.mxu0 %v6185
        %6491 = vmatpush1.bf16.msra.mxu0 %v6184
        %6492 = vmatprep.subr.bf16.mxu0 %v6187
        %6493 = vmatpush1.bf16.msra.mxu0 %v6186
        %6494 = vmatprep.subr.bf16.mxu0 %v6189
        %6495 = vmatpush1.bf16.msra.mxu0 %v6188
        %6496 = vmatprep.subr.bf16.mxu0 %v6191
        %6497 = vmatpush1.bf16.msra.mxu0 %v6190
        %6498 = vmatprep.subr.bf16.mxu0 %v6193
        %6499 = vmatpush1.bf16.msra.mxu0 %v6192
        %6500 = vmatprep.subr.bf16.mxu0 %v6195
        %6501 = vmatpush1.bf16.msra.mxu0 %v6194
        %6502 = vmatprep.mubr.bf16.mxu0 %v5650
        %6503 = vmatmul.mubr.bf16.gmra.mrb[0].mxu0 %v5642
        %v6504 = vpop.f32.mrb[0].mxu0
        %v6505 = vadd.f32 %v6464, %v6504
        %v6506 = vpop.f32.mrb[0].mxu0
        %v6507 = vadd.f32 %v6466, %v6506
        %v6508 = vpop.f32.mrb[0].mxu0
        %v6509 = vpop.f32.mrb[0].mxu0
        %6510 = vdwg.mxu0
        %6511 = vmatprep.subr.bf16.mxu0 %v6197
        %6512 = vmatpush1.bf16.msra.mxu0 %v6196
        %6513 = vmatprep.subr.bf16.mxu0 %v6199
        %6514 = vmatpush1.bf16.msra.mxu0 %v6198
        %6515 = vmatprep.subr.bf16.mxu0 %v6201
        %6516 = vmatpush1.bf16.msra.mxu0 %v6200
        %6517 = vmatprep.subr.bf16.mxu0 %v6203
        %6518 = vmatpush1.bf16.msra.mxu0 %v6202
        %6519 = vmatprep.subr.bf16.mxu0 %v6205
        %6520 = vmatpush1.bf16.msra.mxu0 %v6204
        %6521 = vmatprep.subr.bf16.mxu0 %v6207
        %6522 = vmatpush1.bf16.msra.mxu0 %v6206
        %6523 = vmatprep.subr.bf16.mxu0 %v6209
        %6524 = vmatpush1.bf16.msra.mxu0 %v6208
        %6525 = vmatprep.subr.bf16.mxu0 %v6211
        %6526 = vmatpush1.bf16.msra.mxu0 %v6210
        %6527 = vmatprep.subr.bf16.mxu0 %v6213
        %6528 = vmatpush1.bf16.msra.mxu0 %v6212
        %6529 = vmatprep.subr.bf16.mxu0 %v6215
        %6530 = vmatpush1.bf16.msra.mxu0 %v6214
        %6531 = vmatprep.subr.bf16.mxu0 %v6217
        %6532 = vmatpush1.bf16.msra.mxu0 %v6216
        %6533 = vmatprep.subr.bf16.mxu0 %v6219
        %6534 = vmatpush1.bf16.msra.mxu0 %v6218
        %6535 = vmatprep.subr.bf16.mxu0 %v6221
        %6536 = vmatpush1.bf16.msra.mxu0 %v6220
        %6537 = vmatprep.subr.bf16.mxu0 %v6223
        %6538 = vmatpush1.bf16.msra.mxu0 %v6222
        %6539 = vmatprep.subr.bf16.mxu0 %v6225
        %6540 = vmatpush1.bf16.msra.mxu0 %v6224
        %6541 = vmatprep.subr.bf16.mxu0 %v6227
        %6542 = vmatpush1.bf16.msra.mxu0 %v6226
        %6543 = vmatprep.mubr.bf16.mxu0 %v5651
        %6544 = vmatmul.mubr.bf16.gmra.mrb[0].mxu0 %v5649
        %v6545 = vpop.f32.mrb[0].mxu0
        %v6546 = vadd.f32 %v6505, %v6545
        %v6547 = vpop.f32.mrb[0].mxu0
        %v6548 = vadd.f32 %v6507, %v6547
        %v6549 = vpop.f32.mrb[0].mxu0
        %v6550 = vpop.f32.mrb[0].mxu0
        %6551 = vdwg.mxu0
        %6552 = vmatprep.subr.bf16.mxu0 %v6229
        %6553 = vmatpush1.bf16.msra.mxu0 %v6228
        %6554 = vmatprep.subr.bf16.mxu0 %v6231
        %6555 = vmatpush1.bf16.msra.mxu0 %v6230
        %6556 = vmatprep.subr.bf16.mxu0 %v6233
        %6557 = vmatpush1.bf16.msra.mxu0 %v6232
        %6558 = vmatprep.subr.bf16.mxu0 %v6235
        %6559 = vmatpush1.bf16.msra.mxu0 %v6234
        %6560 = vmatprep.subr.bf16.mxu0 %v6237
        %6561 = vmatpush1.bf16.msra.mxu0 %v6236
        %6562 = vmatprep.subr.bf16.mxu0 %v6239
        %6563 = vmatpush1.bf16.msra.mxu0 %v6238
        %6564 = vmatprep.subr.bf16.mxu0 %v6241
        %6565 = vmatpush1.bf16.msra.mxu0 %v6240
        %6566 = vmatprep.subr.bf16.mxu0 %v6243
        %6567 = vmatpush1.bf16.msra.mxu0 %v6242
        %6568 = vmatprep.subr.bf16.mxu0 0
        %6569 = vmatpush1.bf16.msra.mxu0 0
        %6570 = vmatprep.subr.bf16.mxu0 0
        %6571 = vmatpush1.bf16.msra.mxu0 0
        %6572 = vmatprep.subr.bf16.mxu0 0
        %6573 = vmatpush1.bf16.msra.mxu0 0
        %6574 = vmatprep.subr.bf16.mxu0 0
        %6575 = vmatpush1.bf16.msra.mxu0 0
        %6576 = vmatprep.subr.bf16.mxu0 0
        %6577 = vmatpush1.bf16.msra.mxu0 0
        %6578 = vmatprep.subr.bf16.mxu0 0
        %6579 = vmatpush1.bf16.msra.mxu0 0
        %6580 = vmatprep.subr.bf16.mxu0 0
        %6581 = vmatpush1.bf16.msra.mxu0 0
        %6582 = vmatprep.subr.bf16.mxu0 0
        %6583 = vmatpush1.bf16.msra.mxu0 0
        %6584 = vmatprep.mubr.bf16.mxu0 0
        %6585 = vmatmul.mubr.bf16.gmra.mrb[0].mxu0 %v5658
        %v6586 = vpop.f32.mrb[0].mxu0
        %v6587 = vadd.f32 %v6546, %v6586
        %v6588 = vpop.f32.mrb[0].mxu0
        %v6589 = vadd.f32 %v6548, %v6588
        %v6590 = vpop.f32.mrb[0].mxu0
        %v6591 = vpop.f32.mrb[0].mxu0
        %6592 = vdwg.mxu0
        %v6593 = vmax.f32 %v6587, %v6589
        %v6594 = vsel %vm5229, %v6593, 0.0
        %v6595 = vrot.slane %v6594, 4
        %v6596 = vadd.f32 %v6594, %v6595
        %v6597 = vrot.slane %v6596, 2
        %v6598 = vadd.f32 %v6596, %v6597
        %v6599 = vrot.slane %v6598, 1
        %v6600 = vadd.f32 %v6598, %v6599
        %v6601 = vmul.f32 %v6600, 0.25
        %v6602 = vld [vmem:[#allocation25] sm:$0xff]
        %v6603 = vld [vmem:[#allocation25 + $0x8] sm:$0xff]
        %v6604 = vld [vmem:[#allocation25 + $0x10] sm:$0xff]
        %v6605 = vld [vmem:[#allocation25 + $0x18] sm:$0xff]
        %v6606 = vld [vmem:[#allocation25 + $0x20] sm:$0xff]
        %v6607 = vld [vmem:[#allocation25 + $0x28] sm:$0xff]
        %v6608 = vld [vmem:[#allocation25 + $0x30] sm:$0xff]
        %v6609 = vld [vmem:[#allocation25 + $0x38] sm:$0xff]
        %v6610 = vld [vmem:[#allocation25 + $0x40] sm:$0xff]
        %v6611 = vld [vmem:[#allocation25 + $0x48] sm:$0xff]
        %v6612 = vld [vmem:[#allocation25 + $0x50] sm:$0xff]
        %v6613 = vld [vmem:[#allocation25 + $0x58] sm:$0xff]
        %v6614 = vld [vmem:[#allocation25 + $0x60] sm:$0xff]
        %v6615 = vld [vmem:[#allocation25 + $0x68] sm:$0xff]
        %v6616 = vld [vmem:[#allocation25 + $0x70] sm:$0xff]
        %v6617 = vld [vmem:[#allocation25 + $0x78] sm:$0xff]
        %v6618 = vld [vmem:[#allocation27] sm:$0x1]
        %6619 = vmatprep.subr.mxu0 0.0
        %6620 = vmatpush1.msra.mxu0 %v6602
        %6621 = vmatprep.subr.mxu0 0.0
        %6622 = vmatpush1.msra.mxu0 %v6603
        %6623 = vmatprep.subr.mxu0 0.0
        %6624 = vmatpush1.msra.mxu0 %v6604
        %6625 = vmatprep.subr.mxu0 0.0
        %6626 = vmatpush1.msra.mxu0 %v6605
        %6627 = vmatprep.subr.mxu0 0.0
        %6628 = vmatpush1.msra.mxu0 %v6606
        %6629 = vmatprep.subr.mxu0 0.0
        %6630 = vmatpush1.msra.mxu0 %v6607
        %6631 = vmatprep.subr.mxu0 0.0
        %6632 = vmatpush1.msra.mxu0 %v6608
        %6633 = vmatprep.subr.mxu0 0.0
        %6634 = vmatpush1.msra.mxu0 %v6609
        %6635 = vmatprep.subr.mxu0 0.0
        %6636 = vmatpush1.msra.mxu0 %v6610
        %6637 = vmatprep.subr.mxu0 0.0
        %6638 = vmatpush1.msra.mxu0 %v6611
        %6639 = vmatprep.subr.mxu0 0.0
        %6640 = vmatpush1.msra.mxu0 %v6612
        %6641 = vmatprep.subr.mxu0 0.0
        %6642 = vmatpush1.msra.mxu0 %v6613
        %6643 = vmatprep.subr.mxu0 0.0
        %6644 = vmatpush1.msra.mxu0 %v6614
        %6645 = vmatprep.subr.mxu0 0.0
        %6646 = vmatpush1.msra.mxu0 %v6615
        %6647 = vmatprep.subr.mxu0 0.0
        %6648 = vmatpush1.msra.mxu0 %v6616
        %6649 = vmatprep.subr.mxu0 0.0
        %6650 = vmatpush1.msra.mxu0 %v6617
        %6651 = vmatprep.subr.mxu0 0.0
        %6652 = vmatpush1.msra.mxu0 0.0
        %6653 = vmatprep.subr.mxu0 0.0
        %6654 = vmatpush1.msra.mxu0 0.0
        %6655 = vmatprep.subr.mxu0 0.0
        %6656 = vmatpush1.msra.mxu0 0.0
        %6657 = vmatprep.subr.mxu0 0.0
        %6658 = vmatpush1.msra.mxu0 0.0
        %6659 = vmatprep.subr.mxu0 0.0
        %6660 = vmatpush1.msra.mxu0 0.0
        %6661 = vmatprep.subr.mxu0 0.0
        %6662 = vmatpush1.msra.mxu0 0.0
        %6663 = vmatprep.subr.mxu0 0.0
        %6664 = vmatpush1.msra.mxu0 0.0
        %6665 = vmatprep.subr.mxu0 0.0
        %6666 = vmatpush1.msra.mxu0 0.0
        %6667 = vmatprep.subr.mxu0 0.0
        %6668 = vmatpush1.msra.mxu0 0.0
        %6669 = vmatprep.subr.mxu0 0.0
        %6670 = vmatpush1.msra.mxu0 0.0
        %6671 = vmatprep.subr.mxu0 0.0
        %6672 = vmatpush1.msra.mxu0 0.0
        %6673 = vmatprep.subr.mxu0 0.0
        %6674 = vmatpush1.msra.mxu0 0.0
        %6675 = vmatprep.subr.mxu0 0.0
        %6676 = vmatpush1.msra.mxu0 0.0
        %6677 = vmatprep.subr.mxu0 0.0
        %6678 = vmatpush1.msra.mxu0 0.0
        %6679 = vmatprep.subr.mxu0 0.0
        %6680 = vmatpush1.msra.mxu0 0.0
        %6681 = vmatprep.subr.mxu0 0.0
        %6682 = vmatpush1.msra.mxu0 0.0
        %6683 = vmatprep.mubr.f32.mxu0 0.0
        %6684 = vmatmul.mubr.f32.gmra.mrb[0].mxu0 %v6601
        %v6685 = vpop.f32.mrb[0].mxu0
        %v6686 = vadd.f32 %v6618, %v6685
        %v6687 = vpop.f32.mrb[0].mxu0
        %6688 = vdwg.mxu0
        %vm6689 = vcmask 8192
        %6690 = vst.msk [vmem:[%s538] sm:$0x1] %vm6689, %v6686
        %s6691 = sand.u32 %s277, 1
        %s6692 = scalar_lea.sflag [#allocation12], %s6691
        %s6693 = sand.u32 %s277, 1
        %s6694 = scalar_lea.vmem [#allocation28], %s6693
        // Predicated region
        $region109: #{lfcc_lcnn_forward.1} parent=63 // pred_check
          %p6695 = pneg %p287
        $region110: #{lfcc_lcnn_forward.1} parent=63 // pred_check_branch
          %6697 = sbr.rel (%p6695) target = $region112
        $region111: #{lfcc_lcnn_forward.1} parent=63 // pred_region
          %s6699 = ssub.s32 16, 16
          %6700 = vsyncadd %s6692, %s6699
          %s6701 = smul.addr %s33, 16
          %s6702 = scalar_lea.hbm %s11, %s6701
          %s6704 = sshll.u32 %s6694, 4
          %s6705 = int_to_ptr.vmem [resolvable:$true] %s6704
          %6707 = dma.vmem_to_hbm [thread:$0]  %s6705, 16, %s6702, %s6692
        $region112: #{lfcc_lcnn_forward.1} parent=63 // pred_fallthru
          _
      $region64: #{lfcc_lcnn_forward.1} parent=5 // pred_fallthru
        _
      %p6708 = scmp.le.s32.totalorder 2, %s28
      // Predicated region
      $region113: #{lfcc_lcnn_forward.1} parent=5 // pred_check
        %p6709 = pneg %p6708
      $region114: #{lfcc_lcnn_forward.1} parent=5 // pred_check_branch
        %6711 = sbr.rel (%p6709) target = $region116
      $region115: #{lfcc_lcnn_forward.1} parent=5 // pred_region
        %s6712 = ssub.s32 %s28, 2
        // Predicated region
        $region117: #{lfcc_lcnn_forward.1} parent=115 // pred_check
          %p6713 = pneg %p293
        $region118: #{lfcc_lcnn_forward.1} parent=115 // pred_check_branch
          %6715 = sbr.rel (%p6713) target = $region120
        $region119: #{lfcc_lcnn_forward.1} parent=115 // pred_region
          %s6716 = sand.u32 %s278, 1
          %s6717 = scalar_lea.sflag [#allocation12], %s6716
          %s6718 = sand.u32 %s278, 1
          %s6719 = scalar_lea.vmem [#allocation28], %s6718
          %6720 = dma.done %s6717, 16
        $region120: #{lfcc_lcnn_forward.1} parent=115 // pred_fallthru
          _
      $region116: #{lfcc_lcnn_forward.1} parent=5 // pred_fallthru
        _
    $region6: #{lfcc_lcnn_forward.1} parent=1 // loop_footer
      %s32 = sadd.s32 1, %s28
    $region7: #{lfcc_lcnn_forward.1} parent=1 // loop_footer_branch
      %27 = sbr.rel target = $region3
    $region8: #{lfcc_lcnn_forward.1} parent=1 // loop_exit
      _
    %6721 = vsyncpa [#allocation11], 1
    %s6722 = scalar_lea.sflag [#allocation11], 1
    %6723 = vsyncpa %s6722, 1
    %6724 = vsyncpa [#allocation14], 1
    %6725 = vsyncpa [#allocation17], 1
    %6726 = vsyncpa [#allocation20], 1
    %6727 = vsyncpa [#allocation23], 1
    %6728 = vsyncpa [#allocation26], 1
    %6729 = vsyncpa [#allocation12], 1
    %s6730 = scalar_lea.sflag [#allocation12], 1
    %6731 = vsyncpa %s6730, 1

</llo_original>
